<compile_context>
chip_gen: v6e
topology: v6e:2x2x1
jax: 0.10.0
libtpu: 0.0.40
codegen_flags: <defaults>
</compile_context>

<pallas_src>
import jax
import jax.numpy as jnp
import numpy as np
from jax import lax
from jax.experimental import pallas as pl
from jax.experimental.pallas import tpu as pltpu

EPS = 1e-5
LANE = 128
VMEM_LIMIT = 32 * 1024 * 1024


def _rup(n, m=LANE):
    return ((n + m - 1) // m) * m


def _compiler_params():
    return pltpu.CompilerParams(dimension_semantics=("parallel",),
                                vmem_limit_bytes=VMEM_LIMIT)


def _full_spec(shape):
    nd = len(shape)
    return pl.BlockSpec(shape, lambda n, _nd=nd: (0,) * _nd)


# ------------------------------- kernels ----------------------------------- #
def _build_patches(load_tap, patch_ref, taps, rows, c):
    """In-VMEM im2col: each shifted view becomes a 128-lane-aligned column slab."""
    for k, (kh, kw) in enumerate(taps):
        patch_ref[:, k * c:(k + 1) * c] = load_tap(kh, kw).reshape(rows, c)


def conv1_kernel(xpad_ref, w1_ref, b1_ref, a1_ref, st1_ref, patch_ref):
    """relu(conv1(x) + b1) for one image + per-image BN1 partial stats."""
    _, H, W, C = a1_ref.shape
    ci = xpad_ref.shape[3]
    taps = [(kh, kw) for kh in range(3) for kw in range(3)]
    _build_patches(lambda kh, kw: xpad_ref[0, kh:kh + H, kw:kw + W, :],
                   patch_ref, taps, H * W, ci)
    acc = jnp.dot(patch_ref[...], w1_ref[...], preferred_element_type=jnp.float32)
    h = jnp.maximum(acc + b1_ref[...], 0.0)                       # (H*W, C)
    a1_ref[...] = h.reshape(1, H, W, C)
    st1_ref[0, 0:1, :] = jnp.sum(h, axis=0, keepdims=True)
    st1_ref[0, 1:2, :] = jnp.sum(h * h, axis=0, keepdims=True)


def conv2_kernel(a1_ref, t_ref, wt_ref, bt_ref, sc1_ref, sh1_ref, w2_ref, b2_ref,
                 a2_ref, st2_ref, pad_ref, patch_ref):
    """bnorm1-apply + time-emb add + relu(conv2 + b2) + BN2 partial stats."""
    _, H, W, C = a1_ref.shape
    # time embedding, computed once per batch element (not per pixel)
    te = jnp.maximum(
        jnp.dot(t_ref[0], wt_ref[...], preferred_element_type=jnp.float32)
        + bt_ref[...], 0.0)                                        # (1, C)
    h = a1_ref[0].reshape(H * W, C) * sc1_ref[...] + sh1_ref[...] + te
    # zero-padded halo for the 3x3 conv, built in VMEM (never round-trips HBM)
    pad_ref[...] = jnp.zeros(pad_ref.shape, pad_ref.dtype)
    pad_ref[1:H + 1, 1:W + 1, :] = h.reshape(H, W, C)
    taps = [(kh, kw) for kh in range(3) for kw in range(3)]
    _build_patches(lambda kh, kw: pad_ref[kh:kh + H, kw:kw + W, :],
                   patch_ref, taps, H * W, C)
    acc = jnp.dot(patch_ref[...], w2_ref[...], preferred_element_type=jnp.float32)
    h2 = jnp.maximum(acc + b2_ref[...], 0.0)
    a2_ref[...] = h2.reshape(1, H, W, C)
    st2_ref[0, 0:1, :] = jnp.sum(h2, axis=0, keepdims=True)
    st2_ref[0, 1:2, :] = jnp.sum(h2 * h2, axis=0, keepdims=True)


def transform_kernel(a2ph_ref, sc2_ref, sh2_ref, w4_ref, b4_ref, y_ref,
                     pad_ref, patch_ref):
    """bnorm2-apply fused with Conv2d(4, stride=2, pad=1) via phase decomposition."""
    _, _, Hh, Wh, C = a2ph_ref.shape
    _, Ho, Wo, _ = y_ref.shape
    pad_ref[...] = jnp.zeros(pad_ref.shape, pad_ref.dtype)
    # Phase plane (p, q) holds pad(h2,1)[2u+p, 2v+q]; its interior is a2's
    # phase (1-p, 1-q) normalized with the bnorm2 affine; borders stay zero.
    for p in (0, 1):
        for q in (0, 1):
            src = 2 * (1 - p) + (1 - q)
            hph = a2ph_ref[0, src] * sc2_ref[...] + sh2_ref[...]   # (Hh, Wh, C)
            pad_ref[2 * p + q, 1 - p:1 - p + Hh, 1 - q:1 - q + Wh, :] = hph
    # 4x4 / stride-2 conv == four unstrided 2x2 convs over the phase planes.
    k = 0
    for p in (0, 1):
        for q in (0, 1):
            for ah in (0, 1):
                for aw in (0, 1):
                    tap = pad_ref[2 * p + q, ah:ah + Ho, aw:aw + Wo, :]
                    patch_ref[:, k * C:(k + 1) * C] = tap.reshape(Ho * Wo, C)
                    k += 1
    y = jnp.dot(patch_ref[...], w4_ref[...], preferred_element_type=jnp.float32)
    y_ref[...] = (y + b4_ref[...]).reshape(1, Ho, Wo, C)


# --------------------------- pallas_call wrappers --------------------------- #
def _stage1(xpad, w1, b1, H, W, cpo):
    N, Hp, Wp, ci = xpad.shape
    return pl.pallas_call(
        conv1_kernel,
        grid=(N,),
        in_specs=[
            pl.BlockSpec((1, Hp, Wp, ci), lambda n: (n, 0, 0, 0)),
            _full_spec(w1.shape),
            _full_spec(b1.shape),
        ],
        out_specs=(
            pl.BlockSpec((1, H, W, cpo), lambda n: (n, 0, 0, 0)),
            pl.BlockSpec((1, 2, cpo), lambda n: (n, 0, 0)),
        ),
        out_shape=(
            jax.ShapeDtypeStruct((N, H, W, cpo), jnp.float32),
            jax.ShapeDtypeStruct((N, 2, cpo), jnp.float32),
        ),
        scratch_shapes=[pltpu.VMEM((H * W, 9 * ci), jnp.float32)],
        compiler_params=_compiler_params(),
    )(xpad, w1, b1)


def _stage2(a1, t3, wt, bt, sc1, sh1, w2, b2):
    N, H, W, C = a1.shape
    per_img = pl.BlockSpec((1, H, W, C), lambda n: (n, 0, 0, 0))
    return pl.pallas_call(
        conv2_kernel,
        grid=(N,),
        in_specs=[
            per_img,
            pl.BlockSpec((1, 1, t3.shape[2]), lambda n: (n, 0, 0)),
            _full_spec(wt.shape), _full_spec(bt.shape),
            _full_spec(sc1.shape), _full_spec(sh1.shape),
            _full_spec(w2.shape), _full_spec(b2.shape),
        ],
        out_specs=(
            per_img,
            pl.BlockSpec((1, 2, C), lambda n: (n, 0, 0)),
        ),
        out_shape=(
            jax.ShapeDtypeStruct((N, H, W, C), jnp.float32),
            jax.ShapeDtypeStruct((N, 2, C), jnp.float32),
        ),
        scratch_shapes=[
            pltpu.VMEM((H + 2, W + 2, C), jnp.float32),
            pltpu.VMEM((H * W, 9 * C), jnp.float32),
        ],
        compiler_params=_compiler_params(),
    )(a1, t3, wt, bt, sc1, sh1, w2, b2)


def _stage3(a2ph, sc2, sh2, w4, b4):
    N, _, Hh, Wh, C = a2ph.shape
    Ho, Wo = Hh, Wh
    return pl.pallas_call(
        transform_kernel,
        grid=(N,),
        in_specs=[
            pl.BlockSpec((1, 4, Hh, Wh, C), lambda n: (n, 0, 0, 0, 0)),
            _full_spec(sc2.shape), _full_spec(sh2.shape),
            _full_spec(w4.shape), _full_spec(b4.shape),
        ],
        out_specs=pl.BlockSpec((1, Ho, Wo, C), lambda n: (n, 0, 0, 0)),
        out_shape=jax.ShapeDtypeStruct((N, Ho, Wo, C), jnp.float32),
        scratch_shapes=[
            pltpu.VMEM((4, Hh + 1, Wh + 1, C), jnp.float32),
            pltpu.VMEM((Ho * Wo, 16 * C), jnp.float32),
        ],
        compiler_params=_compiler_params(),
    )(a2ph, sc2, sh2, w4, b4)


# --------------------------------- glue ------------------------------------ #
def block_forward(x_nchw, t, p):
    """Pallas implementation of Block.forward (up=False)."""
    x = jnp.transpose(x_nchw, (0, 2, 3, 1)).astype(jnp.float32)    # NHWC
    N, H, W, ci = x.shape
    co = p["conv1_b"].shape[-1]
    td = p["time_w"].shape[0]
    assert H % 2 == 0 and W % 2 == 0
    cpi, cpo, tpd = _rup(ci), _rup(co), _rup(td)
    M = float(N * H * W)

    def pad_axis(a, axis, size):
        pads = [(0, 0)] * a.ndim
        pads[axis] = (0, size - a.shape[axis])
        return jnp.pad(a, pads)

    # layout plumbing (once, in XLA): lane-pad channels to 128 and pack conv
    # weights as single (K*K*Cin, Cout) matrices.
    w1 = pad_axis(pad_axis(p["conv1_w"], 2, cpi), 3, cpo).reshape(9 * cpi, cpo)
    b1 = pad_axis(p["conv1_b"].reshape(1, -1), 1, cpo)
    w2 = pad_axis(pad_axis(p["conv2_w"], 2, cpo), 3, cpo).reshape(9 * cpo, cpo)
    b2 = pad_axis(p["conv2_b"].reshape(1, -1), 1, cpo)
    wt = pad_axis(pad_axis(p["time_w"], 0, tpd), 1, cpo)
    bt = pad_axis(p["time_b"].reshape(1, -1), 1, cpo)
    w4h = pad_axis(pad_axis(p["trans_w"], 2, cpo), 3, cpo)          # (4,4,cpo,cpo)
    w4 = jnp.concatenate(
        [w4h[2 * ah + ph, 2 * aw + pw]
         for ph in (0, 1) for pw in (0, 1) for ah in (0, 1) for aw in (0, 1)],
        axis=0)                                                     # (16*cpo, cpo)
    b4 = pad_axis(p["trans_b"].reshape(1, -1), 1, cpo)
    g1 = pad_axis(p["bn1_g"].reshape(1, -1), 1, cpo)[0]
    be1 = pad_axis(p["bn1_b"].reshape(1, -1), 1, cpo)[0]
    g2 = pad_axis(p["bn2_g"].reshape(1, -1), 1, cpo)[0]
    be2 = pad_axis(p["bn2_b"].reshape(1, -1), 1, cpo)[0]

    xpad = jnp.pad(x, ((0, 0), (1, 1), (1, 1), (0, cpi - ci)))
    t3 = pad_axis(t.astype(jnp.float32), 1, tpd).reshape(N, 1, tpd)

    # stage 1: relu(conv1(x)) + BN1 partial stats
    a1, st1 = _stage1(xpad, w1, b1, H, W, cpo)
    mean1 = jnp.sum(st1[:, 0, :], axis=0) / M
    var1 = jnp.sum(st1[:, 1, :], axis=0) / M - mean1 * mean1
    sc1 = g1 * lax.rsqrt(var1 + EPS)
    sh1 = be1 - mean1 * sc1

    # stage 2: bnorm1 + time-emb + relu(conv2) + BN2 partial stats
    a2, st2 = _stage2(a1, t3, wt, bt, sc1.reshape(1, cpo), sh1.reshape(1, cpo),
                      w2, b2)
    mean2 = jnp.sum(st2[:, 0, :], axis=0) / M
    var2 = jnp.sum(st2[:, 1, :], axis=0) / M - mean2 * mean2
    sc2 = g2 * lax.rsqrt(var2 + EPS)
    sh2 = be2 - mean2 * sc2

    # stage 3: bnorm2 + strided transform conv (phase-decomposed, no 16x im2col)
    a2ph = jnp.stack([a2[:, ph::2, pw::2, :]
                      for ph in (0, 1) for pw in (0, 1)], axis=1)
    y = _stage3(a2ph, sc2.reshape(1, cpo), sh2.reshape(1, cpo), w4, b4)
    return jnp.transpose(y[..., :co], (0, 3, 1, 2))                 # NCHW


# ------------------------------ reference ----------------------------------- #
def block_reference(x_nchw, t, p):
    """Pure-JAX reference of the same forward pass (verification only)."""
    x = jnp.transpose(x_nchw, (0, 2, 3, 1)).astype(jnp.float32)

    def conv(h, w_hwio, b, stride, pad):
        y = lax.conv_general_dilated(
            h, w_hwio, window_strides=(stride, stride),
            padding=[(pad, pad), (pad, pad)],
            dimension_numbers=("NHWC", "HWIO", "NHWC"))
        return y + b.reshape(1, 1, 1, -1)

    def bn(h, g, b):
        mean = jnp.mean(h, axis=(0, 1, 2), keepdims=True)
        var = jnp.mean((h - mean) ** 2, axis=(0, 1, 2), keepdims=True)
        return (h - mean) * lax.rsqrt(var + EPS) * g.reshape(1, 1, 1, -1) \
            + b.reshape(1, 1, 1, -1)

    h = bn(jnp.maximum(conv(x, p["conv1_w"], p["conv1_b"], 1, 1), 0.0),
           p["bn1_g"], p["bn1_b"])
    te = jnp.maximum(t @ p["time_w"] + p["time_b"], 0.0)
    h = h + te[:, None, None, :]
    h = bn(jnp.maximum(conv(h, p["conv2_w"], p["conv2_b"], 1, 1), 0.0),
           p["bn2_g"], p["bn2_b"])
    y = conv(h, p["trans_w"], p["trans_b"], 2, 1)
    return jnp.transpose(y, (0, 3, 1, 2))


def init_params(key, in_ch, out_ch, time_emb_dim):
    ks = jax.random.split(key, 10)
    n = jax.random.normal
    return {
        "conv1_w": n(ks[0], (3, 3, in_ch, out_ch), jnp.float32) * 0.2,
        "conv1_b": n(ks[1], (1, out_ch), jnp.float32) * 0.1,
        "time_w":  n(ks[2], (time_emb_dim, out_ch), jnp.float32) * 0.1,
        "time_b":  n(ks[3], (1, out_ch), jnp.float32) * 0.1,
        "conv2_w": n(ks[4], (3, 3, out_ch, out_ch), jnp.float32) * 0.2,
        "conv2_b": n(ks[5], (1, out_ch), jnp.float32) * 0.1,
        "trans_w": n(ks[6], (4, 4, out_ch, out_ch), jnp.float32) * 0.2,
        "trans_b": n(ks[7], (1, out_ch), jnp.float32) * 0.1,
        "bn1_g": 1.0 + 0.1 * n(ks[8], (1, out_ch), jnp.float32),
        "bn1_b": 0.1 * n(ks[9], (1, out_ch), jnp.float32),
        "bn2_g": jnp.ones((1, out_ch), jnp.float32),
        "bn2_b": jnp.zeros((1, out_ch), jnp.float32),
    }


if __name__ == "__main__":
    N, IN_CH, OUT_CH, H, W, T_DIM = 2, 4, 8, 16, 16, 32
    key = jax.random.PRNGKey(0)
    kx, kt, kp = jax.random.split(key, 3)
    x = jax.random.normal(kx, (N, IN_CH, H, W), jnp.float32)   # NCHW (PyTorch)
    t = jax.random.normal(kt, (N, T_DIM), jnp.float32)
    params = init_params(kp, IN_CH, OUT_CH, T_DIM)

    fwd = jax.jit(block_forward)
    out = jax.block_until_ready(fwd(x, t, params))
    ref = jax.block_until_ready(block_reference(x, t, params))

    assert out.shape == (N, OUT_CH, H // 2, W // 2), out.shape
    assert bool(jnp.all(jnp.isfinite(out)))
    np.testing.assert_allclose(np.asarray(out), np.asarray(ref),
                               rtol=2e-3, atol=2e-3)
    print("KERNEL_OK")
</pallas_src>

<mosaic_0001>
module attributes {stable_mosaic.version = 11 : i64} {
  func.func @conv1_kernel(%arg0: i32, %arg1: memref<1x18x18x128xf32, #tpu.memory_space<vmem>>, %arg2: memref<1152x128xf32, #tpu.memory_space<vmem>>, %arg3: memref<1x128xf32, #tpu.memory_space<vmem>>, %arg4: memref<1x16x16x128xf32, #tpu.memory_space<vmem>>, %arg5: memref<1x2x128xf32, #tpu.memory_space<vmem>>, %arg6: memref<256x1152xf32, #tpu.memory_space<vmem>>) attributes {dimension_semantics = [#tpu.dimension_semantics<parallel>], iteration_bounds = array<i64: 2>, scalar_prefetch = 0 : i64, scratch_operands = 1 : i64, tpu.core_type = #tpu.core_type<tc>, window_params = [{transform_indices = @transform_0, window_bounds = array<i64: 1, 18, 18, 128>}, {pipeline_mode = #tpu.pipeline_mode<synchronous>, transform_indices = @transform_1, window_bounds = array<i64: 1152, 128>}, {pipeline_mode = #tpu.pipeline_mode<synchronous>, transform_indices = @transform_2, window_bounds = array<i64: 1, 128>}, {transform_indices = @transform_3, window_bounds = array<i64: 1, 16, 16, 128>}, {transform_indices = @transform_4, window_bounds = array<i64: 1, 2, 128>}]} {
    %c0 = arith.constant 0 : index
    %c0_0 = arith.constant 0 : index
    %c0_1 = arith.constant 0 : index
    %c0_2 = arith.constant 0 : index
    %0 = vector.load %arg1[%c0, %c0_0, %c0_1, %c0_2] : memref<1x18x18x128xf32, #tpu.memory_space<vmem>>, vector<1x16x16x128xf32>
    %1 = vector.shape_cast %0 : vector<1x16x16x128xf32> to vector<16x16x128xf32>
    %2 = vector.shape_cast %1 : vector<16x16x128xf32> to vector<256x128xf32>
    %c0_3 = arith.constant 0 : index
    %c0_4 = arith.constant 0 : index
    %3 = vector.load %arg6[%c0_3, %c0_4] : memref<256x1152xf32, #tpu.memory_space<vmem>>, vector<256x128xf32>
    tpu.vector_store %arg6[%c0_3, %c0_4], %2 {strides = array<i32>} : memref<256x1152xf32, #tpu.memory_space<vmem>>, vector<256x128xf32>,
    %c0_5 = arith.constant 0 : index
    %c0_6 = arith.constant 0 : index
    %c1 = arith.constant 1 : index
    %c0_7 = arith.constant 0 : index
    %4 = vector.load %arg1[%c0_5, %c0_6, %c1, %c0_7] : memref<1x18x18x128xf32, #tpu.memory_space<vmem>>, vector<1x16x16x128xf32>
    %5 = vector.shape_cast %4 : vector<1x16x16x128xf32> to vector<16x16x128xf32>
    %6 = vector.shape_cast %5 : vector<16x16x128xf32> to vector<256x128xf32>
    %c0_8 = arith.constant 0 : index
    %c128 = arith.constant 128 : index
    %7 = vector.load %arg6[%c0_8, %c128] : memref<256x1152xf32, #tpu.memory_space<vmem>>, vector<256x128xf32>
    tpu.vector_store %arg6[%c0_8, %c128], %6 {strides = array<i32>} : memref<256x1152xf32, #tpu.memory_space<vmem>>, vector<256x128xf32>,
    %c0_9 = arith.constant 0 : index
    %c0_10 = arith.constant 0 : index
    %c2 = arith.constant 2 : index
    %c0_11 = arith.constant 0 : index
    %8 = vector.load %arg1[%c0_9, %c0_10, %c2, %c0_11] : memref<1x18x18x128xf32, #tpu.memory_space<vmem>>, vector<1x16x16x128xf32>
    %9 = vector.shape_cast %8 : vector<1x16x16x128xf32> to vector<16x16x128xf32>
    %10 = vector.shape_cast %9 : vector<16x16x128xf32> to vector<256x128xf32>
    %c0_12 = arith.constant 0 : index
    %c256 = arith.constant 256 : index
    %11 = vector.load %arg6[%c0_12, %c256] : memref<256x1152xf32, #tpu.memory_space<vmem>>, vector<256x128xf32>
    tpu.vector_store %arg6[%c0_12, %c256], %10 {strides = array<i32>} : memref<256x1152xf32, #tpu.memory_space<vmem>>, vector<256x128xf32>,
    %c0_13 = arith.constant 0 : index
    %c1_14 = arith.constant 1 : index
    %c0_15 = arith.constant 0 : index
    %c0_16 = arith.constant 0 : index
    %12 = vector.load %arg1[%c0_13, %c1_14, %c0_15, %c0_16] : memref<1x18x18x128xf32, #tpu.memory_space<vmem>>, vector<1x16x16x128xf32>
    %13 = vector.shape_cast %12 : vector<1x16x16x128xf32> to vector<16x16x128xf32>
    %14 = vector.shape_cast %13 : vector<16x16x128xf32> to vector<256x128xf32>
    %c0_17 = arith.constant 0 : index
    %c384 = arith.constant 384 : index
    %15 = vector.load %arg6[%c0_17, %c384] : memref<256x1152xf32, #tpu.memory_space<vmem>>, vector<256x128xf32>
    tpu.vector_store %arg6[%c0_17, %c384], %14 {strides = array<i32>} : memref<256x1152xf32, #tpu.memory_space<vmem>>, vector<256x128xf32>,
    %c0_18 = arith.constant 0 : index
    %c1_19 = arith.constant 1 : index
    %c1_20 = arith.constant 1 : index
    %c0_21 = arith.constant 0 : index
    %16 = vector.load %arg1[%c0_18, %c1_19, %c1_20, %c0_21] : memref<1x18x18x128xf32, #tpu.memory_space<vmem>>, vector<1x16x16x128xf32>
    %17 = vector.shape_cast %16 : vector<1x16x16x128xf32> to vector<16x16x128xf32>
    %18 = vector.shape_cast %17 : vector<16x16x128xf32> to vector<256x128xf32>
    %c0_22 = arith.constant 0 : index
    %c512 = arith.constant 512 : index
    %19 = vector.load %arg6[%c0_22, %c512] : memref<256x1152xf32, #tpu.memory_space<vmem>>, vector<256x128xf32>
    tpu.vector_store %arg6[%c0_22, %c512], %18 {strides = array<i32>} : memref<256x1152xf32, #tpu.memory_space<vmem>>, vector<256x128xf32>,
    %c0_23 = arith.constant 0 : index
    %c1_24 = arith.constant 1 : index
    %c2_25 = arith.constant 2 : index
    %c0_26 = arith.constant 0 : index
    %20 = vector.load %arg1[%c0_23, %c1_24, %c2_25, %c0_26] : memref<1x18x18x128xf32, #tpu.memory_space<vmem>>, vector<1x16x16x128xf32>
    %21 = vector.shape_cast %20 : vector<1x16x16x128xf32> to vector<16x16x128xf32>
    %22 = vector.shape_cast %21 : vector<16x16x128xf32> to vector<256x128xf32>
    %c0_27 = arith.constant 0 : index
    %c640 = arith.constant 640 : index
    %23 = vector.load %arg6[%c0_27, %c640] : memref<256x1152xf32, #tpu.memory_space<vmem>>, vector<256x128xf32>
    tpu.vector_store %arg6[%c0_27, %c640], %22 {strides = array<i32>} : memref<256x1152xf32, #tpu.memory_space<vmem>>, vector<256x128xf32>,
    %c0_28 = arith.constant 0 : index
    %c2_29 = arith.constant 2 : index
    %c0_30 = arith.constant 0 : index
    %c0_31 = arith.constant 0 : index
    %24 = vector.load %arg1[%c0_28, %c2_29, %c0_30, %c0_31] : memref<1x18x18x128xf32, #tpu.memory_space<vmem>>, vector<1x16x16x128xf32>
    %25 = vector.shape_cast %24 : vector<1x16x16x128xf32> to vector<16x16x128xf32>
    %26 = vector.shape_cast %25 : vector<16x16x128xf32> to vector<256x128xf32>
    %c0_32 = arith.constant 0 : index
    %c768 = arith.constant 768 : index
    %27 = vector.load %arg6[%c0_32, %c768] : memref<256x1152xf32, #tpu.memory_space<vmem>>, vector<256x128xf32>
    tpu.vector_store %arg6[%c0_32, %c768], %26 {strides = array<i32>} : memref<256x1152xf32, #tpu.memory_space<vmem>>, vector<256x128xf32>,
    %c0_33 = arith.constant 0 : index
    %c2_34 = arith.constant 2 : index
    %c1_35 = arith.constant 1 : index
    %c0_36 = arith.constant 0 : index
    %28 = vector.load %arg1[%c0_33, %c2_34, %c1_35, %c0_36] : memref<1x18x18x128xf32, #tpu.memory_space<vmem>>, vector<1x16x16x128xf32>
    %29 = vector.shape_cast %28 : vector<1x16x16x128xf32> to vector<16x16x128xf32>
    %30 = vector.shape_cast %29 : vector<16x16x128xf32> to vector<256x128xf32>
    %c0_37 = arith.constant 0 : index
    %c896 = arith.constant 896 : index
    %31 = vector.load %arg6[%c0_37, %c896] : memref<256x1152xf32, #tpu.memory_space<vmem>>, vector<256x128xf32>
    tpu.vector_store %arg6[%c0_37, %c896], %30 {strides = array<i32>} : memref<256x1152xf32, #tpu.memory_space<vmem>>, vector<256x128xf32>,
    %c0_38 = arith.constant 0 : index
    %c2_39 = arith.constant 2 : index
    %c2_40 = arith.constant 2 : index
    %c0_41 = arith.constant 0 : index
    %32 = vector.load %arg1[%c0_38, %c2_39, %c2_40, %c0_41] : memref<1x18x18x128xf32, #tpu.memory_space<vmem>>, vector<1x16x16x128xf32>
    %33 = vector.shape_cast %32 : vector<1x16x16x128xf32> to vector<16x16x128xf32>
    %34 = vector.shape_cast %33 : vector<16x16x128xf32> to vector<256x128xf32>
    %c0_42 = arith.constant 0 : index
    %c1024 = arith.constant 1024 : index
    %35 = vector.load %arg6[%c0_42, %c1024] : memref<256x1152xf32, #tpu.memory_space<vmem>>, vector<256x128xf32>
    tpu.vector_store %arg6[%c0_42, %c1024], %34 {strides = array<i32>} : memref<256x1152xf32, #tpu.memory_space<vmem>>, vector<256x128xf32>,
    %c0_43 = arith.constant 0 : index
    %c0_44 = arith.constant 0 : index
    %36 = vector.load %arg6[%c0_43, %c0_44] : memref<256x1152xf32, #tpu.memory_space<vmem>>, vector<256x1152xf32>
    %c0_45 = arith.constant 0 : index
    %c0_46 = arith.constant 0 : index
    %37 = vector.load %arg2[%c0_45, %c0_46] : memref<1152x128xf32, #tpu.memory_space<vmem>>, vector<1152x128xf32>
    %cst = arith.constant dense<0.000000e+00> : vector<256x128xf32>
    %38 = tpu.matmul %36, %37, %cst {dimension_numbers = #tpu.dot_dimension_numbers<[1], [0], [0], [1], [0, 0, 1, 1], [], []>} : vector<256x1152xf32>, vector<1152x128xf32>, vector<256x128xf32> -> vector<256x128xf32>
    %c0_47 = arith.constant 0 : index
    %c0_48 = arith.constant 0 : index
    %39 = vector.load %arg3[%c0_47, %c0_48] : memref<1x128xf32, #tpu.memory_space<vmem>>, vector<1x128xf32>
    %40 = vector.broadcast %39 : vector<1x128xf32> to vector<256x128xf32>
    %41 = arith.addf %38, %40 : vector<256x128xf32>
    %cst_49 = arith.constant 0.000000e+00 : f32
    %42 = vector.broadcast %cst_49 : f32 to vector<256x128xf32>
    %43 = arith.maximumf %41, %42 : vector<256x128xf32>
    %44 = vector.shape_cast %43 : vector<256x128xf32> to vector<1x16x16x128xf32>
    %c0_50 = arith.constant 0 : index
    %c0_51 = arith.constant 0 : index
    %c0_52 = arith.constant 0 : index
    %c0_53 = arith.constant 0 : index
    %45 = vector.load %arg4[%c0_50, %c0_51, %c0_52, %c0_53] : memref<1x16x16x128xf32, #tpu.memory_space<vmem>>, vector<1x16x16x128xf32>
    tpu.vector_store %arg4[%c0_50, %c0_51, %c0_52, %c0_53], %44 {strides = array<i32>} : memref<1x16x16x128xf32, #tpu.memory_space<vmem>>, vector<1x16x16x128xf32>,
    %cst_54 = arith.constant dense<0.000000e+00> : vector<128xf32>
    %46 = vector.multi_reduction <add>, %43, %cst_54 [0] : vector<256x128xf32> to vector<128xf32>
    %47 = vector.shape_cast %46 : vector<128xf32> to vector<1x128xf32>
    %c0_55 = arith.constant 0 : index
    %c0_56 = arith.constant 0 : index
    %c0_57 = arith.constant 0 : index
    %48 = vector.load %arg5[%c0_55, %c0_56, %c0_57] : memref<1x2x128xf32, #tpu.memory_space<vmem>>, vector<1x1x128xf32>
    %49 = vector.shape_cast %48 : vector<1x1x128xf32> to vector<1x128xf32>
    %50 = vector.shape_cast %47 : vector<1x128xf32> to vector<1x1x128xf32>
    tpu.vector_store %arg5[%c0_55, %c0_56, %c0_57], %50 {strides = array<i32>} : memref<1x2x128xf32, #tpu.memory_space<vmem>>, vector<1x1x128xf32>,
    %51 = arith.mulf %43, %43 : vector<256x128xf32>
    %cst_58 = arith.constant dense<0.000000e+00> : vector<128xf32>
    %52 = vector.multi_reduction <add>, %51, %cst_58 [0] : vector<256x128xf32> to vector<128xf32>
    %53 = vector.shape_cast %52 : vector<128xf32> to vector<1x128xf32>
    %c0_59 = arith.constant 0 : index
    %c1_60 = arith.constant 1 : index
    %c0_61 = arith.constant 0 : index
    %54 = vector.load %arg5[%c0_59, %c1_60, %c0_61] : memref<1x2x128xf32, #tpu.memory_space<vmem>>, vector<1x1x128xf32>
    %55 = vector.shape_cast %54 : vector<1x1x128xf32> to vector<1x128xf32>
    %56 = vector.shape_cast %53 : vector<1x128xf32> to vector<1x1x128xf32>
    tpu.vector_store %arg5[%c0_59, %c1_60, %c0_61], %56 {strides = array<i32>} : memref<1x2x128xf32, #tpu.memory_space<vmem>>, vector<1x1x128xf32>,
    return
  }
  func.func @transform_0(%arg0: i32) -> (i32, i32, i32, i32) {
    %c0_i32 = arith.constant 0 : i32
    %c0_i32_0 = arith.constant 0 : i32
    %c0_i32_1 = arith.constant 0 : i32
    %c0_i32_2 = arith.constant 0 : i32
    return %arg0, %c0_i32, %c0_i32_0, %c0_i32_1 : i32, i32, i32, i32
  }
  func.func @transform_1(%arg0: i32) -> (i32, i32) {
    %c0_i32 = arith.constant 0 : i32
    %c0_i32_0 = arith.constant 0 : i32
    %c0_i32_1 = arith.constant 0 : i32
    return %c0_i32, %c0_i32_0 : i32, i32
  }
  func.func @transform_2(%arg0: i32) -> (i32, i32) {
    %c0_i32 = arith.constant 0 : i32
    %c0_i32_0 = arith.constant 0 : i32
    %c0_i32_1 = arith.constant 0 : i32
    return %c0_i32, %c0_i32_0 : i32, i32
  }
  func.func @transform_3(%arg0: i32) -> (i32, i32, i32, i32) {
    %c0_i32 = arith.constant 0 : i32
    %c0_i32_0 = arith.constant 0 : i32
    %c0_i32_1 = arith.constant 0 : i32
    %c0_i32_2 = arith.constant 0 : i32
    return %arg0, %c0_i32, %c0_i32_0, %c0_i32_1 : i32, i32, i32, i32
  }
  func.func @transform_4(%arg0: i32) -> (i32, i32, i32) {
    %c0_i32 = arith.constant 0 : i32
    %c0_i32_0 = arith.constant 0 : i32
    %c0_i32_1 = arith.constant 0 : i32
    return %arg0, %c0_i32, %c0_i32_0 : i32, i32, i32
  }
}

module attributes {stable_mosaic.version = 11 : i64} {
  func.func @conv2_kernel(%arg0: i32, %arg1: memref<1x16x16x128xf32, #tpu.memory_space<vmem>>, %arg2: memref<1x1x128xf32, #tpu.memory_space<vmem>>, %arg3: memref<128x128xf32, #tpu.memory_space<vmem>>, %arg4: memref<1x128xf32, #tpu.memory_space<vmem>>, %arg5: memref<1x128xf32, #tpu.memory_space<vmem>>, %arg6: memref<1x128xf32, #tpu.memory_space<vmem>>, %arg7: memref<1152x128xf32, #tpu.memory_space<vmem>>, %arg8: memref<1x128xf32, #tpu.memory_space<vmem>>, %arg9: memref<1x16x16x128xf32, #tpu.memory_space<vmem>>, %arg10: memref<1x2x128xf32, #tpu.memory_space<vmem>>, %arg11: memref<18x18x128xf32, #tpu.memory_space<vmem>>, %arg12: memref<256x1152xf32, #tpu.memory_space<vmem>>) attributes {dimension_semantics = [#tpu.dimension_semantics<parallel>], iteration_bounds = array<i64: 2>, scalar_prefetch = 0 : i64, scratch_operands = 2 : i64, tpu.core_type = #tpu.core_type<tc>, window_params = [{transform_indices = @transform_0, window_bounds = array<i64: 1, 16, 16, 128>}, {transform_indices = @transform_1, window_bounds = array<i64: 1, 1, 128>}, {pipeline_mode = #tpu.pipeline_mode<synchronous>, transform_indices = @transform_2, window_bounds = array<i64: 128, 128>}, {pipeline_mode = #tpu.pipeline_mode<synchronous>, transform_indices = @transform_3, window_bounds = array<i64: 1, 128>}, {pipeline_mode = #tpu.pipeline_mode<synchronous>, transform_indices = @transform_4, window_bounds = array<i64: 1, 128>}, {pipeline_mode = #tpu.pipeline_mode<synchronous>, transform_indices = @transform_5, window_bounds = array<i64: 1, 128>}, {pipeline_mode = #tpu.pipeline_mode<synchronous>, transform_indices = @transform_6, window_bounds = array<i64: 1152, 128>}, {pipeline_mode = #tpu.pipeline_mode<synchronous>, transform_indices = @transform_7, window_bounds = array<i64: 1, 128>}, {transform_indices = @transform_8, window_bounds = array<i64: 1, 16, 16, 128>}, {transform_indices = @transform_9, window_bounds = array<i64: 1, 2, 128>}]} {
    %c0 = arith.constant 0 : index
    %c0_0 = arith.constant 0 : index
    %c0_1 = arith.constant 0 : index
    %0 = vector.load %arg2[%c0, %c0_0, %c0_1] : memref<1x1x128xf32, #tpu.memory_space<vmem>>, vector<1x1x128xf32>
    %1 = vector.shape_cast %0 : vector<1x1x128xf32> to vector<1x128xf32>
    %c0_2 = arith.constant 0 : index
    %c0_3 = arith.constant 0 : index
    %2 = vector.load %arg3[%c0_2, %c0_3] : memref<128x128xf32, #tpu.memory_space<vmem>>, vector<128x128xf32>
    %cst = arith.constant dense<0.000000e+00> : vector<1x128xf32>
    %3 = tpu.matmul %1, %2, %cst {dimension_numbers = #tpu.dot_dimension_numbers<[1], [0], [0], [1], [0, 0, 1, 1], [], []>} : vector<1x128xf32>, vector<128x128xf32>, vector<1x128xf32> -> vector<1x128xf32>
    %c0_4 = arith.constant 0 : index
    %c0_5 = arith.constant 0 : index
    %4 = vector.load %arg4[%c0_4, %c0_5] : memref<1x128xf32, #tpu.memory_space<vmem>>, vector<1x128xf32>
    %5 = arith.addf %3, %4 : vector<1x128xf32>
    %cst_6 = arith.constant 0.000000e+00 : f32
    %6 = vector.broadcast %cst_6 : f32 to vector<1x128xf32>
    %7 = arith.maximumf %5, %6 : vector<1x128xf32>
    %c0_7 = arith.constant 0 : index
    %c0_8 = arith.constant 0 : index
    %c0_9 = arith.constant 0 : index
    %c0_10 = arith.constant 0 : index
    %8 = vector.load %arg1[%c0_7, %c0_8, %c0_9, %c0_10] : memref<1x16x16x128xf32, #tpu.memory_space<vmem>>, vector<1x16x16x128xf32>
    %9 = vector.shape_cast %8 : vector<1x16x16x128xf32> to vector<16x16x128xf32>
    %10 = vector.shape_cast %9 : vector<16x16x128xf32> to vector<256x128xf32>
    %c0_11 = arith.constant 0 : index
    %c0_12 = arith.constant 0 : index
    %11 = vector.load %arg5[%c0_11, %c0_12] : memref<1x128xf32, #tpu.memory_space<vmem>>, vector<1x128xf32>
    %12 = vector.broadcast %11 : vector<1x128xf32> to vector<256x128xf32>
    %13 = arith.mulf %10, %12 : vector<256x128xf32>
    %c0_13 = arith.constant 0 : index
    %c0_14 = arith.constant 0 : index
    %14 = vector.load %arg6[%c0_13, %c0_14] : memref<1x128xf32, #tpu.memory_space<vmem>>, vector<1x128xf32>
    %15 = vector.broadcast %14 : vector<1x128xf32> to vector<256x128xf32>
    %16 = arith.addf %13, %15 : vector<256x128xf32>
    %17 = vector.broadcast %7 : vector<1x128xf32> to vector<256x128xf32>
    %18 = arith.addf %16, %17 : vector<256x128xf32>
    %cst_15 = arith.constant 0.000000e+00 : f32
    %19 = vector.broadcast %cst_15 : f32 to vector<18x18x128xf32>
    %c0_16 = arith.constant 0 : index
    %c0_17 = arith.constant 0 : index
    %c0_18 = arith.constant 0 : index
    %20 = vector.load %arg11[%c0_16, %c0_17, %c0_18] : memref<18x18x128xf32, #tpu.memory_space<vmem>>, vector<18x18x128xf32>
    tpu.vector_store %arg11[%c0_16, %c0_17, %c0_18], %19 {strides = array<i32>} : memref<18x18x128xf32, #tpu.memory_space<vmem>>, vector<18x18x128xf32>,
    %21 = vector.shape_cast %18 : vector<256x128xf32> to vector<16x16x128xf32>
    %c1 = arith.constant 1 : index
    %c1_19 = arith.constant 1 : index
    %c0_20 = arith.constant 0 : index
    %22 = vector.load %arg11[%c1, %c1_19, %c0_20] : memref<18x18x128xf32, #tpu.memory_space<vmem>>, vector<16x16x128xf32>
    tpu.vector_store %arg11[%c1, %c1_19, %c0_20], %21 {strides = array<i32>} : memref<18x18x128xf32, #tpu.memory_space<vmem>>, vector<16x16x128xf32>,
    %c0_21 = arith.constant 0 : index
    %c0_22 = arith.constant 0 : index
    %c0_23 = arith.constant 0 : index
    %23 = vector.load %arg11[%c0_21, %c0_22, %c0_23] : memref<18x18x128xf32, #tpu.memory_space<vmem>>, vector<16x16x128xf32>
    %24 = vector.shape_cast %23 : vector<16x16x128xf32> to vector<256x128xf32>
    %c0_24 = arith.constant 0 : index
    %c0_25 = arith.constant 0 : index
    %25 = vector.load %arg12[%c0_24, %c0_25] : memref<256x1152xf32, #tpu.memory_space<vmem>>, vector<256x128xf32>
    tpu.vector_store %arg12[%c0_24, %c0_25], %24 {strides = array<i32>} : memref<256x1152xf32, #tpu.memory_space<vmem>>, vector<256x128xf32>,
    %c0_26 = arith.constant 0 : index
    %c1_27 = arith.constant 1 : index
    %c0_28 = arith.constant 0 : index
    %26 = vector.load %arg11[%c0_26, %c1_27, %c0_28] : memref<18x18x128xf32, #tpu.memory_space<vmem>>, vector<16x16x128xf32>
    %27 = vector.shape_cast %26 : vector<16x16x128xf32> to vector<256x128xf32>
    %c0_29 = arith.constant 0 : index
    %c128 = arith.constant 128 : index
    %28 = vector.load %arg12[%c0_29, %c128] : memref<256x1152xf32, #tpu.memory_space<vmem>>, vector<256x128xf32>
    tpu.vector_store %arg12[%c0_29, %c128], %27 {strides = array<i32>} : memref<256x1152xf32, #tpu.memory_space<vmem>>, vector<256x128xf32>,
    %c0_30 = arith.constant 0 : index
    %c2 = arith.constant 2 : index
    %c0_31 = arith.constant 0 : index
    %29 = vector.load %arg11[%c0_30, %c2, %c0_31] : memref<18x18x128xf32, #tpu.memory_space<vmem>>, vector<16x16x128xf32>
    %30 = vector.shape_cast %29 : vector<16x16x128xf32> to vector<256x128xf32>
    %c0_32 = arith.constant 0 : index
    %c256 = arith.constant 256 : index
    %31 = vector.load %arg12[%c0_32, %c256] : memref<256x1152xf32, #tpu.memory_space<vmem>>, vector<256x128xf32>
    tpu.vector_store %arg12[%c0_32, %c256], %30 {strides = array<i32>} : memref<256x1152xf32, #tpu.memory_space<vmem>>, vector<256x128xf32>,
    %c1_33 = arith.constant 1 : index
    %c0_34 = arith.constant 0 : index
    %c0_35 = arith.constant 0 : index
    %32 = vector.load %arg11[%c1_33, %c0_34, %c0_35] : memref<18x18x128xf32, #tpu.memory_space<vmem>>, vector<16x16x128xf32>
    %33 = vector.shape_cast %32 : vector<16x16x128xf32> to vector<256x128xf32>
    %c0_36 = arith.constant 0 : index
    %c384 = arith.constant 384 : index
    %34 = vector.load %arg12[%c0_36, %c384] : memref<256x1152xf32, #tpu.memory_space<vmem>>, vector<256x128xf32>
    tpu.vector_store %arg12[%c0_36, %c384], %33 {strides = array<i32>} : memref<256x1152xf32, #tpu.memory_space<vmem>>, vector<256x128xf32>,
    %c1_37 = arith.constant 1 : index
    %c1_38 = arith.constant 1 : index
    %c0_39 = arith.constant 0 : index
    %35 = vector.load %arg11[%c1_37, %c1_38, %c0_39] : memref<18x18x128xf32, #tpu.memory_space<vmem>>, vector<16x16x128xf32>
    %36 = vector.shape_cast %35 : vector<16x16x128xf32> to vector<256x128xf32>
    %c0_40 = arith.constant 0 : index
    %c512 = arith.constant 512 : index
    %37 = vector.load %arg12[%c0_40, %c512] : memref<256x1152xf32, #tpu.memory_space<vmem>>, vector<256x128xf32>
    tpu.vector_store %arg12[%c0_40, %c512], %36 {strides = array<i32>} : memref<256x1152xf32, #tpu.memory_space<vmem>>, vector<256x128xf32>,
    %c1_41 = arith.constant 1 : index
    %c2_42 = arith.constant 2 : index
    %c0_43 = arith.constant 0 : index
    %38 = vector.load %arg11[%c1_41, %c2_42, %c0_43] : memref<18x18x128xf32, #tpu.memory_space<vmem>>, vector<16x16x128xf32>
    %39 = vector.shape_cast %38 : vector<16x16x128xf32> to vector<256x128xf32>
    %c0_44 = arith.constant 0 : index
    %c640 = arith.constant 640 : index
    %40 = vector.load %arg12[%c0_44, %c640] : memref<256x1152xf32, #tpu.memory_space<vmem>>, vector<256x128xf32>
    tpu.vector_store %arg12[%c0_44, %c640], %39 {strides = array<i32>} : memref<256x1152xf32, #tpu.memory_space<vmem>>, vector<256x128xf32>,
    %c2_45 = arith.constant 2 : index
    %c0_46 = arith.constant 0 : index
    %c0_47 = arith.constant 0 : index
    %41 = vector.load %arg11[%c2_45, %c0_46, %c0_47] : memref<18x18x128xf32, #tpu.memory_space<vmem>>, vector<16x16x128xf32>
    %42 = vector.shape_cast %41 : vector<16x16x128xf32> to vector<256x128xf32>
    %c0_48 = arith.constant 0 : index
    %c768 = arith.constant 768 : index
    %43 = vector.load %arg12[%c0_48, %c768] : memref<256x1152xf32, #tpu.memory_space<vmem>>, vector<256x128xf32>
    tpu.vector_store %arg12[%c0_48, %c768], %42 {strides = array<i32>} : memref<256x1152xf32, #tpu.memory_space<vmem>>, vector<256x128xf32>,
    %c2_49 = arith.constant 2 : index
    %c1_50 = arith.constant 1 : index
    %c0_51 = arith.constant 0 : index
    %44 = vector.load %arg11[%c2_49, %c1_50, %c0_51] : memref<18x18x128xf32, #tpu.memory_space<vmem>>, vector<16x16x128xf32>
    %45 = vector.shape_cast %44 : vector<16x16x128xf32> to vector<256x128xf32>
    %c0_52 = arith.constant 0 : index
    %c896 = arith.constant 896 : index
    %46 = vector.load %arg12[%c0_52, %c896] : memref<256x1152xf32, #tpu.memory_space<vmem>>, vector<256x128xf32>
    tpu.vector_store %arg12[%c0_52, %c896], %45 {strides = array<i32>} : memref<256x1152xf32, #tpu.memory_space<vmem>>, vector<256x128xf32>,
    %c2_53 = arith.constant 2 : index
    %c2_54 = arith.constant 2 : index
    %c0_55 = arith.constant 0 : index
    %47 = vector.load %arg11[%c2_53, %c2_54, %c0_55] : memref<18x18x128xf32, #tpu.memory_space<vmem>>, vector<16x16x128xf32>
    %48 = vector.shape_cast %47 : vector<16x16x128xf32> to vector<256x128xf32>
    %c0_56 = arith.constant 0 : index
    %c1024 = arith.constant 1024 : index
    %49 = vector.load %arg12[%c0_56, %c1024] : memref<256x1152xf32, #tpu.memory_space<vmem>>, vector<256x128xf32>
    tpu.vector_store %arg12[%c0_56, %c1024], %48 {strides = array<i32>} : memref<256x1152xf32, #tpu.memory_space<vmem>>, vector<256x128xf32>,
    %c0_57 = arith.constant 0 : index
    %c0_58 = arith.constant 0 : index
    %50 = vector.load %arg12[%c0_57, %c0_58] : memref<256x1152xf32, #tpu.memory_space<vmem>>, vector<256x1152xf32>
    %c0_59 = arith.constant 0 : index
    %c0_60 = arith.constant 0 : index
    %51 = vector.load %arg7[%c0_59, %c0_60] : memref<1152x128xf32, #tpu.memory_space<vmem>>, vector<1152x128xf32>
    %cst_61 = arith.constant dense<0.000000e+00> : vector<256x128xf32>
    %52 = tpu.matmul %50, %51, %cst_61 {dimension_numbers = #tpu.dot_dimension_numbers<[1], [0], [0], [1], [0, 0, 1, 1], [], []>} : vector<256x1152xf32>, vector<1152x128xf32>, vector<256x128xf32> -> vector<256x128xf32>
    %c0_62 = arith.constant 0 : index
    %c0_63 = arith.constant 0 : index
    %53 = vector.load %arg8[%c0_62, %c0_63] : memref<1x128xf32, #tpu.memory_space<vmem>>, vector<1x128xf32>
    %54 = vector.broadcast %53 : vector<1x128xf32> to vector<256x128xf32>
    %55 = arith.addf %52, %54 : vector<256x128xf32>
    %cst_64 = arith.constant 0.000000e+00 : f32
    %56 = vector.broadcast %cst_64 : f32 to vector<256x128xf32>
    %57 = arith.maximumf %55, %56 : vector<256x128xf32>
    %58 = vector.shape_cast %57 : vector<256x128xf32> to vector<1x16x16x128xf32>
    %c0_65 = arith.constant 0 : index
    %c0_66 = arith.constant 0 : index
    %c0_67 = arith.constant 0 : index
    %c0_68 = arith.constant 0 : index
    %59 = vector.load %arg9[%c0_65, %c0_66, %c0_67, %c0_68] : memref<1x16x16x128xf32, #tpu.memory_space<vmem>>, vector<1x16x16x128xf32>
    tpu.vector_store %arg9[%c0_65, %c0_66, %c0_67, %c0_68], %58 {strides = array<i32>} : memref<1x16x16x128xf32, #tpu.memory_space<vmem>>, vector<1x16x16x128xf32>,
    %cst_69 = arith.constant dense<0.000000e+00> : vector<128xf32>
    %60 = vector.multi_reduction <add>, %57, %cst_69 [0] : vector<256x128xf32> to vector<128xf32>
    %61 = vector.shape_cast %60 : vector<128xf32> to vector<1x128xf32>
    %c0_70 = arith.constant 0 : index
    %c0_71 = arith.constant 0 : index
    %c0_72 = arith.constant 0 : index
    %62 = vector.load %arg10[%c0_70, %c0_71, %c0_72] : memref<1x2x128xf32, #tpu.memory_space<vmem>>, vector<1x1x128xf32>
    %63 = vector.shape_cast %62 : vector<1x1x128xf32> to vector<1x128xf32>
    %64 = vector.shape_cast %61 : vector<1x128xf32> to vector<1x1x128xf32>
    tpu.vector_store %arg10[%c0_70, %c0_71, %c0_72], %64 {strides = array<i32>} : memref<1x2x128xf32, #tpu.memory_space<vmem>>, vector<1x1x128xf32>,
    %65 = arith.mulf %57, %57 : vector<256x128xf32>
    %cst_73 = arith.constant dense<0.000000e+00> : vector<128xf32>
    %66 = vector.multi_reduction <add>, %65, %cst_73 [0] : vector<256x128xf32> to vector<128xf32>
    %67 = vector.shape_cast %66 : vector<128xf32> to vector<1x128xf32>
    %c0_74 = arith.constant 0 : index
    %c1_75 = arith.constant 1 : index
    %c0_76 = arith.constant 0 : index
    %68 = vector.load %arg10[%c0_74, %c1_75, %c0_76] : memref<1x2x128xf32, #tpu.memory_space<vmem>>, vector<1x1x128xf32>
    %69 = vector.shape_cast %68 : vector<1x1x128xf32> to vector<1x128xf32>
    %70 = vector.shape_cast %67 : vector<1x128xf32> to vector<1x1x128xf32>
    tpu.vector_store %arg10[%c0_74, %c1_75, %c0_76], %70 {strides = array<i32>} : memref<1x2x128xf32, #tpu.memory_space<vmem>>, vector<1x1x128xf32>,
    return
  }
  func.func @transform_0(%arg0: i32) -> (i32, i32, i32, i32) {
    %c0_i32 = arith.constant 0 : i32
    %c0_i32_0 = arith.constant 0 : i32
    %c0_i32_1 = arith.constant 0 : i32
    %c0_i32_2 = arith.constant 0 : i32
    return %arg0, %c0_i32, %c0_i32_0, %c0_i32_1 : i32, i32, i32, i32
  }
  func.func @transform_1(%arg0: i32) -> (i32, i32, i32) {
    %c0_i32 = arith.constant 0 : i32
    %c0_i32_0 = arith.constant 0 : i32
    %c0_i32_1 = arith.constant 0 : i32
    return %arg0, %c0_i32, %c0_i32_0 : i32, i32, i32
  }
  func.func @transform_2(%arg0: i32) -> (i32, i32) {
    %c0_i32 = arith.constant 0 : i32
    %c0_i32_0 = arith.constant 0 : i32
    %c0_i32_1 = arith.constant 0 : i32
    return %c0_i32, %c0_i32_0 : i32, i32
  }
  func.func @transform_3(%arg0: i32) -> (i32, i32) {
    %c0_i32 = arith.constant 0 : i32
    %c0_i32_0 = arith.constant 0 : i32
    %c0_i32_1 = arith.constant 0 : i32
    return %c0_i32, %c0_i32_0 : i32, i32
  }
  func.func @transform_4(%arg0: i32) -> (i32, i32) {
    %c0_i32 = arith.constant 0 : i32
    %c0_i32_0 = arith.constant 0 : i32
    %c0_i32_1 = arith.constant 0 : i32
    return %c0_i32, %c0_i32_0 : i32, i32
  }
  func.func @transform_5(%arg0: i32) -> (i32, i32) {
    %c0_i32 = arith.constant 0 : i32
    %c0_i32_0 = arith.constant 0 : i32
    %c0_i32_1 = arith.constant 0 : i32
    return %c0_i32, %c0_i32_0 : i32, i32
  }
  func.func @transform_6(%arg0: i32) -> (i32, i32) {
    %c0_i32 = arith.constant 0 : i32
    %c0_i32_0 = arith.constant 0 : i32
    %c0_i32_1 = arith.constant 0 : i32
    return %c0_i32, %c0_i32_0 : i32, i32
  }
  func.func @transform_7(%arg0: i32) -> (i32, i32) {
    %c0_i32 = arith.constant 0 : i32
    %c0_i32_0 = arith.constant 0 : i32
    %c0_i32_1 = arith.constant 0 : i32
    return %c0_i32, %c0_i32_0 : i32, i32
  }
  func.func @transform_8(%arg0: i32) -> (i32, i32, i32, i32) {
    %c0_i32 = arith.constant 0 : i32
    %c0_i32_0 = arith.constant 0 : i32
    %c0_i32_1 = arith.constant 0 : i32
    %c0_i32_2 = arith.constant 0 : i32
    return %arg0, %c0_i32, %c0_i32_0, %c0_i32_1 : i32, i32, i32, i32
  }
  func.func @transform_9(%arg0: i32) -> (i32, i32, i32) {
    %c0_i32 = arith.constant 0 : i32
    %c0_i32_0 = arith.constant 0 : i32
    %c0_i32_1 = arith.constant 0 : i32
    return %arg0, %c0_i32, %c0_i32_0 : i32, i32, i32
  }
}

module attributes {stable_mosaic.version = 11 : i64} {
  func.func @transform_kernel(%arg0: i32, %arg1: memref<1x4x8x8x128xf32, #tpu.memory_space<vmem>>, %arg2: memref<1x128xf32, #tpu.memory_space<vmem>>, %arg3: memref<1x128xf32, #tpu.memory_space<vmem>>, %arg4: memref<2048x128xf32, #tpu.memory_space<vmem>>, %arg5: memref<1x128xf32, #tpu.memory_space<vmem>>, %arg6: memref<1x8x8x128xf32, #tpu.memory_space<vmem>>, %arg7: memref<4x9x9x128xf32, #tpu.memory_space<vmem>>, %arg8: memref<64x2048xf32, #tpu.memory_space<vmem>>) attributes {dimension_semantics = [#tpu.dimension_semantics<parallel>], iteration_bounds = array<i64: 2>, scalar_prefetch = 0 : i64, scratch_operands = 2 : i64, tpu.core_type = #tpu.core_type<tc>, window_params = [{transform_indices = @transform_0, window_bounds = array<i64: 1, 4, 8, 8, 128>}, {pipeline_mode = #tpu.pipeline_mode<synchronous>, transform_indices = @transform_1, window_bounds = array<i64: 1, 128>}, {pipeline_mode = #tpu.pipeline_mode<synchronous>, transform_indices = @transform_2, window_bounds = array<i64: 1, 128>}, {pipeline_mode = #tpu.pipeline_mode<synchronous>, transform_indices = @transform_3, window_bounds = array<i64: 2048, 128>}, {pipeline_mode = #tpu.pipeline_mode<synchronous>, transform_indices = @transform_4, window_bounds = array<i64: 1, 128>}, {transform_indices = @transform_5, window_bounds = array<i64: 1, 8, 8, 128>}]} {
    %cst = arith.constant 0.000000e+00 : f32
    %0 = vector.broadcast %cst : f32 to vector<4x9x9x128xf32>
    %c0 = arith.constant 0 : index
    %c0_0 = arith.constant 0 : index
    %c0_1 = arith.constant 0 : index
    %c0_2 = arith.constant 0 : index
    %1 = vector.load %arg7[%c0, %c0_0, %c0_1, %c0_2] : memref<4x9x9x128xf32, #tpu.memory_space<vmem>>, vector<4x9x9x128xf32>
    tpu.vector_store %arg7[%c0, %c0_0, %c0_1, %c0_2], %0 {strides = array<i32>} : memref<4x9x9x128xf32, #tpu.memory_space<vmem>>, vector<4x9x9x128xf32>,
    %c0_3 = arith.constant 0 : index
    %c3 = arith.constant 3 : index
    %c0_4 = arith.constant 0 : index
    %c0_5 = arith.constant 0 : index
    %c0_6 = arith.constant 0 : index
    %2 = vector.load %arg1[%c0_3, %c3, %c0_4, %c0_5, %c0_6] : memref<1x4x8x8x128xf32, #tpu.memory_space<vmem>>, vector<1x1x8x8x128xf32>
    %3 = vector.shape_cast %2 : vector<1x1x8x8x128xf32> to vector<8x8x128xf32>
    %c0_7 = arith.constant 0 : index
    %c0_8 = arith.constant 0 : index
    %4 = vector.load %arg2[%c0_7, %c0_8] : memref<1x128xf32, #tpu.memory_space<vmem>>, vector<1x128xf32>
    %5 = vector.shape_cast %4 : vector<1x128xf32> to vector<1x1x128xf32>
    %6 = vector.broadcast %5 : vector<1x1x128xf32> to vector<8x8x128xf32>
    %7 = arith.mulf %3, %6 : vector<8x8x128xf32>
    %c0_9 = arith.constant 0 : index
    %c0_10 = arith.constant 0 : index
    %8 = vector.load %arg3[%c0_9, %c0_10] : memref<1x128xf32, #tpu.memory_space<vmem>>, vector<1x128xf32>
    %9 = vector.shape_cast %8 : vector<1x128xf32> to vector<1x1x128xf32>
    %10 = vector.broadcast %9 : vector<1x1x128xf32> to vector<8x8x128xf32>
    %11 = arith.addf %7, %10 : vector<8x8x128xf32>
    %c0_11 = arith.constant 0 : index
    %c1 = arith.constant 1 : index
    %c1_12 = arith.constant 1 : index
    %c0_13 = arith.constant 0 : index
    %12 = vector.load %arg7[%c0_11, %c1, %c1_12, %c0_13] : memref<4x9x9x128xf32, #tpu.memory_space<vmem>>, vector<1x8x8x128xf32>
    %13 = vector.shape_cast %12 : vector<1x8x8x128xf32> to vector<8x8x128xf32>
    %14 = vector.shape_cast %11 : vector<8x8x128xf32> to vector<1x8x8x128xf32>
    tpu.vector_store %arg7[%c0_11, %c1, %c1_12, %c0_13], %14 {strides = array<i32>} : memref<4x9x9x128xf32, #tpu.memory_space<vmem>>, vector<1x8x8x128xf32>,
    %c0_14 = arith.constant 0 : index
    %c2 = arith.constant 2 : index
    %c0_15 = arith.constant 0 : index
    %c0_16 = arith.constant 0 : index
    %c0_17 = arith.constant 0 : index
    %15 = vector.load %arg1[%c0_14, %c2, %c0_15, %c0_16, %c0_17] : memref<1x4x8x8x128xf32, #tpu.memory_space<vmem>>, vector<1x1x8x8x128xf32>
    %16 = vector.shape_cast %15 : vector<1x1x8x8x128xf32> to vector<8x8x128xf32>
    %c0_18 = arith.constant 0 : index
    %c0_19 = arith.constant 0 : index
    %17 = vector.load %arg2[%c0_18, %c0_19] : memref<1x128xf32, #tpu.memory_space<vmem>>, vector<1x128xf32>
    %18 = vector.shape_cast %17 : vector<1x128xf32> to vector<1x1x128xf32>
    %19 = vector.broadcast %18 : vector<1x1x128xf32> to vector<8x8x128xf32>
    %20 = arith.mulf %16, %19 : vector<8x8x128xf32>
    %c0_20 = arith.constant 0 : index
    %c0_21 = arith.constant 0 : index
    %21 = vector.load %arg3[%c0_20, %c0_21] : memref<1x128xf32, #tpu.memory_space<vmem>>, vector<1x128xf32>
    %22 = vector.shape_cast %21 : vector<1x128xf32> to vector<1x1x128xf32>
    %23 = vector.broadcast %22 : vector<1x1x128xf32> to vector<8x8x128xf32>
    %24 = arith.addf %20, %23 : vector<8x8x128xf32>
    %c1_22 = arith.constant 1 : index
    %c1_23 = arith.constant 1 : index
    %c0_24 = arith.constant 0 : index
    %c0_25 = arith.constant 0 : index
    %25 = vector.load %arg7[%c1_22, %c1_23, %c0_24, %c0_25] : memref<4x9x9x128xf32, #tpu.memory_space<vmem>>, vector<1x8x8x128xf32>
    %26 = vector.shape_cast %25 : vector<1x8x8x128xf32> to vector<8x8x128xf32>
    %27 = vector.shape_cast %24 : vector<8x8x128xf32> to vector<1x8x8x128xf32>
    tpu.vector_store %arg7[%c1_22, %c1_23, %c0_24, %c0_25], %27 {strides = array<i32>} : memref<4x9x9x128xf32, #tpu.memory_space<vmem>>, vector<1x8x8x128xf32>,
    %c0_26 = arith.constant 0 : index
    %c1_27 = arith.constant 1 : index
    %c0_28 = arith.constant 0 : index
    %c0_29 = arith.constant 0 : index
    %c0_30 = arith.constant 0 : index
    %28 = vector.load %arg1[%c0_26, %c1_27, %c0_28, %c0_29, %c0_30] : memref<1x4x8x8x128xf32, #tpu.memory_space<vmem>>, vector<1x1x8x8x128xf32>
    %29 = vector.shape_cast %28 : vector<1x1x8x8x128xf32> to vector<8x8x128xf32>
    %c0_31 = arith.constant 0 : index
    %c0_32 = arith.constant 0 : index
    %30 = vector.load %arg2[%c0_31, %c0_32] : memref<1x128xf32, #tpu.memory_space<vmem>>, vector<1x128xf32>
    %31 = vector.shape_cast %30 : vector<1x128xf32> to vector<1x1x128xf32>
    %32 = vector.broadcast %31 : vector<1x1x128xf32> to vector<8x8x128xf32>
    %33 = arith.mulf %29, %32 : vector<8x8x128xf32>
    %c0_33 = arith.constant 0 : index
    %c0_34 = arith.constant 0 : index
    %34 = vector.load %arg3[%c0_33, %c0_34] : memref<1x128xf32, #tpu.memory_space<vmem>>, vector<1x128xf32>
    %35 = vector.shape_cast %34 : vector<1x128xf32> to vector<1x1x128xf32>
    %36 = vector.broadcast %35 : vector<1x1x128xf32> to vector<8x8x128xf32>
    %37 = arith.addf %33, %36 : vector<8x8x128xf32>
    %c2_35 = arith.constant 2 : index
    %c0_36 = arith.constant 0 : index
    %c1_37 = arith.constant 1 : index
    %c0_38 = arith.constant 0 : index
    %38 = vector.load %arg7[%c2_35, %c0_36, %c1_37, %c0_38] : memref<4x9x9x128xf32, #tpu.memory_space<vmem>>, vector<1x8x8x128xf32>
    %39 = vector.shape_cast %38 : vector<1x8x8x128xf32> to vector<8x8x128xf32>
    %40 = vector.shape_cast %37 : vector<8x8x128xf32> to vector<1x8x8x128xf32>
    tpu.vector_store %arg7[%c2_35, %c0_36, %c1_37, %c0_38], %40 {strides = array<i32>} : memref<4x9x9x128xf32, #tpu.memory_space<vmem>>, vector<1x8x8x128xf32>,
    %c0_39 = arith.constant 0 : index
    %c0_40 = arith.constant 0 : index
    %c0_41 = arith.constant 0 : index
    %c0_42 = arith.constant 0 : index
    %c0_43 = arith.constant 0 : index
    %41 = vector.load %arg1[%c0_39, %c0_40, %c0_41, %c0_42, %c0_43] : memref<1x4x8x8x128xf32, #tpu.memory_space<vmem>>, vector<1x1x8x8x128xf32>
    %42 = vector.shape_cast %41 : vector<1x1x8x8x128xf32> to vector<8x8x128xf32>
    %c0_44 = arith.constant 0 : index
    %c0_45 = arith.constant 0 : index
    %43 = vector.load %arg2[%c0_44, %c0_45] : memref<1x128xf32, #tpu.memory_space<vmem>>, vector<1x128xf32>
    %44 = vector.shape_cast %43 : vector<1x128xf32> to vector<1x1x128xf32>
    %45 = vector.broadcast %44 : vector<1x1x128xf32> to vector<8x8x128xf32>
    %46 = arith.mulf %42, %45 : vector<8x8x128xf32>
    %c0_46 = arith.constant 0 : index
    %c0_47 = arith.constant 0 : index
    %47 = vector.load %arg3[%c0_46, %c0_47] : memref<1x128xf32, #tpu.memory_space<vmem>>, vector<1x128xf32>
    %48 = vector.shape_cast %47 : vector<1x128xf32> to vector<1x1x128xf32>
    %49 = vector.broadcast %48 : vector<1x1x128xf32> to vector<8x8x128xf32>
    %50 = arith.addf %46, %49 : vector<8x8x128xf32>
    %c3_48 = arith.constant 3 : index
    %c0_49 = arith.constant 0 : index
    %c0_50 = arith.constant 0 : index
    %c0_51 = arith.constant 0 : index
    %51 = vector.load %arg7[%c3_48, %c0_49, %c0_50, %c0_51] : memref<4x9x9x128xf32, #tpu.memory_space<vmem>>, vector<1x8x8x128xf32>
    %52 = vector.shape_cast %51 : vector<1x8x8x128xf32> to vector<8x8x128xf32>
    %53 = vector.shape_cast %50 : vector<8x8x128xf32> to vector<1x8x8x128xf32>
    tpu.vector_store %arg7[%c3_48, %c0_49, %c0_50, %c0_51], %53 {strides = array<i32>} : memref<4x9x9x128xf32, #tpu.memory_space<vmem>>, vector<1x8x8x128xf32>,
    %c0_52 = arith.constant 0 : index
    %c0_53 = arith.constant 0 : index
    %c0_54 = arith.constant 0 : index
    %c0_55 = arith.constant 0 : index
    %54 = vector.load %arg7[%c0_52, %c0_53, %c0_54, %c0_55] : memref<4x9x9x128xf32, #tpu.memory_space<vmem>>, vector<1x8x8x128xf32>
    %55 = vector.shape_cast %54 : vector<1x8x8x128xf32> to vector<8x8x128xf32>
    %56 = vector.shape_cast %55 : vector<8x8x128xf32> to vector<64x128xf32>
    %c0_56 = arith.constant 0 : index
    %c0_57 = arith.constant 0 : index
    %57 = vector.load %arg8[%c0_56, %c0_57] : memref<64x2048xf32, #tpu.memory_space<vmem>>, vector<64x128xf32>
    tpu.vector_store %arg8[%c0_56, %c0_57], %56 {strides = array<i32>} : memref<64x2048xf32, #tpu.memory_space<vmem>>, vector<64x128xf32>,
    %c0_58 = arith.constant 0 : index
    %c0_59 = arith.constant 0 : index
    %c1_60 = arith.constant 1 : index
    %c0_61 = arith.constant 0 : index
    %58 = vector.load %arg7[%c0_58, %c0_59, %c1_60, %c0_61] : memref<4x9x9x128xf32, #tpu.memory_space<vmem>>, vector<1x8x8x128xf32>
    %59 = vector.shape_cast %58 : vector<1x8x8x128xf32> to vector<8x8x128xf32>
    %60 = vector.shape_cast %59 : vector<8x8x128xf32> to vector<64x128xf32>
    %c0_62 = arith.constant 0 : index
    %c128 = arith.constant 128 : index
    %61 = vector.load %arg8[%c0_62, %c128] : memref<64x2048xf32, #tpu.memory_space<vmem>>, vector<64x128xf32>
    tpu.vector_store %arg8[%c0_62, %c128], %60 {strides = array<i32>} : memref<64x2048xf32, #tpu.memory_space<vmem>>, vector<64x128xf32>,
    %c0_63 = arith.constant 0 : index
    %c1_64 = arith.constant 1 : index
    %c0_65 = arith.constant 0 : index
    %c0_66 = arith.constant 0 : index
    %62 = vector.load %arg7[%c0_63, %c1_64, %c0_65, %c0_66] : memref<4x9x9x128xf32, #tpu.memory_space<vmem>>, vector<1x8x8x128xf32>
    %63 = vector.shape_cast %62 : vector<1x8x8x128xf32> to vector<8x8x128xf32>
    %64 = vector.shape_cast %63 : vector<8x8x128xf32> to vector<64x128xf32>
    %c0_67 = arith.constant 0 : index
    %c256 = arith.constant 256 : index
    %65 = vector.load %arg8[%c0_67, %c256] : memref<64x2048xf32, #tpu.memory_space<vmem>>, vector<64x128xf32>
    tpu.vector_store %arg8[%c0_67, %c256], %64 {strides = array<i32>} : memref<64x2048xf32, #tpu.memory_space<vmem>>, vector<64x128xf32>,
    %c0_68 = arith.constant 0 : index
    %c1_69 = arith.constant 1 : index
    %c1_70 = arith.constant 1 : index
    %c0_71 = arith.constant 0 : index
    %66 = vector.load %arg7[%c0_68, %c1_69, %c1_70, %c0_71] : memref<4x9x9x128xf32, #tpu.memory_space<vmem>>, vector<1x8x8x128xf32>
    %67 = vector.shape_cast %66 : vector<1x8x8x128xf32> to vector<8x8x128xf32>
    %68 = vector.shape_cast %67 : vector<8x8x128xf32> to vector<64x128xf32>
    %c0_72 = arith.constant 0 : index
    %c384 = arith.constant 384 : index
    %69 = vector.load %arg8[%c0_72, %c384] : memref<64x2048xf32, #tpu.memory_space<vmem>>, vector<64x128xf32>
    tpu.vector_store %arg8[%c0_72, %c384], %68 {strides = array<i32>} : memref<64x2048xf32, #tpu.memory_space<vmem>>, vector<64x128xf32>,
    %c1_73 = arith.constant 1 : index
    %c0_74 = arith.constant 0 : index
    %c0_75 = arith.constant 0 : index
    %c0_76 = arith.constant 0 : index
    %70 = vector.load %arg7[%c1_73, %c0_74, %c0_75, %c0_76] : memref<4x9x9x128xf32, #tpu.memory_space<vmem>>, vector<1x8x8x128xf32>
    %71 = vector.shape_cast %70 : vector<1x8x8x128xf32> to vector<8x8x128xf32>
    %72 = vector.shape_cast %71 : vector<8x8x128xf32> to vector<64x128xf32>
    %c0_77 = arith.constant 0 : index
    %c512 = arith.constant 512 : index
    %73 = vector.load %arg8[%c0_77, %c512] : memref<64x2048xf32, #tpu.memory_space<vmem>>, vector<64x128xf32>
    tpu.vector_store %arg8[%c0_77, %c512], %72 {strides = array<i32>} : memref<64x2048xf32, #tpu.memory_space<vmem>>, vector<64x128xf32>,
    %c1_78 = arith.constant 1 : index
    %c0_79 = arith.constant 0 : index
    %c1_80 = arith.constant 1 : index
    %c0_81 = arith.constant 0 : index
    %74 = vector.load %arg7[%c1_78, %c0_79, %c1_80, %c0_81] : memref<4x9x9x128xf32, #tpu.memory_space<vmem>>, vector<1x8x8x128xf32>
    %75 = vector.shape_cast %74 : vector<1x8x8x128xf32> to vector<8x8x128xf32>
    %76 = vector.shape_cast %75 : vector<8x8x128xf32> to vector<64x128xf32>
    %c0_82 = arith.constant 0 : index
    %c640 = arith.constant 640 : index
    %77 = vector.load %arg8[%c0_82, %c640] : memref<64x2048xf32, #tpu.memory_space<vmem>>, vector<64x128xf32>
    tpu.vector_store %arg8[%c0_82, %c640], %76 {strides = array<i32>} : memref<64x2048xf32, #tpu.memory_space<vmem>>, vector<64x128xf32>,
    %c1_83 = arith.constant 1 : index
    %c1_84 = arith.constant 1 : index
    %c0_85 = arith.constant 0 : index
    %c0_86 = arith.constant 0 : index
    %78 = vector.load %arg7[%c1_83, %c1_84, %c0_85, %c0_86] : memref<4x9x9x128xf32, #tpu.memory_space<vmem>>, vector<1x8x8x128xf32>
    %79 = vector.shape_cast %78 : vector<1x8x8x128xf32> to vector<8x8x128xf32>
    %80 = vector.shape_cast %79 : vector<8x8x128xf32> to vector<64x128xf32>
    %c0_87 = arith.constant 0 : index
    %c768 = arith.constant 768 : index
    %81 = vector.load %arg8[%c0_87, %c768] : memref<64x2048xf32, #tpu.memory_space<vmem>>, vector<64x128xf32>
    tpu.vector_store %arg8[%c0_87, %c768], %80 {strides = array<i32>} : memref<64x2048xf32, #tpu.memory_space<vmem>>, vector<64x128xf32>,
    %c1_88 = arith.constant 1 : index
    %c1_89 = arith.constant 1 : index
    %c1_90 = arith.constant 1 : index
    %c0_91 = arith.constant 0 : index
    %82 = vector.load %arg7[%c1_88, %c1_89, %c1_90, %c0_91] : memref<4x9x9x128xf32, #tpu.memory_space<vmem>>, vector<1x8x8x128xf32>
    %83 = vector.shape_cast %82 : vector<1x8x8x128xf32> to vector<8x8x128xf32>
    %84 = vector.shape_cast %83 : vector<8x8x128xf32> to vector<64x128xf32>
    %c0_92 = arith.constant 0 : index
    %c896 = arith.constant 896 : index
    %85 = vector.load %arg8[%c0_92, %c896] : memref<64x2048xf32, #tpu.memory_space<vmem>>, vector<64x128xf32>
    tpu.vector_store %arg8[%c0_92, %c896], %84 {strides = array<i32>} : memref<64x2048xf32, #tpu.memory_space<vmem>>, vector<64x128xf32>,
    %c2_93 = arith.constant 2 : index
    %c0_94 = arith.constant 0 : index
    %c0_95 = arith.constant 0 : index
    %c0_96 = arith.constant 0 : index
    %86 = vector.load %arg7[%c2_93, %c0_94, %c0_95, %c0_96] : memref<4x9x9x128xf32, #tpu.memory_space<vmem>>, vector<1x8x8x128xf32>
    %87 = vector.shape_cast %86 : vector<1x8x8x128xf32> to vector<8x8x128xf32>
    %88 = vector.shape_cast %87 : vector<8x8x128xf32> to vector<64x128xf32>
    %c0_97 = arith.constant 0 : index
    %c1024 = arith.constant 1024 : index
    %89 = vector.load %arg8[%c0_97, %c1024] : memref<64x2048xf32, #tpu.memory_space<vmem>>, vector<64x128xf32>
    tpu.vector_store %arg8[%c0_97, %c1024], %88 {strides = array<i32>} : memref<64x2048xf32, #tpu.memory_space<vmem>>, vector<64x128xf32>,
    %c2_98 = arith.constant 2 : index
    %c0_99 = arith.constant 0 : index
    %c1_100 = arith.constant 1 : index
    %c0_101 = arith.constant 0 : index
    %90 = vector.load %arg7[%c2_98, %c0_99, %c1_100, %c0_101] : memref<4x9x9x128xf32, #tpu.memory_space<vmem>>, vector<1x8x8x128xf32>
    %91 = vector.shape_cast %90 : vector<1x8x8x128xf32> to vector<8x8x128xf32>
    %92 = vector.shape_cast %91 : vector<8x8x128xf32> to vector<64x128xf32>
    %c0_102 = arith.constant 0 : index
    %c1152 = arith.constant 1152 : index
    %93 = vector.load %arg8[%c0_102, %c1152] : memref<64x2048xf32, #tpu.memory_space<vmem>>, vector<64x128xf32>
    tpu.vector_store %arg8[%c0_102, %c1152], %92 {strides = array<i32>} : memref<64x2048xf32, #tpu.memory_space<vmem>>, vector<64x128xf32>,
    %c2_103 = arith.constant 2 : index
    %c1_104 = arith.constant 1 : index
    %c0_105 = arith.constant 0 : index
    %c0_106 = arith.constant 0 : index
    %94 = vector.load %arg7[%c2_103, %c1_104, %c0_105, %c0_106] : memref<4x9x9x128xf32, #tpu.memory_space<vmem>>, vector<1x8x8x128xf32>
    %95 = vector.shape_cast %94 : vector<1x8x8x128xf32> to vector<8x8x128xf32>
    %96 = vector.shape_cast %95 : vector<8x8x128xf32> to vector<64x128xf32>
    %c0_107 = arith.constant 0 : index
    %c1280 = arith.constant 1280 : index
    %97 = vector.load %arg8[%c0_107, %c1280] : memref<64x2048xf32, #tpu.memory_space<vmem>>, vector<64x128xf32>
    tpu.vector_store %arg8[%c0_107, %c1280], %96 {strides = array<i32>} : memref<64x2048xf32, #tpu.memory_space<vmem>>, vector<64x128xf32>,
    %c2_108 = arith.constant 2 : index
    %c1_109 = arith.constant 1 : index
    %c1_110 = arith.constant 1 : index
    %c0_111 = arith.constant 0 : index
    %98 = vector.load %arg7[%c2_108, %c1_109, %c1_110, %c0_111] : memref<4x9x9x128xf32, #tpu.memory_space<vmem>>, vector<1x8x8x128xf32>
    %99 = vector.shape_cast %98 : vector<1x8x8x128xf32> to vector<8x8x128xf32>
    %100 = vector.shape_cast %99 : vector<8x8x128xf32> to vector<64x128xf32>
    %c0_112 = arith.constant 0 : index
    %c1408 = arith.constant 1408 : index
    %101 = vector.load %arg8[%c0_112, %c1408] : memref<64x2048xf32, #tpu.memory_space<vmem>>, vector<64x128xf32>
    tpu.vector_store %arg8[%c0_112, %c1408], %100 {strides = array<i32>} : memref<64x2048xf32, #tpu.memory_space<vmem>>, vector<64x128xf32>,
    %c3_113 = arith.constant 3 : index
    %c0_114 = arith.constant 0 : index
    %c0_115 = arith.constant 0 : index
    %c0_116 = arith.constant 0 : index
    %102 = vector.load %arg7[%c3_113, %c0_114, %c0_115, %c0_116] : memref<4x9x9x128xf32, #tpu.memory_space<vmem>>, vector<1x8x8x128xf32>
    %103 = vector.shape_cast %102 : vector<1x8x8x128xf32> to vector<8x8x128xf32>
    %104 = vector.shape_cast %103 : vector<8x8x128xf32> to vector<64x128xf32>
    %c0_117 = arith.constant 0 : index
    %c1536 = arith.constant 1536 : index
    %105 = vector.load %arg8[%c0_117, %c1536] : memref<64x2048xf32, #tpu.memory_space<vmem>>, vector<64x128xf32>
    tpu.vector_store %arg8[%c0_117, %c1536], %104 {strides = array<i32>} : memref<64x2048xf32, #tpu.memory_space<vmem>>, vector<64x128xf32>,
    %c3_118 = arith.constant 3 : index
    %c0_119 = arith.constant 0 : index
    %c1_120 = arith.constant 1 : index
    %c0_121 = arith.constant 0 : index
    %106 = vector.load %arg7[%c3_118, %c0_119, %c1_120, %c0_121] : memref<4x9x9x128xf32, #tpu.memory_space<vmem>>, vector<1x8x8x128xf32>
    %107 = vector.shape_cast %106 : vector<1x8x8x128xf32> to vector<8x8x128xf32>
    %108 = vector.shape_cast %107 : vector<8x8x128xf32> to vector<64x128xf32>
    %c0_122 = arith.constant 0 : index
    %c1664 = arith.constant 1664 : index
    %109 = vector.load %arg8[%c0_122, %c1664] : memref<64x2048xf32, #tpu.memory_space<vmem>>, vector<64x128xf32>
    tpu.vector_store %arg8[%c0_122, %c1664], %108 {strides = array<i32>} : memref<64x2048xf32, #tpu.memory_space<vmem>>, vector<64x128xf32>,
    %c3_123 = arith.constant 3 : index
    %c1_124 = arith.constant 1 : index
    %c0_125 = arith.constant 0 : index
    %c0_126 = arith.constant 0 : index
    %110 = vector.load %arg7[%c3_123, %c1_124, %c0_125, %c0_126] : memref<4x9x9x128xf32, #tpu.memory_space<vmem>>, vector<1x8x8x128xf32>
    %111 = vector.shape_cast %110 : vector<1x8x8x128xf32> to vector<8x8x128xf32>
    %112 = vector.shape_cast %111 : vector<8x8x128xf32> to vector<64x128xf32>
    %c0_127 = arith.constant 0 : index
    %c1792 = arith.constant 1792 : index
    %113 = vector.load %arg8[%c0_127, %c1792] : memref<64x2048xf32, #tpu.memory_space<vmem>>, vector<64x128xf32>
    tpu.vector_store %arg8[%c0_127, %c1792], %112 {strides = array<i32>} : memref<64x2048xf32, #tpu.memory_space<vmem>>, vector<64x128xf32>,
    %c3_128 = arith.constant 3 : index
    %c1_129 = arith.constant 1 : index
    %c1_130 = arith.constant 1 : index
    %c0_131 = arith.constant 0 : index
    %114 = vector.load %arg7[%c3_128, %c1_129, %c1_130, %c0_131] : memref<4x9x9x128xf32, #tpu.memory_space<vmem>>, vector<1x8x8x128xf32>
    %115 = vector.shape_cast %114 : vector<1x8x8x128xf32> to vector<8x8x128xf32>
    %116 = vector.shape_cast %115 : vector<8x8x128xf32> to vector<64x128xf32>
    %c0_132 = arith.constant 0 : index
    %c1920 = arith.constant 1920 : index
    %117 = vector.load %arg8[%c0_132, %c1920] : memref<64x2048xf32, #tpu.memory_space<vmem>>, vector<64x128xf32>
    tpu.vector_store %arg8[%c0_132, %c1920], %116 {strides = array<i32>} : memref<64x2048xf32, #tpu.memory_space<vmem>>, vector<64x128xf32>,
    %c0_133 = arith.constant 0 : index
    %c0_134 = arith.constant 0 : index
    %118 = vector.load %arg8[%c0_133, %c0_134] : memref<64x2048xf32, #tpu.memory_space<vmem>>, vector<64x2048xf32>
    %c0_135 = arith.constant 0 : index
    %c0_136 = arith.constant 0 : index
    %119 = vector.load %arg4[%c0_135, %c0_136] : memref<2048x128xf32, #tpu.memory_space<vmem>>, vector<2048x128xf32>
    %cst_137 = arith.constant dense<0.000000e+00> : vector<64x128xf32>
    %120 = tpu.matmul %118, %119, %cst_137 {dimension_numbers = #tpu.dot_dimension_numbers<[1], [0], [0], [1], [0, 0, 1, 1], [], []>} : vector<64x2048xf32>, vector<2048x128xf32>, vector<64x128xf32> -> vector<64x128xf32>
    %c0_138 = arith.constant 0 : index
    %c0_139 = arith.constant 0 : index
    %121 = vector.load %arg5[%c0_138, %c0_139] : memref<1x128xf32, #tpu.memory_space<vmem>>, vector<1x128xf32>
    %122 = vector.broadcast %121 : vector<1x128xf32> to vector<64x128xf32>
    %123 = arith.addf %120, %122 : vector<64x128xf32>
    %124 = vector.shape_cast %123 : vector<64x128xf32> to vector<1x8x8x128xf32>
    %c0_140 = arith.constant 0 : index
    %c0_141 = arith.constant 0 : index
    %c0_142 = arith.constant 0 : index
    %c0_143 = arith.constant 0 : index
    %125 = vector.load %arg6[%c0_140, %c0_141, %c0_142, %c0_143] : memref<1x8x8x128xf32, #tpu.memory_space<vmem>>, vector<1x8x8x128xf32>
    tpu.vector_store %arg6[%c0_140, %c0_141, %c0_142, %c0_143], %124 {strides = array<i32>} : memref<1x8x8x128xf32, #tpu.memory_space<vmem>>, vector<1x8x8x128xf32>,
    return
  }
  func.func @transform_0(%arg0: i32) -> (i32, i32, i32, i32, i32) {
    %c0_i32 = arith.constant 0 : i32
    %c0_i32_0 = arith.constant 0 : i32
    %c0_i32_1 = arith.constant 0 : i32
    %c0_i32_2 = arith.constant 0 : i32
    %c0_i32_3 = arith.constant 0 : i32
    return %arg0, %c0_i32, %c0_i32_0, %c0_i32_1, %c0_i32_2 : i32, i32, i32, i32, i32
  }
  func.func @transform_1(%arg0: i32) -> (i32, i32) {
    %c0_i32 = arith.constant 0 : i32
    %c0_i32_0 = arith.constant 0 : i32
    %c0_i32_1 = arith.constant 0 : i32
    return %c0_i32, %c0_i32_0 : i32, i32
  }
  func.func @transform_2(%arg0: i32) -> (i32, i32) {
    %c0_i32 = arith.constant 0 : i32
    %c0_i32_0 = arith.constant 0 : i32
    %c0_i32_1 = arith.constant 0 : i32
    return %c0_i32, %c0_i32_0 : i32, i32
  }
  func.func @transform_3(%arg0: i32) -> (i32, i32) {
    %c0_i32 = arith.constant 0 : i32
    %c0_i32_0 = arith.constant 0 : i32
    %c0_i32_1 = arith.constant 0 : i32
    return %c0_i32, %c0_i32_0 : i32, i32
  }
  func.func @transform_4(%arg0: i32) -> (i32, i32) {
    %c0_i32 = arith.constant 0 : i32
    %c0_i32_0 = arith.constant 0 : i32
    %c0_i32_1 = arith.constant 0 : i32
    return %c0_i32, %c0_i32_0 : i32, i32
  }
  func.func @transform_5(%arg0: i32) -> (i32, i32, i32, i32) {
    %c0_i32 = arith.constant 0 : i32
    %c0_i32_0 = arith.constant 0 : i32
    %c0_i32_1 = arith.constant 0 : i32
    %c0_i32_2 = arith.constant 0 : i32
    return %arg0, %c0_i32, %c0_i32_0, %c0_i32_1 : i32, i32, i32, i32
  }
}

</mosaic_0001>

<llo_original>
// kernel: block_forward.3
$region0: #{block_forward.3}
  #allocation0 [shape = 'u32[]', space=smem, size = 0x4, offset = 0x4, fixed_abs, tag = 'smem constant byte address 0x4 - core index']
  #allocation1 [shape = 'u32[144,128]{1,0:T(1,128)}', space=vmem, size = 0x12000, scoped, tag = 'internal scratch']
  #allocation2 [shape = 'f32[256,1152]{1,0:T(8,128)}', space=vmem, size = 0x120000, scoped, tag = 'scratch operand']
  %s0 = inlined_call_operand.vmem [shape: f32[2,18,18,128], index: 0, kind: input, shape index: {}]
  %s1 = inlined_call_operand.vmem [shape: f32[1152,128], index: 1, kind: input, shape index: {}]
  %s2 = inlined_call_operand.vmem [shape: f32[1,128], index: 2, kind: input, shape index: {}]
  %s3 = inlined_call_operand.vmem [shape: f32[2,16,16,128], index: 3, kind: output, shape index: {0}]
  %s4 = inlined_call_operand.vmem [shape: f32[2,2,128], index: 4, kind: output, shape index: {1}]
  %5 = xla_tuple %s3, %s4
  %s6 = sld [smem:[#allocation0]]
  $region53: #{block_forward.3} parent=0
    _
  %s8 = ssub.s32 1, %s6
  %s9 = scalar_select 0, %s8, %s6
  loop: start=0, step=1, limit=4
  $region2: #{block_forward.3} parent=0 // loop_pre_header
    _
  $region3: #{block_forward.3} parent=0 // loop_header
    %s11 = sphi 0, %s15
    %p12 = scmp.ge.s32.totalorder %s11, 4
    %s21 = sphi 0, %s23
    %s24 = sphi 0, %s21
    %s25 = sphi 0, %s24
    %s41 = sphi 0, %s25
    %s45 = sphi 0, %s45
    %s47 = sphi 0, %s45
    %s48 = sphi 0, %s47
    %s62 = sphi 0, %s48
    %s66 = sphi 0, %s66
    %s68 = sphi 0, %s66
    %s69 = sphi 0, %s68
    %s83 = sphi 0, %s69
    %s89 = sphi 0, %s91
    %s92 = sphi 0, %s89
    %s93 = sphi 0, %s92
    %s109 = sphi 0, %s93
    %s115 = sphi 0, %s117
    %s118 = sphi 0, %s115
    %s119 = sphi 0, %s118
    %s135 = sphi 0, %s119
  $region4: #{block_forward.3} parent=0 // loop_header_branch
    %14 = sbr.rel (%p12) target = $region8
  $region5: #{block_forward.3} parent=0 // loop_body
    %s16 = ssub.s32 %s11, 1
    %s17 = ssub.s32 %s11, 2
    %s18 = sadd.s32 %s11, 1
    %s19 = ssub.s32 %s11, %s18
    %p20 = scmp.eq.s32.totalorder %s19, 0
    %s22 = sadd.s32 %s21, 1
    %s23 = scalar_select %p20, %s21, %s22
    %p26 = pneg %p20
    %p27 = scmp.eq.s32.totalorder %s11, 1
    %p28 = por %p26, %p27
    %p29 = scmp.ne.s32.totalorder %s21, %s24
    %p30 = scmp.eq.s32.totalorder %s11, 0
    %p31 = por %p29, %p30
    %p32 = scmp.ne.s32.totalorder %s21, %s24
    %p33 = scmp.eq.s32.totalorder %s16, 1
    %p34 = por %p32, %p33
    %p35 = scmp.ne.s32.totalorder %s24, %s25
    %p36 = scmp.eq.s32.totalorder %s16, 0
    %p37 = por %p35, %p36
    %p38 = scmp.ne.s32.totalorder %s24, %s25
    %p39 = scmp.eq.s32.totalorder %s17, 1
    %p40 = por %p38, %p39
    %p42 = scmp.ne.s32.totalorder %s25, %s41
    %p43 = scmp.eq.s32.totalorder %s17, 0
    %p44 = por %p42, %p43
    %s46 = sadd.s32 %s45, 1
    %p49 = scmp.eq.s32.totalorder %s11, 1
    %p50 = scmp.ne.s32.totalorder %s45, %s47
    %p51 = scmp.eq.s32.totalorder %s11, 0
    %p52 = por %p50, %p51
    %p53 = scmp.ne.s32.totalorder %s45, %s47
    %p54 = scmp.eq.s32.totalorder %s16, 1
    %p55 = por %p53, %p54
    %p56 = scmp.ne.s32.totalorder %s47, %s48
    %p57 = scmp.eq.s32.totalorder %s16, 0
    %p58 = por %p56, %p57
    %p59 = scmp.ne.s32.totalorder %s47, %s48
    %p60 = scmp.eq.s32.totalorder %s17, 1
    %p61 = por %p59, %p60
    %p63 = scmp.ne.s32.totalorder %s48, %s62
    %p64 = scmp.eq.s32.totalorder %s17, 0
    %p65 = por %p63, %p64
    %s67 = sadd.s32 %s66, 1
    %p70 = scmp.eq.s32.totalorder %s11, 1
    %p71 = scmp.ne.s32.totalorder %s66, %s68
    %p72 = scmp.eq.s32.totalorder %s11, 0
    %p73 = por %p71, %p72
    %p74 = scmp.ne.s32.totalorder %s66, %s68
    %p75 = scmp.eq.s32.totalorder %s16, 1
    %p76 = por %p74, %p75
    %p77 = scmp.ne.s32.totalorder %s68, %s69
    %p78 = scmp.eq.s32.totalorder %s16, 0
    %p79 = por %p77, %p78
    %p80 = scmp.ne.s32.totalorder %s68, %s69
    %p81 = scmp.eq.s32.totalorder %s17, 1
    %p82 = por %p80, %p81
    %p84 = scmp.ne.s32.totalorder %s69, %s83
    %p85 = scmp.eq.s32.totalorder %s17, 0
    %p86 = por %p84, %p85
    %s87 = ssub.s32 %s11, %s18
    %p88 = scmp.eq.s32.totalorder %s87, 0
    %s90 = sadd.s32 %s89, 1
    %s91 = scalar_select %p88, %s89, %s90
    %p94 = pneg %p88
    %p95 = scmp.eq.s32.totalorder %s11, 1
    %p96 = por %p94, %p95
    %p97 = scmp.ne.s32.totalorder %s89, %s92
    %p98 = scmp.eq.s32.totalorder %s11, 0
    %p99 = por %p97, %p98
    %p100 = scmp.ne.s32.totalorder %s89, %s92
    %p101 = scmp.eq.s32.totalorder %s16, 1
    %p102 = por %p100, %p101
    %p103 = scmp.ne.s32.totalorder %s92, %s93
    %p104 = scmp.eq.s32.totalorder %s16, 0
    %p105 = por %p103, %p104
    %p106 = scmp.ne.s32.totalorder %s92, %s93
    %p107 = scmp.eq.s32.totalorder %s17, 1
    %p108 = por %p106, %p107
    %p110 = scmp.ne.s32.totalorder %s93, %s109
    %p111 = scmp.eq.s32.totalorder %s17, 0
    %p112 = por %p110, %p111
    %s113 = ssub.s32 %s11, %s18
    %p114 = scmp.eq.s32.totalorder %s113, 0
    %s116 = sadd.s32 %s115, 1
    %s117 = scalar_select %p114, %s115, %s116
    %p120 = pneg %p114
    %p121 = scmp.eq.s32.totalorder %s11, 1
    %p122 = por %p120, %p121
    %p123 = scmp.ne.s32.totalorder %s115, %s118
    %p124 = scmp.eq.s32.totalorder %s11, 0
    %p125 = por %p123, %p124
    %p126 = scmp.ne.s32.totalorder %s115, %s118
    %p127 = scmp.eq.s32.totalorder %s16, 1
    %p128 = por %p126, %p127
    %p129 = scmp.ne.s32.totalorder %s118, %s119
    %p130 = scmp.eq.s32.totalorder %s16, 0
    %p131 = por %p129, %p130
    %p132 = scmp.ne.s32.totalorder %s118, %s119
    %p133 = scmp.eq.s32.totalorder %s17, 1
    %p134 = por %p132, %p133
    %p136 = scmp.ne.s32.totalorder %s119, %s135
    %p137 = scmp.eq.s32.totalorder %s17, 0
    %p138 = por %p136, %p137
    %p139 = scmp.le.s32.totalorder 1, %s11
    %p140 = scmp.lt.s32.totalorder %s11, 3
    %p141 = pnand %p139, %p140
    %p142 = pneg %p141
    // Predicated region
    $region9: #{block_forward.3} parent=5 // pred_check
      _
    $region10: #{block_forward.3} parent=5 // pred_check_branch
      %144 = sbr.rel (%p141) target = $region12
    $region11: #{block_forward.3} parent=5 // pred_region
      %s145 = ssub.s32 %s11, 1
      // Predicated region
      $region13: #{block_forward.3} parent=11 // pred_check
        %p146 = pneg %p58
      $region14: #{block_forward.3} parent=11 // pred_check_branch
        %148 = sbr.rel (%p146) target = $region16
      $region15: #{block_forward.3} parent=11 // pred_region
        _
      $region16: #{block_forward.3} parent=11 // pred_fallthru
        _
      // Predicated region
      $region17: #{block_forward.3} parent=11 // pred_check
        %p149 = pneg %p79
      $region18: #{block_forward.3} parent=11 // pred_check_branch
        %151 = sbr.rel (%p149) target = $region20
      $region19: #{block_forward.3} parent=11 // pred_region
        _
      $region20: #{block_forward.3} parent=11 // pred_fallthru
        _
    $region12: #{block_forward.3} parent=5 // pred_fallthru
      _
    %p152 = scmp.lt.s32.totalorder %s11, 2
    // Predicated region
    $region21: #{block_forward.3} parent=5 // pred_check
      %p153 = pneg %p152
    $region22: #{block_forward.3} parent=5 // pred_check_branch
      %155 = sbr.rel (%p153) target = $region24
    $region23: #{block_forward.3} parent=5 // pred_region
      // Predicated region
      $region25: #{block_forward.3} parent=23 // pred_check
        %p156 = pneg %p31
      $region26: #{block_forward.3} parent=23 // pred_check_branch
        %158 = sbr.rel (%p156) target = $region28
      $region27: #{block_forward.3} parent=23 // pred_region
        %p159 = scmp.lt.s32.totalorder %s11, 1
        %s160 = scalar_select %p159, %s11, 1
        %s161 = smul.addr %s160, 54
        %s162 = smul.addr %s161, 8
        %s163 = scalar_lea.vmem %s0, %s162
      $region28: #{block_forward.3} parent=23 // pred_fallthru
        _
    $region24: #{block_forward.3} parent=5 // pred_fallthru
      _
    %p164 = scmp.le.s32.totalorder 1, %s11
    %p165 = scmp.lt.s32.totalorder %s11, 3
    %p166 = pnand %p164, %p165
    %p167 = pneg %p166
    // Predicated region
    $region29: #{block_forward.3} parent=5 // pred_check
      _
    $region30: #{block_forward.3} parent=5 // pred_check_branch
      %169 = sbr.rel (%p166) target = $region32
    $region31: #{block_forward.3} parent=5 // pred_region
      %s170 = ssub.s32 %s11, 1
      %p171 = scmp.lt.s32.totalorder %s16, 1
      %s172 = scalar_select %p171, %s16, 1
      %s173 = smul.addr %s172, 54
      %s174 = smul.addr %s173, 8
      %s175 = scalar_lea.vmem %s0, %s174
      %p176 = pneg %p37
      %p177 = pneg %p34
      %p178 = pneg %p58
      %p179 = pneg %p55
      %p180 = pneg %p79
      %p181 = pneg %p76
      %p182 = pneg %p105
      %p183 = pneg %p102
      %p184 = scmp.lt.s32.totalorder %s16, 1
      %s185 = scalar_select %p184, %s16, 1
      %s186 = smul.addr %s185, 32
      %s187 = smul.addr %s186, 8
      %s188 = scalar_lea.vmem %s3, %s187
      %p189 = pneg %p131
      %p190 = pneg %p128
      %p191 = scmp.lt.s32.totalorder %s16, 1
      %s192 = scalar_select %p191, %s16, 1
      %s193 = smul.addr %s192, 2
      %s194 = scalar_lea.vmem %s4, %s193
      %p195 = scmp.lt.s32.totalorder %s16, 1
      %s196 = scalar_select %p195, %s16, 1
      %s197 = smul.addr %s196, 54
      %s198 = smul.addr %s197, 8
      %s199 = scalar_lea.vmem %s0, %s198
      %p200 = scmp.lt.s32.totalorder %s16, 1
      %s201 = scalar_select %p200, %s16, 1
      %s202 = smul.addr %s201, 32
      %s203 = smul.addr %s202, 8
      %s204 = scalar_lea.vmem %s3, %s203
      %p205 = scmp.lt.s32.totalorder %s16, 1
      %s206 = scalar_select %p205, %s16, 1
      %s207 = smul.addr %s206, 2
      %s208 = scalar_lea.vmem %s4, %s207
      %v209 = vld [vmem:[%s199] sm:$0xff]
      %v210 = vld [vmem:[%s199 + $0x8] sm:$0xff]
      %v211 = vld [vmem:[%s199 + $0x18] sm:$0xff]
      %v212 = vld [vmem:[%s199 + $0x20] sm:$0xff]
      %v213 = vld [vmem:[%s199 + $0x30] sm:$0xff]
      %v214 = vld [vmem:[%s199 + $0x38] sm:$0xff]
      %v215 = vld [vmem:[%s199 + $0x48] sm:$0xff]
      %v216 = vld [vmem:[%s199 + $0x50] sm:$0xff]
      %v217 = vld [vmem:[%s199 + $0x60] sm:$0xff]
      %v218 = vld [vmem:[%s199 + $0x68] sm:$0xff]
      %v219 = vld [vmem:[%s199 + $0x78] sm:$0xff]
      %v220 = vld [vmem:[%s199 + $0x80] sm:$0xff]
      %v221 = vld [vmem:[%s199 + $0x90] sm:$0xff]
      %v222 = vld [vmem:[%s199 + $0x98] sm:$0xff]
      %v223 = vld [vmem:[%s199 + $0xa8] sm:$0xff]
      %v224 = vld [vmem:[%s199 + $0xb0] sm:$0xff]
      %v225 = vld [vmem:[%s199 + $0xc0] sm:$0xff]
      %v226 = vld [vmem:[%s199 + $0xc8] sm:$0xff]
      %v227 = vld [vmem:[%s199 + $0xd8] sm:$0xff]
      %v228 = vld [vmem:[%s199 + $0xe0] sm:$0xff]
      %v229 = vld [vmem:[%s199 + $0xf0] sm:$0xff]
      %v230 = vld [vmem:[%s199 + $0xf8] sm:$0xff]
      %v231 = vld [vmem:[%s199 + $0x108] sm:$0xff]
      %v232 = vld [vmem:[%s199 + $0x110] sm:$0xff]
      %v233 = vld [vmem:[%s199 + $0x120] sm:$0xff]
      %v234 = vld [vmem:[%s199 + $0x128] sm:$0xff]
      %v235 = vld [vmem:[%s199 + $0x138] sm:$0xff]
      %v236 = vld [vmem:[%s199 + $0x140] sm:$0xff]
      %v237 = vld [vmem:[%s199 + $0x150] sm:$0xff]
      %v238 = vld [vmem:[%s199 + $0x158] sm:$0xff]
      %v239 = vld [vmem:[%s199 + $0x168] sm:$0xff]
      %v240 = vld [vmem:[%s199 + $0x170] sm:$0xff]
      %241 = vst [vmem:[#allocation2] sm:$0xff] %v209
      %242 = vst [vmem:[#allocation2 + $0x48] sm:$0xff] %v210
      %243 = vst [vmem:[#allocation2 + $0x90] sm:$0xff] %v211
      %244 = vst [vmem:[#allocation2 + $0xd8] sm:$0xff] %v212
      %245 = vst [vmem:[#allocation2 + $0x120] sm:$0xff] %v213
      %246 = vst [vmem:[#allocation2 + $0x168] sm:$0xff] %v214
      %247 = vst [vmem:[#allocation2 + $0x1b0] sm:$0xff] %v215
      %248 = vst [vmem:[#allocation2 + $0x1f8] sm:$0xff] %v216
      %249 = vst [vmem:[#allocation2 + $0x240] sm:$0xff] %v217
      %250 = vst [vmem:[#allocation2 + $0x288] sm:$0xff] %v218
      %251 = vst [vmem:[#allocation2 + $0x2d0] sm:$0xff] %v219
      %252 = vst [vmem:[#allocation2 + $0x318] sm:$0xff] %v220
      %253 = vst [vmem:[#allocation2 + $0x360] sm:$0xff] %v221
      %254 = vst [vmem:[#allocation2 + $0x3a8] sm:$0xff] %v222
      %255 = vst [vmem:[#allocation2 + $0x3f0] sm:$0xff] %v223
      %256 = vst [vmem:[#allocation2 + $0x438] sm:$0xff] %v224
      %257 = vst [vmem:[#allocation2 + $0x480] sm:$0xff] %v225
      %258 = vst [vmem:[#allocation2 + $0x4c8] sm:$0xff] %v226
      %259 = vst [vmem:[#allocation2 + $0x510] sm:$0xff] %v227
      %260 = vst [vmem:[#allocation2 + $0x558] sm:$0xff] %v228
      %261 = vst [vmem:[#allocation2 + $0x5a0] sm:$0xff] %v229
      %262 = vst [vmem:[#allocation2 + $0x5e8] sm:$0xff] %v230
      %263 = vst [vmem:[#allocation2 + $0x630] sm:$0xff] %v231
      %264 = vst [vmem:[#allocation2 + $0x678] sm:$0xff] %v232
      %265 = vst [vmem:[#allocation2 + $0x6c0] sm:$0xff] %v233
      %266 = vst [vmem:[#allocation2 + $0x708] sm:$0xff] %v234
      %267 = vst [vmem:[#allocation2 + $0x750] sm:$0xff] %v235
      %268 = vst [vmem:[#allocation2 + $0x798] sm:$0xff] %v236
      %269 = vst [vmem:[#allocation2 + $0x7e0] sm:$0xff] %v237
      %270 = vst [vmem:[#allocation2 + $0x828] sm:$0xff] %v238
      %271 = vst [vmem:[#allocation2 + $0x870] sm:$0xff] %v239
      %272 = vst [vmem:[#allocation2 + $0x8b8] sm:$0xff] %v240
      %v273 = vld [vmem:[%s199 + $0x1] sm:$0xff]
      %v274 = vld [vmem:[%s199 + $0x9] sm:$0xff]
      %v275 = vld [vmem:[%s199 + $0x19] sm:$0xff]
      %v276 = vld [vmem:[%s199 + $0x21] sm:$0xff]
      %v277 = vld [vmem:[%s199 + $0x31] sm:$0xff]
      %v278 = vld [vmem:[%s199 + $0x39] sm:$0xff]
      %v279 = vld [vmem:[%s199 + $0x49] sm:$0xff]
      %v280 = vld [vmem:[%s199 + $0x51] sm:$0xff]
      %v281 = vld [vmem:[%s199 + $0x61] sm:$0xff]
      %v282 = vld [vmem:[%s199 + $0x69] sm:$0xff]
      %v283 = vld [vmem:[%s199 + $0x79] sm:$0xff]
      %v284 = vld [vmem:[%s199 + $0x81] sm:$0xff]
      %v285 = vld [vmem:[%s199 + $0x91] sm:$0xff]
      %v286 = vld [vmem:[%s199 + $0x99] sm:$0xff]
      %v287 = vld [vmem:[%s199 + $0xa9] sm:$0xff]
      %v288 = vld [vmem:[%s199 + $0xb1] sm:$0xff]
      %v289 = vld [vmem:[%s199 + $0xc1] sm:$0xff]
      %v290 = vld [vmem:[%s199 + $0xc9] sm:$0xff]
      %v291 = vld [vmem:[%s199 + $0xd9] sm:$0xff]
      %v292 = vld [vmem:[%s199 + $0xe1] sm:$0xff]
      %v293 = vld [vmem:[%s199 + $0xf1] sm:$0xff]
      %v294 = vld [vmem:[%s199 + $0xf9] sm:$0xff]
      %v295 = vld [vmem:[%s199 + $0x109] sm:$0xff]
      %v296 = vld [vmem:[%s199 + $0x111] sm:$0xff]
      %v297 = vld [vmem:[%s199 + $0x121] sm:$0xff]
      %v298 = vld [vmem:[%s199 + $0x129] sm:$0xff]
      %v299 = vld [vmem:[%s199 + $0x139] sm:$0xff]
      %v300 = vld [vmem:[%s199 + $0x141] sm:$0xff]
      %v301 = vld [vmem:[%s199 + $0x151] sm:$0xff]
      %v302 = vld [vmem:[%s199 + $0x159] sm:$0xff]
      %v303 = vld [vmem:[%s199 + $0x169] sm:$0xff]
      %v304 = vld [vmem:[%s199 + $0x171] sm:$0xff]
      %305 = vst [vmem:[#allocation2 + $0x8] sm:$0xff] %v273
      %306 = vst [vmem:[#allocation2 + $0x50] sm:$0xff] %v274
      %307 = vst [vmem:[#allocation2 + $0x98] sm:$0xff] %v275
      %308 = vst [vmem:[#allocation2 + $0xe0] sm:$0xff] %v276
      %309 = vst [vmem:[#allocation2 + $0x128] sm:$0xff] %v277
      %310 = vst [vmem:[#allocation2 + $0x170] sm:$0xff] %v278
      %311 = vst [vmem:[#allocation2 + $0x1b8] sm:$0xff] %v279
      %312 = vst [vmem:[#allocation2 + $0x200] sm:$0xff] %v280
      %313 = vst [vmem:[#allocation2 + $0x248] sm:$0xff] %v281
      %314 = vst [vmem:[#allocation2 + $0x290] sm:$0xff] %v282
      %315 = vst [vmem:[#allocation2 + $0x2d8] sm:$0xff] %v283
      %316 = vst [vmem:[#allocation2 + $0x320] sm:$0xff] %v284
      %317 = vst [vmem:[#allocation2 + $0x368] sm:$0xff] %v285
      %318 = vst [vmem:[#allocation2 + $0x3b0] sm:$0xff] %v286
      %319 = vst [vmem:[#allocation2 + $0x3f8] sm:$0xff] %v287
      %320 = vst [vmem:[#allocation2 + $0x440] sm:$0xff] %v288
      %321 = vst [vmem:[#allocation2 + $0x488] sm:$0xff] %v289
      %322 = vst [vmem:[#allocation2 + $0x4d0] sm:$0xff] %v290
      %323 = vst [vmem:[#allocation2 + $0x518] sm:$0xff] %v291
      %324 = vst [vmem:[#allocation2 + $0x560] sm:$0xff] %v292
      %325 = vst [vmem:[#allocation2 + $0x5a8] sm:$0xff] %v293
      %326 = vst [vmem:[#allocation2 + $0x5f0] sm:$0xff] %v294
      %327 = vst [vmem:[#allocation2 + $0x638] sm:$0xff] %v295
      %328 = vst [vmem:[#allocation2 + $0x680] sm:$0xff] %v296
      %329 = vst [vmem:[#allocation2 + $0x6c8] sm:$0xff] %v297
      %330 = vst [vmem:[#allocation2 + $0x710] sm:$0xff] %v298
      %331 = vst [vmem:[#allocation2 + $0x758] sm:$0xff] %v299
      %332 = vst [vmem:[#allocation2 + $0x7a0] sm:$0xff] %v300
      %333 = vst [vmem:[#allocation2 + $0x7e8] sm:$0xff] %v301
      %334 = vst [vmem:[#allocation2 + $0x830] sm:$0xff] %v302
      %335 = vst [vmem:[#allocation2 + $0x878] sm:$0xff] %v303
      %336 = vst [vmem:[#allocation2 + $0x8c0] sm:$0xff] %v304
      %v337 = vld [vmem:[%s199 + $0x2] sm:$0xff]
      %v338 = vld [vmem:[%s199 + $0xa] sm:$0xff]
      %v339 = vld [vmem:[%s199 + $0x1a] sm:$0xff]
      %v340 = vld [vmem:[%s199 + $0x22] sm:$0xff]
      %v341 = vld [vmem:[%s199 + $0x32] sm:$0xff]
      %v342 = vld [vmem:[%s199 + $0x3a] sm:$0xff]
      %v343 = vld [vmem:[%s199 + $0x4a] sm:$0xff]
      %v344 = vld [vmem:[%s199 + $0x52] sm:$0xff]
      %v345 = vld [vmem:[%s199 + $0x62] sm:$0xff]
      %v346 = vld [vmem:[%s199 + $0x6a] sm:$0xff]
      %v347 = vld [vmem:[%s199 + $0x7a] sm:$0xff]
      %v348 = vld [vmem:[%s199 + $0x82] sm:$0xff]
      %v349 = vld [vmem:[%s199 + $0x92] sm:$0xff]
      %v350 = vld [vmem:[%s199 + $0x9a] sm:$0xff]
      %v351 = vld [vmem:[%s199 + $0xaa] sm:$0xff]
      %v352 = vld [vmem:[%s199 + $0xb2] sm:$0xff]
      %v353 = vld [vmem:[%s199 + $0xc2] sm:$0xff]
      %v354 = vld [vmem:[%s199 + $0xca] sm:$0xff]
      %v355 = vld [vmem:[%s199 + $0xda] sm:$0xff]
      %v356 = vld [vmem:[%s199 + $0xe2] sm:$0xff]
      %v357 = vld [vmem:[%s199 + $0xf2] sm:$0xff]
      %v358 = vld [vmem:[%s199 + $0xfa] sm:$0xff]
      %v359 = vld [vmem:[%s199 + $0x10a] sm:$0xff]
      %v360 = vld [vmem:[%s199 + $0x112] sm:$0xff]
      %v361 = vld [vmem:[%s199 + $0x122] sm:$0xff]
      %v362 = vld [vmem:[%s199 + $0x12a] sm:$0xff]
      %v363 = vld [vmem:[%s199 + $0x13a] sm:$0xff]
      %v364 = vld [vmem:[%s199 + $0x142] sm:$0xff]
      %v365 = vld [vmem:[%s199 + $0x152] sm:$0xff]
      %v366 = vld [vmem:[%s199 + $0x15a] sm:$0xff]
      %v367 = vld [vmem:[%s199 + $0x16a] sm:$0xff]
      %v368 = vld [vmem:[%s199 + $0x172] sm:$0xff]
      %369 = vst [vmem:[#allocation2 + $0x10] sm:$0xff] %v337
      %370 = vst [vmem:[#allocation2 + $0x58] sm:$0xff] %v338
      %371 = vst [vmem:[#allocation2 + $0xa0] sm:$0xff] %v339
      %372 = vst [vmem:[#allocation2 + $0xe8] sm:$0xff] %v340
      %373 = vst [vmem:[#allocation2 + $0x130] sm:$0xff] %v341
      %374 = vst [vmem:[#allocation2 + $0x178] sm:$0xff] %v342
      %375 = vst [vmem:[#allocation2 + $0x1c0] sm:$0xff] %v343
      %376 = vst [vmem:[#allocation2 + $0x208] sm:$0xff] %v344
      %377 = vst [vmem:[#allocation2 + $0x250] sm:$0xff] %v345
      %378 = vst [vmem:[#allocation2 + $0x298] sm:$0xff] %v346
      %379 = vst [vmem:[#allocation2 + $0x2e0] sm:$0xff] %v347
      %380 = vst [vmem:[#allocation2 + $0x328] sm:$0xff] %v348
      %381 = vst [vmem:[#allocation2 + $0x370] sm:$0xff] %v349
      %382 = vst [vmem:[#allocation2 + $0x3b8] sm:$0xff] %v350
      %383 = vst [vmem:[#allocation2 + $0x400] sm:$0xff] %v351
      %384 = vst [vmem:[#allocation2 + $0x448] sm:$0xff] %v352
      %385 = vst [vmem:[#allocation2 + $0x490] sm:$0xff] %v353
      %386 = vst [vmem:[#allocation2 + $0x4d8] sm:$0xff] %v354
      %387 = vst [vmem:[#allocation2 + $0x520] sm:$0xff] %v355
      %388 = vst [vmem:[#allocation2 + $0x568] sm:$0xff] %v356
      %389 = vst [vmem:[#allocation2 + $0x5b0] sm:$0xff] %v357
      %390 = vst [vmem:[#allocation2 + $0x5f8] sm:$0xff] %v358
      %391 = vst [vmem:[#allocation2 + $0x640] sm:$0xff] %v359
      %392 = vst [vmem:[#allocation2 + $0x688] sm:$0xff] %v360
      %393 = vst [vmem:[#allocation2 + $0x6d0] sm:$0xff] %v361
      %394 = vst [vmem:[#allocation2 + $0x718] sm:$0xff] %v362
      %395 = vst [vmem:[#allocation2 + $0x760] sm:$0xff] %v363
      %396 = vst [vmem:[#allocation2 + $0x7a8] sm:$0xff] %v364
      %397 = vst [vmem:[#allocation2 + $0x7f0] sm:$0xff] %v365
      %398 = vst [vmem:[#allocation2 + $0x838] sm:$0xff] %v366
      %399 = vst [vmem:[#allocation2 + $0x880] sm:$0xff] %v367
      %400 = vst [vmem:[#allocation2 + $0x8c8] sm:$0xff] %v368
      %s401 = scalar_lea.vmem %s199, 24
      %v402 = vld [vmem:[%s401] sm:$0xff]
      %v403 = vld [vmem:[%s401 + $0x8] sm:$0xff]
      %v404 = vld [vmem:[%s401 + $0x18] sm:$0xff]
      %v405 = vld [vmem:[%s401 + $0x20] sm:$0xff]
      %v406 = vld [vmem:[%s401 + $0x30] sm:$0xff]
      %v407 = vld [vmem:[%s401 + $0x38] sm:$0xff]
      %v408 = vld [vmem:[%s401 + $0x48] sm:$0xff]
      %v409 = vld [vmem:[%s401 + $0x50] sm:$0xff]
      %v410 = vld [vmem:[%s401 + $0x60] sm:$0xff]
      %v411 = vld [vmem:[%s401 + $0x68] sm:$0xff]
      %v412 = vld [vmem:[%s401 + $0x78] sm:$0xff]
      %v413 = vld [vmem:[%s401 + $0x80] sm:$0xff]
      %v414 = vld [vmem:[%s401 + $0x90] sm:$0xff]
      %v415 = vld [vmem:[%s401 + $0x98] sm:$0xff]
      %v416 = vld [vmem:[%s401 + $0xa8] sm:$0xff]
      %v417 = vld [vmem:[%s401 + $0xb0] sm:$0xff]
      %v418 = vld [vmem:[%s401 + $0xc0] sm:$0xff]
      %v419 = vld [vmem:[%s401 + $0xc8] sm:$0xff]
      %v420 = vld [vmem:[%s401 + $0xd8] sm:$0xff]
      %v421 = vld [vmem:[%s401 + $0xe0] sm:$0xff]
      %v422 = vld [vmem:[%s401 + $0xf0] sm:$0xff]
      %v423 = vld [vmem:[%s401 + $0xf8] sm:$0xff]
      %v424 = vld [vmem:[%s401 + $0x108] sm:$0xff]
      %v425 = vld [vmem:[%s401 + $0x110] sm:$0xff]
      %v426 = vld [vmem:[%s401 + $0x120] sm:$0xff]
      %v427 = vld [vmem:[%s401 + $0x128] sm:$0xff]
      %v428 = vld [vmem:[%s401 + $0x138] sm:$0xff]
      %v429 = vld [vmem:[%s401 + $0x140] sm:$0xff]
      %v430 = vld [vmem:[%s401 + $0x150] sm:$0xff]
      %v431 = vld [vmem:[%s401 + $0x158] sm:$0xff]
      %v432 = vld [vmem:[%s401 + $0x168] sm:$0xff]
      %v433 = vld [vmem:[%s401 + $0x170] sm:$0xff]
      %434 = vst [vmem:[#allocation2 + $0x18] sm:$0xff] %v402
      %435 = vst [vmem:[#allocation2 + $0x60] sm:$0xff] %v403
      %436 = vst [vmem:[#allocation2 + $0xa8] sm:$0xff] %v404
      %437 = vst [vmem:[#allocation2 + $0xf0] sm:$0xff] %v405
      %438 = vst [vmem:[#allocation2 + $0x138] sm:$0xff] %v406
      %439 = vst [vmem:[#allocation2 + $0x180] sm:$0xff] %v407
      %440 = vst [vmem:[#allocation2 + $0x1c8] sm:$0xff] %v408
      %441 = vst [vmem:[#allocation2 + $0x210] sm:$0xff] %v409
      %442 = vst [vmem:[#allocation2 + $0x258] sm:$0xff] %v410
      %443 = vst [vmem:[#allocation2 + $0x2a0] sm:$0xff] %v411
      %444 = vst [vmem:[#allocation2 + $0x2e8] sm:$0xff] %v412
      %445 = vst [vmem:[#allocation2 + $0x330] sm:$0xff] %v413
      %446 = vst [vmem:[#allocation2 + $0x378] sm:$0xff] %v414
      %447 = vst [vmem:[#allocation2 + $0x3c0] sm:$0xff] %v415
      %448 = vst [vmem:[#allocation2 + $0x408] sm:$0xff] %v416
      %449 = vst [vmem:[#allocation2 + $0x450] sm:$0xff] %v417
      %450 = vst [vmem:[#allocation2 + $0x498] sm:$0xff] %v418
      %451 = vst [vmem:[#allocation2 + $0x4e0] sm:$0xff] %v419
      %452 = vst [vmem:[#allocation2 + $0x528] sm:$0xff] %v420
      %453 = vst [vmem:[#allocation2 + $0x570] sm:$0xff] %v421
      %454 = vst [vmem:[#allocation2 + $0x5b8] sm:$0xff] %v422
      %455 = vst [vmem:[#allocation2 + $0x600] sm:$0xff] %v423
      %456 = vst [vmem:[#allocation2 + $0x648] sm:$0xff] %v424
      %457 = vst [vmem:[#allocation2 + $0x690] sm:$0xff] %v425
      %458 = vst [vmem:[#allocation2 + $0x6d8] sm:$0xff] %v426
      %459 = vst [vmem:[#allocation2 + $0x720] sm:$0xff] %v427
      %460 = vst [vmem:[#allocation2 + $0x768] sm:$0xff] %v428
      %461 = vst [vmem:[#allocation2 + $0x7b0] sm:$0xff] %v429
      %462 = vst [vmem:[#allocation2 + $0x7f8] sm:$0xff] %v430
      %463 = vst [vmem:[#allocation2 + $0x840] sm:$0xff] %v431
      %464 = vst [vmem:[#allocation2 + $0x888] sm:$0xff] %v432
      %465 = vst [vmem:[#allocation2 + $0x8d0] sm:$0xff] %v433
      %v466 = vld [vmem:[%s401 + $0x1] sm:$0xff]
      %v467 = vld [vmem:[%s401 + $0x9] sm:$0xff]
      %v468 = vld [vmem:[%s401 + $0x19] sm:$0xff]
      %v469 = vld [vmem:[%s401 + $0x21] sm:$0xff]
      %v470 = vld [vmem:[%s401 + $0x31] sm:$0xff]
      %v471 = vld [vmem:[%s401 + $0x39] sm:$0xff]
      %v472 = vld [vmem:[%s401 + $0x49] sm:$0xff]
      %v473 = vld [vmem:[%s401 + $0x51] sm:$0xff]
      %v474 = vld [vmem:[%s401 + $0x61] sm:$0xff]
      %v475 = vld [vmem:[%s401 + $0x69] sm:$0xff]
      %v476 = vld [vmem:[%s401 + $0x79] sm:$0xff]
      %v477 = vld [vmem:[%s401 + $0x81] sm:$0xff]
      %v478 = vld [vmem:[%s401 + $0x91] sm:$0xff]
      %v479 = vld [vmem:[%s401 + $0x99] sm:$0xff]
      %v480 = vld [vmem:[%s401 + $0xa9] sm:$0xff]
      %v481 = vld [vmem:[%s401 + $0xb1] sm:$0xff]
      %v482 = vld [vmem:[%s401 + $0xc1] sm:$0xff]
      %v483 = vld [vmem:[%s401 + $0xc9] sm:$0xff]
      %v484 = vld [vmem:[%s401 + $0xd9] sm:$0xff]
      %v485 = vld [vmem:[%s401 + $0xe1] sm:$0xff]
      %v486 = vld [vmem:[%s401 + $0xf1] sm:$0xff]
      %v487 = vld [vmem:[%s401 + $0xf9] sm:$0xff]
      %v488 = vld [vmem:[%s401 + $0x109] sm:$0xff]
      %v489 = vld [vmem:[%s401 + $0x111] sm:$0xff]
      %v490 = vld [vmem:[%s401 + $0x121] sm:$0xff]
      %v491 = vld [vmem:[%s401 + $0x129] sm:$0xff]
      %v492 = vld [vmem:[%s401 + $0x139] sm:$0xff]
      %v493 = vld [vmem:[%s401 + $0x141] sm:$0xff]
      %v494 = vld [vmem:[%s401 + $0x151] sm:$0xff]
      %v495 = vld [vmem:[%s401 + $0x159] sm:$0xff]
      %v496 = vld [vmem:[%s401 + $0x169] sm:$0xff]
      %v497 = vld [vmem:[%s401 + $0x171] sm:$0xff]
      %498 = vst [vmem:[#allocation2 + $0x20] sm:$0xff] %v466
      %499 = vst [vmem:[#allocation2 + $0x68] sm:$0xff] %v467
      %500 = vst [vmem:[#allocation2 + $0xb0] sm:$0xff] %v468
      %501 = vst [vmem:[#allocation2 + $0xf8] sm:$0xff] %v469
      %502 = vst [vmem:[#allocation2 + $0x140] sm:$0xff] %v470
      %503 = vst [vmem:[#allocation2 + $0x188] sm:$0xff] %v471
      %504 = vst [vmem:[#allocation2 + $0x1d0] sm:$0xff] %v472
      %505 = vst [vmem:[#allocation2 + $0x218] sm:$0xff] %v473
      %506 = vst [vmem:[#allocation2 + $0x260] sm:$0xff] %v474
      %507 = vst [vmem:[#allocation2 + $0x2a8] sm:$0xff] %v475
      %508 = vst [vmem:[#allocation2 + $0x2f0] sm:$0xff] %v476
      %509 = vst [vmem:[#allocation2 + $0x338] sm:$0xff] %v477
      %510 = vst [vmem:[#allocation2 + $0x380] sm:$0xff] %v478
      %511 = vst [vmem:[#allocation2 + $0x3c8] sm:$0xff] %v479
      %512 = vst [vmem:[#allocation2 + $0x410] sm:$0xff] %v480
      %513 = vst [vmem:[#allocation2 + $0x458] sm:$0xff] %v481
      %514 = vst [vmem:[#allocation2 + $0x4a0] sm:$0xff] %v482
      %515 = vst [vmem:[#allocation2 + $0x4e8] sm:$0xff] %v483
      %516 = vst [vmem:[#allocation2 + $0x530] sm:$0xff] %v484
      %517 = vst [vmem:[#allocation2 + $0x578] sm:$0xff] %v485
      %518 = vst [vmem:[#allocation2 + $0x5c0] sm:$0xff] %v486
      %519 = vst [vmem:[#allocation2 + $0x608] sm:$0xff] %v487
      %520 = vst [vmem:[#allocation2 + $0x650] sm:$0xff] %v488
      %521 = vst [vmem:[#allocation2 + $0x698] sm:$0xff] %v489
      %522 = vst [vmem:[#allocation2 + $0x6e0] sm:$0xff] %v490
      %523 = vst [vmem:[#allocation2 + $0x728] sm:$0xff] %v491
      %524 = vst [vmem:[#allocation2 + $0x770] sm:$0xff] %v492
      %525 = vst [vmem:[#allocation2 + $0x7b8] sm:$0xff] %v493
      %526 = vst [vmem:[#allocation2 + $0x800] sm:$0xff] %v494
      %527 = vst [vmem:[#allocation2 + $0x848] sm:$0xff] %v495
      %528 = vst [vmem:[#allocation2 + $0x890] sm:$0xff] %v496
      %529 = vst [vmem:[#allocation2 + $0x8d8] sm:$0xff] %v497
      %v530 = vld [vmem:[%s401 + $0x2] sm:$0xff]
      %v531 = vld [vmem:[%s401 + $0xa] sm:$0xff]
      %v532 = vld [vmem:[%s401 + $0x1a] sm:$0xff]
      %v533 = vld [vmem:[%s401 + $0x22] sm:$0xff]
      %v534 = vld [vmem:[%s401 + $0x32] sm:$0xff]
      %v535 = vld [vmem:[%s401 + $0x3a] sm:$0xff]
      %v536 = vld [vmem:[%s401 + $0x4a] sm:$0xff]
      %v537 = vld [vmem:[%s401 + $0x52] sm:$0xff]
      %v538 = vld [vmem:[%s401 + $0x62] sm:$0xff]
      %v539 = vld [vmem:[%s401 + $0x6a] sm:$0xff]
      %v540 = vld [vmem:[%s401 + $0x7a] sm:$0xff]
      %v541 = vld [vmem:[%s401 + $0x82] sm:$0xff]
      %v542 = vld [vmem:[%s401 + $0x92] sm:$0xff]
      %v543 = vld [vmem:[%s401 + $0x9a] sm:$0xff]
      %v544 = vld [vmem:[%s401 + $0xaa] sm:$0xff]
      %v545 = vld [vmem:[%s401 + $0xb2] sm:$0xff]
      %v546 = vld [vmem:[%s401 + $0xc2] sm:$0xff]
      %v547 = vld [vmem:[%s401 + $0xca] sm:$0xff]
      %v548 = vld [vmem:[%s401 + $0xda] sm:$0xff]
      %v549 = vld [vmem:[%s401 + $0xe2] sm:$0xff]
      %v550 = vld [vmem:[%s401 + $0xf2] sm:$0xff]
      %v551 = vld [vmem:[%s401 + $0xfa] sm:$0xff]
      %v552 = vld [vmem:[%s401 + $0x10a] sm:$0xff]
      %v553 = vld [vmem:[%s401 + $0x112] sm:$0xff]
      %v554 = vld [vmem:[%s401 + $0x122] sm:$0xff]
      %v555 = vld [vmem:[%s401 + $0x12a] sm:$0xff]
      %v556 = vld [vmem:[%s401 + $0x13a] sm:$0xff]
      %v557 = vld [vmem:[%s401 + $0x142] sm:$0xff]
      %v558 = vld [vmem:[%s401 + $0x152] sm:$0xff]
      %v559 = vld [vmem:[%s401 + $0x15a] sm:$0xff]
      %v560 = vld [vmem:[%s401 + $0x16a] sm:$0xff]
      %v561 = vld [vmem:[%s401 + $0x172] sm:$0xff]
      %562 = vst [vmem:[#allocation2 + $0x28] sm:$0xff] %v530
      %563 = vst [vmem:[#allocation2 + $0x70] sm:$0xff] %v531
      %564 = vst [vmem:[#allocation2 + $0xb8] sm:$0xff] %v532
      %565 = vst [vmem:[#allocation2 + $0x100] sm:$0xff] %v533
      %566 = vst [vmem:[#allocation2 + $0x148] sm:$0xff] %v534
      %567 = vst [vmem:[#allocation2 + $0x190] sm:$0xff] %v535
      %568 = vst [vmem:[#allocation2 + $0x1d8] sm:$0xff] %v536
      %569 = vst [vmem:[#allocation2 + $0x220] sm:$0xff] %v537
      %570 = vst [vmem:[#allocation2 + $0x268] sm:$0xff] %v538
      %571 = vst [vmem:[#allocation2 + $0x2b0] sm:$0xff] %v539
      %572 = vst [vmem:[#allocation2 + $0x2f8] sm:$0xff] %v540
      %573 = vst [vmem:[#allocation2 + $0x340] sm:$0xff] %v541
      %574 = vst [vmem:[#allocation2 + $0x388] sm:$0xff] %v542
      %575 = vst [vmem:[#allocation2 + $0x3d0] sm:$0xff] %v543
      %576 = vst [vmem:[#allocation2 + $0x418] sm:$0xff] %v544
      %577 = vst [vmem:[#allocation2 + $0x460] sm:$0xff] %v545
      %578 = vst [vmem:[#allocation2 + $0x4a8] sm:$0xff] %v546
      %579 = vst [vmem:[#allocation2 + $0x4f0] sm:$0xff] %v547
      %580 = vst [vmem:[#allocation2 + $0x538] sm:$0xff] %v548
      %581 = vst [vmem:[#allocation2 + $0x580] sm:$0xff] %v549
      %582 = vst [vmem:[#allocation2 + $0x5c8] sm:$0xff] %v550
      %583 = vst [vmem:[#allocation2 + $0x610] sm:$0xff] %v551
      %584 = vst [vmem:[#allocation2 + $0x658] sm:$0xff] %v552
      %585 = vst [vmem:[#allocation2 + $0x6a0] sm:$0xff] %v553
      %586 = vst [vmem:[#allocation2 + $0x6e8] sm:$0xff] %v554
      %587 = vst [vmem:[#allocation2 + $0x730] sm:$0xff] %v555
      %588 = vst [vmem:[#allocation2 + $0x778] sm:$0xff] %v556
      %589 = vst [vmem:[#allocation2 + $0x7c0] sm:$0xff] %v557
      %590 = vst [vmem:[#allocation2 + $0x808] sm:$0xff] %v558
      %591 = vst [vmem:[#allocation2 + $0x850] sm:$0xff] %v559
      %592 = vst [vmem:[#allocation2 + $0x898] sm:$0xff] %v560
      %593 = vst [vmem:[#allocation2 + $0x8e0] sm:$0xff] %v561
      %s594 = scalar_lea.vmem %s199, 48
      %v595 = vld [vmem:[%s594] sm:$0xff]
      %v596 = vld [vmem:[%s594 + $0x8] sm:$0xff]
      %v597 = vld [vmem:[%s594 + $0x18] sm:$0xff]
      %v598 = vld [vmem:[%s594 + $0x20] sm:$0xff]
      %v599 = vld [vmem:[%s594 + $0x30] sm:$0xff]
      %v600 = vld [vmem:[%s594 + $0x38] sm:$0xff]
      %v601 = vld [vmem:[%s594 + $0x48] sm:$0xff]
      %v602 = vld [vmem:[%s594 + $0x50] sm:$0xff]
      %v603 = vld [vmem:[%s594 + $0x60] sm:$0xff]
      %v604 = vld [vmem:[%s594 + $0x68] sm:$0xff]
      %v605 = vld [vmem:[%s594 + $0x78] sm:$0xff]
      %v606 = vld [vmem:[%s594 + $0x80] sm:$0xff]
      %v607 = vld [vmem:[%s594 + $0x90] sm:$0xff]
      %v608 = vld [vmem:[%s594 + $0x98] sm:$0xff]
      %v609 = vld [vmem:[%s594 + $0xa8] sm:$0xff]
      %v610 = vld [vmem:[%s594 + $0xb0] sm:$0xff]
      %v611 = vld [vmem:[%s594 + $0xc0] sm:$0xff]
      %v612 = vld [vmem:[%s594 + $0xc8] sm:$0xff]
      %v613 = vld [vmem:[%s594 + $0xd8] sm:$0xff]
      %v614 = vld [vmem:[%s594 + $0xe0] sm:$0xff]
      %v615 = vld [vmem:[%s594 + $0xf0] sm:$0xff]
      %v616 = vld [vmem:[%s594 + $0xf8] sm:$0xff]
      %v617 = vld [vmem:[%s594 + $0x108] sm:$0xff]
      %v618 = vld [vmem:[%s594 + $0x110] sm:$0xff]
      %v619 = vld [vmem:[%s594 + $0x120] sm:$0xff]
      %v620 = vld [vmem:[%s594 + $0x128] sm:$0xff]
      %v621 = vld [vmem:[%s594 + $0x138] sm:$0xff]
      %v622 = vld [vmem:[%s594 + $0x140] sm:$0xff]
      %v623 = vld [vmem:[%s594 + $0x150] sm:$0xff]
      %v624 = vld [vmem:[%s594 + $0x158] sm:$0xff]
      %v625 = vld [vmem:[%s594 + $0x168] sm:$0xff]
      %v626 = vld [vmem:[%s594 + $0x170] sm:$0xff]
      %627 = vst [vmem:[#allocation2 + $0x30] sm:$0xff] %v595
      %628 = vst [vmem:[#allocation2 + $0x78] sm:$0xff] %v596
      %629 = vst [vmem:[#allocation2 + $0xc0] sm:$0xff] %v597
      %630 = vst [vmem:[#allocation2 + $0x108] sm:$0xff] %v598
      %631 = vst [vmem:[#allocation2 + $0x150] sm:$0xff] %v599
      %632 = vst [vmem:[#allocation2 + $0x198] sm:$0xff] %v600
      %633 = vst [vmem:[#allocation2 + $0x1e0] sm:$0xff] %v601
      %634 = vst [vmem:[#allocation2 + $0x228] sm:$0xff] %v602
      %635 = vst [vmem:[#allocation2 + $0x270] sm:$0xff] %v603
      %636 = vst [vmem:[#allocation2 + $0x2b8] sm:$0xff] %v604
      %637 = vst [vmem:[#allocation2 + $0x300] sm:$0xff] %v605
      %638 = vst [vmem:[#allocation2 + $0x348] sm:$0xff] %v606
      %639 = vst [vmem:[#allocation2 + $0x390] sm:$0xff] %v607
      %640 = vst [vmem:[#allocation2 + $0x3d8] sm:$0xff] %v608
      %641 = vst [vmem:[#allocation2 + $0x420] sm:$0xff] %v609
      %642 = vst [vmem:[#allocation2 + $0x468] sm:$0xff] %v610
      %643 = vst [vmem:[#allocation2 + $0x4b0] sm:$0xff] %v611
      %644 = vst [vmem:[#allocation2 + $0x4f8] sm:$0xff] %v612
      %645 = vst [vmem:[#allocation2 + $0x540] sm:$0xff] %v613
      %646 = vst [vmem:[#allocation2 + $0x588] sm:$0xff] %v614
      %647 = vst [vmem:[#allocation2 + $0x5d0] sm:$0xff] %v615
      %648 = vst [vmem:[#allocation2 + $0x618] sm:$0xff] %v616
      %649 = vst [vmem:[#allocation2 + $0x660] sm:$0xff] %v617
      %650 = vst [vmem:[#allocation2 + $0x6a8] sm:$0xff] %v618
      %651 = vst [vmem:[#allocation2 + $0x6f0] sm:$0xff] %v619
      %652 = vst [vmem:[#allocation2 + $0x738] sm:$0xff] %v620
      %653 = vst [vmem:[#allocation2 + $0x780] sm:$0xff] %v621
      %654 = vst [vmem:[#allocation2 + $0x7c8] sm:$0xff] %v622
      %655 = vst [vmem:[#allocation2 + $0x810] sm:$0xff] %v623
      %656 = vst [vmem:[#allocation2 + $0x858] sm:$0xff] %v624
      %657 = vst [vmem:[#allocation2 + $0x8a0] sm:$0xff] %v625
      %658 = vst [vmem:[#allocation2 + $0x8e8] sm:$0xff] %v626
      %v659 = vld [vmem:[%s594 + $0x1] sm:$0xff]
      %v660 = vld [vmem:[%s594 + $0x9] sm:$0xff]
      %v661 = vld [vmem:[%s594 + $0x19] sm:$0xff]
      %v662 = vld [vmem:[%s594 + $0x21] sm:$0xff]
      %v663 = vld [vmem:[%s594 + $0x31] sm:$0xff]
      %v664 = vld [vmem:[%s594 + $0x39] sm:$0xff]
      %v665 = vld [vmem:[%s594 + $0x49] sm:$0xff]
      %v666 = vld [vmem:[%s594 + $0x51] sm:$0xff]
      %v667 = vld [vmem:[%s594 + $0x61] sm:$0xff]
      %v668 = vld [vmem:[%s594 + $0x69] sm:$0xff]
      %v669 = vld [vmem:[%s594 + $0x79] sm:$0xff]
      %v670 = vld [vmem:[%s594 + $0x81] sm:$0xff]
      %v671 = vld [vmem:[%s594 + $0x91] sm:$0xff]
      %v672 = vld [vmem:[%s594 + $0x99] sm:$0xff]
      %v673 = vld [vmem:[%s594 + $0xa9] sm:$0xff]
      %v674 = vld [vmem:[%s594 + $0xb1] sm:$0xff]
      %v675 = vld [vmem:[%s594 + $0xc1] sm:$0xff]
      %v676 = vld [vmem:[%s594 + $0xc9] sm:$0xff]
      %v677 = vld [vmem:[%s594 + $0xd9] sm:$0xff]
      %v678 = vld [vmem:[%s594 + $0xe1] sm:$0xff]
      %v679 = vld [vmem:[%s594 + $0xf1] sm:$0xff]
      %v680 = vld [vmem:[%s594 + $0xf9] sm:$0xff]
      %v681 = vld [vmem:[%s594 + $0x109] sm:$0xff]
      %v682 = vld [vmem:[%s594 + $0x111] sm:$0xff]
      %v683 = vld [vmem:[%s594 + $0x121] sm:$0xff]
      %v684 = vld [vmem:[%s594 + $0x129] sm:$0xff]
      %v685 = vld [vmem:[%s594 + $0x139] sm:$0xff]
      %v686 = vld [vmem:[%s594 + $0x141] sm:$0xff]
      %v687 = vld [vmem:[%s594 + $0x151] sm:$0xff]
      %v688 = vld [vmem:[%s594 + $0x159] sm:$0xff]
      %v689 = vld [vmem:[%s594 + $0x169] sm:$0xff]
      %v690 = vld [vmem:[%s594 + $0x171] sm:$0xff]
      %691 = vst [vmem:[#allocation2 + $0x38] sm:$0xff] %v659
      %692 = vst [vmem:[#allocation2 + $0x80] sm:$0xff] %v660
      %693 = vst [vmem:[#allocation2 + $0xc8] sm:$0xff] %v661
      %694 = vst [vmem:[#allocation2 + $0x110] sm:$0xff] %v662
      %695 = vst [vmem:[#allocation2 + $0x158] sm:$0xff] %v663
      %696 = vst [vmem:[#allocation2 + $0x1a0] sm:$0xff] %v664
      %697 = vst [vmem:[#allocation2 + $0x1e8] sm:$0xff] %v665
      %698 = vst [vmem:[#allocation2 + $0x230] sm:$0xff] %v666
      %699 = vst [vmem:[#allocation2 + $0x278] sm:$0xff] %v667
      %700 = vst [vmem:[#allocation2 + $0x2c0] sm:$0xff] %v668
      %701 = vst [vmem:[#allocation2 + $0x308] sm:$0xff] %v669
      %702 = vst [vmem:[#allocation2 + $0x350] sm:$0xff] %v670
      %703 = vst [vmem:[#allocation2 + $0x398] sm:$0xff] %v671
      %704 = vst [vmem:[#allocation2 + $0x3e0] sm:$0xff] %v672
      %705 = vst [vmem:[#allocation2 + $0x428] sm:$0xff] %v673
      %706 = vst [vmem:[#allocation2 + $0x470] sm:$0xff] %v674
      %707 = vst [vmem:[#allocation2 + $0x4b8] sm:$0xff] %v675
      %708 = vst [vmem:[#allocation2 + $0x500] sm:$0xff] %v676
      %709 = vst [vmem:[#allocation2 + $0x548] sm:$0xff] %v677
      %710 = vst [vmem:[#allocation2 + $0x590] sm:$0xff] %v678
      %711 = vst [vmem:[#allocation2 + $0x5d8] sm:$0xff] %v679
      %712 = vst [vmem:[#allocation2 + $0x620] sm:$0xff] %v680
      %713 = vst [vmem:[#allocation2 + $0x668] sm:$0xff] %v681
      %714 = vst [vmem:[#allocation2 + $0x6b0] sm:$0xff] %v682
      %715 = vst [vmem:[#allocation2 + $0x6f8] sm:$0xff] %v683
      %716 = vst [vmem:[#allocation2 + $0x740] sm:$0xff] %v684
      %717 = vst [vmem:[#allocation2 + $0x788] sm:$0xff] %v685
      %718 = vst [vmem:[#allocation2 + $0x7d0] sm:$0xff] %v686
      %719 = vst [vmem:[#allocation2 + $0x818] sm:$0xff] %v687
      %720 = vst [vmem:[#allocation2 + $0x860] sm:$0xff] %v688
      %721 = vst [vmem:[#allocation2 + $0x8a8] sm:$0xff] %v689
      %722 = vst [vmem:[#allocation2 + $0x8f0] sm:$0xff] %v690
      %v723 = vld [vmem:[%s594 + $0x2] sm:$0xff]
      %v724 = vld [vmem:[%s594 + $0xa] sm:$0xff]
      %v725 = vld [vmem:[%s594 + $0x1a] sm:$0xff]
      %v726 = vld [vmem:[%s594 + $0x22] sm:$0xff]
      %v727 = vld [vmem:[%s594 + $0x32] sm:$0xff]
      %v728 = vld [vmem:[%s594 + $0x3a] sm:$0xff]
      %v729 = vld [vmem:[%s594 + $0x4a] sm:$0xff]
      %v730 = vld [vmem:[%s594 + $0x52] sm:$0xff]
      %v731 = vld [vmem:[%s594 + $0x62] sm:$0xff]
      %v732 = vld [vmem:[%s594 + $0x6a] sm:$0xff]
      %v733 = vld [vmem:[%s594 + $0x7a] sm:$0xff]
      %v734 = vld [vmem:[%s594 + $0x82] sm:$0xff]
      %v735 = vld [vmem:[%s594 + $0x92] sm:$0xff]
      %v736 = vld [vmem:[%s594 + $0x9a] sm:$0xff]
      %v737 = vld [vmem:[%s594 + $0xaa] sm:$0xff]
      %v738 = vld [vmem:[%s594 + $0xb2] sm:$0xff]
      %v739 = vld [vmem:[%s594 + $0xc2] sm:$0xff]
      %v740 = vld [vmem:[%s594 + $0xca] sm:$0xff]
      %v741 = vld [vmem:[%s594 + $0xda] sm:$0xff]
      %v742 = vld [vmem:[%s594 + $0xe2] sm:$0xff]
      %v743 = vld [vmem:[%s594 + $0xf2] sm:$0xff]
      %v744 = vld [vmem:[%s594 + $0xfa] sm:$0xff]
      %v745 = vld [vmem:[%s594 + $0x10a] sm:$0xff]
      %v746 = vld [vmem:[%s594 + $0x112] sm:$0xff]
      %v747 = vld [vmem:[%s594 + $0x122] sm:$0xff]
      %v748 = vld [vmem:[%s594 + $0x12a] sm:$0xff]
      %v749 = vld [vmem:[%s594 + $0x13a] sm:$0xff]
      %v750 = vld [vmem:[%s594 + $0x142] sm:$0xff]
      %v751 = vld [vmem:[%s594 + $0x152] sm:$0xff]
      %v752 = vld [vmem:[%s594 + $0x15a] sm:$0xff]
      %v753 = vld [vmem:[%s594 + $0x16a] sm:$0xff]
      %v754 = vld [vmem:[%s594 + $0x172] sm:$0xff]
      %755 = vst [vmem:[#allocation2 + $0x40] sm:$0xff] %v723
      %756 = vst [vmem:[#allocation2 + $0x88] sm:$0xff] %v724
      %757 = vst [vmem:[#allocation2 + $0xd0] sm:$0xff] %v725
      %758 = vst [vmem:[#allocation2 + $0x118] sm:$0xff] %v726
      %759 = vst [vmem:[#allocation2 + $0x160] sm:$0xff] %v727
      %760 = vst [vmem:[#allocation2 + $0x1a8] sm:$0xff] %v728
      %761 = vst [vmem:[#allocation2 + $0x1f0] sm:$0xff] %v729
      %762 = vst [vmem:[#allocation2 + $0x238] sm:$0xff] %v730
      %763 = vst [vmem:[#allocation2 + $0x280] sm:$0xff] %v731
      %764 = vst [vmem:[#allocation2 + $0x2c8] sm:$0xff] %v732
      %765 = vst [vmem:[#allocation2 + $0x310] sm:$0xff] %v733
      %766 = vst [vmem:[#allocation2 + $0x358] sm:$0xff] %v734
      %767 = vst [vmem:[#allocation2 + $0x3a0] sm:$0xff] %v735
      %768 = vst [vmem:[#allocation2 + $0x3e8] sm:$0xff] %v736
      %769 = vst [vmem:[#allocation2 + $0x430] sm:$0xff] %v737
      %770 = vst [vmem:[#allocation2 + $0x478] sm:$0xff] %v738
      %771 = vst [vmem:[#allocation2 + $0x4c0] sm:$0xff] %v739
      %772 = vst [vmem:[#allocation2 + $0x508] sm:$0xff] %v740
      %773 = vst [vmem:[#allocation2 + $0x550] sm:$0xff] %v741
      %774 = vst [vmem:[#allocation2 + $0x598] sm:$0xff] %v742
      %775 = vst [vmem:[#allocation2 + $0x5e0] sm:$0xff] %v743
      %776 = vst [vmem:[#allocation2 + $0x628] sm:$0xff] %v744
      %777 = vst [vmem:[#allocation2 + $0x670] sm:$0xff] %v745
      %778 = vst [vmem:[#allocation2 + $0x6b8] sm:$0xff] %v746
      %779 = vst [vmem:[#allocation2 + $0x700] sm:$0xff] %v747
      %780 = vst [vmem:[#allocation2 + $0x748] sm:$0xff] %v748
      %781 = vst [vmem:[#allocation2 + $0x790] sm:$0xff] %v749
      %782 = vst [vmem:[#allocation2 + $0x7d8] sm:$0xff] %v750
      %783 = vst [vmem:[#allocation2 + $0x820] sm:$0xff] %v751
      %784 = vst [vmem:[#allocation2 + $0x868] sm:$0xff] %v752
      %785 = vst [vmem:[#allocation2 + $0x8b0] sm:$0xff] %v753
      %786 = vst [vmem:[#allocation2 + $0x8f8] sm:$0xff] %v754
      %v787 = vld [vmem:[#allocation2] sm:$0xff]
      %v788 = vld [vmem:[#allocation2 + $0x8] sm:$0xff]
      %v789 = vld [vmem:[#allocation2 + $0x10] sm:$0xff]
      %v790 = vld [vmem:[#allocation2 + $0x18] sm:$0xff]
      %v791 = vld [vmem:[#allocation2 + $0x20] sm:$0xff]
      %v792 = vld [vmem:[#allocation2 + $0x28] sm:$0xff]
      %v793 = vld [vmem:[#allocation2 + $0x30] sm:$0xff]
      %v794 = vld [vmem:[#allocation2 + $0x38] sm:$0xff]
      %v795 = vld [vmem:[#allocation2 + $0x40] sm:$0xff]
      %v796 = vld [vmem:[#allocation2 + $0x48] sm:$0xff]
      %v797 = vld [vmem:[#allocation2 + $0x50] sm:$0xff]
      %v798 = vld [vmem:[#allocation2 + $0x58] sm:$0xff]
      %v799 = vld [vmem:[#allocation2 + $0x60] sm:$0xff]
      %v800 = vld [vmem:[#allocation2 + $0x68] sm:$0xff]
      %v801 = vld [vmem:[#allocation2 + $0x70] sm:$0xff]
      %v802 = vld [vmem:[#allocation2 + $0x78] sm:$0xff]
      %v803 = vld [vmem:[#allocation2 + $0x80] sm:$0xff]
      %v804 = vld [vmem:[#allocation2 + $0x88] sm:$0xff]
      %v805 = vld [vmem:[#allocation2 + $0x90] sm:$0xff]
      %v806 = vld [vmem:[#allocation2 + $0x98] sm:$0xff]
      %v807 = vld [vmem:[#allocation2 + $0xa0] sm:$0xff]
      %v808 = vld [vmem:[#allocation2 + $0xa8] sm:$0xff]
      %v809 = vld [vmem:[#allocation2 + $0xb0] sm:$0xff]
      %v810 = vld [vmem:[#allocation2 + $0xb8] sm:$0xff]
      %v811 = vld [vmem:[#allocation2 + $0xc0] sm:$0xff]
      %v812 = vld [vmem:[#allocation2 + $0xc8] sm:$0xff]
      %v813 = vld [vmem:[#allocation2 + $0xd0] sm:$0xff]
      %v814 = vld [vmem:[#allocation2 + $0xd8] sm:$0xff]
      %v815 = vld [vmem:[#allocation2 + $0xe0] sm:$0xff]
      %v816 = vld [vmem:[#allocation2 + $0xe8] sm:$0xff]
      %v817 = vld [vmem:[#allocation2 + $0xf0] sm:$0xff]
      %v818 = vld [vmem:[#allocation2 + $0xf8] sm:$0xff]
      %v819 = vld [vmem:[#allocation2 + $0x100] sm:$0xff]
      %v820 = vld [vmem:[#allocation2 + $0x108] sm:$0xff]
      %v821 = vld [vmem:[#allocation2 + $0x110] sm:$0xff]
      %v822 = vld [vmem:[#allocation2 + $0x118] sm:$0xff]
      %v823 = vld [vmem:[#allocation2 + $0x120] sm:$0xff]
      %v824 = vld [vmem:[#allocation2 + $0x128] sm:$0xff]
      %v825 = vld [vmem:[#allocation2 + $0x130] sm:$0xff]
      %v826 = vld [vmem:[#allocation2 + $0x138] sm:$0xff]
      %v827 = vld [vmem:[#allocation2 + $0x140] sm:$0xff]
      %v828 = vld [vmem:[#allocation2 + $0x148] sm:$0xff]
      %v829 = vld [vmem:[#allocation2 + $0x150] sm:$0xff]
      %v830 = vld [vmem:[#allocation2 + $0x158] sm:$0xff]
      %v831 = vld [vmem:[#allocation2 + $0x160] sm:$0xff]
      %v832 = vld [vmem:[#allocation2 + $0x168] sm:$0xff]
      %v833 = vld [vmem:[#allocation2 + $0x170] sm:$0xff]
      %v834 = vld [vmem:[#allocation2 + $0x178] sm:$0xff]
      %v835 = vld [vmem:[#allocation2 + $0x180] sm:$0xff]
      %v836 = vld [vmem:[#allocation2 + $0x188] sm:$0xff]
      %v837 = vld [vmem:[#allocation2 + $0x190] sm:$0xff]
      %v838 = vld [vmem:[#allocation2 + $0x198] sm:$0xff]
      %v839 = vld [vmem:[#allocation2 + $0x1a0] sm:$0xff]
      %v840 = vld [vmem:[#allocation2 + $0x1a8] sm:$0xff]
      %v841 = vld [vmem:[#allocation2 + $0x1b0] sm:$0xff]
      %v842 = vld [vmem:[#allocation2 + $0x1b8] sm:$0xff]
      %v843 = vld [vmem:[#allocation2 + $0x1c0] sm:$0xff]
      %v844 = vld [vmem:[#allocation2 + $0x1c8] sm:$0xff]
      %v845 = vld [vmem:[#allocation2 + $0x1d0] sm:$0xff]
      %v846 = vld [vmem:[#allocation2 + $0x1d8] sm:$0xff]
      %v847 = vld [vmem:[#allocation2 + $0x1e0] sm:$0xff]
      %v848 = vld [vmem:[#allocation2 + $0x1e8] sm:$0xff]
      %v849 = vld [vmem:[#allocation2 + $0x1f0] sm:$0xff]
      %v850 = vld [vmem:[#allocation2 + $0x1f8] sm:$0xff]
      %v851 = vld [vmem:[#allocation2 + $0x200] sm:$0xff]
      %v852 = vld [vmem:[#allocation2 + $0x208] sm:$0xff]
      %v853 = vld [vmem:[#allocation2 + $0x210] sm:$0xff]
      %v854 = vld [vmem:[#allocation2 + $0x218] sm:$0xff]
      %v855 = vld [vmem:[#allocation2 + $0x220] sm:$0xff]
      %v856 = vld [vmem:[#allocation2 + $0x228] sm:$0xff]
      %v857 = vld [vmem:[#allocation2 + $0x230] sm:$0xff]
      %v858 = vld [vmem:[#allocation2 + $0x238] sm:$0xff]
      %v859 = vld [vmem:[#allocation2 + $0x240] sm:$0xff]
      %v860 = vld [vmem:[#allocation2 + $0x248] sm:$0xff]
      %v861 = vld [vmem:[#allocation2 + $0x250] sm:$0xff]
      %v862 = vld [vmem:[#allocation2 + $0x258] sm:$0xff]
      %v863 = vld [vmem:[#allocation2 + $0x260] sm:$0xff]
      %v864 = vld [vmem:[#allocation2 + $0x268] sm:$0xff]
      %v865 = vld [vmem:[#allocation2 + $0x270] sm:$0xff]
      %v866 = vld [vmem:[#allocation2 + $0x278] sm:$0xff]
      %v867 = vld [vmem:[#allocation2 + $0x280] sm:$0xff]
      %v868 = vld [vmem:[#allocation2 + $0x288] sm:$0xff]
      %v869 = vld [vmem:[#allocation2 + $0x290] sm:$0xff]
      %v870 = vld [vmem:[#allocation2 + $0x298] sm:$0xff]
      %v871 = vld [vmem:[#allocation2 + $0x2a0] sm:$0xff]
      %v872 = vld [vmem:[#allocation2 + $0x2a8] sm:$0xff]
      %v873 = vld [vmem:[#allocation2 + $0x2b0] sm:$0xff]
      %v874 = vld [vmem:[#allocation2 + $0x2b8] sm:$0xff]
      %v875 = vld [vmem:[#allocation2 + $0x2c0] sm:$0xff]
      %v876 = vld [vmem:[#allocation2 + $0x2c8] sm:$0xff]
      %v877 = vld [vmem:[#allocation2 + $0x2d0] sm:$0xff]
      %v878 = vld [vmem:[#allocation2 + $0x2d8] sm:$0xff]
      %v879 = vld [vmem:[#allocation2 + $0x2e0] sm:$0xff]
      %v880 = vld [vmem:[#allocation2 + $0x2e8] sm:$0xff]
      %v881 = vld [vmem:[#allocation2 + $0x2f0] sm:$0xff]
      %v882 = vld [vmem:[#allocation2 + $0x2f8] sm:$0xff]
      %v883 = vld [vmem:[#allocation2 + $0x300] sm:$0xff]
      %v884 = vld [vmem:[#allocation2 + $0x308] sm:$0xff]
      %v885 = vld [vmem:[#allocation2 + $0x310] sm:$0xff]
      %v886 = vld [vmem:[#allocation2 + $0x318] sm:$0xff]
      %v887 = vld [vmem:[#allocation2 + $0x320] sm:$0xff]
      %v888 = vld [vmem:[#allocation2 + $0x328] sm:$0xff]
      %v889 = vld [vmem:[#allocation2 + $0x330] sm:$0xff]
      %v890 = vld [vmem:[#allocation2 + $0x338] sm:$0xff]
      %v891 = vld [vmem:[#allocation2 + $0x340] sm:$0xff]
      %v892 = vld [vmem:[#allocation2 + $0x348] sm:$0xff]
      %v893 = vld [vmem:[#allocation2 + $0x350] sm:$0xff]
      %v894 = vld [vmem:[#allocation2 + $0x358] sm:$0xff]
      %v895 = vld [vmem:[#allocation2 + $0x360] sm:$0xff]
      %v896 = vld [vmem:[#allocation2 + $0x368] sm:$0xff]
      %v897 = vld [vmem:[#allocation2 + $0x370] sm:$0xff]
      %v898 = vld [vmem:[#allocation2 + $0x378] sm:$0xff]
      %v899 = vld [vmem:[#allocation2 + $0x380] sm:$0xff]
      %v900 = vld [vmem:[#allocation2 + $0x388] sm:$0xff]
      %v901 = vld [vmem:[#allocation2 + $0x390] sm:$0xff]
      %v902 = vld [vmem:[#allocation2 + $0x398] sm:$0xff]
      %v903 = vld [vmem:[#allocation2 + $0x3a0] sm:$0xff]
      %v904 = vld [vmem:[#allocation2 + $0x3a8] sm:$0xff]
      %v905 = vld [vmem:[#allocation2 + $0x3b0] sm:$0xff]
      %v906 = vld [vmem:[#allocation2 + $0x3b8] sm:$0xff]
      %v907 = vld [vmem:[#allocation2 + $0x3c0] sm:$0xff]
      %v908 = vld [vmem:[#allocation2 + $0x3c8] sm:$0xff]
      %v909 = vld [vmem:[#allocation2 + $0x3d0] sm:$0xff]
      %v910 = vld [vmem:[#allocation2 + $0x3d8] sm:$0xff]
      %v911 = vld [vmem:[#allocation2 + $0x3e0] sm:$0xff]
      %v912 = vld [vmem:[#allocation2 + $0x3e8] sm:$0xff]
      %v913 = vld [vmem:[#allocation2 + $0x3f0] sm:$0xff]
      %v914 = vld [vmem:[#allocation2 + $0x3f8] sm:$0xff]
      %v915 = vld [vmem:[#allocation2 + $0x400] sm:$0xff]
      %v916 = vld [vmem:[#allocation2 + $0x408] sm:$0xff]
      %v917 = vld [vmem:[#allocation2 + $0x410] sm:$0xff]
      %v918 = vld [vmem:[#allocation2 + $0x418] sm:$0xff]
      %v919 = vld [vmem:[#allocation2 + $0x420] sm:$0xff]
      %v920 = vld [vmem:[#allocation2 + $0x428] sm:$0xff]
      %v921 = vld [vmem:[#allocation2 + $0x430] sm:$0xff]
      %v922 = vld [vmem:[#allocation2 + $0x438] sm:$0xff]
      %v923 = vld [vmem:[#allocation2 + $0x440] sm:$0xff]
      %v924 = vld [vmem:[#allocation2 + $0x448] sm:$0xff]
      %v925 = vld [vmem:[#allocation2 + $0x450] sm:$0xff]
      %v926 = vld [vmem:[#allocation2 + $0x458] sm:$0xff]
      %v927 = vld [vmem:[#allocation2 + $0x460] sm:$0xff]
      %v928 = vld [vmem:[#allocation2 + $0x468] sm:$0xff]
      %v929 = vld [vmem:[#allocation2 + $0x470] sm:$0xff]
      %v930 = vld [vmem:[#allocation2 + $0x478] sm:$0xff]
      %v931 = vld [vmem:[#allocation2 + $0x480] sm:$0xff]
      %v932 = vld [vmem:[#allocation2 + $0x488] sm:$0xff]
      %v933 = vld [vmem:[#allocation2 + $0x490] sm:$0xff]
      %v934 = vld [vmem:[#allocation2 + $0x498] sm:$0xff]
      %v935 = vld [vmem:[#allocation2 + $0x4a0] sm:$0xff]
      %v936 = vld [vmem:[#allocation2 + $0x4a8] sm:$0xff]
      %v937 = vld [vmem:[#allocation2 + $0x4b0] sm:$0xff]
      %v938 = vld [vmem:[#allocation2 + $0x4b8] sm:$0xff]
      %v939 = vld [vmem:[#allocation2 + $0x4c0] sm:$0xff]
      %v940 = vld [vmem:[#allocation2 + $0x4c8] sm:$0xff]
      %v941 = vld [vmem:[#allocation2 + $0x4d0] sm:$0xff]
      %v942 = vld [vmem:[#allocation2 + $0x4d8] sm:$0xff]
      %v943 = vld [vmem:[#allocation2 + $0x4e0] sm:$0xff]
      %v944 = vld [vmem:[#allocation2 + $0x4e8] sm:$0xff]
      %v945 = vld [vmem:[#allocation2 + $0x4f0] sm:$0xff]
      %v946 = vld [vmem:[#allocation2 + $0x4f8] sm:$0xff]
      %v947 = vld [vmem:[#allocation2 + $0x500] sm:$0xff]
      %v948 = vld [vmem:[#allocation2 + $0x508] sm:$0xff]
      %v949 = vld [vmem:[#allocation2 + $0x510] sm:$0xff]
      %v950 = vld [vmem:[#allocation2 + $0x518] sm:$0xff]
      %v951 = vld [vmem:[#allocation2 + $0x520] sm:$0xff]
      %v952 = vld [vmem:[#allocation2 + $0x528] sm:$0xff]
      %v953 = vld [vmem:[#allocation2 + $0x530] sm:$0xff]
      %v954 = vld [vmem:[#allocation2 + $0x538] sm:$0xff]
      %v955 = vld [vmem:[#allocation2 + $0x540] sm:$0xff]
      %v956 = vld [vmem:[#allocation2 + $0x548] sm:$0xff]
      %v957 = vld [vmem:[#allocation2 + $0x550] sm:$0xff]
      %v958 = vld [vmem:[#allocation2 + $0x558] sm:$0xff]
      %v959 = vld [vmem:[#allocation2 + $0x560] sm:$0xff]
      %v960 = vld [vmem:[#allocation2 + $0x568] sm:$0xff]
      %v961 = vld [vmem:[#allocation2 + $0x570] sm:$0xff]
      %v962 = vld [vmem:[#allocation2 + $0x578] sm:$0xff]
      %v963 = vld [vmem:[#allocation2 + $0x580] sm:$0xff]
      %v964 = vld [vmem:[#allocation2 + $0x588] sm:$0xff]
      %v965 = vld [vmem:[#allocation2 + $0x590] sm:$0xff]
      %v966 = vld [vmem:[#allocation2 + $0x598] sm:$0xff]
      %v967 = vld [vmem:[#allocation2 + $0x5a0] sm:$0xff]
      %v968 = vld [vmem:[#allocation2 + $0x5a8] sm:$0xff]
      %v969 = vld [vmem:[#allocation2 + $0x5b0] sm:$0xff]
      %v970 = vld [vmem:[#allocation2 + $0x5b8] sm:$0xff]
      %v971 = vld [vmem:[#allocation2 + $0x5c0] sm:$0xff]
      %v972 = vld [vmem:[#allocation2 + $0x5c8] sm:$0xff]
      %v973 = vld [vmem:[#allocation2 + $0x5d0] sm:$0xff]
      %v974 = vld [vmem:[#allocation2 + $0x5d8] sm:$0xff]
      %v975 = vld [vmem:[#allocation2 + $0x5e0] sm:$0xff]
      %v976 = vld [vmem:[#allocation2 + $0x5e8] sm:$0xff]
      %v977 = vld [vmem:[#allocation2 + $0x5f0] sm:$0xff]
      %v978 = vld [vmem:[#allocation2 + $0x5f8] sm:$0xff]
      %v979 = vld [vmem:[#allocation2 + $0x600] sm:$0xff]
      %v980 = vld [vmem:[#allocation2 + $0x608] sm:$0xff]
      %v981 = vld [vmem:[#allocation2 + $0x610] sm:$0xff]
      %v982 = vld [vmem:[#allocation2 + $0x618] sm:$0xff]
      %v983 = vld [vmem:[#allocation2 + $0x620] sm:$0xff]
      %v984 = vld [vmem:[#allocation2 + $0x628] sm:$0xff]
      %v985 = vld [vmem:[#allocation2 + $0x630] sm:$0xff]
      %v986 = vld [vmem:[#allocation2 + $0x638] sm:$0xff]
      %v987 = vld [vmem:[#allocation2 + $0x640] sm:$0xff]
      %v988 = vld [vmem:[#allocation2 + $0x648] sm:$0xff]
      %v989 = vld [vmem:[#allocation2 + $0x650] sm:$0xff]
      %v990 = vld [vmem:[#allocation2 + $0x658] sm:$0xff]
      %v991 = vld [vmem:[#allocation2 + $0x660] sm:$0xff]
      %v992 = vld [vmem:[#allocation2 + $0x668] sm:$0xff]
      %v993 = vld [vmem:[#allocation2 + $0x670] sm:$0xff]
      %v994 = vld [vmem:[#allocation2 + $0x678] sm:$0xff]
      %v995 = vld [vmem:[#allocation2 + $0x680] sm:$0xff]
      %v996 = vld [vmem:[#allocation2 + $0x688] sm:$0xff]
      %v997 = vld [vmem:[#allocation2 + $0x690] sm:$0xff]
      %v998 = vld [vmem:[#allocation2 + $0x698] sm:$0xff]
      %v999 = vld [vmem:[#allocation2 + $0x6a0] sm:$0xff]
      %v1000 = vld [vmem:[#allocation2 + $0x6a8] sm:$0xff]
      %v1001 = vld [vmem:[#allocation2 + $0x6b0] sm:$0xff]
      %v1002 = vld [vmem:[#allocation2 + $0x6b8] sm:$0xff]
      %v1003 = vld [vmem:[#allocation2 + $0x6c0] sm:$0xff]
      %v1004 = vld [vmem:[#allocation2 + $0x6c8] sm:$0xff]
      %v1005 = vld [vmem:[#allocation2 + $0x6d0] sm:$0xff]
      %v1006 = vld [vmem:[#allocation2 + $0x6d8] sm:$0xff]
      %v1007 = vld [vmem:[#allocation2 + $0x6e0] sm:$0xff]
      %v1008 = vld [vmem:[#allocation2 + $0x6e8] sm:$0xff]
      %v1009 = vld [vmem:[#allocation2 + $0x6f0] sm:$0xff]
      %v1010 = vld [vmem:[#allocation2 + $0x6f8] sm:$0xff]
      %v1011 = vld [vmem:[#allocation2 + $0x700] sm:$0xff]
      %v1012 = vld [vmem:[#allocation2 + $0x708] sm:$0xff]
      %v1013 = vld [vmem:[#allocation2 + $0x710] sm:$0xff]
      %v1014 = vld [vmem:[#allocation2 + $0x718] sm:$0xff]
      %v1015 = vld [vmem:[#allocation2 + $0x720] sm:$0xff]
      %v1016 = vld [vmem:[#allocation2 + $0x728] sm:$0xff]
      %v1017 = vld [vmem:[#allocation2 + $0x730] sm:$0xff]
      %v1018 = vld [vmem:[#allocation2 + $0x738] sm:$0xff]
      %v1019 = vld [vmem:[#allocation2 + $0x740] sm:$0xff]
      %v1020 = vld [vmem:[#allocation2 + $0x748] sm:$0xff]
      %v1021 = vld [vmem:[#allocation2 + $0x750] sm:$0xff]
      %v1022 = vld [vmem:[#allocation2 + $0x758] sm:$0xff]
      %v1023 = vld [vmem:[#allocation2 + $0x760] sm:$0xff]
      %v1024 = vld [vmem:[#allocation2 + $0x768] sm:$0xff]
      %v1025 = vld [vmem:[#allocation2 + $0x770] sm:$0xff]
      %v1026 = vld [vmem:[#allocation2 + $0x778] sm:$0xff]
      %v1027 = vld [vmem:[#allocation2 + $0x780] sm:$0xff]
      %v1028 = vld [vmem:[#allocation2 + $0x788] sm:$0xff]
      %v1029 = vld [vmem:[#allocation2 + $0x790] sm:$0xff]
      %v1030 = vld [vmem:[#allocation2 + $0x798] sm:$0xff]
      %v1031 = vld [vmem:[#allocation2 + $0x7a0] sm:$0xff]
      %v1032 = vld [vmem:[#allocation2 + $0x7a8] sm:$0xff]
      %v1033 = vld [vmem:[#allocation2 + $0x7b0] sm:$0xff]
      %v1034 = vld [vmem:[#allocation2 + $0x7b8] sm:$0xff]
      %v1035 = vld [vmem:[#allocation2 + $0x7c0] sm:$0xff]
      %v1036 = vld [vmem:[#allocation2 + $0x7c8] sm:$0xff]
      %v1037 = vld [vmem:[#allocation2 + $0x7d0] sm:$0xff]
      %v1038 = vld [vmem:[#allocation2 + $0x7d8] sm:$0xff]
      %v1039 = vld [vmem:[#allocation2 + $0x7e0] sm:$0xff]
      %v1040 = vld [vmem:[#allocation2 + $0x7e8] sm:$0xff]
      %v1041 = vld [vmem:[#allocation2 + $0x7f0] sm:$0xff]
      %v1042 = vld [vmem:[#allocation2 + $0x7f8] sm:$0xff]
      %v1043 = vld [vmem:[#allocation2 + $0x800] sm:$0xff]
      %v1044 = vld [vmem:[#allocation2 + $0x808] sm:$0xff]
      %v1045 = vld [vmem:[#allocation2 + $0x810] sm:$0xff]
      %v1046 = vld [vmem:[#allocation2 + $0x818] sm:$0xff]
      %v1047 = vld [vmem:[#allocation2 + $0x820] sm:$0xff]
      %v1048 = vld [vmem:[#allocation2 + $0x828] sm:$0xff]
      %v1049 = vld [vmem:[#allocation2 + $0x830] sm:$0xff]
      %v1050 = vld [vmem:[#allocation2 + $0x838] sm:$0xff]
      %v1051 = vld [vmem:[#allocation2 + $0x840] sm:$0xff]
      %v1052 = vld [vmem:[#allocation2 + $0x848] sm:$0xff]
      %v1053 = vld [vmem:[#allocation2 + $0x850] sm:$0xff]
      %v1054 = vld [vmem:[#allocation2 + $0x858] sm:$0xff]
      %v1055 = vld [vmem:[#allocation2 + $0x860] sm:$0xff]
      %v1056 = vld [vmem:[#allocation2 + $0x868] sm:$0xff]
      %v1057 = vld [vmem:[#allocation2 + $0x870] sm:$0xff]
      %v1058 = vld [vmem:[#allocation2 + $0x878] sm:$0xff]
      %v1059 = vld [vmem:[#allocation2 + $0x880] sm:$0xff]
      %v1060 = vld [vmem:[#allocation2 + $0x888] sm:$0xff]
      %v1061 = vld [vmem:[#allocation2 + $0x890] sm:$0xff]
      %v1062 = vld [vmem:[#allocation2 + $0x898] sm:$0xff]
      %v1063 = vld [vmem:[#allocation2 + $0x8a0] sm:$0xff]
      %v1064 = vld [vmem:[#allocation2 + $0x8a8] sm:$0xff]
      %v1065 = vld [vmem:[#allocation2 + $0x8b0] sm:$0xff]
      %v1066 = vld [vmem:[#allocation2 + $0x8b8] sm:$0xff]
      %v1067 = vld [vmem:[#allocation2 + $0x8c0] sm:$0xff]
      %v1068 = vld [vmem:[#allocation2 + $0x8c8] sm:$0xff]
      %v1069 = vld [vmem:[#allocation2 + $0x8d0] sm:$0xff]
      %v1070 = vld [vmem:[#allocation2 + $0x8d8] sm:$0xff]
      %v1071 = vld [vmem:[#allocation2 + $0x8e0] sm:$0xff]
      %v1072 = vld [vmem:[#allocation2 + $0x8e8] sm:$0xff]
      %v1073 = vld [vmem:[#allocation2 + $0x8f0] sm:$0xff]
      %v1074 = vld [vmem:[#allocation2 + $0x8f8] sm:$0xff]
      %v1075 = vld [vmem:[%s1] sm:$0xff]
      %v1076 = vld [vmem:[%s1 + $0x8] sm:$0xff]
      %v1077 = vld [vmem:[%s1 + $0x10] sm:$0xff]
      %v1078 = vld [vmem:[%s1 + $0x18] sm:$0xff]
      %v1079 = vld [vmem:[%s1 + $0x20] sm:$0xff]
      %v1080 = vld [vmem:[%s1 + $0x28] sm:$0xff]
      %v1081 = vld [vmem:[%s1 + $0x30] sm:$0xff]
      %v1082 = vld [vmem:[%s1 + $0x38] sm:$0xff]
      %v1083 = vld [vmem:[%s1 + $0x40] sm:$0xff]
      %v1084 = vld [vmem:[%s1 + $0x48] sm:$0xff]
      %v1085 = vld [vmem:[%s1 + $0x50] sm:$0xff]
      %v1086 = vld [vmem:[%s1 + $0x58] sm:$0xff]
      %v1087 = vld [vmem:[%s1 + $0x60] sm:$0xff]
      %v1088 = vld [vmem:[%s1 + $0x68] sm:$0xff]
      %v1089 = vld [vmem:[%s1 + $0x70] sm:$0xff]
      %v1090 = vld [vmem:[%s1 + $0x78] sm:$0xff]
      %v1091 = vld [vmem:[%s1 + $0x80] sm:$0xff]
      %v1092 = vld [vmem:[%s1 + $0x88] sm:$0xff]
      %v1093 = vld [vmem:[%s1 + $0x90] sm:$0xff]
      %v1094 = vld [vmem:[%s1 + $0x98] sm:$0xff]
      %v1095 = vld [vmem:[%s1 + $0xa0] sm:$0xff]
      %v1096 = vld [vmem:[%s1 + $0xa8] sm:$0xff]
      %v1097 = vld [vmem:[%s1 + $0xb0] sm:$0xff]
      %v1098 = vld [vmem:[%s1 + $0xb8] sm:$0xff]
      %v1099 = vld [vmem:[%s1 + $0xc0] sm:$0xff]
      %v1100 = vld [vmem:[%s1 + $0xc8] sm:$0xff]
      %v1101 = vld [vmem:[%s1 + $0xd0] sm:$0xff]
      %v1102 = vld [vmem:[%s1 + $0xd8] sm:$0xff]
      %v1103 = vld [vmem:[%s1 + $0xe0] sm:$0xff]
      %v1104 = vld [vmem:[%s1 + $0xe8] sm:$0xff]
      %v1105 = vld [vmem:[%s1 + $0xf0] sm:$0xff]
      %v1106 = vld [vmem:[%s1 + $0xf8] sm:$0xff]
      %v1107 = vld [vmem:[%s1 + $0x100] sm:$0xff]
      %v1108 = vld [vmem:[%s1 + $0x108] sm:$0xff]
      %v1109 = vld [vmem:[%s1 + $0x110] sm:$0xff]
      %v1110 = vld [vmem:[%s1 + $0x118] sm:$0xff]
      %v1111 = vld [vmem:[%s1 + $0x120] sm:$0xff]
      %v1112 = vld [vmem:[%s1 + $0x128] sm:$0xff]
      %v1113 = vld [vmem:[%s1 + $0x130] sm:$0xff]
      %v1114 = vld [vmem:[%s1 + $0x138] sm:$0xff]
      %v1115 = vld [vmem:[%s1 + $0x140] sm:$0xff]
      %v1116 = vld [vmem:[%s1 + $0x148] sm:$0xff]
      %v1117 = vld [vmem:[%s1 + $0x150] sm:$0xff]
      %v1118 = vld [vmem:[%s1 + $0x158] sm:$0xff]
      %v1119 = vld [vmem:[%s1 + $0x160] sm:$0xff]
      %v1120 = vld [vmem:[%s1 + $0x168] sm:$0xff]
      %v1121 = vld [vmem:[%s1 + $0x170] sm:$0xff]
      %v1122 = vld [vmem:[%s1 + $0x178] sm:$0xff]
      %v1123 = vld [vmem:[%s1 + $0x180] sm:$0xff]
      %v1124 = vld [vmem:[%s1 + $0x188] sm:$0xff]
      %v1125 = vld [vmem:[%s1 + $0x190] sm:$0xff]
      %v1126 = vld [vmem:[%s1 + $0x198] sm:$0xff]
      %v1127 = vld [vmem:[%s1 + $0x1a0] sm:$0xff]
      %v1128 = vld [vmem:[%s1 + $0x1a8] sm:$0xff]
      %v1129 = vld [vmem:[%s1 + $0x1b0] sm:$0xff]
      %v1130 = vld [vmem:[%s1 + $0x1b8] sm:$0xff]
      %v1131 = vld [vmem:[%s1 + $0x1c0] sm:$0xff]
      %v1132 = vld [vmem:[%s1 + $0x1c8] sm:$0xff]
      %v1133 = vld [vmem:[%s1 + $0x1d0] sm:$0xff]
      %v1134 = vld [vmem:[%s1 + $0x1d8] sm:$0xff]
      %v1135 = vld [vmem:[%s1 + $0x1e0] sm:$0xff]
      %v1136 = vld [vmem:[%s1 + $0x1e8] sm:$0xff]
      %v1137 = vld [vmem:[%s1 + $0x1f0] sm:$0xff]
      %v1138 = vld [vmem:[%s1 + $0x1f8] sm:$0xff]
      %v1139 = vld [vmem:[%s1 + $0x200] sm:$0xff]
      %v1140 = vld [vmem:[%s1 + $0x208] sm:$0xff]
      %v1141 = vld [vmem:[%s1 + $0x210] sm:$0xff]
      %v1142 = vld [vmem:[%s1 + $0x218] sm:$0xff]
      %v1143 = vld [vmem:[%s1 + $0x220] sm:$0xff]
      %v1144 = vld [vmem:[%s1 + $0x228] sm:$0xff]
      %v1145 = vld [vmem:[%s1 + $0x230] sm:$0xff]
      %v1146 = vld [vmem:[%s1 + $0x238] sm:$0xff]
      %v1147 = vld [vmem:[%s1 + $0x240] sm:$0xff]
      %v1148 = vld [vmem:[%s1 + $0x248] sm:$0xff]
      %v1149 = vld [vmem:[%s1 + $0x250] sm:$0xff]
      %v1150 = vld [vmem:[%s1 + $0x258] sm:$0xff]
      %v1151 = vld [vmem:[%s1 + $0x260] sm:$0xff]
      %v1152 = vld [vmem:[%s1 + $0x268] sm:$0xff]
      %v1153 = vld [vmem:[%s1 + $0x270] sm:$0xff]
      %v1154 = vld [vmem:[%s1 + $0x278] sm:$0xff]
      %v1155 = vld [vmem:[%s1 + $0x280] sm:$0xff]
      %v1156 = vld [vmem:[%s1 + $0x288] sm:$0xff]
      %v1157 = vld [vmem:[%s1 + $0x290] sm:$0xff]
      %v1158 = vld [vmem:[%s1 + $0x298] sm:$0xff]
      %v1159 = vld [vmem:[%s1 + $0x2a0] sm:$0xff]
      %v1160 = vld [vmem:[%s1 + $0x2a8] sm:$0xff]
      %v1161 = vld [vmem:[%s1 + $0x2b0] sm:$0xff]
      %v1162 = vld [vmem:[%s1 + $0x2b8] sm:$0xff]
      %v1163 = vld [vmem:[%s1 + $0x2c0] sm:$0xff]
      %v1164 = vld [vmem:[%s1 + $0x2c8] sm:$0xff]
      %v1165 = vld [vmem:[%s1 + $0x2d0] sm:$0xff]
      %v1166 = vld [vmem:[%s1 + $0x2d8] sm:$0xff]
      %v1167 = vld [vmem:[%s1 + $0x2e0] sm:$0xff]
      %v1168 = vld [vmem:[%s1 + $0x2e8] sm:$0xff]
      %v1169 = vld [vmem:[%s1 + $0x2f0] sm:$0xff]
      %v1170 = vld [vmem:[%s1 + $0x2f8] sm:$0xff]
      %v1171 = vld [vmem:[%s1 + $0x300] sm:$0xff]
      %v1172 = vld [vmem:[%s1 + $0x308] sm:$0xff]
      %v1173 = vld [vmem:[%s1 + $0x310] sm:$0xff]
      %v1174 = vld [vmem:[%s1 + $0x318] sm:$0xff]
      %v1175 = vld [vmem:[%s1 + $0x320] sm:$0xff]
      %v1176 = vld [vmem:[%s1 + $0x328] sm:$0xff]
      %v1177 = vld [vmem:[%s1 + $0x330] sm:$0xff]
      %v1178 = vld [vmem:[%s1 + $0x338] sm:$0xff]
      %v1179 = vld [vmem:[%s1 + $0x340] sm:$0xff]
      %v1180 = vld [vmem:[%s1 + $0x348] sm:$0xff]
      %v1181 = vld [vmem:[%s1 + $0x350] sm:$0xff]
      %v1182 = vld [vmem:[%s1 + $0x358] sm:$0xff]
      %v1183 = vld [vmem:[%s1 + $0x360] sm:$0xff]
      %v1184 = vld [vmem:[%s1 + $0x368] sm:$0xff]
      %v1185 = vld [vmem:[%s1 + $0x370] sm:$0xff]
      %v1186 = vld [vmem:[%s1 + $0x378] sm:$0xff]
      %v1187 = vld [vmem:[%s1 + $0x380] sm:$0xff]
      %v1188 = vld [vmem:[%s1 + $0x388] sm:$0xff]
      %v1189 = vld [vmem:[%s1 + $0x390] sm:$0xff]
      %v1190 = vld [vmem:[%s1 + $0x398] sm:$0xff]
      %v1191 = vld [vmem:[%s1 + $0x3a0] sm:$0xff]
      %v1192 = vld [vmem:[%s1 + $0x3a8] sm:$0xff]
      %v1193 = vld [vmem:[%s1 + $0x3b0] sm:$0xff]
      %v1194 = vld [vmem:[%s1 + $0x3b8] sm:$0xff]
      %v1195 = vld [vmem:[%s1 + $0x3c0] sm:$0xff]
      %v1196 = vld [vmem:[%s1 + $0x3c8] sm:$0xff]
      %v1197 = vld [vmem:[%s1 + $0x3d0] sm:$0xff]
      %v1198 = vld [vmem:[%s1 + $0x3d8] sm:$0xff]
      %v1199 = vld [vmem:[%s1 + $0x3e0] sm:$0xff]
      %v1200 = vld [vmem:[%s1 + $0x3e8] sm:$0xff]
      %v1201 = vld [vmem:[%s1 + $0x3f0] sm:$0xff]
      %v1202 = vld [vmem:[%s1 + $0x3f8] sm:$0xff]
      %v1203 = vld [vmem:[%s1 + $0x400] sm:$0xff]
      %v1204 = vld [vmem:[%s1 + $0x408] sm:$0xff]
      %v1205 = vld [vmem:[%s1 + $0x410] sm:$0xff]
      %v1206 = vld [vmem:[%s1 + $0x418] sm:$0xff]
      %v1207 = vld [vmem:[%s1 + $0x420] sm:$0xff]
      %v1208 = vld [vmem:[%s1 + $0x428] sm:$0xff]
      %v1209 = vld [vmem:[%s1 + $0x430] sm:$0xff]
      %v1210 = vld [vmem:[%s1 + $0x438] sm:$0xff]
      %v1211 = vld [vmem:[%s1 + $0x440] sm:$0xff]
      %v1212 = vld [vmem:[%s1 + $0x448] sm:$0xff]
      %v1213 = vld [vmem:[%s1 + $0x450] sm:$0xff]
      %v1214 = vld [vmem:[%s1 + $0x458] sm:$0xff]
      %v1215 = vld [vmem:[%s1 + $0x460] sm:$0xff]
      %v1216 = vld [vmem:[%s1 + $0x468] sm:$0xff]
      %v1217 = vld [vmem:[%s1 + $0x470] sm:$0xff]
      %v1218 = vld [vmem:[%s1 + $0x478] sm:$0xff]
      %v1219 = vld [vmem:[%s2] sm:$0x1]
      %v1221 = vlaneseq
      %v1222 = vshrl.u32 %v1221, 7
      %v1223 = vsub.s32 0, %v1222
      %v1224 = vrot.slane %v1219, %v1223
      %1226 = vmatprep.subr.mxu0 0.0
      %1227 = vmatpush1.msra.mxu0 %v1090
      %1228 = vmatprep.subr.mxu0 0.0
      %1229 = vmatpush1.msra.mxu0 %v1089
      %1230 = vmatprep.subr.mxu0 0.0
      %1231 = vmatpush1.msra.mxu0 %v1088
      %1232 = vmatprep.subr.mxu0 0.0
      %1233 = vmatpush1.msra.mxu0 %v1087
      %1234 = vmatprep.subr.mxu0 0.0
      %1235 = vmatpush1.msra.mxu0 %v1086
      %1236 = vmatprep.subr.mxu0 0.0
      %1237 = vmatpush1.msra.mxu0 %v1085
      %1238 = vmatprep.subr.mxu0 0.0
      %1239 = vmatpush1.msra.mxu0 %v1084
      %1240 = vmatprep.subr.mxu0 0.0
      %1241 = vmatpush1.msra.mxu0 %v1083
      %1242 = vmatprep.subr.mxu0 0.0
      %1243 = vmatpush1.msra.mxu0 %v1082
      %1244 = vmatprep.subr.mxu0 0.0
      %1245 = vmatpush1.msra.mxu0 %v1081
      %1246 = vmatprep.subr.mxu0 0.0
      %1247 = vmatpush1.msra.mxu0 %v1080
      %1248 = vmatprep.subr.mxu0 0.0
      %1249 = vmatpush1.msra.mxu0 %v1079
      %1250 = vmatprep.subr.mxu0 0.0
      %1251 = vmatpush1.msra.mxu0 %v1078
      %1252 = vmatprep.subr.mxu0 0.0
      %1253 = vmatpush1.msra.mxu0 %v1077
      %1254 = vmatprep.subr.mxu0 0.0
      %1255 = vmatpush1.msra.mxu0 %v1076
      %1256 = vmatprep.subr.mxu0 0.0
      %1257 = vmatpush1.msra.mxu0 %v1075
      %1258 = vmatprep.subr.mxu0 0.0
      %1259 = vmatpush2.msra.mxu0 %v1106
      %1260 = vmatprep.subr.mxu0 0.0
      %1261 = vmatpush2.msra.mxu0 %v1105
      %1262 = vmatprep.subr.mxu0 0.0
      %1263 = vmatpush2.msra.mxu0 %v1104
      %1264 = vmatprep.subr.mxu0 0.0
      %1265 = vmatpush2.msra.mxu0 %v1103
      %1266 = vmatprep.subr.mxu0 0.0
      %1267 = vmatpush2.msra.mxu0 %v1102
      %1268 = vmatprep.subr.mxu0 0.0
      %1269 = vmatpush2.msra.mxu0 %v1101
      %1270 = vmatprep.subr.mxu0 0.0
      %1271 = vmatpush2.msra.mxu0 %v1100
      %1272 = vmatprep.subr.mxu0 0.0
      %1273 = vmatpush2.msra.mxu0 %v1099
      %1274 = vmatprep.subr.mxu0 0.0
      %1275 = vmatpush2.msra.mxu0 %v1098
      %1276 = vmatprep.subr.mxu0 0.0
      %1277 = vmatpush2.msra.mxu0 %v1097
      %1278 = vmatprep.subr.mxu0 0.0
      %1279 = vmatpush2.msra.mxu0 %v1096
      %1280 = vmatprep.subr.mxu0 0.0
      %1281 = vmatpush2.msra.mxu0 %v1095
      %1282 = vmatprep.subr.mxu0 0.0
      %1283 = vmatpush2.msra.mxu0 %v1094
      %1284 = vmatprep.subr.mxu0 0.0
      %1285 = vmatpush2.msra.mxu0 %v1093
      %1286 = vmatprep.subr.mxu0 0.0
      %1287 = vmatpush2.msra.mxu0 %v1092
      %1288 = vmatprep.subr.mxu0 0.0
      %1289 = vmatpush2.msra.mxu0 %v1091
      %1290 = vmatprep.mubr.f32.mxu0 %v788
      %1291 = vmatmul.mubr.f32.gmra.mxu0 %v787
      %v1292 = vpop.f32.mrf.mxu0
      %v1293 = vadd.f32 %v1224, %v1292
      %v1294 = vpop.f32.mrf.mxu0
      %1295 = vmatprep.mubr.f32.mxu0 %v797
      %1296 = vmatmul.mubr.f32.gmra.mxu0 %v796
      %v1297 = vpop.f32.mrf.mxu0
      %v1298 = vadd.f32 %v1224, %v1297
      %v1299 = vpop.f32.mrf.mxu0
      %1300 = vmatprep.mubr.f32.mxu0 %v806
      %1301 = vmatmul.mubr.f32.gmra.mxu0 %v805
      %v1302 = vpop.f32.mrf.mxu0
      %v1303 = vadd.f32 %v1224, %v1302
      %v1304 = vpop.f32.mrf.mxu0
      %1305 = vmatprep.mubr.f32.mxu0 %v815
      %1306 = vmatmul.mubr.f32.gmra.mxu0 %v814
      %v1307 = vpop.f32.mrf.mxu0
      %v1308 = vadd.f32 %v1224, %v1307
      %v1309 = vpop.f32.mrf.mxu0
      %1310 = vmatprep.mubr.f32.mxu0 %v824
      %1311 = vmatmul.mubr.f32.gmra.mxu0 %v823
      %v1312 = vpop.f32.mrf.mxu0
      %v1313 = vadd.f32 %v1224, %v1312
      %v1314 = vpop.f32.mrf.mxu0
      %1315 = vmatprep.mubr.f32.mxu0 %v833
      %1316 = vmatmul.mubr.f32.gmra.mxu0 %v832
      %v1317 = vpop.f32.mrf.mxu0
      %v1318 = vadd.f32 %v1224, %v1317
      %v1319 = vpop.f32.mrf.mxu0
      %1320 = vmatprep.mubr.f32.mxu0 %v842
      %1321 = vmatmul.mubr.f32.gmra.mxu0 %v841
      %v1322 = vpop.f32.mrf.mxu0
      %v1323 = vadd.f32 %v1224, %v1322
      %v1324 = vpop.f32.mrf.mxu0
      %1325 = vmatprep.mubr.f32.mxu0 %v851
      %1326 = vmatmul.mubr.f32.gmra.mxu0 %v850
      %v1327 = vpop.f32.mrf.mxu0
      %v1328 = vadd.f32 %v1224, %v1327
      %v1329 = vpop.f32.mrf.mxu0
      %1330 = vmatprep.mubr.f32.mxu0 %v860
      %1331 = vmatmul.mubr.f32.gmra.mxu0 %v859
      %v1332 = vpop.f32.mrf.mxu0
      %v1333 = vadd.f32 %v1224, %v1332
      %v1334 = vpop.f32.mrf.mxu0
      %1335 = vmatprep.mubr.f32.mxu0 %v869
      %1336 = vmatmul.mubr.f32.gmra.mxu0 %v868
      %v1337 = vpop.f32.mrf.mxu0
      %v1338 = vadd.f32 %v1224, %v1337
      %v1339 = vpop.f32.mrf.mxu0
      %1340 = vmatprep.mubr.f32.mxu0 %v878
      %1341 = vmatmul.mubr.f32.gmra.mxu0 %v877
      %v1342 = vpop.f32.mrf.mxu0
      %v1343 = vadd.f32 %v1224, %v1342
      %v1344 = vpop.f32.mrf.mxu0
      %1345 = vmatprep.mubr.f32.mxu0 %v887
      %1346 = vmatmul.mubr.f32.gmra.mxu0 %v886
      %v1347 = vpop.f32.mrf.mxu0
      %v1348 = vadd.f32 %v1224, %v1347
      %v1349 = vpop.f32.mrf.mxu0
      %1350 = vmatprep.mubr.f32.mxu0 %v896
      %1351 = vmatmul.mubr.f32.gmra.mxu0 %v895
      %v1352 = vpop.f32.mrf.mxu0
      %v1353 = vadd.f32 %v1224, %v1352
      %v1354 = vpop.f32.mrf.mxu0
      %1355 = vmatprep.mubr.f32.mxu0 %v905
      %1356 = vmatmul.mubr.f32.gmra.mxu0 %v904
      %v1357 = vpop.f32.mrf.mxu0
      %v1358 = vadd.f32 %v1224, %v1357
      %v1359 = vpop.f32.mrf.mxu0
      %1360 = vmatprep.mubr.f32.mxu0 %v914
      %1361 = vmatmul.mubr.f32.gmra.mxu0 %v913
      %v1362 = vpop.f32.mrf.mxu0
      %v1363 = vadd.f32 %v1224, %v1362
      %v1364 = vpop.f32.mrf.mxu0
      %1365 = vmatprep.mubr.f32.mxu0 %v923
      %1366 = vmatmul.mubr.f32.gmra.mxu0 %v922
      %v1367 = vpop.f32.mrf.mxu0
      %v1368 = vadd.f32 %v1224, %v1367
      %v1369 = vpop.f32.mrf.mxu0
      %1370 = vmatprep.mubr.f32.mxu0 %v932
      %1371 = vmatmul.mubr.f32.gmra.mxu0 %v931
      %v1372 = vpop.f32.mrf.mxu0
      %v1373 = vadd.f32 %v1224, %v1372
      %v1374 = vpop.f32.mrf.mxu0
      %1375 = vmatprep.mubr.f32.mxu0 %v941
      %1376 = vmatmul.mubr.f32.gmra.mxu0 %v940
      %v1377 = vpop.f32.mrf.mxu0
      %v1378 = vadd.f32 %v1224, %v1377
      %v1379 = vpop.f32.mrf.mxu0
      %1380 = vmatprep.mubr.f32.mxu0 %v950
      %1381 = vmatmul.mubr.f32.gmra.mxu0 %v949
      %v1382 = vpop.f32.mrf.mxu0
      %v1383 = vadd.f32 %v1224, %v1382
      %v1384 = vpop.f32.mrf.mxu0
      %1385 = vmatprep.mubr.f32.mxu0 %v959
      %1386 = vmatmul.mubr.f32.gmra.mxu0 %v958
      %v1387 = vpop.f32.mrf.mxu0
      %v1388 = vadd.f32 %v1224, %v1387
      %v1389 = vpop.f32.mrf.mxu0
      %1390 = vmatprep.mubr.f32.mxu0 %v968
      %1391 = vmatmul.mubr.f32.gmra.mxu0 %v967
      %v1392 = vpop.f32.mrf.mxu0
      %v1393 = vadd.f32 %v1224, %v1392
      %v1394 = vpop.f32.mrf.mxu0
      %1395 = vmatprep.mubr.f32.mxu0 %v977
      %1396 = vmatmul.mubr.f32.gmra.mxu0 %v976
      %v1397 = vpop.f32.mrf.mxu0
      %v1398 = vadd.f32 %v1224, %v1397
      %v1399 = vpop.f32.mrf.mxu0
      %1400 = vmatprep.mubr.f32.mxu0 %v986
      %1401 = vmatmul.mubr.f32.gmra.mxu0 %v985
      %v1402 = vpop.f32.mrf.mxu0
      %v1403 = vadd.f32 %v1224, %v1402
      %v1404 = vpop.f32.mrf.mxu0
      %1405 = vmatprep.mubr.f32.mxu0 %v995
      %1406 = vmatmul.mubr.f32.gmra.mxu0 %v994
      %v1407 = vpop.f32.mrf.mxu0
      %v1408 = vadd.f32 %v1224, %v1407
      %v1409 = vpop.f32.mrf.mxu0
      %1410 = vmatprep.mubr.f32.mxu0 %v1004
      %1411 = vmatmul.mubr.f32.gmra.mxu0 %v1003
      %v1412 = vpop.f32.mrf.mxu0
      %v1413 = vadd.f32 %v1224, %v1412
      %v1414 = vpop.f32.mrf.mxu0
      %1415 = vmatprep.mubr.f32.mxu0 %v1013
      %1416 = vmatmul.mubr.f32.gmra.mxu0 %v1012
      %v1417 = vpop.f32.mrf.mxu0
      %v1418 = vadd.f32 %v1224, %v1417
      %v1419 = vpop.f32.mrf.mxu0
      %1420 = vmatprep.mubr.f32.mxu0 %v1022
      %1421 = vmatmul.mubr.f32.gmra.mxu0 %v1021
      %v1422 = vpop.f32.mrf.mxu0
      %v1423 = vadd.f32 %v1224, %v1422
      %v1424 = vpop.f32.mrf.mxu0
      %1425 = vmatprep.mubr.f32.mxu0 %v1031
      %1426 = vmatmul.mubr.f32.gmra.mxu0 %v1030
      %v1427 = vpop.f32.mrf.mxu0
      %v1428 = vadd.f32 %v1224, %v1427
      %v1429 = vpop.f32.mrf.mxu0
      %1430 = vmatprep.mubr.f32.mxu0 %v1040
      %1431 = vmatmul.mubr.f32.gmra.mxu0 %v1039
      %v1432 = vpop.f32.mrf.mxu0
      %v1433 = vadd.f32 %v1224, %v1432
      %v1434 = vpop.f32.mrf.mxu0
      %1435 = vmatprep.mubr.f32.mxu0 %v1049
      %1436 = vmatmul.mubr.f32.gmra.mxu0 %v1048
      %v1437 = vpop.f32.mrf.mxu0
      %v1438 = vadd.f32 %v1224, %v1437
      %v1439 = vpop.f32.mrf.mxu0
      %1440 = vmatprep.mubr.f32.mxu0 %v1058
      %1441 = vmatmul.mubr.f32.gmra.mxu0 %v1057
      %v1442 = vpop.f32.mrf.mxu0
      %v1443 = vadd.f32 %v1224, %v1442
      %v1444 = vpop.f32.mrf.mxu0
      %1445 = vmatprep.mubr.f32.mxu0 %v1067
      %1446 = vmatmul.mubr.f32.gmra.mxu0 %v1066
      %v1447 = vpop.f32.mrf.mxu0
      %v1448 = vadd.f32 %v1224, %v1447
      %v1449 = vpop.f32.mrf.mxu0
      %1450 = vdwg.mxu0
      %1451 = vmatprep.subr.mxu0 0.0
      %1452 = vmatpush1.msra.mxu0 %v1122
      %1453 = vmatprep.subr.mxu0 0.0
      %1454 = vmatpush1.msra.mxu0 %v1121
      %1455 = vmatprep.subr.mxu0 0.0
      %1456 = vmatpush1.msra.mxu0 %v1120
      %1457 = vmatprep.subr.mxu0 0.0
      %1458 = vmatpush1.msra.mxu0 %v1119
      %1459 = vmatprep.subr.mxu0 0.0
      %1460 = vmatpush1.msra.mxu0 %v1118
      %1461 = vmatprep.subr.mxu0 0.0
      %1462 = vmatpush1.msra.mxu0 %v1117
      %1463 = vmatprep.subr.mxu0 0.0
      %1464 = vmatpush1.msra.mxu0 %v1116
      %1465 = vmatprep.subr.mxu0 0.0
      %1466 = vmatpush1.msra.mxu0 %v1115
      %1467 = vmatprep.subr.mxu0 0.0
      %1468 = vmatpush1.msra.mxu0 %v1114
      %1469 = vmatprep.subr.mxu0 0.0
      %1470 = vmatpush1.msra.mxu0 %v1113
      %1471 = vmatprep.subr.mxu0 0.0
      %1472 = vmatpush1.msra.mxu0 %v1112
      %1473 = vmatprep.subr.mxu0 0.0
      %1474 = vmatpush1.msra.mxu0 %v1111
      %1475 = vmatprep.subr.mxu0 0.0
      %1476 = vmatpush1.msra.mxu0 %v1110
      %1477 = vmatprep.subr.mxu0 0.0
      %1478 = vmatpush1.msra.mxu0 %v1109
      %1479 = vmatprep.subr.mxu0 0.0
      %1480 = vmatpush1.msra.mxu0 %v1108
      %1481 = vmatprep.subr.mxu0 0.0
      %1482 = vmatpush1.msra.mxu0 %v1107
      %1483 = vmatprep.subr.mxu0 0.0
      %1484 = vmatpush2.msra.mxu0 %v1138
      %1485 = vmatprep.subr.mxu0 0.0
      %1486 = vmatpush2.msra.mxu0 %v1137
      %1487 = vmatprep.subr.mxu0 0.0
      %1488 = vmatpush2.msra.mxu0 %v1136
      %1489 = vmatprep.subr.mxu0 0.0
      %1490 = vmatpush2.msra.mxu0 %v1135
      %1491 = vmatprep.subr.mxu0 0.0
      %1492 = vmatpush2.msra.mxu0 %v1134
      %1493 = vmatprep.subr.mxu0 0.0
      %1494 = vmatpush2.msra.mxu0 %v1133
      %1495 = vmatprep.subr.mxu0 0.0
      %1496 = vmatpush2.msra.mxu0 %v1132
      %1497 = vmatprep.subr.mxu0 0.0
      %1498 = vmatpush2.msra.mxu0 %v1131
      %1499 = vmatprep.subr.mxu0 0.0
      %1500 = vmatpush2.msra.mxu0 %v1130
      %1501 = vmatprep.subr.mxu0 0.0
      %1502 = vmatpush2.msra.mxu0 %v1129
      %1503 = vmatprep.subr.mxu0 0.0
      %1504 = vmatpush2.msra.mxu0 %v1128
      %1505 = vmatprep.subr.mxu0 0.0
      %1506 = vmatpush2.msra.mxu0 %v1127
      %1507 = vmatprep.subr.mxu0 0.0
      %1508 = vmatpush2.msra.mxu0 %v1126
      %1509 = vmatprep.subr.mxu0 0.0
      %1510 = vmatpush2.msra.mxu0 %v1125
      %1511 = vmatprep.subr.mxu0 0.0
      %1512 = vmatpush2.msra.mxu0 %v1124
      %1513 = vmatprep.subr.mxu0 0.0
      %1514 = vmatpush2.msra.mxu0 %v1123
      %1515 = vmatprep.mubr.f32.mxu0 %v790
      %1516 = vmatmul.mubr.f32.gmra.mxu0 %v789
      %v1517 = vpop.f32.mrf.mxu0
      %v1518 = vadd.f32 %v1293, %v1517
      %v1519 = vpop.f32.mrf.mxu0
      %1520 = vmatprep.mubr.f32.mxu0 %v799
      %1521 = vmatmul.mubr.f32.gmra.mxu0 %v798
      %v1522 = vpop.f32.mrf.mxu0
      %v1523 = vadd.f32 %v1298, %v1522
      %v1524 = vpop.f32.mrf.mxu0
      %1525 = vmatprep.mubr.f32.mxu0 %v808
      %1526 = vmatmul.mubr.f32.gmra.mxu0 %v807
      %v1527 = vpop.f32.mrf.mxu0
      %v1528 = vadd.f32 %v1303, %v1527
      %v1529 = vpop.f32.mrf.mxu0
      %1530 = vmatprep.mubr.f32.mxu0 %v817
      %1531 = vmatmul.mubr.f32.gmra.mxu0 %v816
      %v1532 = vpop.f32.mrf.mxu0
      %v1533 = vadd.f32 %v1308, %v1532
      %v1534 = vpop.f32.mrf.mxu0
      %1535 = vmatprep.mubr.f32.mxu0 %v826
      %1536 = vmatmul.mubr.f32.gmra.mxu0 %v825
      %v1537 = vpop.f32.mrf.mxu0
      %v1538 = vadd.f32 %v1313, %v1537
      %v1539 = vpop.f32.mrf.mxu0
      %1540 = vmatprep.mubr.f32.mxu0 %v835
      %1541 = vmatmul.mubr.f32.gmra.mxu0 %v834
      %v1542 = vpop.f32.mrf.mxu0
      %v1543 = vadd.f32 %v1318, %v1542
      %v1544 = vpop.f32.mrf.mxu0
      %1545 = vmatprep.mubr.f32.mxu0 %v844
      %1546 = vmatmul.mubr.f32.gmra.mxu0 %v843
      %v1547 = vpop.f32.mrf.mxu0
      %v1548 = vadd.f32 %v1323, %v1547
      %v1549 = vpop.f32.mrf.mxu0
      %1550 = vmatprep.mubr.f32.mxu0 %v853
      %1551 = vmatmul.mubr.f32.gmra.mxu0 %v852
      %v1552 = vpop.f32.mrf.mxu0
      %v1553 = vadd.f32 %v1328, %v1552
      %v1554 = vpop.f32.mrf.mxu0
      %1555 = vmatprep.mubr.f32.mxu0 %v862
      %1556 = vmatmul.mubr.f32.gmra.mxu0 %v861
      %v1557 = vpop.f32.mrf.mxu0
      %v1558 = vadd.f32 %v1333, %v1557
      %v1559 = vpop.f32.mrf.mxu0
      %1560 = vmatprep.mubr.f32.mxu0 %v871
      %1561 = vmatmul.mubr.f32.gmra.mxu0 %v870
      %v1562 = vpop.f32.mrf.mxu0
      %v1563 = vadd.f32 %v1338, %v1562
      %v1564 = vpop.f32.mrf.mxu0
      %1565 = vmatprep.mubr.f32.mxu0 %v880
      %1566 = vmatmul.mubr.f32.gmra.mxu0 %v879
      %v1567 = vpop.f32.mrf.mxu0
      %v1568 = vadd.f32 %v1343, %v1567
      %v1569 = vpop.f32.mrf.mxu0
      %1570 = vmatprep.mubr.f32.mxu0 %v889
      %1571 = vmatmul.mubr.f32.gmra.mxu0 %v888
      %v1572 = vpop.f32.mrf.mxu0
      %v1573 = vadd.f32 %v1348, %v1572
      %v1574 = vpop.f32.mrf.mxu0
      %1575 = vmatprep.mubr.f32.mxu0 %v898
      %1576 = vmatmul.mubr.f32.gmra.mxu0 %v897
      %v1577 = vpop.f32.mrf.mxu0
      %v1578 = vadd.f32 %v1353, %v1577
      %v1579 = vpop.f32.mrf.mxu0
      %1580 = vmatprep.mubr.f32.mxu0 %v907
      %1581 = vmatmul.mubr.f32.gmra.mxu0 %v906
      %v1582 = vpop.f32.mrf.mxu0
      %v1583 = vadd.f32 %v1358, %v1582
      %v1584 = vpop.f32.mrf.mxu0
      %1585 = vmatprep.mubr.f32.mxu0 %v916
      %1586 = vmatmul.mubr.f32.gmra.mxu0 %v915
      %v1587 = vpop.f32.mrf.mxu0
      %v1588 = vadd.f32 %v1363, %v1587
      %v1589 = vpop.f32.mrf.mxu0
      %1590 = vmatprep.mubr.f32.mxu0 %v925
      %1591 = vmatmul.mubr.f32.gmra.mxu0 %v924
      %v1592 = vpop.f32.mrf.mxu0
      %v1593 = vadd.f32 %v1368, %v1592
      %v1594 = vpop.f32.mrf.mxu0
      %1595 = vmatprep.mubr.f32.mxu0 %v934
      %1596 = vmatmul.mubr.f32.gmra.mxu0 %v933
      %v1597 = vpop.f32.mrf.mxu0
      %v1598 = vadd.f32 %v1373, %v1597
      %v1599 = vpop.f32.mrf.mxu0
      %1600 = vmatprep.mubr.f32.mxu0 %v943
      %1601 = vmatmul.mubr.f32.gmra.mxu0 %v942
      %v1602 = vpop.f32.mrf.mxu0
      %v1603 = vadd.f32 %v1378, %v1602
      %v1604 = vpop.f32.mrf.mxu0
      %1605 = vmatprep.mubr.f32.mxu0 %v952
      %1606 = vmatmul.mubr.f32.gmra.mxu0 %v951
      %v1607 = vpop.f32.mrf.mxu0
      %v1608 = vadd.f32 %v1383, %v1607
      %v1609 = vpop.f32.mrf.mxu0
      %1610 = vmatprep.mubr.f32.mxu0 %v961
      %1611 = vmatmul.mubr.f32.gmra.mxu0 %v960
      %v1612 = vpop.f32.mrf.mxu0
      %v1613 = vadd.f32 %v1388, %v1612
      %v1614 = vpop.f32.mrf.mxu0
      %1615 = vmatprep.mubr.f32.mxu0 %v970
      %1616 = vmatmul.mubr.f32.gmra.mxu0 %v969
      %v1617 = vpop.f32.mrf.mxu0
      %v1618 = vadd.f32 %v1393, %v1617
      %v1619 = vpop.f32.mrf.mxu0
      %1620 = vmatprep.mubr.f32.mxu0 %v979
      %1621 = vmatmul.mubr.f32.gmra.mxu0 %v978
      %v1622 = vpop.f32.mrf.mxu0
      %v1623 = vadd.f32 %v1398, %v1622
      %v1624 = vpop.f32.mrf.mxu0
      %1625 = vmatprep.mubr.f32.mxu0 %v988
      %1626 = vmatmul.mubr.f32.gmra.mxu0 %v987
      %v1627 = vpop.f32.mrf.mxu0
      %v1628 = vadd.f32 %v1403, %v1627
      %v1629 = vpop.f32.mrf.mxu0
      %1630 = vmatprep.mubr.f32.mxu0 %v997
      %1631 = vmatmul.mubr.f32.gmra.mxu0 %v996
      %v1632 = vpop.f32.mrf.mxu0
      %v1633 = vadd.f32 %v1408, %v1632
      %v1634 = vpop.f32.mrf.mxu0
      %1635 = vmatprep.mubr.f32.mxu0 %v1006
      %1636 = vmatmul.mubr.f32.gmra.mxu0 %v1005
      %v1637 = vpop.f32.mrf.mxu0
      %v1638 = vadd.f32 %v1413, %v1637
      %v1639 = vpop.f32.mrf.mxu0
      %1640 = vmatprep.mubr.f32.mxu0 %v1015
      %1641 = vmatmul.mubr.f32.gmra.mxu0 %v1014
      %v1642 = vpop.f32.mrf.mxu0
      %v1643 = vadd.f32 %v1418, %v1642
      %v1644 = vpop.f32.mrf.mxu0
      %1645 = vmatprep.mubr.f32.mxu0 %v1024
      %1646 = vmatmul.mubr.f32.gmra.mxu0 %v1023
      %v1647 = vpop.f32.mrf.mxu0
      %v1648 = vadd.f32 %v1423, %v1647
      %v1649 = vpop.f32.mrf.mxu0
      %1650 = vmatprep.mubr.f32.mxu0 %v1033
      %1651 = vmatmul.mubr.f32.gmra.mxu0 %v1032
      %v1652 = vpop.f32.mrf.mxu0
      %v1653 = vadd.f32 %v1428, %v1652
      %v1654 = vpop.f32.mrf.mxu0
      %1655 = vmatprep.mubr.f32.mxu0 %v1042
      %1656 = vmatmul.mubr.f32.gmra.mxu0 %v1041
      %v1657 = vpop.f32.mrf.mxu0
      %v1658 = vadd.f32 %v1433, %v1657
      %v1659 = vpop.f32.mrf.mxu0
      %1660 = vmatprep.mubr.f32.mxu0 %v1051
      %1661 = vmatmul.mubr.f32.gmra.mxu0 %v1050
      %v1662 = vpop.f32.mrf.mxu0
      %v1663 = vadd.f32 %v1438, %v1662
      %v1664 = vpop.f32.mrf.mxu0
      %1665 = vmatprep.mubr.f32.mxu0 %v1060
      %1666 = vmatmul.mubr.f32.gmra.mxu0 %v1059
      %v1667 = vpop.f32.mrf.mxu0
      %v1668 = vadd.f32 %v1443, %v1667
      %v1669 = vpop.f32.mrf.mxu0
      %1670 = vmatprep.mubr.f32.mxu0 %v1069
      %1671 = vmatmul.mubr.f32.gmra.mxu0 %v1068
      %v1672 = vpop.f32.mrf.mxu0
      %v1673 = vadd.f32 %v1448, %v1672
      %v1674 = vpop.f32.mrf.mxu0
      %1675 = vdwg.mxu0
      %1676 = vmatprep.subr.mxu0 0.0
      %1677 = vmatpush1.msra.mxu0 %v1154
      %1678 = vmatprep.subr.mxu0 0.0
      %1679 = vmatpush1.msra.mxu0 %v1153
      %1680 = vmatprep.subr.mxu0 0.0
      %1681 = vmatpush1.msra.mxu0 %v1152
      %1682 = vmatprep.subr.mxu0 0.0
      %1683 = vmatpush1.msra.mxu0 %v1151
      %1684 = vmatprep.subr.mxu0 0.0
      %1685 = vmatpush1.msra.mxu0 %v1150
      %1686 = vmatprep.subr.mxu0 0.0
      %1687 = vmatpush1.msra.mxu0 %v1149
      %1688 = vmatprep.subr.mxu0 0.0
      %1689 = vmatpush1.msra.mxu0 %v1148
      %1690 = vmatprep.subr.mxu0 0.0
      %1691 = vmatpush1.msra.mxu0 %v1147
      %1692 = vmatprep.subr.mxu0 0.0
      %1693 = vmatpush1.msra.mxu0 %v1146
      %1694 = vmatprep.subr.mxu0 0.0
      %1695 = vmatpush1.msra.mxu0 %v1145
      %1696 = vmatprep.subr.mxu0 0.0
      %1697 = vmatpush1.msra.mxu0 %v1144
      %1698 = vmatprep.subr.mxu0 0.0
      %1699 = vmatpush1.msra.mxu0 %v1143
      %1700 = vmatprep.subr.mxu0 0.0
      %1701 = vmatpush1.msra.mxu0 %v1142
      %1702 = vmatprep.subr.mxu0 0.0
      %1703 = vmatpush1.msra.mxu0 %v1141
      %1704 = vmatprep.subr.mxu0 0.0
      %1705 = vmatpush1.msra.mxu0 %v1140
      %1706 = vmatprep.subr.mxu0 0.0
      %1707 = vmatpush1.msra.mxu0 %v1139
      %1708 = vmatprep.subr.mxu0 0.0
      %1709 = vmatpush2.msra.mxu0 %v1170
      %1710 = vmatprep.subr.mxu0 0.0
      %1711 = vmatpush2.msra.mxu0 %v1169
      %1712 = vmatprep.subr.mxu0 0.0
      %1713 = vmatpush2.msra.mxu0 %v1168
      %1714 = vmatprep.subr.mxu0 0.0
      %1715 = vmatpush2.msra.mxu0 %v1167
      %1716 = vmatprep.subr.mxu0 0.0
      %1717 = vmatpush2.msra.mxu0 %v1166
      %1718 = vmatprep.subr.mxu0 0.0
      %1719 = vmatpush2.msra.mxu0 %v1165
      %1720 = vmatprep.subr.mxu0 0.0
      %1721 = vmatpush2.msra.mxu0 %v1164
      %1722 = vmatprep.subr.mxu0 0.0
      %1723 = vmatpush2.msra.mxu0 %v1163
      %1724 = vmatprep.subr.mxu0 0.0
      %1725 = vmatpush2.msra.mxu0 %v1162
      %1726 = vmatprep.subr.mxu0 0.0
      %1727 = vmatpush2.msra.mxu0 %v1161
      %1728 = vmatprep.subr.mxu0 0.0
      %1729 = vmatpush2.msra.mxu0 %v1160
      %1730 = vmatprep.subr.mxu0 0.0
      %1731 = vmatpush2.msra.mxu0 %v1159
      %1732 = vmatprep.subr.mxu0 0.0
      %1733 = vmatpush2.msra.mxu0 %v1158
      %1734 = vmatprep.subr.mxu0 0.0
      %1735 = vmatpush2.msra.mxu0 %v1157
      %1736 = vmatprep.subr.mxu0 0.0
      %1737 = vmatpush2.msra.mxu0 %v1156
      %1738 = vmatprep.subr.mxu0 0.0
      %1739 = vmatpush2.msra.mxu0 %v1155
      %1740 = vmatprep.mubr.f32.mxu0 %v792
      %1741 = vmatmul.mubr.f32.gmra.mxu0 %v791
      %v1742 = vpop.f32.mrf.mxu0
      %v1743 = vadd.f32 %v1518, %v1742
      %v1744 = vpop.f32.mrf.mxu0
      %1745 = vmatprep.mubr.f32.mxu0 %v801
      %1746 = vmatmul.mubr.f32.gmra.mxu0 %v800
      %v1747 = vpop.f32.mrf.mxu0
      %v1748 = vadd.f32 %v1523, %v1747
      %v1749 = vpop.f32.mrf.mxu0
      %1750 = vmatprep.mubr.f32.mxu0 %v810
      %1751 = vmatmul.mubr.f32.gmra.mxu0 %v809
      %v1752 = vpop.f32.mrf.mxu0
      %v1753 = vadd.f32 %v1528, %v1752
      %v1754 = vpop.f32.mrf.mxu0
      %1755 = vmatprep.mubr.f32.mxu0 %v819
      %1756 = vmatmul.mubr.f32.gmra.mxu0 %v818
      %v1757 = vpop.f32.mrf.mxu0
      %v1758 = vadd.f32 %v1533, %v1757
      %v1759 = vpop.f32.mrf.mxu0
      %1760 = vmatprep.mubr.f32.mxu0 %v828
      %1761 = vmatmul.mubr.f32.gmra.mxu0 %v827
      %v1762 = vpop.f32.mrf.mxu0
      %v1763 = vadd.f32 %v1538, %v1762
      %v1764 = vpop.f32.mrf.mxu0
      %1765 = vmatprep.mubr.f32.mxu0 %v837
      %1766 = vmatmul.mubr.f32.gmra.mxu0 %v836
      %v1767 = vpop.f32.mrf.mxu0
      %v1768 = vadd.f32 %v1543, %v1767
      %v1769 = vpop.f32.mrf.mxu0
      %1770 = vmatprep.mubr.f32.mxu0 %v846
      %1771 = vmatmul.mubr.f32.gmra.mxu0 %v845
      %v1772 = vpop.f32.mrf.mxu0
      %v1773 = vadd.f32 %v1548, %v1772
      %v1774 = vpop.f32.mrf.mxu0
      %1775 = vmatprep.mubr.f32.mxu0 %v855
      %1776 = vmatmul.mubr.f32.gmra.mxu0 %v854
      %v1777 = vpop.f32.mrf.mxu0
      %v1778 = vadd.f32 %v1553, %v1777
      %v1779 = vpop.f32.mrf.mxu0
      %1780 = vmatprep.mubr.f32.mxu0 %v864
      %1781 = vmatmul.mubr.f32.gmra.mxu0 %v863
      %v1782 = vpop.f32.mrf.mxu0
      %v1783 = vadd.f32 %v1558, %v1782
      %v1784 = vpop.f32.mrf.mxu0
      %1785 = vmatprep.mubr.f32.mxu0 %v873
      %1786 = vmatmul.mubr.f32.gmra.mxu0 %v872
      %v1787 = vpop.f32.mrf.mxu0
      %v1788 = vadd.f32 %v1563, %v1787
      %v1789 = vpop.f32.mrf.mxu0
      %1790 = vmatprep.mubr.f32.mxu0 %v882
      %1791 = vmatmul.mubr.f32.gmra.mxu0 %v881
      %v1792 = vpop.f32.mrf.mxu0
      %v1793 = vadd.f32 %v1568, %v1792
      %v1794 = vpop.f32.mrf.mxu0
      %1795 = vmatprep.mubr.f32.mxu0 %v891
      %1796 = vmatmul.mubr.f32.gmra.mxu0 %v890
      %v1797 = vpop.f32.mrf.mxu0
      %v1798 = vadd.f32 %v1573, %v1797
      %v1799 = vpop.f32.mrf.mxu0
      %1800 = vmatprep.mubr.f32.mxu0 %v900
      %1801 = vmatmul.mubr.f32.gmra.mxu0 %v899
      %v1802 = vpop.f32.mrf.mxu0
      %v1803 = vadd.f32 %v1578, %v1802
      %v1804 = vpop.f32.mrf.mxu0
      %1805 = vmatprep.mubr.f32.mxu0 %v909
      %1806 = vmatmul.mubr.f32.gmra.mxu0 %v908
      %v1807 = vpop.f32.mrf.mxu0
      %v1808 = vadd.f32 %v1583, %v1807
      %v1809 = vpop.f32.mrf.mxu0
      %1810 = vmatprep.mubr.f32.mxu0 %v918
      %1811 = vmatmul.mubr.f32.gmra.mxu0 %v917
      %v1812 = vpop.f32.mrf.mxu0
      %v1813 = vadd.f32 %v1588, %v1812
      %v1814 = vpop.f32.mrf.mxu0
      %1815 = vmatprep.mubr.f32.mxu0 %v927
      %1816 = vmatmul.mubr.f32.gmra.mxu0 %v926
      %v1817 = vpop.f32.mrf.mxu0
      %v1818 = vadd.f32 %v1593, %v1817
      %v1819 = vpop.f32.mrf.mxu0
      %1820 = vmatprep.mubr.f32.mxu0 %v936
      %1821 = vmatmul.mubr.f32.gmra.mxu0 %v935
      %v1822 = vpop.f32.mrf.mxu0
      %v1823 = vadd.f32 %v1598, %v1822
      %v1824 = vpop.f32.mrf.mxu0
      %1825 = vmatprep.mubr.f32.mxu0 %v945
      %1826 = vmatmul.mubr.f32.gmra.mxu0 %v944
      %v1827 = vpop.f32.mrf.mxu0
      %v1828 = vadd.f32 %v1603, %v1827
      %v1829 = vpop.f32.mrf.mxu0
      %1830 = vmatprep.mubr.f32.mxu0 %v954
      %1831 = vmatmul.mubr.f32.gmra.mxu0 %v953
      %v1832 = vpop.f32.mrf.mxu0
      %v1833 = vadd.f32 %v1608, %v1832
      %v1834 = vpop.f32.mrf.mxu0
      %1835 = vmatprep.mubr.f32.mxu0 %v963
      %1836 = vmatmul.mubr.f32.gmra.mxu0 %v962
      %v1837 = vpop.f32.mrf.mxu0
      %v1838 = vadd.f32 %v1613, %v1837
      %v1839 = vpop.f32.mrf.mxu0
      %1840 = vmatprep.mubr.f32.mxu0 %v972
      %1841 = vmatmul.mubr.f32.gmra.mxu0 %v971
      %v1842 = vpop.f32.mrf.mxu0
      %v1843 = vadd.f32 %v1618, %v1842
      %v1844 = vpop.f32.mrf.mxu0
      %1845 = vmatprep.mubr.f32.mxu0 %v981
      %1846 = vmatmul.mubr.f32.gmra.mxu0 %v980
      %v1847 = vpop.f32.mrf.mxu0
      %v1848 = vadd.f32 %v1623, %v1847
      %v1849 = vpop.f32.mrf.mxu0
      %1850 = vmatprep.mubr.f32.mxu0 %v990
      %1851 = vmatmul.mubr.f32.gmra.mxu0 %v989
      %v1852 = vpop.f32.mrf.mxu0
      %v1853 = vadd.f32 %v1628, %v1852
      %v1854 = vpop.f32.mrf.mxu0
      %1855 = vmatprep.mubr.f32.mxu0 %v999
      %1856 = vmatmul.mubr.f32.gmra.mxu0 %v998
      %v1857 = vpop.f32.mrf.mxu0
      %v1858 = vadd.f32 %v1633, %v1857
      %v1859 = vpop.f32.mrf.mxu0
      %1860 = vmatprep.mubr.f32.mxu0 %v1008
      %1861 = vmatmul.mubr.f32.gmra.mxu0 %v1007
      %v1862 = vpop.f32.mrf.mxu0
      %v1863 = vadd.f32 %v1638, %v1862
      %v1864 = vpop.f32.mrf.mxu0
      %1865 = vmatprep.mubr.f32.mxu0 %v1017
      %1866 = vmatmul.mubr.f32.gmra.mxu0 %v1016
      %v1867 = vpop.f32.mrf.mxu0
      %v1868 = vadd.f32 %v1643, %v1867
      %v1869 = vpop.f32.mrf.mxu0
      %1870 = vmatprep.mubr.f32.mxu0 %v1026
      %1871 = vmatmul.mubr.f32.gmra.mxu0 %v1025
      %v1872 = vpop.f32.mrf.mxu0
      %v1873 = vadd.f32 %v1648, %v1872
      %v1874 = vpop.f32.mrf.mxu0
      %1875 = vmatprep.mubr.f32.mxu0 %v1035
      %1876 = vmatmul.mubr.f32.gmra.mxu0 %v1034
      %v1877 = vpop.f32.mrf.mxu0
      %v1878 = vadd.f32 %v1653, %v1877
      %v1879 = vpop.f32.mrf.mxu0
      %1880 = vmatprep.mubr.f32.mxu0 %v1044
      %1881 = vmatmul.mubr.f32.gmra.mxu0 %v1043
      %v1882 = vpop.f32.mrf.mxu0
      %v1883 = vadd.f32 %v1658, %v1882
      %v1884 = vpop.f32.mrf.mxu0
      %1885 = vmatprep.mubr.f32.mxu0 %v1053
      %1886 = vmatmul.mubr.f32.gmra.mxu0 %v1052
      %v1887 = vpop.f32.mrf.mxu0
      %v1888 = vadd.f32 %v1663, %v1887
      %v1889 = vpop.f32.mrf.mxu0
      %1890 = vmatprep.mubr.f32.mxu0 %v1062
      %1891 = vmatmul.mubr.f32.gmra.mxu0 %v1061
      %v1892 = vpop.f32.mrf.mxu0
      %v1893 = vadd.f32 %v1668, %v1892
      %v1894 = vpop.f32.mrf.mxu0
      %1895 = vmatprep.mubr.f32.mxu0 %v1071
      %1896 = vmatmul.mubr.f32.gmra.mxu0 %v1070
      %v1897 = vpop.f32.mrf.mxu0
      %v1898 = vadd.f32 %v1673, %v1897
      %v1899 = vpop.f32.mrf.mxu0
      %1900 = vdwg.mxu0
      %1901 = vmatprep.subr.mxu0 0.0
      %1902 = vmatpush1.msra.mxu0 %v1186
      %1903 = vmatprep.subr.mxu0 0.0
      %1904 = vmatpush1.msra.mxu0 %v1185
      %1905 = vmatprep.subr.mxu0 0.0
      %1906 = vmatpush1.msra.mxu0 %v1184
      %1907 = vmatprep.subr.mxu0 0.0
      %1908 = vmatpush1.msra.mxu0 %v1183
      %1909 = vmatprep.subr.mxu0 0.0
      %1910 = vmatpush1.msra.mxu0 %v1182
      %1911 = vmatprep.subr.mxu0 0.0
      %1912 = vmatpush1.msra.mxu0 %v1181
      %1913 = vmatprep.subr.mxu0 0.0
      %1914 = vmatpush1.msra.mxu0 %v1180
      %1915 = vmatprep.subr.mxu0 0.0
      %1916 = vmatpush1.msra.mxu0 %v1179
      %1917 = vmatprep.subr.mxu0 0.0
      %1918 = vmatpush1.msra.mxu0 %v1178
      %1919 = vmatprep.subr.mxu0 0.0
      %1920 = vmatpush1.msra.mxu0 %v1177
      %1921 = vmatprep.subr.mxu0 0.0
      %1922 = vmatpush1.msra.mxu0 %v1176
      %1923 = vmatprep.subr.mxu0 0.0
      %1924 = vmatpush1.msra.mxu0 %v1175
      %1925 = vmatprep.subr.mxu0 0.0
      %1926 = vmatpush1.msra.mxu0 %v1174
      %1927 = vmatprep.subr.mxu0 0.0
      %1928 = vmatpush1.msra.mxu0 %v1173
      %1929 = vmatprep.subr.mxu0 0.0
      %1930 = vmatpush1.msra.mxu0 %v1172
      %1931 = vmatprep.subr.mxu0 0.0
      %1932 = vmatpush1.msra.mxu0 %v1171
      %1933 = vmatprep.subr.mxu0 0.0
      %1934 = vmatpush2.msra.mxu0 %v1202
      %1935 = vmatprep.subr.mxu0 0.0
      %1936 = vmatpush2.msra.mxu0 %v1201
      %1937 = vmatprep.subr.mxu0 0.0
      %1938 = vmatpush2.msra.mxu0 %v1200
      %1939 = vmatprep.subr.mxu0 0.0
      %1940 = vmatpush2.msra.mxu0 %v1199
      %1941 = vmatprep.subr.mxu0 0.0
      %1942 = vmatpush2.msra.mxu0 %v1198
      %1943 = vmatprep.subr.mxu0 0.0
      %1944 = vmatpush2.msra.mxu0 %v1197
      %1945 = vmatprep.subr.mxu0 0.0
      %1946 = vmatpush2.msra.mxu0 %v1196
      %1947 = vmatprep.subr.mxu0 0.0
      %1948 = vmatpush2.msra.mxu0 %v1195
      %1949 = vmatprep.subr.mxu0 0.0
      %1950 = vmatpush2.msra.mxu0 %v1194
      %1951 = vmatprep.subr.mxu0 0.0
      %1952 = vmatpush2.msra.mxu0 %v1193
      %1953 = vmatprep.subr.mxu0 0.0
      %1954 = vmatpush2.msra.mxu0 %v1192
      %1955 = vmatprep.subr.mxu0 0.0
      %1956 = vmatpush2.msra.mxu0 %v1191
      %1957 = vmatprep.subr.mxu0 0.0
      %1958 = vmatpush2.msra.mxu0 %v1190
      %1959 = vmatprep.subr.mxu0 0.0
      %1960 = vmatpush2.msra.mxu0 %v1189
      %1961 = vmatprep.subr.mxu0 0.0
      %1962 = vmatpush2.msra.mxu0 %v1188
      %1963 = vmatprep.subr.mxu0 0.0
      %1964 = vmatpush2.msra.mxu0 %v1187
      %1965 = vmatprep.mubr.f32.mxu0 %v794
      %1966 = vmatmul.mubr.f32.gmra.mxu0 %v793
      %v1967 = vpop.f32.mrf.mxu0
      %v1968 = vadd.f32 %v1743, %v1967
      %v1969 = vpop.f32.mrf.mxu0
      %1970 = vmatprep.mubr.f32.mxu0 %v803
      %1971 = vmatmul.mubr.f32.gmra.mxu0 %v802
      %v1972 = vpop.f32.mrf.mxu0
      %v1973 = vadd.f32 %v1748, %v1972
      %v1974 = vpop.f32.mrf.mxu0
      %1975 = vmatprep.mubr.f32.mxu0 %v812
      %1976 = vmatmul.mubr.f32.gmra.mxu0 %v811
      %v1977 = vpop.f32.mrf.mxu0
      %v1978 = vadd.f32 %v1753, %v1977
      %v1979 = vpop.f32.mrf.mxu0
      %1980 = vmatprep.mubr.f32.mxu0 %v821
      %1981 = vmatmul.mubr.f32.gmra.mxu0 %v820
      %v1982 = vpop.f32.mrf.mxu0
      %v1983 = vadd.f32 %v1758, %v1982
      %v1984 = vpop.f32.mrf.mxu0
      %1985 = vmatprep.mubr.f32.mxu0 %v830
      %1986 = vmatmul.mubr.f32.gmra.mxu0 %v829
      %v1987 = vpop.f32.mrf.mxu0
      %v1988 = vadd.f32 %v1763, %v1987
      %v1989 = vpop.f32.mrf.mxu0
      %1990 = vmatprep.mubr.f32.mxu0 %v839
      %1991 = vmatmul.mubr.f32.gmra.mxu0 %v838
      %v1992 = vpop.f32.mrf.mxu0
      %v1993 = vadd.f32 %v1768, %v1992
      %v1994 = vpop.f32.mrf.mxu0
      %1995 = vmatprep.mubr.f32.mxu0 %v848
      %1996 = vmatmul.mubr.f32.gmra.mxu0 %v847
      %v1997 = vpop.f32.mrf.mxu0
      %v1998 = vadd.f32 %v1773, %v1997
      %v1999 = vpop.f32.mrf.mxu0
      %2000 = vmatprep.mubr.f32.mxu0 %v857
      %2001 = vmatmul.mubr.f32.gmra.mxu0 %v856
      %v2002 = vpop.f32.mrf.mxu0
      %v2003 = vadd.f32 %v1778, %v2002
      %v2004 = vpop.f32.mrf.mxu0
      %2005 = vmatprep.mubr.f32.mxu0 %v866
      %2006 = vmatmul.mubr.f32.gmra.mxu0 %v865
      %v2007 = vpop.f32.mrf.mxu0
      %v2008 = vadd.f32 %v1783, %v2007
      %v2009 = vpop.f32.mrf.mxu0
      %2010 = vmatprep.mubr.f32.mxu0 %v875
      %2011 = vmatmul.mubr.f32.gmra.mxu0 %v874
      %v2012 = vpop.f32.mrf.mxu0
      %v2013 = vadd.f32 %v1788, %v2012
      %v2014 = vpop.f32.mrf.mxu0
      %2015 = vmatprep.mubr.f32.mxu0 %v884
      %2016 = vmatmul.mubr.f32.gmra.mxu0 %v883
      %v2017 = vpop.f32.mrf.mxu0
      %v2018 = vadd.f32 %v1793, %v2017
      %v2019 = vpop.f32.mrf.mxu0
      %2020 = vmatprep.mubr.f32.mxu0 %v893
      %2021 = vmatmul.mubr.f32.gmra.mxu0 %v892
      %v2022 = vpop.f32.mrf.mxu0
      %v2023 = vadd.f32 %v1798, %v2022
      %v2024 = vpop.f32.mrf.mxu0
      %2025 = vmatprep.mubr.f32.mxu0 %v902
      %2026 = vmatmul.mubr.f32.gmra.mxu0 %v901
      %v2027 = vpop.f32.mrf.mxu0
      %v2028 = vadd.f32 %v1803, %v2027
      %v2029 = vpop.f32.mrf.mxu0
      %2030 = vmatprep.mubr.f32.mxu0 %v911
      %2031 = vmatmul.mubr.f32.gmra.mxu0 %v910
      %v2032 = vpop.f32.mrf.mxu0
      %v2033 = vadd.f32 %v1808, %v2032
      %v2034 = vpop.f32.mrf.mxu0
      %2035 = vmatprep.mubr.f32.mxu0 %v920
      %2036 = vmatmul.mubr.f32.gmra.mxu0 %v919
      %v2037 = vpop.f32.mrf.mxu0
      %v2038 = vadd.f32 %v1813, %v2037
      %v2039 = vpop.f32.mrf.mxu0
      %2040 = vmatprep.mubr.f32.mxu0 %v929
      %2041 = vmatmul.mubr.f32.gmra.mxu0 %v928
      %v2042 = vpop.f32.mrf.mxu0
      %v2043 = vadd.f32 %v1818, %v2042
      %v2044 = vpop.f32.mrf.mxu0
      %2045 = vmatprep.mubr.f32.mxu0 %v938
      %2046 = vmatmul.mubr.f32.gmra.mxu0 %v937
      %v2047 = vpop.f32.mrf.mxu0
      %v2048 = vadd.f32 %v1823, %v2047
      %v2049 = vpop.f32.mrf.mxu0
      %2050 = vmatprep.mubr.f32.mxu0 %v947
      %2051 = vmatmul.mubr.f32.gmra.mxu0 %v946
      %v2052 = vpop.f32.mrf.mxu0
      %v2053 = vadd.f32 %v1828, %v2052
      %v2054 = vpop.f32.mrf.mxu0
      %2055 = vmatprep.mubr.f32.mxu0 %v956
      %2056 = vmatmul.mubr.f32.gmra.mxu0 %v955
      %v2057 = vpop.f32.mrf.mxu0
      %v2058 = vadd.f32 %v1833, %v2057
      %v2059 = vpop.f32.mrf.mxu0
      %2060 = vmatprep.mubr.f32.mxu0 %v965
      %2061 = vmatmul.mubr.f32.gmra.mxu0 %v964
      %v2062 = vpop.f32.mrf.mxu0
      %v2063 = vadd.f32 %v1838, %v2062
      %v2064 = vpop.f32.mrf.mxu0
      %2065 = vmatprep.mubr.f32.mxu0 %v974
      %2066 = vmatmul.mubr.f32.gmra.mxu0 %v973
      %v2067 = vpop.f32.mrf.mxu0
      %v2068 = vadd.f32 %v1843, %v2067
      %v2069 = vpop.f32.mrf.mxu0
      %2070 = vmatprep.mubr.f32.mxu0 %v983
      %2071 = vmatmul.mubr.f32.gmra.mxu0 %v982
      %v2072 = vpop.f32.mrf.mxu0
      %v2073 = vadd.f32 %v1848, %v2072
      %v2074 = vpop.f32.mrf.mxu0
      %2075 = vmatprep.mubr.f32.mxu0 %v992
      %2076 = vmatmul.mubr.f32.gmra.mxu0 %v991
      %v2077 = vpop.f32.mrf.mxu0
      %v2078 = vadd.f32 %v1853, %v2077
      %v2079 = vpop.f32.mrf.mxu0
      %2080 = vmatprep.mubr.f32.mxu0 %v1001
      %2081 = vmatmul.mubr.f32.gmra.mxu0 %v1000
      %v2082 = vpop.f32.mrf.mxu0
      %v2083 = vadd.f32 %v1858, %v2082
      %v2084 = vpop.f32.mrf.mxu0
      %2085 = vmatprep.mubr.f32.mxu0 %v1010
      %2086 = vmatmul.mubr.f32.gmra.mxu0 %v1009
      %v2087 = vpop.f32.mrf.mxu0
      %v2088 = vadd.f32 %v1863, %v2087
      %v2089 = vpop.f32.mrf.mxu0
      %2090 = vmatprep.mubr.f32.mxu0 %v1019
      %2091 = vmatmul.mubr.f32.gmra.mxu0 %v1018
      %v2092 = vpop.f32.mrf.mxu0
      %v2093 = vadd.f32 %v1868, %v2092
      %v2094 = vpop.f32.mrf.mxu0
      %2095 = vmatprep.mubr.f32.mxu0 %v1028
      %2096 = vmatmul.mubr.f32.gmra.mxu0 %v1027
      %v2097 = vpop.f32.mrf.mxu0
      %v2098 = vadd.f32 %v1873, %v2097
      %v2099 = vpop.f32.mrf.mxu0
      %2100 = vmatprep.mubr.f32.mxu0 %v1037
      %2101 = vmatmul.mubr.f32.gmra.mxu0 %v1036
      %v2102 = vpop.f32.mrf.mxu0
      %v2103 = vadd.f32 %v1878, %v2102
      %v2104 = vpop.f32.mrf.mxu0
      %2105 = vmatprep.mubr.f32.mxu0 %v1046
      %2106 = vmatmul.mubr.f32.gmra.mxu0 %v1045
      %v2107 = vpop.f32.mrf.mxu0
      %v2108 = vadd.f32 %v1883, %v2107
      %v2109 = vpop.f32.mrf.mxu0
      %2110 = vmatprep.mubr.f32.mxu0 %v1055
      %2111 = vmatmul.mubr.f32.gmra.mxu0 %v1054
      %v2112 = vpop.f32.mrf.mxu0
      %v2113 = vadd.f32 %v1888, %v2112
      %v2114 = vpop.f32.mrf.mxu0
      %2115 = vmatprep.mubr.f32.mxu0 %v1064
      %2116 = vmatmul.mubr.f32.gmra.mxu0 %v1063
      %v2117 = vpop.f32.mrf.mxu0
      %v2118 = vadd.f32 %v1893, %v2117
      %v2119 = vpop.f32.mrf.mxu0
      %2120 = vmatprep.mubr.f32.mxu0 %v1073
      %2121 = vmatmul.mubr.f32.gmra.mxu0 %v1072
      %v2122 = vpop.f32.mrf.mxu0
      %v2123 = vadd.f32 %v1898, %v2122
      %v2124 = vpop.f32.mrf.mxu0
      %2125 = vdwg.mxu0
      %2126 = vmatprep.subr.mxu0 0.0
      %2127 = vmatpush1.msra.mxu0 %v1218
      %2128 = vmatprep.subr.mxu0 0.0
      %2129 = vmatpush1.msra.mxu0 %v1217
      %2130 = vmatprep.subr.mxu0 0.0
      %2131 = vmatpush1.msra.mxu0 %v1216
      %2132 = vmatprep.subr.mxu0 0.0
      %2133 = vmatpush1.msra.mxu0 %v1215
      %2134 = vmatprep.subr.mxu0 0.0
      %2135 = vmatpush1.msra.mxu0 %v1214
      %2136 = vmatprep.subr.mxu0 0.0
      %2137 = vmatpush1.msra.mxu0 %v1213
      %2138 = vmatprep.subr.mxu0 0.0
      %2139 = vmatpush1.msra.mxu0 %v1212
      %2140 = vmatprep.subr.mxu0 0.0
      %2141 = vmatpush1.msra.mxu0 %v1211
      %2142 = vmatprep.subr.mxu0 0.0
      %2143 = vmatpush1.msra.mxu0 %v1210
      %2144 = vmatprep.subr.mxu0 0.0
      %2145 = vmatpush1.msra.mxu0 %v1209
      %2146 = vmatprep.subr.mxu0 0.0
      %2147 = vmatpush1.msra.mxu0 %v1208
      %2148 = vmatprep.subr.mxu0 0.0
      %2149 = vmatpush1.msra.mxu0 %v1207
      %2150 = vmatprep.subr.mxu0 0.0
      %2151 = vmatpush1.msra.mxu0 %v1206
      %2152 = vmatprep.subr.mxu0 0.0
      %2153 = vmatpush1.msra.mxu0 %v1205
      %2154 = vmatprep.subr.mxu0 0.0
      %2155 = vmatpush1.msra.mxu0 %v1204
      %2156 = vmatprep.subr.mxu0 0.0
      %2157 = vmatpush1.msra.mxu0 %v1203
      %2158 = vmatprep.subr.mxu0 0.0
      %2159 = vmatpush2.msra.mxu0 0.0
      %2160 = vmatprep.subr.mxu0 0.0
      %2161 = vmatpush2.msra.mxu0 0.0
      %2162 = vmatprep.subr.mxu0 0.0
      %2163 = vmatpush2.msra.mxu0 0.0
      %2164 = vmatprep.subr.mxu0 0.0
      %2165 = vmatpush2.msra.mxu0 0.0
      %2166 = vmatprep.subr.mxu0 0.0
      %2167 = vmatpush2.msra.mxu0 0.0
      %2168 = vmatprep.subr.mxu0 0.0
      %2169 = vmatpush2.msra.mxu0 0.0
      %2170 = vmatprep.subr.mxu0 0.0
      %2171 = vmatpush2.msra.mxu0 0.0
      %2172 = vmatprep.subr.mxu0 0.0
      %2173 = vmatpush2.msra.mxu0 0.0
      %2174 = vmatprep.subr.mxu0 0.0
      %2175 = vmatpush2.msra.mxu0 0.0
      %2176 = vmatprep.subr.mxu0 0.0
      %2177 = vmatpush2.msra.mxu0 0.0
      %2178 = vmatprep.subr.mxu0 0.0
      %2179 = vmatpush2.msra.mxu0 0.0
      %2180 = vmatprep.subr.mxu0 0.0
      %2181 = vmatpush2.msra.mxu0 0.0
      %2182 = vmatprep.subr.mxu0 0.0
      %2183 = vmatpush2.msra.mxu0 0.0
      %2184 = vmatprep.subr.mxu0 0.0
      %2185 = vmatpush2.msra.mxu0 0.0
      %2186 = vmatprep.subr.mxu0 0.0
      %2187 = vmatpush2.msra.mxu0 0.0
      %2188 = vmatprep.subr.mxu0 0.0
      %2189 = vmatpush2.msra.mxu0 0.0
      %2190 = vmatprep.mubr.f32.mxu0 0.0
      %2191 = vmatmul.mubr.f32.gmra.mxu0 %v795
      %v2192 = vpop.f32.mrf.mxu0
      %v2193 = vadd.f32 %v1968, %v2192
      %v2194 = vpop.f32.mrf.mxu0
      %2195 = vmatprep.mubr.f32.mxu0 0.0
      %2196 = vmatmul.mubr.f32.gmra.mxu0 %v804
      %v2197 = vpop.f32.mrf.mxu0
      %v2198 = vadd.f32 %v1973, %v2197
      %v2199 = vpop.f32.mrf.mxu0
      %2200 = vmatprep.mubr.f32.mxu0 0.0
      %2201 = vmatmul.mubr.f32.gmra.mxu0 %v813
      %v2202 = vpop.f32.mrf.mxu0
      %v2203 = vadd.f32 %v1978, %v2202
      %v2204 = vpop.f32.mrf.mxu0
      %2205 = vmatprep.mubr.f32.mxu0 0.0
      %2206 = vmatmul.mubr.f32.gmra.mxu0 %v822
      %v2207 = vpop.f32.mrf.mxu0
      %v2208 = vadd.f32 %v1983, %v2207
      %v2209 = vpop.f32.mrf.mxu0
      %2210 = vmatprep.mubr.f32.mxu0 0.0
      %2211 = vmatmul.mubr.f32.gmra.mxu0 %v831
      %v2212 = vpop.f32.mrf.mxu0
      %v2213 = vadd.f32 %v1988, %v2212
      %v2214 = vpop.f32.mrf.mxu0
      %2215 = vmatprep.mubr.f32.mxu0 0.0
      %2216 = vmatmul.mubr.f32.gmra.mxu0 %v840
      %v2217 = vpop.f32.mrf.mxu0
      %v2218 = vadd.f32 %v1993, %v2217
      %v2219 = vpop.f32.mrf.mxu0
      %2220 = vmatprep.mubr.f32.mxu0 0.0
      %2221 = vmatmul.mubr.f32.gmra.mxu0 %v849
      %v2222 = vpop.f32.mrf.mxu0
      %v2223 = vadd.f32 %v1998, %v2222
      %v2224 = vpop.f32.mrf.mxu0
      %2225 = vmatprep.mubr.f32.mxu0 0.0
      %2226 = vmatmul.mubr.f32.gmra.mxu0 %v858
      %v2227 = vpop.f32.mrf.mxu0
      %v2228 = vadd.f32 %v2003, %v2227
      %v2229 = vpop.f32.mrf.mxu0
      %2230 = vmatprep.mubr.f32.mxu0 0.0
      %2231 = vmatmul.mubr.f32.gmra.mxu0 %v867
      %v2232 = vpop.f32.mrf.mxu0
      %v2233 = vadd.f32 %v2008, %v2232
      %v2234 = vpop.f32.mrf.mxu0
      %2235 = vmatprep.mubr.f32.mxu0 0.0
      %2236 = vmatmul.mubr.f32.gmra.mxu0 %v876
      %v2237 = vpop.f32.mrf.mxu0
      %v2238 = vadd.f32 %v2013, %v2237
      %v2239 = vpop.f32.mrf.mxu0
      %2240 = vmatprep.mubr.f32.mxu0 0.0
      %2241 = vmatmul.mubr.f32.gmra.mxu0 %v885
      %v2242 = vpop.f32.mrf.mxu0
      %v2243 = vadd.f32 %v2018, %v2242
      %v2244 = vpop.f32.mrf.mxu0
      %2245 = vmatprep.mubr.f32.mxu0 0.0
      %2246 = vmatmul.mubr.f32.gmra.mxu0 %v894
      %v2247 = vpop.f32.mrf.mxu0
      %v2248 = vadd.f32 %v2023, %v2247
      %v2249 = vpop.f32.mrf.mxu0
      %2250 = vmatprep.mubr.f32.mxu0 0.0
      %2251 = vmatmul.mubr.f32.gmra.mxu0 %v903
      %v2252 = vpop.f32.mrf.mxu0
      %v2253 = vadd.f32 %v2028, %v2252
      %v2254 = vpop.f32.mrf.mxu0
      %2255 = vmatprep.mubr.f32.mxu0 0.0
      %2256 = vmatmul.mubr.f32.gmra.mxu0 %v912
      %v2257 = vpop.f32.mrf.mxu0
      %v2258 = vadd.f32 %v2033, %v2257
      %v2259 = vpop.f32.mrf.mxu0
      %2260 = vmatprep.mubr.f32.mxu0 0.0
      %2261 = vmatmul.mubr.f32.gmra.mxu0 %v921
      %v2262 = vpop.f32.mrf.mxu0
      %v2263 = vadd.f32 %v2038, %v2262
      %v2264 = vpop.f32.mrf.mxu0
      %2265 = vmatprep.mubr.f32.mxu0 0.0
      %2266 = vmatmul.mubr.f32.gmra.mxu0 %v930
      %v2267 = vpop.f32.mrf.mxu0
      %v2268 = vadd.f32 %v2043, %v2267
      %v2269 = vpop.f32.mrf.mxu0
      %2270 = vmatprep.mubr.f32.mxu0 0.0
      %2271 = vmatmul.mubr.f32.gmra.mxu0 %v939
      %v2272 = vpop.f32.mrf.mxu0
      %v2273 = vadd.f32 %v2048, %v2272
      %v2274 = vpop.f32.mrf.mxu0
      %2275 = vmatprep.mubr.f32.mxu0 0.0
      %2276 = vmatmul.mubr.f32.gmra.mxu0 %v948
      %v2277 = vpop.f32.mrf.mxu0
      %v2278 = vadd.f32 %v2053, %v2277
      %v2279 = vpop.f32.mrf.mxu0
      %2280 = vmatprep.mubr.f32.mxu0 0.0
      %2281 = vmatmul.mubr.f32.gmra.mxu0 %v957
      %v2282 = vpop.f32.mrf.mxu0
      %v2283 = vadd.f32 %v2058, %v2282
      %v2284 = vpop.f32.mrf.mxu0
      %2285 = vmatprep.mubr.f32.mxu0 0.0
      %2286 = vmatmul.mubr.f32.gmra.mxu0 %v966
      %v2287 = vpop.f32.mrf.mxu0
      %v2288 = vadd.f32 %v2063, %v2287
      %v2289 = vpop.f32.mrf.mxu0
      %2290 = vmatprep.mubr.f32.mxu0 0.0
      %2291 = vmatmul.mubr.f32.gmra.mxu0 %v975
      %v2292 = vpop.f32.mrf.mxu0
      %v2293 = vadd.f32 %v2068, %v2292
      %v2294 = vpop.f32.mrf.mxu0
      %2295 = vmatprep.mubr.f32.mxu0 0.0
      %2296 = vmatmul.mubr.f32.gmra.mxu0 %v984
      %v2297 = vpop.f32.mrf.mxu0
      %v2298 = vadd.f32 %v2073, %v2297
      %v2299 = vpop.f32.mrf.mxu0
      %2300 = vmatprep.mubr.f32.mxu0 0.0
      %2301 = vmatmul.mubr.f32.gmra.mxu0 %v993
      %v2302 = vpop.f32.mrf.mxu0
      %v2303 = vadd.f32 %v2078, %v2302
      %v2304 = vpop.f32.mrf.mxu0
      %2305 = vmatprep.mubr.f32.mxu0 0.0
      %2306 = vmatmul.mubr.f32.gmra.mxu0 %v1002
      %v2307 = vpop.f32.mrf.mxu0
      %v2308 = vadd.f32 %v2083, %v2307
      %v2309 = vpop.f32.mrf.mxu0
      %2310 = vmatprep.mubr.f32.mxu0 0.0
      %2311 = vmatmul.mubr.f32.gmra.mxu0 %v1011
      %v2312 = vpop.f32.mrf.mxu0
      %v2313 = vadd.f32 %v2088, %v2312
      %v2314 = vpop.f32.mrf.mxu0
      %2315 = vmatprep.mubr.f32.mxu0 0.0
      %2316 = vmatmul.mubr.f32.gmra.mxu0 %v1020
      %v2317 = vpop.f32.mrf.mxu0
      %v2318 = vadd.f32 %v2093, %v2317
      %v2319 = vpop.f32.mrf.mxu0
      %2320 = vmatprep.mubr.f32.mxu0 0.0
      %2321 = vmatmul.mubr.f32.gmra.mxu0 %v1029
      %v2322 = vpop.f32.mrf.mxu0
      %v2323 = vadd.f32 %v2098, %v2322
      %v2324 = vpop.f32.mrf.mxu0
      %2325 = vmatprep.mubr.f32.mxu0 0.0
      %2326 = vmatmul.mubr.f32.gmra.mxu0 %v1038
      %v2327 = vpop.f32.mrf.mxu0
      %v2328 = vadd.f32 %v2103, %v2327
      %v2329 = vpop.f32.mrf.mxu0
      %2330 = vmatprep.mubr.f32.mxu0 0.0
      %2331 = vmatmul.mubr.f32.gmra.mxu0 %v1047
      %v2332 = vpop.f32.mrf.mxu0
      %v2333 = vadd.f32 %v2108, %v2332
      %v2334 = vpop.f32.mrf.mxu0
      %2335 = vmatprep.mubr.f32.mxu0 0.0
      %2336 = vmatmul.mubr.f32.gmra.mxu0 %v1056
      %v2337 = vpop.f32.mrf.mxu0
      %v2338 = vadd.f32 %v2113, %v2337
      %v2339 = vpop.f32.mrf.mxu0
      %2340 = vmatprep.mubr.f32.mxu0 0.0
      %2341 = vmatmul.mubr.f32.gmra.mxu0 %v1065
      %v2342 = vpop.f32.mrf.mxu0
      %v2343 = vadd.f32 %v2118, %v2342
      %v2344 = vpop.f32.mrf.mxu0
      %2345 = vmatprep.mubr.f32.mxu0 0.0
      %2346 = vmatmul.mubr.f32.gmra.mxu0 %v1074
      %v2347 = vpop.f32.mrf.mxu0
      %v2348 = vadd.f32 %v2123, %v2347
      %v2349 = vpop.f32.mrf.mxu0
      %2350 = vdwg.mxu0
      %v2351 = vmax.f32 %v2193, 0.0
      %v2352 = vmax.f32 %v2198, 0.0
      %v2353 = vmax.f32 %v2203, 0.0
      %v2354 = vmax.f32 %v2208, 0.0
      %v2355 = vmax.f32 %v2213, 0.0
      %v2356 = vmax.f32 %v2218, 0.0
      %v2357 = vmax.f32 %v2223, 0.0
      %v2358 = vmax.f32 %v2228, 0.0
      %v2359 = vmax.f32 %v2233, 0.0
      %v2360 = vmax.f32 %v2238, 0.0
      %v2361 = vmax.f32 %v2243, 0.0
      %v2362 = vmax.f32 %v2248, 0.0
      %v2363 = vmax.f32 %v2253, 0.0
      %v2364 = vmax.f32 %v2258, 0.0
      %v2365 = vmax.f32 %v2263, 0.0
      %v2366 = vmax.f32 %v2268, 0.0
      %v2367 = vmax.f32 %v2273, 0.0
      %v2368 = vmax.f32 %v2278, 0.0
      %v2369 = vmax.f32 %v2283, 0.0
      %v2370 = vmax.f32 %v2288, 0.0
      %v2371 = vmax.f32 %v2293, 0.0
      %v2372 = vmax.f32 %v2298, 0.0
      %v2373 = vmax.f32 %v2303, 0.0
      %v2374 = vmax.f32 %v2308, 0.0
      %v2375 = vmax.f32 %v2313, 0.0
      %v2376 = vmax.f32 %v2318, 0.0
      %v2377 = vmax.f32 %v2323, 0.0
      %v2378 = vmax.f32 %v2328, 0.0
      %v2379 = vmax.f32 %v2333, 0.0
      %v2380 = vmax.f32 %v2338, 0.0
      %v2381 = vmax.f32 %v2343, 0.0
      %v2382 = vmax.f32 %v2348, 0.0
      %2383 = vst [vmem:[%s204] sm:$0xff] %v2351
      %2384 = vst [vmem:[%s204 + $0x8] sm:$0xff] %v2352
      %2385 = vst [vmem:[%s204 + $0x10] sm:$0xff] %v2353
      %2386 = vst [vmem:[%s204 + $0x18] sm:$0xff] %v2354
      %2387 = vst [vmem:[%s204 + $0x20] sm:$0xff] %v2355
      %2388 = vst [vmem:[%s204 + $0x28] sm:$0xff] %v2356
      %2389 = vst [vmem:[%s204 + $0x30] sm:$0xff] %v2357
      %2390 = vst [vmem:[%s204 + $0x38] sm:$0xff] %v2358
      %2391 = vst [vmem:[%s204 + $0x40] sm:$0xff] %v2359
      %2392 = vst [vmem:[%s204 + $0x48] sm:$0xff] %v2360
      %2393 = vst [vmem:[%s204 + $0x50] sm:$0xff] %v2361
      %2394 = vst [vmem:[%s204 + $0x58] sm:$0xff] %v2362
      %2395 = vst [vmem:[%s204 + $0x60] sm:$0xff] %v2363
      %2396 = vst [vmem:[%s204 + $0x68] sm:$0xff] %v2364
      %2397 = vst [vmem:[%s204 + $0x70] sm:$0xff] %v2365
      %2398 = vst [vmem:[%s204 + $0x78] sm:$0xff] %v2366
      %2399 = vst [vmem:[%s204 + $0x80] sm:$0xff] %v2367
      %2400 = vst [vmem:[%s204 + $0x88] sm:$0xff] %v2368
      %2401 = vst [vmem:[%s204 + $0x90] sm:$0xff] %v2369
      %2402 = vst [vmem:[%s204 + $0x98] sm:$0xff] %v2370
      %2403 = vst [vmem:[%s204 + $0xa0] sm:$0xff] %v2371
      %2404 = vst [vmem:[%s204 + $0xa8] sm:$0xff] %v2372
      %2405 = vst [vmem:[%s204 + $0xb0] sm:$0xff] %v2373
      %2406 = vst [vmem:[%s204 + $0xb8] sm:$0xff] %v2374
      %2407 = vst [vmem:[%s204 + $0xc0] sm:$0xff] %v2375
      %2408 = vst [vmem:[%s204 + $0xc8] sm:$0xff] %v2376
      %2409 = vst [vmem:[%s204 + $0xd0] sm:$0xff] %v2377
      %2410 = vst [vmem:[%s204 + $0xd8] sm:$0xff] %v2378
      %2411 = vst [vmem:[%s204 + $0xe0] sm:$0xff] %v2379
      %2412 = vst [vmem:[%s204 + $0xe8] sm:$0xff] %v2380
      %2413 = vst [vmem:[%s204 + $0xf0] sm:$0xff] %v2381
      %2414 = vst [vmem:[%s204 + $0xf8] sm:$0xff] %v2382
      %v2415 = vadd.f32 %v2351, %v2352
      %v2416 = vadd.f32 %v2415, %v2353
      %v2417 = vadd.f32 %v2416, %v2354
      %v2418 = vadd.f32 %v2417, %v2355
      %v2419 = vadd.f32 %v2418, %v2356
      %v2420 = vadd.f32 %v2419, %v2357
      %v2421 = vadd.f32 %v2420, %v2358
      %v2422 = vadd.f32 %v2421, %v2359
      %v2423 = vadd.f32 %v2422, %v2360
      %v2424 = vadd.f32 %v2423, %v2361
      %v2425 = vadd.f32 %v2424, %v2362
      %v2426 = vadd.f32 %v2425, %v2363
      %v2427 = vadd.f32 %v2426, %v2364
      %v2428 = vadd.f32 %v2427, %v2365
      %v2429 = vadd.f32 %v2428, %v2366
      %v2430 = vadd.f32 %v2429, %v2367
      %v2431 = vadd.f32 %v2430, %v2368
      %v2432 = vadd.f32 %v2431, %v2369
      %v2433 = vadd.f32 %v2432, %v2370
      %v2434 = vadd.f32 %v2433, %v2371
      %v2435 = vadd.f32 %v2434, %v2372
      %v2436 = vadd.f32 %v2435, %v2373
      %v2437 = vadd.f32 %v2436, %v2374
      %v2438 = vadd.f32 %v2437, %v2375
      %v2439 = vadd.f32 %v2438, %v2376
      %v2440 = vadd.f32 %v2439, %v2377
      %v2441 = vadd.f32 %v2440, %v2378
      %v2442 = vadd.f32 %v2441, %v2379
      %v2443 = vadd.f32 %v2442, %v2380
      %v2444 = vadd.f32 %v2443, %v2381
      %v2445 = vadd.f32 %v2444, %v2382
      %v2446 = vrot.slane %v2445, 4
      %v2447 = vadd.f32 %v2445, %v2446
      %v2448 = vrot.slane %v2447, 2
      %v2449 = vadd.f32 %v2447, %v2448
      %v2450 = vrot.slane %v2449, 1
      %v2451 = vadd.f32 %v2449, %v2450
      %2452 = vst [vmem:[%s208] sm:$0x1] %v2451
      %v2453 = vmul.f32 %v2351, %v2351
      %v2454 = vmul.f32 %v2352, %v2352
      %v2455 = vmul.f32 %v2353, %v2353
      %v2456 = vmul.f32 %v2354, %v2354
      %v2457 = vmul.f32 %v2355, %v2355
      %v2458 = vmul.f32 %v2356, %v2356
      %v2459 = vmul.f32 %v2357, %v2357
      %v2460 = vmul.f32 %v2358, %v2358
      %v2461 = vmul.f32 %v2359, %v2359
      %v2462 = vmul.f32 %v2360, %v2360
      %v2463 = vmul.f32 %v2361, %v2361
      %v2464 = vmul.f32 %v2362, %v2362
      %v2465 = vmul.f32 %v2363, %v2363
      %v2466 = vmul.f32 %v2364, %v2364
      %v2467 = vmul.f32 %v2365, %v2365
      %v2468 = vmul.f32 %v2366, %v2366
      %v2469 = vmul.f32 %v2367, %v2367
      %v2470 = vmul.f32 %v2368, %v2368
      %v2471 = vmul.f32 %v2369, %v2369
      %v2472 = vmul.f32 %v2370, %v2370
      %v2473 = vmul.f32 %v2371, %v2371
      %v2474 = vmul.f32 %v2372, %v2372
      %v2475 = vmul.f32 %v2373, %v2373
      %v2476 = vmul.f32 %v2374, %v2374
      %v2477 = vmul.f32 %v2375, %v2375
      %v2478 = vmul.f32 %v2376, %v2376
      %v2479 = vmul.f32 %v2377, %v2377
      %v2480 = vmul.f32 %v2378, %v2378
      %v2481 = vmul.f32 %v2379, %v2379
      %v2482 = vmul.f32 %v2380, %v2380
      %v2483 = vmul.f32 %v2381, %v2381
      %v2484 = vmul.f32 %v2382, %v2382
      %v2485 = vadd.f32 %v2453, %v2454
      %v2486 = vadd.f32 %v2485, %v2455
      %v2487 = vadd.f32 %v2486, %v2456
      %v2488 = vadd.f32 %v2487, %v2457
      %v2489 = vadd.f32 %v2488, %v2458
      %v2490 = vadd.f32 %v2489, %v2459
      %v2491 = vadd.f32 %v2490, %v2460
      %v2492 = vadd.f32 %v2491, %v2461
      %v2493 = vadd.f32 %v2492, %v2462
      %v2494 = vadd.f32 %v2493, %v2463
      %v2495 = vadd.f32 %v2494, %v2464
      %v2496 = vadd.f32 %v2495, %v2465
      %v2497 = vadd.f32 %v2496, %v2466
      %v2498 = vadd.f32 %v2497, %v2467
      %v2499 = vadd.f32 %v2498, %v2468
      %v2500 = vadd.f32 %v2499, %v2469
      %v2501 = vadd.f32 %v2500, %v2470
      %v2502 = vadd.f32 %v2501, %v2471
      %v2503 = vadd.f32 %v2502, %v2472
      %v2504 = vadd.f32 %v2503, %v2473
      %v2505 = vadd.f32 %v2504, %v2474
      %v2506 = vadd.f32 %v2505, %v2475
      %v2507 = vadd.f32 %v2506, %v2476
      %v2508 = vadd.f32 %v2507, %v2477
      %v2509 = vadd.f32 %v2508, %v2478
      %v2510 = vadd.f32 %v2509, %v2479
      %v2511 = vadd.f32 %v2510, %v2480
      %v2512 = vadd.f32 %v2511, %v2481
      %v2513 = vadd.f32 %v2512, %v2482
      %v2514 = vadd.f32 %v2513, %v2483
      %v2515 = vadd.f32 %v2514, %v2484
      %v2516 = vrot.slane %v2515, 4
      %v2517 = vadd.f32 %v2515, %v2516
      %v2518 = vrot.slane %v2517, 2
      %v2519 = vadd.f32 %v2517, %v2518
      %v2520 = vrot.slane %v2519, 1
      %v2521 = vadd.f32 %v2519, %v2520
      %2522 = vst [vmem:[%s208 + $0x1] sm:$0x1] %v2521
      %p2523 = scmp.lt.s32.totalorder %s16, 1
      %s2524 = scalar_select %p2523, %s16, 1
      %s2525 = smul.addr %s2524, 32
      %s2526 = smul.addr %s2525, 8
      %s2527 = scalar_lea.vmem %s3, %s2526
      %p2528 = scmp.lt.s32.totalorder %s16, 1
      %s2529 = scalar_select %p2528, %s16, 1
      %s2530 = smul.addr %s2529, 2
      %s2531 = scalar_lea.vmem %s4, %s2530
      // Predicated region
      $region33: #{block_forward.3} parent=31 // pred_check
        %p2532 = pneg %p102
      $region34: #{block_forward.3} parent=31 // pred_check_branch
        %2534 = sbr.rel (%p2532) target = $region36
      $region35: #{block_forward.3} parent=31 // pred_region
        _
      $region36: #{block_forward.3} parent=31 // pred_fallthru
        _
      // Predicated region
      $region37: #{block_forward.3} parent=31 // pred_check
        %p2535 = pneg %p128
      $region38: #{block_forward.3} parent=31 // pred_check_branch
        %2537 = sbr.rel (%p2535) target = $region40
      $region39: #{block_forward.3} parent=31 // pred_region
        _
      $region40: #{block_forward.3} parent=31 // pred_fallthru
        _
    $region32: #{block_forward.3} parent=5 // pred_fallthru
      _
    %p2538 = scmp.le.s32.totalorder 2, %s11
    // Predicated region
    $region41: #{block_forward.3} parent=5 // pred_check
      %p2539 = pneg %p2538
    $region42: #{block_forward.3} parent=5 // pred_check_branch
      %2541 = sbr.rel (%p2539) target = $region44
    $region43: #{block_forward.3} parent=5 // pred_region
      %s2542 = ssub.s32 %s11, 2
      // Predicated region
      $region45: #{block_forward.3} parent=43 // pred_check
        %p2543 = pneg %p108
      $region46: #{block_forward.3} parent=43 // pred_check_branch
        %2545 = sbr.rel (%p2543) target = $region48
      $region47: #{block_forward.3} parent=43 // pred_region
        %p2546 = scmp.lt.s32.totalorder %s17, 1
        %s2547 = scalar_select %p2546, %s17, 1
        %s2548 = smul.addr %s2547, 32
        %s2549 = smul.addr %s2548, 8
        %s2550 = scalar_lea.vmem %s3, %s2549
      $region48: #{block_forward.3} parent=43 // pred_fallthru
        _
      // Predicated region
      $region49: #{block_forward.3} parent=43 // pred_check
        %p2551 = pneg %p134
      $region50: #{block_forward.3} parent=43 // pred_check_branch
        %2553 = sbr.rel (%p2551) target = $region52
      $region51: #{block_forward.3} parent=43 // pred_region
        %p2554 = scmp.lt.s32.totalorder %s17, 1
        %s2555 = scalar_select %p2554, %s17, 1
        %s2556 = smul.addr %s2555, 2
        %s2557 = scalar_lea.vmem %s4, %s2556
      $region52: #{block_forward.3} parent=43 // pred_fallthru
        _
    $region44: #{block_forward.3} parent=5 // pred_fallthru
      _
  $region6: #{block_forward.3} parent=0 // loop_footer
    %s15 = sadd.s32 1, %s11
  $region7: #{block_forward.3} parent=0 // loop_footer_branch
    %10 = sbr.rel target = $region3
  $region8: #{block_forward.3} parent=0 // loop_exit
    _

// kernel: block_forward.4
$region0: #{block_forward.4}
  #allocation0 [shape = 'u32[]', space=smem, size = 0x4, offset = 0x4, fixed_abs, tag = 'smem constant byte address 0x4 - core index']
  #allocation1 [shape = 'u32[144,128]{1,0:T(1,128)}', space=vmem, size = 0x12000, scoped, tag = 'internal scratch']
  #allocation2 [shape = 'f32[18,18,128]{2,1,0:T(8,128)}', space=vmem, size = 0x36000, scoped, tag = 'scratch operand']
  #allocation3 [shape = 'f32[256,1152]{1,0:T(8,128)}', space=vmem, size = 0x120000, scoped, tag = 'scratch operand']
  %s0 = inlined_call_operand.vmem [shape: f32[2,16,16,128], index: 0, kind: input, shape index: {}]
  %s1 = inlined_call_operand.vmem [shape: f32[2,1,128], index: 1, kind: input, shape index: {}]
  %s2 = inlined_call_operand.vmem [shape: f32[128,128], index: 2, kind: input, shape index: {}]
  %s3 = inlined_call_operand.vmem [shape: f32[1,128], index: 3, kind: input, shape index: {}]
  %s4 = inlined_call_operand.vmem [shape: f32[1,128], index: 4, kind: input, shape index: {}]
  %s5 = inlined_call_operand.vmem [shape: f32[1,128], index: 5, kind: input, shape index: {}]
  %s6 = inlined_call_operand.vmem [shape: f32[1152,128], index: 6, kind: input, shape index: {}]
  %s7 = inlined_call_operand.vmem [shape: f32[1,128], index: 7, kind: input, shape index: {}]
  %s8 = inlined_call_operand.vmem [shape: f32[2,16,16,128], index: 8, kind: output, shape index: {0}]
  %s9 = inlined_call_operand.vmem [shape: f32[2,2,128], index: 9, kind: output, shape index: {1}]
  %10 = xla_tuple %s8, %s9
  %s11 = sld [smem:[#allocation0]]
  $region73: #{block_forward.4} parent=0
    _
  %s13 = ssub.s32 1, %s11
  %s14 = scalar_select 0, %s13, %s11
  loop: start=0, step=1, limit=4
  $region2: #{block_forward.4} parent=0 // loop_pre_header
    _
  $region3: #{block_forward.4} parent=0 // loop_header
    %s16 = sphi 0, %s20
    %p17 = scmp.ge.s32.totalorder %s16, 4
    %s26 = sphi 0, %s28
    %s29 = sphi 0, %s26
    %s30 = sphi 0, %s29
    %s46 = sphi 0, %s30
    %s52 = sphi 0, %s54
    %s55 = sphi 0, %s52
    %s56 = sphi 0, %s55
    %s72 = sphi 0, %s56
    %s76 = sphi 0, %s76
    %s78 = sphi 0, %s76
    %s79 = sphi 0, %s78
    %s93 = sphi 0, %s79
    %s97 = sphi 0, %s97
    %s99 = sphi 0, %s97
    %s100 = sphi 0, %s99
    %s114 = sphi 0, %s100
    %s118 = sphi 0, %s118
    %s120 = sphi 0, %s118
    %s121 = sphi 0, %s120
    %s135 = sphi 0, %s121
    %s139 = sphi 0, %s139
    %s141 = sphi 0, %s139
    %s142 = sphi 0, %s141
    %s156 = sphi 0, %s142
    %s160 = sphi 0, %s160
    %s162 = sphi 0, %s160
    %s163 = sphi 0, %s162
    %s177 = sphi 0, %s163
    %s181 = sphi 0, %s181
    %s183 = sphi 0, %s181
    %s184 = sphi 0, %s183
    %s198 = sphi 0, %s184
    %s204 = sphi 0, %s206
    %s207 = sphi 0, %s204
    %s208 = sphi 0, %s207
    %s224 = sphi 0, %s208
    %s230 = sphi 0, %s232
    %s233 = sphi 0, %s230
    %s234 = sphi 0, %s233
    %s250 = sphi 0, %s234
  $region4: #{block_forward.4} parent=0 // loop_header_branch
    %19 = sbr.rel (%p17) target = $region8
  $region5: #{block_forward.4} parent=0 // loop_body
    %s21 = ssub.s32 %s16, 1
    %s22 = ssub.s32 %s16, 2
    %s23 = sadd.s32 %s16, 1
    %s24 = ssub.s32 %s16, %s23
    %p25 = scmp.eq.s32.totalorder %s24, 0
    %s27 = sadd.s32 %s26, 1
    %s28 = scalar_select %p25, %s26, %s27
    %p31 = pneg %p25
    %p32 = scmp.eq.s32.totalorder %s16, 1
    %p33 = por %p31, %p32
    %p34 = scmp.ne.s32.totalorder %s26, %s29
    %p35 = scmp.eq.s32.totalorder %s16, 0
    %p36 = por %p34, %p35
    %p37 = scmp.ne.s32.totalorder %s26, %s29
    %p38 = scmp.eq.s32.totalorder %s21, 1
    %p39 = por %p37, %p38
    %p40 = scmp.ne.s32.totalorder %s29, %s30
    %p41 = scmp.eq.s32.totalorder %s21, 0
    %p42 = por %p40, %p41
    %p43 = scmp.ne.s32.totalorder %s29, %s30
    %p44 = scmp.eq.s32.totalorder %s22, 1
    %p45 = por %p43, %p44
    %p47 = scmp.ne.s32.totalorder %s30, %s46
    %p48 = scmp.eq.s32.totalorder %s22, 0
    %p49 = por %p47, %p48
    %s50 = ssub.s32 %s16, %s23
    %p51 = scmp.eq.s32.totalorder %s50, 0
    %s53 = sadd.s32 %s52, 1
    %s54 = scalar_select %p51, %s52, %s53
    %p57 = pneg %p51
    %p58 = scmp.eq.s32.totalorder %s16, 1
    %p59 = por %p57, %p58
    %p60 = scmp.ne.s32.totalorder %s52, %s55
    %p61 = scmp.eq.s32.totalorder %s16, 0
    %p62 = por %p60, %p61
    %p63 = scmp.ne.s32.totalorder %s52, %s55
    %p64 = scmp.eq.s32.totalorder %s21, 1
    %p65 = por %p63, %p64
    %p66 = scmp.ne.s32.totalorder %s55, %s56
    %p67 = scmp.eq.s32.totalorder %s21, 0
    %p68 = por %p66, %p67
    %p69 = scmp.ne.s32.totalorder %s55, %s56
    %p70 = scmp.eq.s32.totalorder %s22, 1
    %p71 = por %p69, %p70
    %p73 = scmp.ne.s32.totalorder %s56, %s72
    %p74 = scmp.eq.s32.totalorder %s22, 0
    %p75 = por %p73, %p74
    %s77 = sadd.s32 %s76, 1
    %p80 = scmp.eq.s32.totalorder %s16, 1
    %p81 = scmp.ne.s32.totalorder %s76, %s78
    %p82 = scmp.eq.s32.totalorder %s16, 0
    %p83 = por %p81, %p82
    %p84 = scmp.ne.s32.totalorder %s76, %s78
    %p85 = scmp.eq.s32.totalorder %s21, 1
    %p86 = por %p84, %p85
    %p87 = scmp.ne.s32.totalorder %s78, %s79
    %p88 = scmp.eq.s32.totalorder %s21, 0
    %p89 = por %p87, %p88
    %p90 = scmp.ne.s32.totalorder %s78, %s79
    %p91 = scmp.eq.s32.totalorder %s22, 1
    %p92 = por %p90, %p91
    %p94 = scmp.ne.s32.totalorder %s79, %s93
    %p95 = scmp.eq.s32.totalorder %s22, 0
    %p96 = por %p94, %p95
    %s98 = sadd.s32 %s97, 1
    %p101 = scmp.eq.s32.totalorder %s16, 1
    %p102 = scmp.ne.s32.totalorder %s97, %s99
    %p103 = scmp.eq.s32.totalorder %s16, 0
    %p104 = por %p102, %p103
    %p105 = scmp.ne.s32.totalorder %s97, %s99
    %p106 = scmp.eq.s32.totalorder %s21, 1
    %p107 = por %p105, %p106
    %p108 = scmp.ne.s32.totalorder %s99, %s100
    %p109 = scmp.eq.s32.totalorder %s21, 0
    %p110 = por %p108, %p109
    %p111 = scmp.ne.s32.totalorder %s99, %s100
    %p112 = scmp.eq.s32.totalorder %s22, 1
    %p113 = por %p111, %p112
    %p115 = scmp.ne.s32.totalorder %s100, %s114
    %p116 = scmp.eq.s32.totalorder %s22, 0
    %p117 = por %p115, %p116
    %s119 = sadd.s32 %s118, 1
    %p122 = scmp.eq.s32.totalorder %s16, 1
    %p123 = scmp.ne.s32.totalorder %s118, %s120
    %p124 = scmp.eq.s32.totalorder %s16, 0
    %p125 = por %p123, %p124
    %p126 = scmp.ne.s32.totalorder %s118, %s120
    %p127 = scmp.eq.s32.totalorder %s21, 1
    %p128 = por %p126, %p127
    %p129 = scmp.ne.s32.totalorder %s120, %s121
    %p130 = scmp.eq.s32.totalorder %s21, 0
    %p131 = por %p129, %p130
    %p132 = scmp.ne.s32.totalorder %s120, %s121
    %p133 = scmp.eq.s32.totalorder %s22, 1
    %p134 = por %p132, %p133
    %p136 = scmp.ne.s32.totalorder %s121, %s135
    %p137 = scmp.eq.s32.totalorder %s22, 0
    %p138 = por %p136, %p137
    %s140 = sadd.s32 %s139, 1
    %p143 = scmp.eq.s32.totalorder %s16, 1
    %p144 = scmp.ne.s32.totalorder %s139, %s141
    %p145 = scmp.eq.s32.totalorder %s16, 0
    %p146 = por %p144, %p145
    %p147 = scmp.ne.s32.totalorder %s139, %s141
    %p148 = scmp.eq.s32.totalorder %s21, 1
    %p149 = por %p147, %p148
    %p150 = scmp.ne.s32.totalorder %s141, %s142
    %p151 = scmp.eq.s32.totalorder %s21, 0
    %p152 = por %p150, %p151
    %p153 = scmp.ne.s32.totalorder %s141, %s142
    %p154 = scmp.eq.s32.totalorder %s22, 1
    %p155 = por %p153, %p154
    %p157 = scmp.ne.s32.totalorder %s142, %s156
    %p158 = scmp.eq.s32.totalorder %s22, 0
    %p159 = por %p157, %p158
    %s161 = sadd.s32 %s160, 1
    %p164 = scmp.eq.s32.totalorder %s16, 1
    %p165 = scmp.ne.s32.totalorder %s160, %s162
    %p166 = scmp.eq.s32.totalorder %s16, 0
    %p167 = por %p165, %p166
    %p168 = scmp.ne.s32.totalorder %s160, %s162
    %p169 = scmp.eq.s32.totalorder %s21, 1
    %p170 = por %p168, %p169
    %p171 = scmp.ne.s32.totalorder %s162, %s163
    %p172 = scmp.eq.s32.totalorder %s21, 0
    %p173 = por %p171, %p172
    %p174 = scmp.ne.s32.totalorder %s162, %s163
    %p175 = scmp.eq.s32.totalorder %s22, 1
    %p176 = por %p174, %p175
    %p178 = scmp.ne.s32.totalorder %s163, %s177
    %p179 = scmp.eq.s32.totalorder %s22, 0
    %p180 = por %p178, %p179
    %s182 = sadd.s32 %s181, 1
    %p185 = scmp.eq.s32.totalorder %s16, 1
    %p186 = scmp.ne.s32.totalorder %s181, %s183
    %p187 = scmp.eq.s32.totalorder %s16, 0
    %p188 = por %p186, %p187
    %p189 = scmp.ne.s32.totalorder %s181, %s183
    %p190 = scmp.eq.s32.totalorder %s21, 1
    %p191 = por %p189, %p190
    %p192 = scmp.ne.s32.totalorder %s183, %s184
    %p193 = scmp.eq.s32.totalorder %s21, 0
    %p194 = por %p192, %p193
    %p195 = scmp.ne.s32.totalorder %s183, %s184
    %p196 = scmp.eq.s32.totalorder %s22, 1
    %p197 = por %p195, %p196
    %p199 = scmp.ne.s32.totalorder %s184, %s198
    %p200 = scmp.eq.s32.totalorder %s22, 0
    %p201 = por %p199, %p200
    %s202 = ssub.s32 %s16, %s23
    %p203 = scmp.eq.s32.totalorder %s202, 0
    %s205 = sadd.s32 %s204, 1
    %s206 = scalar_select %p203, %s204, %s205
    %p209 = pneg %p203
    %p210 = scmp.eq.s32.totalorder %s16, 1
    %p211 = por %p209, %p210
    %p212 = scmp.ne.s32.totalorder %s204, %s207
    %p213 = scmp.eq.s32.totalorder %s16, 0
    %p214 = por %p212, %p213
    %p215 = scmp.ne.s32.totalorder %s204, %s207
    %p216 = scmp.eq.s32.totalorder %s21, 1
    %p217 = por %p215, %p216
    %p218 = scmp.ne.s32.totalorder %s207, %s208
    %p219 = scmp.eq.s32.totalorder %s21, 0
    %p220 = por %p218, %p219
    %p221 = scmp.ne.s32.totalorder %s207, %s208
    %p222 = scmp.eq.s32.totalorder %s22, 1
    %p223 = por %p221, %p222
    %p225 = scmp.ne.s32.totalorder %s208, %s224
    %p226 = scmp.eq.s32.totalorder %s22, 0
    %p227 = por %p225, %p226
    %s228 = ssub.s32 %s16, %s23
    %p229 = scmp.eq.s32.totalorder %s228, 0
    %s231 = sadd.s32 %s230, 1
    %s232 = scalar_select %p229, %s230, %s231
    %p235 = pneg %p229
    %p236 = scmp.eq.s32.totalorder %s16, 1
    %p237 = por %p235, %p236
    %p238 = scmp.ne.s32.totalorder %s230, %s233
    %p239 = scmp.eq.s32.totalorder %s16, 0
    %p240 = por %p238, %p239
    %p241 = scmp.ne.s32.totalorder %s230, %s233
    %p242 = scmp.eq.s32.totalorder %s21, 1
    %p243 = por %p241, %p242
    %p244 = scmp.ne.s32.totalorder %s233, %s234
    %p245 = scmp.eq.s32.totalorder %s21, 0
    %p246 = por %p244, %p245
    %p247 = scmp.ne.s32.totalorder %s233, %s234
    %p248 = scmp.eq.s32.totalorder %s22, 1
    %p249 = por %p247, %p248
    %p251 = scmp.ne.s32.totalorder %s234, %s250
    %p252 = scmp.eq.s32.totalorder %s22, 0
    %p253 = por %p251, %p252
    %p254 = scmp.le.s32.totalorder 1, %s16
    %p255 = scmp.lt.s32.totalorder %s16, 3
    %p256 = pnand %p254, %p255
    %p257 = pneg %p256
    // Predicated region
    $region9: #{block_forward.4} parent=5 // pred_check
      _
    $region10: #{block_forward.4} parent=5 // pred_check_branch
      %259 = sbr.rel (%p256) target = $region12
    $region11: #{block_forward.4} parent=5 // pred_region
      %s260 = ssub.s32 %s16, 1
      // Predicated region
      $region13: #{block_forward.4} parent=11 // pred_check
        %p261 = pneg %p89
      $region14: #{block_forward.4} parent=11 // pred_check_branch
        %263 = sbr.rel (%p261) target = $region16
      $region15: #{block_forward.4} parent=11 // pred_region
        _
      $region16: #{block_forward.4} parent=11 // pred_fallthru
        _
      // Predicated region
      $region17: #{block_forward.4} parent=11 // pred_check
        %p264 = pneg %p110
      $region18: #{block_forward.4} parent=11 // pred_check_branch
        %266 = sbr.rel (%p264) target = $region20
      $region19: #{block_forward.4} parent=11 // pred_region
        _
      $region20: #{block_forward.4} parent=11 // pred_fallthru
        _
      // Predicated region
      $region21: #{block_forward.4} parent=11 // pred_check
        %p267 = pneg %p131
      $region22: #{block_forward.4} parent=11 // pred_check_branch
        %269 = sbr.rel (%p267) target = $region24
      $region23: #{block_forward.4} parent=11 // pred_region
        _
      $region24: #{block_forward.4} parent=11 // pred_fallthru
        _
      // Predicated region
      $region25: #{block_forward.4} parent=11 // pred_check
        %p270 = pneg %p152
      $region26: #{block_forward.4} parent=11 // pred_check_branch
        %272 = sbr.rel (%p270) target = $region28
      $region27: #{block_forward.4} parent=11 // pred_region
        _
      $region28: #{block_forward.4} parent=11 // pred_fallthru
        _
      // Predicated region
      $region29: #{block_forward.4} parent=11 // pred_check
        %p273 = pneg %p173
      $region30: #{block_forward.4} parent=11 // pred_check_branch
        %275 = sbr.rel (%p273) target = $region32
      $region31: #{block_forward.4} parent=11 // pred_region
        _
      $region32: #{block_forward.4} parent=11 // pred_fallthru
        _
      // Predicated region
      $region33: #{block_forward.4} parent=11 // pred_check
        %p276 = pneg %p194
      $region34: #{block_forward.4} parent=11 // pred_check_branch
        %278 = sbr.rel (%p276) target = $region36
      $region35: #{block_forward.4} parent=11 // pred_region
        _
      $region36: #{block_forward.4} parent=11 // pred_fallthru
        _
    $region12: #{block_forward.4} parent=5 // pred_fallthru
      _
    %p279 = scmp.lt.s32.totalorder %s16, 2
    // Predicated region
    $region37: #{block_forward.4} parent=5 // pred_check
      %p280 = pneg %p279
    $region38: #{block_forward.4} parent=5 // pred_check_branch
      %282 = sbr.rel (%p280) target = $region40
    $region39: #{block_forward.4} parent=5 // pred_region
      // Predicated region
      $region41: #{block_forward.4} parent=39 // pred_check
        %p283 = pneg %p36
      $region42: #{block_forward.4} parent=39 // pred_check_branch
        %285 = sbr.rel (%p283) target = $region44
      $region43: #{block_forward.4} parent=39 // pred_region
        %p286 = scmp.lt.s32.totalorder %s16, 1
        %s287 = scalar_select %p286, %s16, 1
        %s288 = smul.addr %s287, 32
        %s289 = smul.addr %s288, 8
        %s290 = scalar_lea.vmem %s0, %s289
      $region44: #{block_forward.4} parent=39 // pred_fallthru
        _
      // Predicated region
      $region45: #{block_forward.4} parent=39 // pred_check
        %p291 = pneg %p62
      $region46: #{block_forward.4} parent=39 // pred_check_branch
        %293 = sbr.rel (%p291) target = $region48
      $region47: #{block_forward.4} parent=39 // pred_region
        %p294 = scmp.lt.s32.totalorder %s16, 1
        %s295 = scalar_select %p294, %s16, 1
        %s296 = scalar_lea.vmem %s1, %s295
      $region48: #{block_forward.4} parent=39 // pred_fallthru
        _
    $region40: #{block_forward.4} parent=5 // pred_fallthru
      _
    %p297 = scmp.le.s32.totalorder 1, %s16
    %p298 = scmp.lt.s32.totalorder %s16, 3
    %p299 = pnand %p297, %p298
    %p300 = pneg %p299
    // Predicated region
    $region49: #{block_forward.4} parent=5 // pred_check
      _
    $region50: #{block_forward.4} parent=5 // pred_check_branch
      %302 = sbr.rel (%p299) target = $region52
    $region51: #{block_forward.4} parent=5 // pred_region
      %s303 = ssub.s32 %s16, 1
      %p304 = scmp.lt.s32.totalorder %s21, 1
      %s305 = scalar_select %p304, %s21, 1
      %s306 = smul.addr %s305, 32
      %s307 = smul.addr %s306, 8
      %s308 = scalar_lea.vmem %s0, %s307
      %p309 = pneg %p42
      %p310 = pneg %p39
      %p311 = scmp.lt.s32.totalorder %s21, 1
      %s312 = scalar_select %p311, %s21, 1
      %s313 = scalar_lea.vmem %s1, %s312
      %p314 = pneg %p68
      %p315 = pneg %p65
      %p316 = pneg %p89
      %p317 = pneg %p86
      %p318 = pneg %p110
      %p319 = pneg %p107
      %p320 = pneg %p131
      %p321 = pneg %p128
      %p322 = pneg %p152
      %p323 = pneg %p149
      %p324 = pneg %p173
      %p325 = pneg %p170
      %p326 = pneg %p194
      %p327 = pneg %p191
      %p328 = pneg %p220
      %p329 = pneg %p217
      %p330 = scmp.lt.s32.totalorder %s21, 1
      %s331 = scalar_select %p330, %s21, 1
      %s332 = smul.addr %s331, 32
      %s333 = smul.addr %s332, 8
      %s334 = scalar_lea.vmem %s8, %s333
      %p335 = pneg %p246
      %p336 = pneg %p243
      %p337 = scmp.lt.s32.totalorder %s21, 1
      %s338 = scalar_select %p337, %s21, 1
      %s339 = smul.addr %s338, 2
      %s340 = scalar_lea.vmem %s9, %s339
      %p341 = scmp.lt.s32.totalorder %s21, 1
      %s342 = scalar_select %p341, %s21, 1
      %s343 = smul.addr %s342, 32
      %s344 = smul.addr %s343, 8
      %s345 = scalar_lea.vmem %s0, %s344
      %p346 = scmp.lt.s32.totalorder %s21, 1
      %s347 = scalar_select %p346, %s21, 1
      %s348 = scalar_lea.vmem %s1, %s347
      %p349 = scmp.lt.s32.totalorder %s21, 1
      %s350 = scalar_select %p349, %s21, 1
      %s351 = smul.addr %s350, 32
      %s352 = smul.addr %s351, 8
      %s353 = scalar_lea.vmem %s8, %s352
      %p354 = scmp.lt.s32.totalorder %s21, 1
      %s355 = scalar_select %p354, %s21, 1
      %s356 = smul.addr %s355, 2
      %s357 = scalar_lea.vmem %s9, %s356
      %v358 = vld [vmem:[%s348] sm:$0x1]
      %v359 = vld [vmem:[%s2] sm:$0xff]
      %v360 = vld [vmem:[%s2 + $0x8] sm:$0xff]
      %v361 = vld [vmem:[%s2 + $0x10] sm:$0xff]
      %v362 = vld [vmem:[%s2 + $0x18] sm:$0xff]
      %v363 = vld [vmem:[%s2 + $0x20] sm:$0xff]
      %v364 = vld [vmem:[%s2 + $0x28] sm:$0xff]
      %v365 = vld [vmem:[%s2 + $0x30] sm:$0xff]
      %v366 = vld [vmem:[%s2 + $0x38] sm:$0xff]
      %v367 = vld [vmem:[%s2 + $0x40] sm:$0xff]
      %v368 = vld [vmem:[%s2 + $0x48] sm:$0xff]
      %v369 = vld [vmem:[%s2 + $0x50] sm:$0xff]
      %v370 = vld [vmem:[%s2 + $0x58] sm:$0xff]
      %v371 = vld [vmem:[%s2 + $0x60] sm:$0xff]
      %v372 = vld [vmem:[%s2 + $0x68] sm:$0xff]
      %v373 = vld [vmem:[%s2 + $0x70] sm:$0xff]
      %v374 = vld [vmem:[%s2 + $0x78] sm:$0xff]
      %v375 = vld [vmem:[%s3] sm:$0x1]
      %376 = vmatprep.subr.mxu0 0.0
      %377 = vmatpush1.msra.mxu0 %v374
      %378 = vmatprep.subr.mxu0 0.0
      %379 = vmatpush1.msra.mxu0 %v373
      %380 = vmatprep.subr.mxu0 0.0
      %381 = vmatpush1.msra.mxu0 %v372
      %382 = vmatprep.subr.mxu0 0.0
      %383 = vmatpush1.msra.mxu0 %v371
      %384 = vmatprep.subr.mxu0 0.0
      %385 = vmatpush1.msra.mxu0 %v370
      %386 = vmatprep.subr.mxu0 0.0
      %387 = vmatpush1.msra.mxu0 %v369
      %388 = vmatprep.subr.mxu0 0.0
      %389 = vmatpush1.msra.mxu0 %v368
      %390 = vmatprep.subr.mxu0 0.0
      %391 = vmatpush1.msra.mxu0 %v367
      %392 = vmatprep.subr.mxu0 0.0
      %393 = vmatpush1.msra.mxu0 %v366
      %394 = vmatprep.subr.mxu0 0.0
      %395 = vmatpush1.msra.mxu0 %v365
      %396 = vmatprep.subr.mxu0 0.0
      %397 = vmatpush1.msra.mxu0 %v364
      %398 = vmatprep.subr.mxu0 0.0
      %399 = vmatpush1.msra.mxu0 %v363
      %400 = vmatprep.subr.mxu0 0.0
      %401 = vmatpush1.msra.mxu0 %v362
      %402 = vmatprep.subr.mxu0 0.0
      %403 = vmatpush1.msra.mxu0 %v361
      %404 = vmatprep.subr.mxu0 0.0
      %405 = vmatpush1.msra.mxu0 %v360
      %406 = vmatprep.subr.mxu0 0.0
      %407 = vmatpush1.msra.mxu0 %v359
      %408 = vmatprep.subr.mxu0 0.0
      %409 = vmatpush2.msra.mxu0 0.0
      %410 = vmatprep.subr.mxu0 0.0
      %411 = vmatpush2.msra.mxu0 0.0
      %412 = vmatprep.subr.mxu0 0.0
      %413 = vmatpush2.msra.mxu0 0.0
      %414 = vmatprep.subr.mxu0 0.0
      %415 = vmatpush2.msra.mxu0 0.0
      %416 = vmatprep.subr.mxu0 0.0
      %417 = vmatpush2.msra.mxu0 0.0
      %418 = vmatprep.subr.mxu0 0.0
      %419 = vmatpush2.msra.mxu0 0.0
      %420 = vmatprep.subr.mxu0 0.0
      %421 = vmatpush2.msra.mxu0 0.0
      %422 = vmatprep.subr.mxu0 0.0
      %423 = vmatpush2.msra.mxu0 0.0
      %424 = vmatprep.subr.mxu0 0.0
      %425 = vmatpush2.msra.mxu0 0.0
      %426 = vmatprep.subr.mxu0 0.0
      %427 = vmatpush2.msra.mxu0 0.0
      %428 = vmatprep.subr.mxu0 0.0
      %429 = vmatpush2.msra.mxu0 0.0
      %430 = vmatprep.subr.mxu0 0.0
      %431 = vmatpush2.msra.mxu0 0.0
      %432 = vmatprep.subr.mxu0 0.0
      %433 = vmatpush2.msra.mxu0 0.0
      %434 = vmatprep.subr.mxu0 0.0
      %435 = vmatpush2.msra.mxu0 0.0
      %436 = vmatprep.subr.mxu0 0.0
      %437 = vmatpush2.msra.mxu0 0.0
      %438 = vmatprep.subr.mxu0 0.0
      %439 = vmatpush2.msra.mxu0 0.0
      %440 = vmatprep.mubr.f32.mxu0 0.0
      %441 = vmatmul.mubr.f32.gmra.mxu0 %v358
      %v442 = vpop.f32.mrf.mxu0
      %v443 = vadd.f32 %v375, %v442
      %v444 = vpop.f32.mrf.mxu0
      %445 = vdwg.mxu0
      %v446 = vmax.f32 %v443, 0.0
      %v447 = vld [vmem:[%s345] sm:$0xff]
      %v448 = vld [vmem:[%s345 + $0x8] sm:$0xff]
      %v449 = vld [vmem:[%s345 + $0x10] sm:$0xff]
      %v450 = vld [vmem:[%s345 + $0x18] sm:$0xff]
      %v451 = vld [vmem:[%s345 + $0x20] sm:$0xff]
      %v452 = vld [vmem:[%s345 + $0x28] sm:$0xff]
      %v453 = vld [vmem:[%s345 + $0x30] sm:$0xff]
      %v454 = vld [vmem:[%s345 + $0x38] sm:$0xff]
      %v455 = vld [vmem:[%s345 + $0x40] sm:$0xff]
      %v456 = vld [vmem:[%s345 + $0x48] sm:$0xff]
      %v457 = vld [vmem:[%s345 + $0x50] sm:$0xff]
      %v458 = vld [vmem:[%s345 + $0x58] sm:$0xff]
      %v459 = vld [vmem:[%s345 + $0x60] sm:$0xff]
      %v460 = vld [vmem:[%s345 + $0x68] sm:$0xff]
      %v461 = vld [vmem:[%s345 + $0x70] sm:$0xff]
      %v462 = vld [vmem:[%s345 + $0x78] sm:$0xff]
      %v463 = vld [vmem:[%s345 + $0x80] sm:$0xff]
      %v464 = vld [vmem:[%s345 + $0x88] sm:$0xff]
      %v465 = vld [vmem:[%s345 + $0x90] sm:$0xff]
      %v466 = vld [vmem:[%s345 + $0x98] sm:$0xff]
      %v467 = vld [vmem:[%s345 + $0xa0] sm:$0xff]
      %v468 = vld [vmem:[%s345 + $0xa8] sm:$0xff]
      %v469 = vld [vmem:[%s345 + $0xb0] sm:$0xff]
      %v470 = vld [vmem:[%s345 + $0xb8] sm:$0xff]
      %v471 = vld [vmem:[%s345 + $0xc0] sm:$0xff]
      %v472 = vld [vmem:[%s345 + $0xc8] sm:$0xff]
      %v473 = vld [vmem:[%s345 + $0xd0] sm:$0xff]
      %v474 = vld [vmem:[%s345 + $0xd8] sm:$0xff]
      %v475 = vld [vmem:[%s345 + $0xe0] sm:$0xff]
      %v476 = vld [vmem:[%s345 + $0xe8] sm:$0xff]
      %v477 = vld [vmem:[%s345 + $0xf0] sm:$0xff]
      %v478 = vld [vmem:[%s345 + $0xf8] sm:$0xff]
      %v479 = vld [vmem:[%s4] sm:$0x1]
      %v481 = vlaneseq
      %v482 = vshrl.u32 %v481, 7
      %v483 = vsub.s32 0, %v482
      %v484 = vrot.slane %v479, %v483
      %v486 = vmul.f32 %v447, %v484
      %v487 = vmul.f32 %v448, %v484
      %v488 = vmul.f32 %v449, %v484
      %v489 = vmul.f32 %v450, %v484
      %v490 = vmul.f32 %v451, %v484
      %v491 = vmul.f32 %v452, %v484
      %v492 = vmul.f32 %v453, %v484
      %v493 = vmul.f32 %v454, %v484
      %v494 = vmul.f32 %v455, %v484
      %v495 = vmul.f32 %v456, %v484
      %v496 = vmul.f32 %v457, %v484
      %v497 = vmul.f32 %v458, %v484
      %v498 = vmul.f32 %v459, %v484
      %v499 = vmul.f32 %v460, %v484
      %v500 = vmul.f32 %v461, %v484
      %v501 = vmul.f32 %v462, %v484
      %v502 = vmul.f32 %v463, %v484
      %v503 = vmul.f32 %v464, %v484
      %v504 = vmul.f32 %v465, %v484
      %v505 = vmul.f32 %v466, %v484
      %v506 = vmul.f32 %v467, %v484
      %v507 = vmul.f32 %v468, %v484
      %v508 = vmul.f32 %v469, %v484
      %v509 = vmul.f32 %v470, %v484
      %v510 = vmul.f32 %v471, %v484
      %v511 = vmul.f32 %v472, %v484
      %v512 = vmul.f32 %v473, %v484
      %v513 = vmul.f32 %v474, %v484
      %v514 = vmul.f32 %v475, %v484
      %v515 = vmul.f32 %v476, %v484
      %v516 = vmul.f32 %v477, %v484
      %v517 = vmul.f32 %v478, %v484
      %v518 = vld [vmem:[%s5] sm:$0x1]
      %v520 = vlaneseq
      %v521 = vshrl.u32 %v520, 7
      %v522 = vsub.s32 0, %v521
      %v523 = vrot.slane %v518, %v522
      %v525 = vadd.f32 %v486, %v523
      %v526 = vadd.f32 %v487, %v523
      %v527 = vadd.f32 %v488, %v523
      %v528 = vadd.f32 %v489, %v523
      %v529 = vadd.f32 %v490, %v523
      %v530 = vadd.f32 %v491, %v523
      %v531 = vadd.f32 %v492, %v523
      %v532 = vadd.f32 %v493, %v523
      %v533 = vadd.f32 %v494, %v523
      %v534 = vadd.f32 %v495, %v523
      %v535 = vadd.f32 %v496, %v523
      %v536 = vadd.f32 %v497, %v523
      %v537 = vadd.f32 %v498, %v523
      %v538 = vadd.f32 %v499, %v523
      %v539 = vadd.f32 %v500, %v523
      %v540 = vadd.f32 %v501, %v523
      %v541 = vadd.f32 %v502, %v523
      %v542 = vadd.f32 %v503, %v523
      %v543 = vadd.f32 %v504, %v523
      %v544 = vadd.f32 %v505, %v523
      %v545 = vadd.f32 %v506, %v523
      %v546 = vadd.f32 %v507, %v523
      %v547 = vadd.f32 %v508, %v523
      %v548 = vadd.f32 %v509, %v523
      %v549 = vadd.f32 %v510, %v523
      %v550 = vadd.f32 %v511, %v523
      %v551 = vadd.f32 %v512, %v523
      %v552 = vadd.f32 %v513, %v523
      %v553 = vadd.f32 %v514, %v523
      %v554 = vadd.f32 %v515, %v523
      %v555 = vadd.f32 %v516, %v523
      %v556 = vadd.f32 %v517, %v523
      %v557 = vlaneseq
      %v558 = vshrl.u32 %v557, 7
      %v559 = vsub.s32 0, %v558
      %v560 = vrot.slane %v446, %v559
      %v561 = vadd.f32 %v525, %v560
      %v562 = vadd.f32 %v526, %v560
      %v563 = vadd.f32 %v527, %v560
      %v564 = vadd.f32 %v528, %v560
      %v565 = vadd.f32 %v529, %v560
      %v566 = vadd.f32 %v530, %v560
      %v567 = vadd.f32 %v531, %v560
      %v568 = vadd.f32 %v532, %v560
      %v569 = vadd.f32 %v533, %v560
      %v570 = vadd.f32 %v534, %v560
      %v571 = vadd.f32 %v535, %v560
      %v572 = vadd.f32 %v536, %v560
      %v573 = vadd.f32 %v537, %v560
      %v574 = vadd.f32 %v538, %v560
      %v575 = vadd.f32 %v539, %v560
      %v576 = vadd.f32 %v540, %v560
      %v577 = vadd.f32 %v541, %v560
      %v578 = vadd.f32 %v542, %v560
      %v579 = vadd.f32 %v543, %v560
      %v580 = vadd.f32 %v544, %v560
      %v581 = vadd.f32 %v545, %v560
      %v582 = vadd.f32 %v546, %v560
      %v583 = vadd.f32 %v547, %v560
      %v584 = vadd.f32 %v548, %v560
      %v585 = vadd.f32 %v549, %v560
      %v586 = vadd.f32 %v550, %v560
      %v587 = vadd.f32 %v551, %v560
      %v588 = vadd.f32 %v552, %v560
      %v589 = vadd.f32 %v553, %v560
      %v590 = vadd.f32 %v554, %v560
      %v591 = vadd.f32 %v555, %v560
      %v592 = vadd.f32 %v556, %v560
      %593 = vst [vmem:[#allocation2] sm:$0xff] 0.0
      %594 = vst [vmem:[#allocation2 + $0x8] sm:$0xff] 0.0
      %595 = vst [vmem:[#allocation2 + $0x10] sm:$0x3] 0.0
      %596 = vst [vmem:[#allocation2 + $0x18] sm:$0xff] 0.0
      %597 = vst [vmem:[#allocation2 + $0x20] sm:$0xff] 0.0
      %598 = vst [vmem:[#allocation2 + $0x28] sm:$0x3] 0.0
      %599 = vst [vmem:[#allocation2 + $0x30] sm:$0xff] 0.0
      %600 = vst [vmem:[#allocation2 + $0x38] sm:$0xff] 0.0
      %601 = vst [vmem:[#allocation2 + $0x40] sm:$0x3] 0.0
      %602 = vst [vmem:[#allocation2 + $0x48] sm:$0xff] 0.0
      %603 = vst [vmem:[#allocation2 + $0x50] sm:$0xff] 0.0
      %604 = vst [vmem:[#allocation2 + $0x58] sm:$0x3] 0.0
      %605 = vst [vmem:[#allocation2 + $0x60] sm:$0xff] 0.0
      %606 = vst [vmem:[#allocation2 + $0x68] sm:$0xff] 0.0
      %607 = vst [vmem:[#allocation2 + $0x70] sm:$0x3] 0.0
      %608 = vst [vmem:[#allocation2 + $0x78] sm:$0xff] 0.0
      %609 = vst [vmem:[#allocation2 + $0x80] sm:$0xff] 0.0
      %610 = vst [vmem:[#allocation2 + $0x88] sm:$0x3] 0.0
      %611 = vst [vmem:[#allocation2 + $0x90] sm:$0xff] 0.0
      %612 = vst [vmem:[#allocation2 + $0x98] sm:$0xff] 0.0
      %613 = vst [vmem:[#allocation2 + $0xa0] sm:$0x3] 0.0
      %614 = vst [vmem:[#allocation2 + $0xa8] sm:$0xff] 0.0
      %615 = vst [vmem:[#allocation2 + $0xb0] sm:$0xff] 0.0
      %616 = vst [vmem:[#allocation2 + $0xb8] sm:$0x3] 0.0
      %617 = vst [vmem:[#allocation2 + $0xc0] sm:$0xff] 0.0
      %618 = vst [vmem:[#allocation2 + $0xc8] sm:$0xff] 0.0
      %619 = vst [vmem:[#allocation2 + $0xd0] sm:$0x3] 0.0
      %620 = vst [vmem:[#allocation2 + $0xd8] sm:$0xff] 0.0
      %621 = vst [vmem:[#allocation2 + $0xe0] sm:$0xff] 0.0
      %622 = vst [vmem:[#allocation2 + $0xe8] sm:$0x3] 0.0
      %623 = vst [vmem:[#allocation2 + $0xf0] sm:$0xff] 0.0
      %624 = vst [vmem:[#allocation2 + $0xf8] sm:$0xff] 0.0
      %625 = vst [vmem:[#allocation2 + $0x100] sm:$0x3] 0.0
      %626 = vst [vmem:[#allocation2 + $0x108] sm:$0xff] 0.0
      %627 = vst [vmem:[#allocation2 + $0x110] sm:$0xff] 0.0
      %628 = vst [vmem:[#allocation2 + $0x118] sm:$0x3] 0.0
      %629 = vst [vmem:[#allocation2 + $0x120] sm:$0xff] 0.0
      %630 = vst [vmem:[#allocation2 + $0x128] sm:$0xff] 0.0
      %631 = vst [vmem:[#allocation2 + $0x130] sm:$0x3] 0.0
      %632 = vst [vmem:[#allocation2 + $0x138] sm:$0xff] 0.0
      %633 = vst [vmem:[#allocation2 + $0x140] sm:$0xff] 0.0
      %634 = vst [vmem:[#allocation2 + $0x148] sm:$0x3] 0.0
      %635 = vst [vmem:[#allocation2 + $0x150] sm:$0xff] 0.0
      %636 = vst [vmem:[#allocation2 + $0x158] sm:$0xff] 0.0
      %637 = vst [vmem:[#allocation2 + $0x160] sm:$0x3] 0.0
      %638 = vst [vmem:[#allocation2 + $0x168] sm:$0xff] 0.0
      %639 = vst [vmem:[#allocation2 + $0x170] sm:$0xff] 0.0
      %640 = vst [vmem:[#allocation2 + $0x178] sm:$0x3] 0.0
      %641 = vst [vmem:[#allocation2 + $0x180] sm:$0xff] 0.0
      %642 = vst [vmem:[#allocation2 + $0x188] sm:$0xff] 0.0
      %643 = vst [vmem:[#allocation2 + $0x190] sm:$0x3] 0.0
      %644 = vst [vmem:[#allocation2 + $0x198] sm:$0xff] 0.0
      %645 = vst [vmem:[#allocation2 + $0x1a0] sm:$0xff] 0.0
      %646 = vst [vmem:[#allocation2 + $0x1a8] sm:$0x3] 0.0
      %s647 = scalar_lea.vmem [#allocation2], 24
      %648 = vst [vmem:[%s647 + $0x1] sm:$0xff] %v561
      %649 = vst [vmem:[%s647 + $0x9] sm:$0xff] %v562
      %650 = vst [vmem:[%s647 + $0x19] sm:$0xff] %v563
      %651 = vst [vmem:[%s647 + $0x21] sm:$0xff] %v564
      %652 = vst [vmem:[%s647 + $0x31] sm:$0xff] %v565
      %653 = vst [vmem:[%s647 + $0x39] sm:$0xff] %v566
      %654 = vst [vmem:[%s647 + $0x49] sm:$0xff] %v567
      %655 = vst [vmem:[%s647 + $0x51] sm:$0xff] %v568
      %656 = vst [vmem:[%s647 + $0x61] sm:$0xff] %v569
      %657 = vst [vmem:[%s647 + $0x69] sm:$0xff] %v570
      %658 = vst [vmem:[%s647 + $0x79] sm:$0xff] %v571
      %659 = vst [vmem:[%s647 + $0x81] sm:$0xff] %v572
      %660 = vst [vmem:[%s647 + $0x91] sm:$0xff] %v573
      %661 = vst [vmem:[%s647 + $0x99] sm:$0xff] %v574
      %662 = vst [vmem:[%s647 + $0xa9] sm:$0xff] %v575
      %663 = vst [vmem:[%s647 + $0xb1] sm:$0xff] %v576
      %664 = vst [vmem:[%s647 + $0xc1] sm:$0xff] %v577
      %665 = vst [vmem:[%s647 + $0xc9] sm:$0xff] %v578
      %666 = vst [vmem:[%s647 + $0xd9] sm:$0xff] %v579
      %667 = vst [vmem:[%s647 + $0xe1] sm:$0xff] %v580
      %668 = vst [vmem:[%s647 + $0xf1] sm:$0xff] %v581
      %669 = vst [vmem:[%s647 + $0xf9] sm:$0xff] %v582
      %670 = vst [vmem:[%s647 + $0x109] sm:$0xff] %v583
      %671 = vst [vmem:[%s647 + $0x111] sm:$0xff] %v584
      %672 = vst [vmem:[%s647 + $0x121] sm:$0xff] %v585
      %673 = vst [vmem:[%s647 + $0x129] sm:$0xff] %v586
      %674 = vst [vmem:[%s647 + $0x139] sm:$0xff] %v587
      %675 = vst [vmem:[%s647 + $0x141] sm:$0xff] %v588
      %676 = vst [vmem:[%s647 + $0x151] sm:$0xff] %v589
      %677 = vst [vmem:[%s647 + $0x159] sm:$0xff] %v590
      %678 = vst [vmem:[%s647 + $0x169] sm:$0xff] %v591
      %679 = vst [vmem:[%s647 + $0x171] sm:$0xff] %v592
      %v680 = vld [vmem:[#allocation2] sm:$0xff]
      %v681 = vld [vmem:[#allocation2 + $0x8] sm:$0xff]
      %v682 = vld [vmem:[#allocation2 + $0x18] sm:$0xff]
      %v683 = vld [vmem:[#allocation2 + $0x20] sm:$0xff]
      %v684 = vld [vmem:[#allocation2 + $0x30] sm:$0xff]
      %v685 = vld [vmem:[#allocation2 + $0x38] sm:$0xff]
      %v686 = vld [vmem:[#allocation2 + $0x48] sm:$0xff]
      %v687 = vld [vmem:[#allocation2 + $0x50] sm:$0xff]
      %v688 = vld [vmem:[#allocation2 + $0x60] sm:$0xff]
      %v689 = vld [vmem:[#allocation2 + $0x68] sm:$0xff]
      %v690 = vld [vmem:[#allocation2 + $0x78] sm:$0xff]
      %v691 = vld [vmem:[#allocation2 + $0x80] sm:$0xff]
      %v692 = vld [vmem:[#allocation2 + $0x90] sm:$0xff]
      %v693 = vld [vmem:[#allocation2 + $0x98] sm:$0xff]
      %v694 = vld [vmem:[#allocation2 + $0xa8] sm:$0xff]
      %v695 = vld [vmem:[#allocation2 + $0xb0] sm:$0xff]
      %v696 = vld [vmem:[#allocation2 + $0xc0] sm:$0xff]
      %v697 = vld [vmem:[#allocation2 + $0xc8] sm:$0xff]
      %v698 = vld [vmem:[#allocation2 + $0xd8] sm:$0xff]
      %v699 = vld [vmem:[#allocation2 + $0xe0] sm:$0xff]
      %v700 = vld [vmem:[#allocation2 + $0xf0] sm:$0xff]
      %v701 = vld [vmem:[#allocation2 + $0xf8] sm:$0xff]
      %v702 = vld [vmem:[#allocation2 + $0x108] sm:$0xff]
      %v703 = vld [vmem:[#allocation2 + $0x110] sm:$0xff]
      %v704 = vld [vmem:[#allocation2 + $0x120] sm:$0xff]
      %v705 = vld [vmem:[#allocation2 + $0x128] sm:$0xff]
      %v706 = vld [vmem:[#allocation2 + $0x138] sm:$0xff]
      %v707 = vld [vmem:[#allocation2 + $0x140] sm:$0xff]
      %v708 = vld [vmem:[#allocation2 + $0x150] sm:$0xff]
      %v709 = vld [vmem:[#allocation2 + $0x158] sm:$0xff]
      %v710 = vld [vmem:[#allocation2 + $0x168] sm:$0xff]
      %v711 = vld [vmem:[#allocation2 + $0x170] sm:$0xff]
      %712 = vst [vmem:[#allocation3] sm:$0xff] %v680
      %713 = vst [vmem:[#allocation3 + $0x48] sm:$0xff] %v681
      %714 = vst [vmem:[#allocation3 + $0x90] sm:$0xff] %v682
      %715 = vst [vmem:[#allocation3 + $0xd8] sm:$0xff] %v683
      %716 = vst [vmem:[#allocation3 + $0x120] sm:$0xff] %v684
      %717 = vst [vmem:[#allocation3 + $0x168] sm:$0xff] %v685
      %718 = vst [vmem:[#allocation3 + $0x1b0] sm:$0xff] %v686
      %719 = vst [vmem:[#allocation3 + $0x1f8] sm:$0xff] %v687
      %720 = vst [vmem:[#allocation3 + $0x240] sm:$0xff] %v688
      %721 = vst [vmem:[#allocation3 + $0x288] sm:$0xff] %v689
      %722 = vst [vmem:[#allocation3 + $0x2d0] sm:$0xff] %v690
      %723 = vst [vmem:[#allocation3 + $0x318] sm:$0xff] %v691
      %724 = vst [vmem:[#allocation3 + $0x360] sm:$0xff] %v692
      %725 = vst [vmem:[#allocation3 + $0x3a8] sm:$0xff] %v693
      %726 = vst [vmem:[#allocation3 + $0x3f0] sm:$0xff] %v694
      %727 = vst [vmem:[#allocation3 + $0x438] sm:$0xff] %v695
      %728 = vst [vmem:[#allocation3 + $0x480] sm:$0xff] %v696
      %729 = vst [vmem:[#allocation3 + $0x4c8] sm:$0xff] %v697
      %730 = vst [vmem:[#allocation3 + $0x510] sm:$0xff] %v698
      %731 = vst [vmem:[#allocation3 + $0x558] sm:$0xff] %v699
      %732 = vst [vmem:[#allocation3 + $0x5a0] sm:$0xff] %v700
      %733 = vst [vmem:[#allocation3 + $0x5e8] sm:$0xff] %v701
      %734 = vst [vmem:[#allocation3 + $0x630] sm:$0xff] %v702
      %735 = vst [vmem:[#allocation3 + $0x678] sm:$0xff] %v703
      %736 = vst [vmem:[#allocation3 + $0x6c0] sm:$0xff] %v704
      %737 = vst [vmem:[#allocation3 + $0x708] sm:$0xff] %v705
      %738 = vst [vmem:[#allocation3 + $0x750] sm:$0xff] %v706
      %739 = vst [vmem:[#allocation3 + $0x798] sm:$0xff] %v707
      %740 = vst [vmem:[#allocation3 + $0x7e0] sm:$0xff] %v708
      %741 = vst [vmem:[#allocation3 + $0x828] sm:$0xff] %v709
      %742 = vst [vmem:[#allocation3 + $0x870] sm:$0xff] %v710
      %743 = vst [vmem:[#allocation3 + $0x8b8] sm:$0xff] %v711
      %v744 = vld [vmem:[#allocation2 + $0x1] sm:$0xff]
      %v745 = vld [vmem:[#allocation2 + $0x9] sm:$0xff]
      %v746 = vld [vmem:[#allocation2 + $0x19] sm:$0xff]
      %v747 = vld [vmem:[#allocation2 + $0x21] sm:$0xff]
      %v748 = vld [vmem:[#allocation2 + $0x31] sm:$0xff]
      %v749 = vld [vmem:[#allocation2 + $0x39] sm:$0xff]
      %v750 = vld [vmem:[#allocation2 + $0x49] sm:$0xff]
      %v751 = vld [vmem:[#allocation2 + $0x51] sm:$0xff]
      %v752 = vld [vmem:[#allocation2 + $0x61] sm:$0xff]
      %v753 = vld [vmem:[#allocation2 + $0x69] sm:$0xff]
      %v754 = vld [vmem:[#allocation2 + $0x79] sm:$0xff]
      %v755 = vld [vmem:[#allocation2 + $0x81] sm:$0xff]
      %v756 = vld [vmem:[#allocation2 + $0x91] sm:$0xff]
      %v757 = vld [vmem:[#allocation2 + $0x99] sm:$0xff]
      %v758 = vld [vmem:[#allocation2 + $0xa9] sm:$0xff]
      %v759 = vld [vmem:[#allocation2 + $0xb1] sm:$0xff]
      %v760 = vld [vmem:[#allocation2 + $0xc1] sm:$0xff]
      %v761 = vld [vmem:[#allocation2 + $0xc9] sm:$0xff]
      %v762 = vld [vmem:[#allocation2 + $0xd9] sm:$0xff]
      %v763 = vld [vmem:[#allocation2 + $0xe1] sm:$0xff]
      %v764 = vld [vmem:[#allocation2 + $0xf1] sm:$0xff]
      %v765 = vld [vmem:[#allocation2 + $0xf9] sm:$0xff]
      %v766 = vld [vmem:[#allocation2 + $0x109] sm:$0xff]
      %v767 = vld [vmem:[#allocation2 + $0x111] sm:$0xff]
      %v768 = vld [vmem:[#allocation2 + $0x121] sm:$0xff]
      %v769 = vld [vmem:[#allocation2 + $0x129] sm:$0xff]
      %v770 = vld [vmem:[#allocation2 + $0x139] sm:$0xff]
      %v771 = vld [vmem:[#allocation2 + $0x141] sm:$0xff]
      %v772 = vld [vmem:[#allocation2 + $0x151] sm:$0xff]
      %v773 = vld [vmem:[#allocation2 + $0x159] sm:$0xff]
      %v774 = vld [vmem:[#allocation2 + $0x169] sm:$0xff]
      %v775 = vld [vmem:[#allocation2 + $0x171] sm:$0xff]
      %776 = vst [vmem:[#allocation3 + $0x8] sm:$0xff] %v744
      %777 = vst [vmem:[#allocation3 + $0x50] sm:$0xff] %v745
      %778 = vst [vmem:[#allocation3 + $0x98] sm:$0xff] %v746
      %779 = vst [vmem:[#allocation3 + $0xe0] sm:$0xff] %v747
      %780 = vst [vmem:[#allocation3 + $0x128] sm:$0xff] %v748
      %781 = vst [vmem:[#allocation3 + $0x170] sm:$0xff] %v749
      %782 = vst [vmem:[#allocation3 + $0x1b8] sm:$0xff] %v750
      %783 = vst [vmem:[#allocation3 + $0x200] sm:$0xff] %v751
      %784 = vst [vmem:[#allocation3 + $0x248] sm:$0xff] %v752
      %785 = vst [vmem:[#allocation3 + $0x290] sm:$0xff] %v753
      %786 = vst [vmem:[#allocation3 + $0x2d8] sm:$0xff] %v754
      %787 = vst [vmem:[#allocation3 + $0x320] sm:$0xff] %v755
      %788 = vst [vmem:[#allocation3 + $0x368] sm:$0xff] %v756
      %789 = vst [vmem:[#allocation3 + $0x3b0] sm:$0xff] %v757
      %790 = vst [vmem:[#allocation3 + $0x3f8] sm:$0xff] %v758
      %791 = vst [vmem:[#allocation3 + $0x440] sm:$0xff] %v759
      %792 = vst [vmem:[#allocation3 + $0x488] sm:$0xff] %v760
      %793 = vst [vmem:[#allocation3 + $0x4d0] sm:$0xff] %v761
      %794 = vst [vmem:[#allocation3 + $0x518] sm:$0xff] %v762
      %795 = vst [vmem:[#allocation3 + $0x560] sm:$0xff] %v763
      %796 = vst [vmem:[#allocation3 + $0x5a8] sm:$0xff] %v764
      %797 = vst [vmem:[#allocation3 + $0x5f0] sm:$0xff] %v765
      %798 = vst [vmem:[#allocation3 + $0x638] sm:$0xff] %v766
      %799 = vst [vmem:[#allocation3 + $0x680] sm:$0xff] %v767
      %800 = vst [vmem:[#allocation3 + $0x6c8] sm:$0xff] %v768
      %801 = vst [vmem:[#allocation3 + $0x710] sm:$0xff] %v769
      %802 = vst [vmem:[#allocation3 + $0x758] sm:$0xff] %v770
      %803 = vst [vmem:[#allocation3 + $0x7a0] sm:$0xff] %v771
      %804 = vst [vmem:[#allocation3 + $0x7e8] sm:$0xff] %v772
      %805 = vst [vmem:[#allocation3 + $0x830] sm:$0xff] %v773
      %806 = vst [vmem:[#allocation3 + $0x878] sm:$0xff] %v774
      %807 = vst [vmem:[#allocation3 + $0x8c0] sm:$0xff] %v775
      %v808 = vld [vmem:[#allocation2 + $0x2] sm:$0xff]
      %v809 = vld [vmem:[#allocation2 + $0xa] sm:$0xff]
      %v810 = vld [vmem:[#allocation2 + $0x1a] sm:$0xff]
      %v811 = vld [vmem:[#allocation2 + $0x22] sm:$0xff]
      %v812 = vld [vmem:[#allocation2 + $0x32] sm:$0xff]
      %v813 = vld [vmem:[#allocation2 + $0x3a] sm:$0xff]
      %v814 = vld [vmem:[#allocation2 + $0x4a] sm:$0xff]
      %v815 = vld [vmem:[#allocation2 + $0x52] sm:$0xff]
      %v816 = vld [vmem:[#allocation2 + $0x62] sm:$0xff]
      %v817 = vld [vmem:[#allocation2 + $0x6a] sm:$0xff]
      %v818 = vld [vmem:[#allocation2 + $0x7a] sm:$0xff]
      %v819 = vld [vmem:[#allocation2 + $0x82] sm:$0xff]
      %v820 = vld [vmem:[#allocation2 + $0x92] sm:$0xff]
      %v821 = vld [vmem:[#allocation2 + $0x9a] sm:$0xff]
      %v822 = vld [vmem:[#allocation2 + $0xaa] sm:$0xff]
      %v823 = vld [vmem:[#allocation2 + $0xb2] sm:$0xff]
      %v824 = vld [vmem:[#allocation2 + $0xc2] sm:$0xff]
      %v825 = vld [vmem:[#allocation2 + $0xca] sm:$0xff]
      %v826 = vld [vmem:[#allocation2 + $0xda] sm:$0xff]
      %v827 = vld [vmem:[#allocation2 + $0xe2] sm:$0xff]
      %v828 = vld [vmem:[#allocation2 + $0xf2] sm:$0xff]
      %v829 = vld [vmem:[#allocation2 + $0xfa] sm:$0xff]
      %v830 = vld [vmem:[#allocation2 + $0x10a] sm:$0xff]
      %v831 = vld [vmem:[#allocation2 + $0x112] sm:$0xff]
      %v832 = vld [vmem:[#allocation2 + $0x122] sm:$0xff]
      %v833 = vld [vmem:[#allocation2 + $0x12a] sm:$0xff]
      %v834 = vld [vmem:[#allocation2 + $0x13a] sm:$0xff]
      %v835 = vld [vmem:[#allocation2 + $0x142] sm:$0xff]
      %v836 = vld [vmem:[#allocation2 + $0x152] sm:$0xff]
      %v837 = vld [vmem:[#allocation2 + $0x15a] sm:$0xff]
      %v838 = vld [vmem:[#allocation2 + $0x16a] sm:$0xff]
      %v839 = vld [vmem:[#allocation2 + $0x172] sm:$0xff]
      %840 = vst [vmem:[#allocation3 + $0x10] sm:$0xff] %v808
      %841 = vst [vmem:[#allocation3 + $0x58] sm:$0xff] %v809
      %842 = vst [vmem:[#allocation3 + $0xa0] sm:$0xff] %v810
      %843 = vst [vmem:[#allocation3 + $0xe8] sm:$0xff] %v811
      %844 = vst [vmem:[#allocation3 + $0x130] sm:$0xff] %v812
      %845 = vst [vmem:[#allocation3 + $0x178] sm:$0xff] %v813
      %846 = vst [vmem:[#allocation3 + $0x1c0] sm:$0xff] %v814
      %847 = vst [vmem:[#allocation3 + $0x208] sm:$0xff] %v815
      %848 = vst [vmem:[#allocation3 + $0x250] sm:$0xff] %v816
      %849 = vst [vmem:[#allocation3 + $0x298] sm:$0xff] %v817
      %850 = vst [vmem:[#allocation3 + $0x2e0] sm:$0xff] %v818
      %851 = vst [vmem:[#allocation3 + $0x328] sm:$0xff] %v819
      %852 = vst [vmem:[#allocation3 + $0x370] sm:$0xff] %v820
      %853 = vst [vmem:[#allocation3 + $0x3b8] sm:$0xff] %v821
      %854 = vst [vmem:[#allocation3 + $0x400] sm:$0xff] %v822
      %855 = vst [vmem:[#allocation3 + $0x448] sm:$0xff] %v823
      %856 = vst [vmem:[#allocation3 + $0x490] sm:$0xff] %v824
      %857 = vst [vmem:[#allocation3 + $0x4d8] sm:$0xff] %v825
      %858 = vst [vmem:[#allocation3 + $0x520] sm:$0xff] %v826
      %859 = vst [vmem:[#allocation3 + $0x568] sm:$0xff] %v827
      %860 = vst [vmem:[#allocation3 + $0x5b0] sm:$0xff] %v828
      %861 = vst [vmem:[#allocation3 + $0x5f8] sm:$0xff] %v829
      %862 = vst [vmem:[#allocation3 + $0x640] sm:$0xff] %v830
      %863 = vst [vmem:[#allocation3 + $0x688] sm:$0xff] %v831
      %864 = vst [vmem:[#allocation3 + $0x6d0] sm:$0xff] %v832
      %865 = vst [vmem:[#allocation3 + $0x718] sm:$0xff] %v833
      %866 = vst [vmem:[#allocation3 + $0x760] sm:$0xff] %v834
      %867 = vst [vmem:[#allocation3 + $0x7a8] sm:$0xff] %v835
      %868 = vst [vmem:[#allocation3 + $0x7f0] sm:$0xff] %v836
      %869 = vst [vmem:[#allocation3 + $0x838] sm:$0xff] %v837
      %870 = vst [vmem:[#allocation3 + $0x880] sm:$0xff] %v838
      %871 = vst [vmem:[#allocation3 + $0x8c8] sm:$0xff] %v839
      %v872 = vld [vmem:[%s647] sm:$0xff]
      %v873 = vld [vmem:[%s647 + $0x8] sm:$0xff]
      %v874 = vld [vmem:[%s647 + $0x18] sm:$0xff]
      %v875 = vld [vmem:[%s647 + $0x20] sm:$0xff]
      %v876 = vld [vmem:[%s647 + $0x30] sm:$0xff]
      %v877 = vld [vmem:[%s647 + $0x38] sm:$0xff]
      %v878 = vld [vmem:[%s647 + $0x48] sm:$0xff]
      %v879 = vld [vmem:[%s647 + $0x50] sm:$0xff]
      %v880 = vld [vmem:[%s647 + $0x60] sm:$0xff]
      %v881 = vld [vmem:[%s647 + $0x68] sm:$0xff]
      %v882 = vld [vmem:[%s647 + $0x78] sm:$0xff]
      %v883 = vld [vmem:[%s647 + $0x80] sm:$0xff]
      %v884 = vld [vmem:[%s647 + $0x90] sm:$0xff]
      %v885 = vld [vmem:[%s647 + $0x98] sm:$0xff]
      %v886 = vld [vmem:[%s647 + $0xa8] sm:$0xff]
      %v887 = vld [vmem:[%s647 + $0xb0] sm:$0xff]
      %v888 = vld [vmem:[%s647 + $0xc0] sm:$0xff]
      %v889 = vld [vmem:[%s647 + $0xc8] sm:$0xff]
      %v890 = vld [vmem:[%s647 + $0xd8] sm:$0xff]
      %v891 = vld [vmem:[%s647 + $0xe0] sm:$0xff]
      %v892 = vld [vmem:[%s647 + $0xf0] sm:$0xff]
      %v893 = vld [vmem:[%s647 + $0xf8] sm:$0xff]
      %v894 = vld [vmem:[%s647 + $0x108] sm:$0xff]
      %v895 = vld [vmem:[%s647 + $0x110] sm:$0xff]
      %v896 = vld [vmem:[%s647 + $0x120] sm:$0xff]
      %v897 = vld [vmem:[%s647 + $0x128] sm:$0xff]
      %v898 = vld [vmem:[%s647 + $0x138] sm:$0xff]
      %v899 = vld [vmem:[%s647 + $0x140] sm:$0xff]
      %v900 = vld [vmem:[%s647 + $0x150] sm:$0xff]
      %v901 = vld [vmem:[%s647 + $0x158] sm:$0xff]
      %v902 = vld [vmem:[%s647 + $0x168] sm:$0xff]
      %v903 = vld [vmem:[%s647 + $0x170] sm:$0xff]
      %904 = vst [vmem:[#allocation3 + $0x18] sm:$0xff] %v872
      %905 = vst [vmem:[#allocation3 + $0x60] sm:$0xff] %v873
      %906 = vst [vmem:[#allocation3 + $0xa8] sm:$0xff] %v874
      %907 = vst [vmem:[#allocation3 + $0xf0] sm:$0xff] %v875
      %908 = vst [vmem:[#allocation3 + $0x138] sm:$0xff] %v876
      %909 = vst [vmem:[#allocation3 + $0x180] sm:$0xff] %v877
      %910 = vst [vmem:[#allocation3 + $0x1c8] sm:$0xff] %v878
      %911 = vst [vmem:[#allocation3 + $0x210] sm:$0xff] %v879
      %912 = vst [vmem:[#allocation3 + $0x258] sm:$0xff] %v880
      %913 = vst [vmem:[#allocation3 + $0x2a0] sm:$0xff] %v881
      %914 = vst [vmem:[#allocation3 + $0x2e8] sm:$0xff] %v882
      %915 = vst [vmem:[#allocation3 + $0x330] sm:$0xff] %v883
      %916 = vst [vmem:[#allocation3 + $0x378] sm:$0xff] %v884
      %917 = vst [vmem:[#allocation3 + $0x3c0] sm:$0xff] %v885
      %918 = vst [vmem:[#allocation3 + $0x408] sm:$0xff] %v886
      %919 = vst [vmem:[#allocation3 + $0x450] sm:$0xff] %v887
      %920 = vst [vmem:[#allocation3 + $0x498] sm:$0xff] %v888
      %921 = vst [vmem:[#allocation3 + $0x4e0] sm:$0xff] %v889
      %922 = vst [vmem:[#allocation3 + $0x528] sm:$0xff] %v890
      %923 = vst [vmem:[#allocation3 + $0x570] sm:$0xff] %v891
      %924 = vst [vmem:[#allocation3 + $0x5b8] sm:$0xff] %v892
      %925 = vst [vmem:[#allocation3 + $0x600] sm:$0xff] %v893
      %926 = vst [vmem:[#allocation3 + $0x648] sm:$0xff] %v894
      %927 = vst [vmem:[#allocation3 + $0x690] sm:$0xff] %v895
      %928 = vst [vmem:[#allocation3 + $0x6d8] sm:$0xff] %v896
      %929 = vst [vmem:[#allocation3 + $0x720] sm:$0xff] %v897
      %930 = vst [vmem:[#allocation3 + $0x768] sm:$0xff] %v898
      %931 = vst [vmem:[#allocation3 + $0x7b0] sm:$0xff] %v899
      %932 = vst [vmem:[#allocation3 + $0x7f8] sm:$0xff] %v900
      %933 = vst [vmem:[#allocation3 + $0x840] sm:$0xff] %v901
      %934 = vst [vmem:[#allocation3 + $0x888] sm:$0xff] %v902
      %935 = vst [vmem:[#allocation3 + $0x8d0] sm:$0xff] %v903
      %v936 = vld [vmem:[%s647 + $0x1] sm:$0xff]
      %v937 = vld [vmem:[%s647 + $0x9] sm:$0xff]
      %v938 = vld [vmem:[%s647 + $0x19] sm:$0xff]
      %v939 = vld [vmem:[%s647 + $0x21] sm:$0xff]
      %v940 = vld [vmem:[%s647 + $0x31] sm:$0xff]
      %v941 = vld [vmem:[%s647 + $0x39] sm:$0xff]
      %v942 = vld [vmem:[%s647 + $0x49] sm:$0xff]
      %v943 = vld [vmem:[%s647 + $0x51] sm:$0xff]
      %v944 = vld [vmem:[%s647 + $0x61] sm:$0xff]
      %v945 = vld [vmem:[%s647 + $0x69] sm:$0xff]
      %v946 = vld [vmem:[%s647 + $0x79] sm:$0xff]
      %v947 = vld [vmem:[%s647 + $0x81] sm:$0xff]
      %v948 = vld [vmem:[%s647 + $0x91] sm:$0xff]
      %v949 = vld [vmem:[%s647 + $0x99] sm:$0xff]
      %v950 = vld [vmem:[%s647 + $0xa9] sm:$0xff]
      %v951 = vld [vmem:[%s647 + $0xb1] sm:$0xff]
      %v952 = vld [vmem:[%s647 + $0xc1] sm:$0xff]
      %v953 = vld [vmem:[%s647 + $0xc9] sm:$0xff]
      %v954 = vld [vmem:[%s647 + $0xd9] sm:$0xff]
      %v955 = vld [vmem:[%s647 + $0xe1] sm:$0xff]
      %v956 = vld [vmem:[%s647 + $0xf1] sm:$0xff]
      %v957 = vld [vmem:[%s647 + $0xf9] sm:$0xff]
      %v958 = vld [vmem:[%s647 + $0x109] sm:$0xff]
      %v959 = vld [vmem:[%s647 + $0x111] sm:$0xff]
      %v960 = vld [vmem:[%s647 + $0x121] sm:$0xff]
      %v961 = vld [vmem:[%s647 + $0x129] sm:$0xff]
      %v962 = vld [vmem:[%s647 + $0x139] sm:$0xff]
      %v963 = vld [vmem:[%s647 + $0x141] sm:$0xff]
      %v964 = vld [vmem:[%s647 + $0x151] sm:$0xff]
      %v965 = vld [vmem:[%s647 + $0x159] sm:$0xff]
      %v966 = vld [vmem:[%s647 + $0x169] sm:$0xff]
      %v967 = vld [vmem:[%s647 + $0x171] sm:$0xff]
      %968 = vst [vmem:[#allocation3 + $0x20] sm:$0xff] %v936
      %969 = vst [vmem:[#allocation3 + $0x68] sm:$0xff] %v937
      %970 = vst [vmem:[#allocation3 + $0xb0] sm:$0xff] %v938
      %971 = vst [vmem:[#allocation3 + $0xf8] sm:$0xff] %v939
      %972 = vst [vmem:[#allocation3 + $0x140] sm:$0xff] %v940
      %973 = vst [vmem:[#allocation3 + $0x188] sm:$0xff] %v941
      %974 = vst [vmem:[#allocation3 + $0x1d0] sm:$0xff] %v942
      %975 = vst [vmem:[#allocation3 + $0x218] sm:$0xff] %v943
      %976 = vst [vmem:[#allocation3 + $0x260] sm:$0xff] %v944
      %977 = vst [vmem:[#allocation3 + $0x2a8] sm:$0xff] %v945
      %978 = vst [vmem:[#allocation3 + $0x2f0] sm:$0xff] %v946
      %979 = vst [vmem:[#allocation3 + $0x338] sm:$0xff] %v947
      %980 = vst [vmem:[#allocation3 + $0x380] sm:$0xff] %v948
      %981 = vst [vmem:[#allocation3 + $0x3c8] sm:$0xff] %v949
      %982 = vst [vmem:[#allocation3 + $0x410] sm:$0xff] %v950
      %983 = vst [vmem:[#allocation3 + $0x458] sm:$0xff] %v951
      %984 = vst [vmem:[#allocation3 + $0x4a0] sm:$0xff] %v952
      %985 = vst [vmem:[#allocation3 + $0x4e8] sm:$0xff] %v953
      %986 = vst [vmem:[#allocation3 + $0x530] sm:$0xff] %v954
      %987 = vst [vmem:[#allocation3 + $0x578] sm:$0xff] %v955
      %988 = vst [vmem:[#allocation3 + $0x5c0] sm:$0xff] %v956
      %989 = vst [vmem:[#allocation3 + $0x608] sm:$0xff] %v957
      %990 = vst [vmem:[#allocation3 + $0x650] sm:$0xff] %v958
      %991 = vst [vmem:[#allocation3 + $0x698] sm:$0xff] %v959
      %992 = vst [vmem:[#allocation3 + $0x6e0] sm:$0xff] %v960
      %993 = vst [vmem:[#allocation3 + $0x728] sm:$0xff] %v961
      %994 = vst [vmem:[#allocation3 + $0x770] sm:$0xff] %v962
      %995 = vst [vmem:[#allocation3 + $0x7b8] sm:$0xff] %v963
      %996 = vst [vmem:[#allocation3 + $0x800] sm:$0xff] %v964
      %997 = vst [vmem:[#allocation3 + $0x848] sm:$0xff] %v965
      %998 = vst [vmem:[#allocation3 + $0x890] sm:$0xff] %v966
      %999 = vst [vmem:[#allocation3 + $0x8d8] sm:$0xff] %v967
      %v1000 = vld [vmem:[%s647 + $0x2] sm:$0xff]
      %v1001 = vld [vmem:[%s647 + $0xa] sm:$0xff]
      %v1002 = vld [vmem:[%s647 + $0x1a] sm:$0xff]
      %v1003 = vld [vmem:[%s647 + $0x22] sm:$0xff]
      %v1004 = vld [vmem:[%s647 + $0x32] sm:$0xff]
      %v1005 = vld [vmem:[%s647 + $0x3a] sm:$0xff]
      %v1006 = vld [vmem:[%s647 + $0x4a] sm:$0xff]
      %v1007 = vld [vmem:[%s647 + $0x52] sm:$0xff]
      %v1008 = vld [vmem:[%s647 + $0x62] sm:$0xff]
      %v1009 = vld [vmem:[%s647 + $0x6a] sm:$0xff]
      %v1010 = vld [vmem:[%s647 + $0x7a] sm:$0xff]
      %v1011 = vld [vmem:[%s647 + $0x82] sm:$0xff]
      %v1012 = vld [vmem:[%s647 + $0x92] sm:$0xff]
      %v1013 = vld [vmem:[%s647 + $0x9a] sm:$0xff]
      %v1014 = vld [vmem:[%s647 + $0xaa] sm:$0xff]
      %v1015 = vld [vmem:[%s647 + $0xb2] sm:$0xff]
      %v1016 = vld [vmem:[%s647 + $0xc2] sm:$0xff]
      %v1017 = vld [vmem:[%s647 + $0xca] sm:$0xff]
      %v1018 = vld [vmem:[%s647 + $0xda] sm:$0xff]
      %v1019 = vld [vmem:[%s647 + $0xe2] sm:$0xff]
      %v1020 = vld [vmem:[%s647 + $0xf2] sm:$0xff]
      %v1021 = vld [vmem:[%s647 + $0xfa] sm:$0xff]
      %v1022 = vld [vmem:[%s647 + $0x10a] sm:$0xff]
      %v1023 = vld [vmem:[%s647 + $0x112] sm:$0xff]
      %v1024 = vld [vmem:[%s647 + $0x122] sm:$0xff]
      %v1025 = vld [vmem:[%s647 + $0x12a] sm:$0xff]
      %v1026 = vld [vmem:[%s647 + $0x13a] sm:$0xff]
      %v1027 = vld [vmem:[%s647 + $0x142] sm:$0xff]
      %v1028 = vld [vmem:[%s647 + $0x152] sm:$0xff]
      %v1029 = vld [vmem:[%s647 + $0x15a] sm:$0xff]
      %v1030 = vld [vmem:[%s647 + $0x16a] sm:$0xff]
      %v1031 = vld [vmem:[%s647 + $0x172] sm:$0xff]
      %1032 = vst [vmem:[#allocation3 + $0x28] sm:$0xff] %v1000
      %1033 = vst [vmem:[#allocation3 + $0x70] sm:$0xff] %v1001
      %1034 = vst [vmem:[#allocation3 + $0xb8] sm:$0xff] %v1002
      %1035 = vst [vmem:[#allocation3 + $0x100] sm:$0xff] %v1003
      %1036 = vst [vmem:[#allocation3 + $0x148] sm:$0xff] %v1004
      %1037 = vst [vmem:[#allocation3 + $0x190] sm:$0xff] %v1005
      %1038 = vst [vmem:[#allocation3 + $0x1d8] sm:$0xff] %v1006
      %1039 = vst [vmem:[#allocation3 + $0x220] sm:$0xff] %v1007
      %1040 = vst [vmem:[#allocation3 + $0x268] sm:$0xff] %v1008
      %1041 = vst [vmem:[#allocation3 + $0x2b0] sm:$0xff] %v1009
      %1042 = vst [vmem:[#allocation3 + $0x2f8] sm:$0xff] %v1010
      %1043 = vst [vmem:[#allocation3 + $0x340] sm:$0xff] %v1011
      %1044 = vst [vmem:[#allocation3 + $0x388] sm:$0xff] %v1012
      %1045 = vst [vmem:[#allocation3 + $0x3d0] sm:$0xff] %v1013
      %1046 = vst [vmem:[#allocation3 + $0x418] sm:$0xff] %v1014
      %1047 = vst [vmem:[#allocation3 + $0x460] sm:$0xff] %v1015
      %1048 = vst [vmem:[#allocation3 + $0x4a8] sm:$0xff] %v1016
      %1049 = vst [vmem:[#allocation3 + $0x4f0] sm:$0xff] %v1017
      %1050 = vst [vmem:[#allocation3 + $0x538] sm:$0xff] %v1018
      %1051 = vst [vmem:[#allocation3 + $0x580] sm:$0xff] %v1019
      %1052 = vst [vmem:[#allocation3 + $0x5c8] sm:$0xff] %v1020
      %1053 = vst [vmem:[#allocation3 + $0x610] sm:$0xff] %v1021
      %1054 = vst [vmem:[#allocation3 + $0x658] sm:$0xff] %v1022
      %1055 = vst [vmem:[#allocation3 + $0x6a0] sm:$0xff] %v1023
      %1056 = vst [vmem:[#allocation3 + $0x6e8] sm:$0xff] %v1024
      %1057 = vst [vmem:[#allocation3 + $0x730] sm:$0xff] %v1025
      %1058 = vst [vmem:[#allocation3 + $0x778] sm:$0xff] %v1026
      %1059 = vst [vmem:[#allocation3 + $0x7c0] sm:$0xff] %v1027
      %1060 = vst [vmem:[#allocation3 + $0x808] sm:$0xff] %v1028
      %1061 = vst [vmem:[#allocation3 + $0x850] sm:$0xff] %v1029
      %1062 = vst [vmem:[#allocation3 + $0x898] sm:$0xff] %v1030
      %1063 = vst [vmem:[#allocation3 + $0x8e0] sm:$0xff] %v1031
      %s1064 = scalar_lea.vmem [#allocation2], 48
      %v1065 = vld [vmem:[%s1064] sm:$0xff]
      %v1066 = vld [vmem:[%s1064 + $0x8] sm:$0xff]
      %v1067 = vld [vmem:[%s1064 + $0x18] sm:$0xff]
      %v1068 = vld [vmem:[%s1064 + $0x20] sm:$0xff]
      %v1069 = vld [vmem:[%s1064 + $0x30] sm:$0xff]
      %v1070 = vld [vmem:[%s1064 + $0x38] sm:$0xff]
      %v1071 = vld [vmem:[%s1064 + $0x48] sm:$0xff]
      %v1072 = vld [vmem:[%s1064 + $0x50] sm:$0xff]
      %v1073 = vld [vmem:[%s1064 + $0x60] sm:$0xff]
      %v1074 = vld [vmem:[%s1064 + $0x68] sm:$0xff]
      %v1075 = vld [vmem:[%s1064 + $0x78] sm:$0xff]
      %v1076 = vld [vmem:[%s1064 + $0x80] sm:$0xff]
      %v1077 = vld [vmem:[%s1064 + $0x90] sm:$0xff]
      %v1078 = vld [vmem:[%s1064 + $0x98] sm:$0xff]
      %v1079 = vld [vmem:[%s1064 + $0xa8] sm:$0xff]
      %v1080 = vld [vmem:[%s1064 + $0xb0] sm:$0xff]
      %v1081 = vld [vmem:[%s1064 + $0xc0] sm:$0xff]
      %v1082 = vld [vmem:[%s1064 + $0xc8] sm:$0xff]
      %v1083 = vld [vmem:[%s1064 + $0xd8] sm:$0xff]
      %v1084 = vld [vmem:[%s1064 + $0xe0] sm:$0xff]
      %v1085 = vld [vmem:[%s1064 + $0xf0] sm:$0xff]
      %v1086 = vld [vmem:[%s1064 + $0xf8] sm:$0xff]
      %v1087 = vld [vmem:[%s1064 + $0x108] sm:$0xff]
      %v1088 = vld [vmem:[%s1064 + $0x110] sm:$0xff]
      %v1089 = vld [vmem:[%s1064 + $0x120] sm:$0xff]
      %v1090 = vld [vmem:[%s1064 + $0x128] sm:$0xff]
      %v1091 = vld [vmem:[%s1064 + $0x138] sm:$0xff]
      %v1092 = vld [vmem:[%s1064 + $0x140] sm:$0xff]
      %v1093 = vld [vmem:[%s1064 + $0x150] sm:$0xff]
      %v1094 = vld [vmem:[%s1064 + $0x158] sm:$0xff]
      %v1095 = vld [vmem:[%s1064 + $0x168] sm:$0xff]
      %v1096 = vld [vmem:[%s1064 + $0x170] sm:$0xff]
      %1097 = vst [vmem:[#allocation3 + $0x30] sm:$0xff] %v1065
      %1098 = vst [vmem:[#allocation3 + $0x78] sm:$0xff] %v1066
      %1099 = vst [vmem:[#allocation3 + $0xc0] sm:$0xff] %v1067
      %1100 = vst [vmem:[#allocation3 + $0x108] sm:$0xff] %v1068
      %1101 = vst [vmem:[#allocation3 + $0x150] sm:$0xff] %v1069
      %1102 = vst [vmem:[#allocation3 + $0x198] sm:$0xff] %v1070
      %1103 = vst [vmem:[#allocation3 + $0x1e0] sm:$0xff] %v1071
      %1104 = vst [vmem:[#allocation3 + $0x228] sm:$0xff] %v1072
      %1105 = vst [vmem:[#allocation3 + $0x270] sm:$0xff] %v1073
      %1106 = vst [vmem:[#allocation3 + $0x2b8] sm:$0xff] %v1074
      %1107 = vst [vmem:[#allocation3 + $0x300] sm:$0xff] %v1075
      %1108 = vst [vmem:[#allocation3 + $0x348] sm:$0xff] %v1076
      %1109 = vst [vmem:[#allocation3 + $0x390] sm:$0xff] %v1077
      %1110 = vst [vmem:[#allocation3 + $0x3d8] sm:$0xff] %v1078
      %1111 = vst [vmem:[#allocation3 + $0x420] sm:$0xff] %v1079
      %1112 = vst [vmem:[#allocation3 + $0x468] sm:$0xff] %v1080
      %1113 = vst [vmem:[#allocation3 + $0x4b0] sm:$0xff] %v1081
      %1114 = vst [vmem:[#allocation3 + $0x4f8] sm:$0xff] %v1082
      %1115 = vst [vmem:[#allocation3 + $0x540] sm:$0xff] %v1083
      %1116 = vst [vmem:[#allocation3 + $0x588] sm:$0xff] %v1084
      %1117 = vst [vmem:[#allocation3 + $0x5d0] sm:$0xff] %v1085
      %1118 = vst [vmem:[#allocation3 + $0x618] sm:$0xff] %v1086
      %1119 = vst [vmem:[#allocation3 + $0x660] sm:$0xff] %v1087
      %1120 = vst [vmem:[#allocation3 + $0x6a8] sm:$0xff] %v1088
      %1121 = vst [vmem:[#allocation3 + $0x6f0] sm:$0xff] %v1089
      %1122 = vst [vmem:[#allocation3 + $0x738] sm:$0xff] %v1090
      %1123 = vst [vmem:[#allocation3 + $0x780] sm:$0xff] %v1091
      %1124 = vst [vmem:[#allocation3 + $0x7c8] sm:$0xff] %v1092
      %1125 = vst [vmem:[#allocation3 + $0x810] sm:$0xff] %v1093
      %1126 = vst [vmem:[#allocation3 + $0x858] sm:$0xff] %v1094
      %1127 = vst [vmem:[#allocation3 + $0x8a0] sm:$0xff] %v1095
      %1128 = vst [vmem:[#allocation3 + $0x8e8] sm:$0xff] %v1096
      %v1129 = vld [vmem:[%s1064 + $0x1] sm:$0xff]
      %v1130 = vld [vmem:[%s1064 + $0x9] sm:$0xff]
      %v1131 = vld [vmem:[%s1064 + $0x19] sm:$0xff]
      %v1132 = vld [vmem:[%s1064 + $0x21] sm:$0xff]
      %v1133 = vld [vmem:[%s1064 + $0x31] sm:$0xff]
      %v1134 = vld [vmem:[%s1064 + $0x39] sm:$0xff]
      %v1135 = vld [vmem:[%s1064 + $0x49] sm:$0xff]
      %v1136 = vld [vmem:[%s1064 + $0x51] sm:$0xff]
      %v1137 = vld [vmem:[%s1064 + $0x61] sm:$0xff]
      %v1138 = vld [vmem:[%s1064 + $0x69] sm:$0xff]
      %v1139 = vld [vmem:[%s1064 + $0x79] sm:$0xff]
      %v1140 = vld [vmem:[%s1064 + $0x81] sm:$0xff]
      %v1141 = vld [vmem:[%s1064 + $0x91] sm:$0xff]
      %v1142 = vld [vmem:[%s1064 + $0x99] sm:$0xff]
      %v1143 = vld [vmem:[%s1064 + $0xa9] sm:$0xff]
      %v1144 = vld [vmem:[%s1064 + $0xb1] sm:$0xff]
      %v1145 = vld [vmem:[%s1064 + $0xc1] sm:$0xff]
      %v1146 = vld [vmem:[%s1064 + $0xc9] sm:$0xff]
      %v1147 = vld [vmem:[%s1064 + $0xd9] sm:$0xff]
      %v1148 = vld [vmem:[%s1064 + $0xe1] sm:$0xff]
      %v1149 = vld [vmem:[%s1064 + $0xf1] sm:$0xff]
      %v1150 = vld [vmem:[%s1064 + $0xf9] sm:$0xff]
      %v1151 = vld [vmem:[%s1064 + $0x109] sm:$0xff]
      %v1152 = vld [vmem:[%s1064 + $0x111] sm:$0xff]
      %v1153 = vld [vmem:[%s1064 + $0x121] sm:$0xff]
      %v1154 = vld [vmem:[%s1064 + $0x129] sm:$0xff]
      %v1155 = vld [vmem:[%s1064 + $0x139] sm:$0xff]
      %v1156 = vld [vmem:[%s1064 + $0x141] sm:$0xff]
      %v1157 = vld [vmem:[%s1064 + $0x151] sm:$0xff]
      %v1158 = vld [vmem:[%s1064 + $0x159] sm:$0xff]
      %v1159 = vld [vmem:[%s1064 + $0x169] sm:$0xff]
      %v1160 = vld [vmem:[%s1064 + $0x171] sm:$0xff]
      %1161 = vst [vmem:[#allocation3 + $0x38] sm:$0xff] %v1129
      %1162 = vst [vmem:[#allocation3 + $0x80] sm:$0xff] %v1130
      %1163 = vst [vmem:[#allocation3 + $0xc8] sm:$0xff] %v1131
      %1164 = vst [vmem:[#allocation3 + $0x110] sm:$0xff] %v1132
      %1165 = vst [vmem:[#allocation3 + $0x158] sm:$0xff] %v1133
      %1166 = vst [vmem:[#allocation3 + $0x1a0] sm:$0xff] %v1134
      %1167 = vst [vmem:[#allocation3 + $0x1e8] sm:$0xff] %v1135
      %1168 = vst [vmem:[#allocation3 + $0x230] sm:$0xff] %v1136
      %1169 = vst [vmem:[#allocation3 + $0x278] sm:$0xff] %v1137
      %1170 = vst [vmem:[#allocation3 + $0x2c0] sm:$0xff] %v1138
      %1171 = vst [vmem:[#allocation3 + $0x308] sm:$0xff] %v1139
      %1172 = vst [vmem:[#allocation3 + $0x350] sm:$0xff] %v1140
      %1173 = vst [vmem:[#allocation3 + $0x398] sm:$0xff] %v1141
      %1174 = vst [vmem:[#allocation3 + $0x3e0] sm:$0xff] %v1142
      %1175 = vst [vmem:[#allocation3 + $0x428] sm:$0xff] %v1143
      %1176 = vst [vmem:[#allocation3 + $0x470] sm:$0xff] %v1144
      %1177 = vst [vmem:[#allocation3 + $0x4b8] sm:$0xff] %v1145
      %1178 = vst [vmem:[#allocation3 + $0x500] sm:$0xff] %v1146
      %1179 = vst [vmem:[#allocation3 + $0x548] sm:$0xff] %v1147
      %1180 = vst [vmem:[#allocation3 + $0x590] sm:$0xff] %v1148
      %1181 = vst [vmem:[#allocation3 + $0x5d8] sm:$0xff] %v1149
      %1182 = vst [vmem:[#allocation3 + $0x620] sm:$0xff] %v1150
      %1183 = vst [vmem:[#allocation3 + $0x668] sm:$0xff] %v1151
      %1184 = vst [vmem:[#allocation3 + $0x6b0] sm:$0xff] %v1152
      %1185 = vst [vmem:[#allocation3 + $0x6f8] sm:$0xff] %v1153
      %1186 = vst [vmem:[#allocation3 + $0x740] sm:$0xff] %v1154
      %1187 = vst [vmem:[#allocation3 + $0x788] sm:$0xff] %v1155
      %1188 = vst [vmem:[#allocation3 + $0x7d0] sm:$0xff] %v1156
      %1189 = vst [vmem:[#allocation3 + $0x818] sm:$0xff] %v1157
      %1190 = vst [vmem:[#allocation3 + $0x860] sm:$0xff] %v1158
      %1191 = vst [vmem:[#allocation3 + $0x8a8] sm:$0xff] %v1159
      %1192 = vst [vmem:[#allocation3 + $0x8f0] sm:$0xff] %v1160
      %v1193 = vld [vmem:[%s1064 + $0x2] sm:$0xff]
      %v1194 = vld [vmem:[%s1064 + $0xa] sm:$0xff]
      %v1195 = vld [vmem:[%s1064 + $0x1a] sm:$0xff]
      %v1196 = vld [vmem:[%s1064 + $0x22] sm:$0xff]
      %v1197 = vld [vmem:[%s1064 + $0x32] sm:$0xff]
      %v1198 = vld [vmem:[%s1064 + $0x3a] sm:$0xff]
      %v1199 = vld [vmem:[%s1064 + $0x4a] sm:$0xff]
      %v1200 = vld [vmem:[%s1064 + $0x52] sm:$0xff]
      %v1201 = vld [vmem:[%s1064 + $0x62] sm:$0xff]
      %v1202 = vld [vmem:[%s1064 + $0x6a] sm:$0xff]
      %v1203 = vld [vmem:[%s1064 + $0x7a] sm:$0xff]
      %v1204 = vld [vmem:[%s1064 + $0x82] sm:$0xff]
      %v1205 = vld [vmem:[%s1064 + $0x92] sm:$0xff]
      %v1206 = vld [vmem:[%s1064 + $0x9a] sm:$0xff]
      %v1207 = vld [vmem:[%s1064 + $0xaa] sm:$0xff]
      %v1208 = vld [vmem:[%s1064 + $0xb2] sm:$0xff]
      %v1209 = vld [vmem:[%s1064 + $0xc2] sm:$0xff]
      %v1210 = vld [vmem:[%s1064 + $0xca] sm:$0xff]
      %v1211 = vld [vmem:[%s1064 + $0xda] sm:$0xff]
      %v1212 = vld [vmem:[%s1064 + $0xe2] sm:$0xff]
      %v1213 = vld [vmem:[%s1064 + $0xf2] sm:$0xff]
      %v1214 = vld [vmem:[%s1064 + $0xfa] sm:$0xff]
      %v1215 = vld [vmem:[%s1064 + $0x10a] sm:$0xff]
      %v1216 = vld [vmem:[%s1064 + $0x112] sm:$0xff]
      %v1217 = vld [vmem:[%s1064 + $0x122] sm:$0xff]
      %v1218 = vld [vmem:[%s1064 + $0x12a] sm:$0xff]
      %v1219 = vld [vmem:[%s1064 + $0x13a] sm:$0xff]
      %v1220 = vld [vmem:[%s1064 + $0x142] sm:$0xff]
      %v1221 = vld [vmem:[%s1064 + $0x152] sm:$0xff]
      %v1222 = vld [vmem:[%s1064 + $0x15a] sm:$0xff]
      %v1223 = vld [vmem:[%s1064 + $0x16a] sm:$0xff]
      %v1224 = vld [vmem:[%s1064 + $0x172] sm:$0xff]
      %1225 = vst [vmem:[#allocation3 + $0x40] sm:$0xff] %v1193
      %1226 = vst [vmem:[#allocation3 + $0x88] sm:$0xff] %v1194
      %1227 = vst [vmem:[#allocation3 + $0xd0] sm:$0xff] %v1195
      %1228 = vst [vmem:[#allocation3 + $0x118] sm:$0xff] %v1196
      %1229 = vst [vmem:[#allocation3 + $0x160] sm:$0xff] %v1197
      %1230 = vst [vmem:[#allocation3 + $0x1a8] sm:$0xff] %v1198
      %1231 = vst [vmem:[#allocation3 + $0x1f0] sm:$0xff] %v1199
      %1232 = vst [vmem:[#allocation3 + $0x238] sm:$0xff] %v1200
      %1233 = vst [vmem:[#allocation3 + $0x280] sm:$0xff] %v1201
      %1234 = vst [vmem:[#allocation3 + $0x2c8] sm:$0xff] %v1202
      %1235 = vst [vmem:[#allocation3 + $0x310] sm:$0xff] %v1203
      %1236 = vst [vmem:[#allocation3 + $0x358] sm:$0xff] %v1204
      %1237 = vst [vmem:[#allocation3 + $0x3a0] sm:$0xff] %v1205
      %1238 = vst [vmem:[#allocation3 + $0x3e8] sm:$0xff] %v1206
      %1239 = vst [vmem:[#allocation3 + $0x430] sm:$0xff] %v1207
      %1240 = vst [vmem:[#allocation3 + $0x478] sm:$0xff] %v1208
      %1241 = vst [vmem:[#allocation3 + $0x4c0] sm:$0xff] %v1209
      %1242 = vst [vmem:[#allocation3 + $0x508] sm:$0xff] %v1210
      %1243 = vst [vmem:[#allocation3 + $0x550] sm:$0xff] %v1211
      %1244 = vst [vmem:[#allocation3 + $0x598] sm:$0xff] %v1212
      %1245 = vst [vmem:[#allocation3 + $0x5e0] sm:$0xff] %v1213
      %1246 = vst [vmem:[#allocation3 + $0x628] sm:$0xff] %v1214
      %1247 = vst [vmem:[#allocation3 + $0x670] sm:$0xff] %v1215
      %1248 = vst [vmem:[#allocation3 + $0x6b8] sm:$0xff] %v1216
      %1249 = vst [vmem:[#allocation3 + $0x700] sm:$0xff] %v1217
      %1250 = vst [vmem:[#allocation3 + $0x748] sm:$0xff] %v1218
      %1251 = vst [vmem:[#allocation3 + $0x790] sm:$0xff] %v1219
      %1252 = vst [vmem:[#allocation3 + $0x7d8] sm:$0xff] %v1220
      %1253 = vst [vmem:[#allocation3 + $0x820] sm:$0xff] %v1221
      %1254 = vst [vmem:[#allocation3 + $0x868] sm:$0xff] %v1222
      %1255 = vst [vmem:[#allocation3 + $0x8b0] sm:$0xff] %v1223
      %1256 = vst [vmem:[#allocation3 + $0x8f8] sm:$0xff] %v1224
      %v1257 = vld [vmem:[#allocation3] sm:$0xff]
      %v1258 = vld [vmem:[#allocation3 + $0x8] sm:$0xff]
      %v1259 = vld [vmem:[#allocation3 + $0x10] sm:$0xff]
      %v1260 = vld [vmem:[#allocation3 + $0x18] sm:$0xff]
      %v1261 = vld [vmem:[#allocation3 + $0x20] sm:$0xff]
      %v1262 = vld [vmem:[#allocation3 + $0x28] sm:$0xff]
      %v1263 = vld [vmem:[#allocation3 + $0x30] sm:$0xff]
      %v1264 = vld [vmem:[#allocation3 + $0x38] sm:$0xff]
      %v1265 = vld [vmem:[#allocation3 + $0x40] sm:$0xff]
      %v1266 = vld [vmem:[#allocation3 + $0x48] sm:$0xff]
      %v1267 = vld [vmem:[#allocation3 + $0x50] sm:$0xff]
      %v1268 = vld [vmem:[#allocation3 + $0x58] sm:$0xff]
      %v1269 = vld [vmem:[#allocation3 + $0x60] sm:$0xff]
      %v1270 = vld [vmem:[#allocation3 + $0x68] sm:$0xff]
      %v1271 = vld [vmem:[#allocation3 + $0x70] sm:$0xff]
      %v1272 = vld [vmem:[#allocation3 + $0x78] sm:$0xff]
      %v1273 = vld [vmem:[#allocation3 + $0x80] sm:$0xff]
      %v1274 = vld [vmem:[#allocation3 + $0x88] sm:$0xff]
      %v1275 = vld [vmem:[#allocation3 + $0x90] sm:$0xff]
      %v1276 = vld [vmem:[#allocation3 + $0x98] sm:$0xff]
      %v1277 = vld [vmem:[#allocation3 + $0xa0] sm:$0xff]
      %v1278 = vld [vmem:[#allocation3 + $0xa8] sm:$0xff]
      %v1279 = vld [vmem:[#allocation3 + $0xb0] sm:$0xff]
      %v1280 = vld [vmem:[#allocation3 + $0xb8] sm:$0xff]
      %v1281 = vld [vmem:[#allocation3 + $0xc0] sm:$0xff]
      %v1282 = vld [vmem:[#allocation3 + $0xc8] sm:$0xff]
      %v1283 = vld [vmem:[#allocation3 + $0xd0] sm:$0xff]
      %v1284 = vld [vmem:[#allocation3 + $0xd8] sm:$0xff]
      %v1285 = vld [vmem:[#allocation3 + $0xe0] sm:$0xff]
      %v1286 = vld [vmem:[#allocation3 + $0xe8] sm:$0xff]
      %v1287 = vld [vmem:[#allocation3 + $0xf0] sm:$0xff]
      %v1288 = vld [vmem:[#allocation3 + $0xf8] sm:$0xff]
      %v1289 = vld [vmem:[#allocation3 + $0x100] sm:$0xff]
      %v1290 = vld [vmem:[#allocation3 + $0x108] sm:$0xff]
      %v1291 = vld [vmem:[#allocation3 + $0x110] sm:$0xff]
      %v1292 = vld [vmem:[#allocation3 + $0x118] sm:$0xff]
      %v1293 = vld [vmem:[#allocation3 + $0x120] sm:$0xff]
      %v1294 = vld [vmem:[#allocation3 + $0x128] sm:$0xff]
      %v1295 = vld [vmem:[#allocation3 + $0x130] sm:$0xff]
      %v1296 = vld [vmem:[#allocation3 + $0x138] sm:$0xff]
      %v1297 = vld [vmem:[#allocation3 + $0x140] sm:$0xff]
      %v1298 = vld [vmem:[#allocation3 + $0x148] sm:$0xff]
      %v1299 = vld [vmem:[#allocation3 + $0x150] sm:$0xff]
      %v1300 = vld [vmem:[#allocation3 + $0x158] sm:$0xff]
      %v1301 = vld [vmem:[#allocation3 + $0x160] sm:$0xff]
      %v1302 = vld [vmem:[#allocation3 + $0x168] sm:$0xff]
      %v1303 = vld [vmem:[#allocation3 + $0x170] sm:$0xff]
      %v1304 = vld [vmem:[#allocation3 + $0x178] sm:$0xff]
      %v1305 = vld [vmem:[#allocation3 + $0x180] sm:$0xff]
      %v1306 = vld [vmem:[#allocation3 + $0x188] sm:$0xff]
      %v1307 = vld [vmem:[#allocation3 + $0x190] sm:$0xff]
      %v1308 = vld [vmem:[#allocation3 + $0x198] sm:$0xff]
      %v1309 = vld [vmem:[#allocation3 + $0x1a0] sm:$0xff]
      %v1310 = vld [vmem:[#allocation3 + $0x1a8] sm:$0xff]
      %v1311 = vld [vmem:[#allocation3 + $0x1b0] sm:$0xff]
      %v1312 = vld [vmem:[#allocation3 + $0x1b8] sm:$0xff]
      %v1313 = vld [vmem:[#allocation3 + $0x1c0] sm:$0xff]
      %v1314 = vld [vmem:[#allocation3 + $0x1c8] sm:$0xff]
      %v1315 = vld [vmem:[#allocation3 + $0x1d0] sm:$0xff]
      %v1316 = vld [vmem:[#allocation3 + $0x1d8] sm:$0xff]
      %v1317 = vld [vmem:[#allocation3 + $0x1e0] sm:$0xff]
      %v1318 = vld [vmem:[#allocation3 + $0x1e8] sm:$0xff]
      %v1319 = vld [vmem:[#allocation3 + $0x1f0] sm:$0xff]
      %v1320 = vld [vmem:[#allocation3 + $0x1f8] sm:$0xff]
      %v1321 = vld [vmem:[#allocation3 + $0x200] sm:$0xff]
      %v1322 = vld [vmem:[#allocation3 + $0x208] sm:$0xff]
      %v1323 = vld [vmem:[#allocation3 + $0x210] sm:$0xff]
      %v1324 = vld [vmem:[#allocation3 + $0x218] sm:$0xff]
      %v1325 = vld [vmem:[#allocation3 + $0x220] sm:$0xff]
      %v1326 = vld [vmem:[#allocation3 + $0x228] sm:$0xff]
      %v1327 = vld [vmem:[#allocation3 + $0x230] sm:$0xff]
      %v1328 = vld [vmem:[#allocation3 + $0x238] sm:$0xff]
      %v1329 = vld [vmem:[#allocation3 + $0x240] sm:$0xff]
      %v1330 = vld [vmem:[#allocation3 + $0x248] sm:$0xff]
      %v1331 = vld [vmem:[#allocation3 + $0x250] sm:$0xff]
      %v1332 = vld [vmem:[#allocation3 + $0x258] sm:$0xff]
      %v1333 = vld [vmem:[#allocation3 + $0x260] sm:$0xff]
      %v1334 = vld [vmem:[#allocation3 + $0x268] sm:$0xff]
      %v1335 = vld [vmem:[#allocation3 + $0x270] sm:$0xff]
      %v1336 = vld [vmem:[#allocation3 + $0x278] sm:$0xff]
      %v1337 = vld [vmem:[#allocation3 + $0x280] sm:$0xff]
      %v1338 = vld [vmem:[#allocation3 + $0x288] sm:$0xff]
      %v1339 = vld [vmem:[#allocation3 + $0x290] sm:$0xff]
      %v1340 = vld [vmem:[#allocation3 + $0x298] sm:$0xff]
      %v1341 = vld [vmem:[#allocation3 + $0x2a0] sm:$0xff]
      %v1342 = vld [vmem:[#allocation3 + $0x2a8] sm:$0xff]
      %v1343 = vld [vmem:[#allocation3 + $0x2b0] sm:$0xff]
      %v1344 = vld [vmem:[#allocation3 + $0x2b8] sm:$0xff]
      %v1345 = vld [vmem:[#allocation3 + $0x2c0] sm:$0xff]
      %v1346 = vld [vmem:[#allocation3 + $0x2c8] sm:$0xff]
      %v1347 = vld [vmem:[#allocation3 + $0x2d0] sm:$0xff]
      %v1348 = vld [vmem:[#allocation3 + $0x2d8] sm:$0xff]
      %v1349 = vld [vmem:[#allocation3 + $0x2e0] sm:$0xff]
      %v1350 = vld [vmem:[#allocation3 + $0x2e8] sm:$0xff]
      %v1351 = vld [vmem:[#allocation3 + $0x2f0] sm:$0xff]
      %v1352 = vld [vmem:[#allocation3 + $0x2f8] sm:$0xff]
      %v1353 = vld [vmem:[#allocation3 + $0x300] sm:$0xff]
      %v1354 = vld [vmem:[#allocation3 + $0x308] sm:$0xff]
      %v1355 = vld [vmem:[#allocation3 + $0x310] sm:$0xff]
      %v1356 = vld [vmem:[#allocation3 + $0x318] sm:$0xff]
      %v1357 = vld [vmem:[#allocation3 + $0x320] sm:$0xff]
      %v1358 = vld [vmem:[#allocation3 + $0x328] sm:$0xff]
      %v1359 = vld [vmem:[#allocation3 + $0x330] sm:$0xff]
      %v1360 = vld [vmem:[#allocation3 + $0x338] sm:$0xff]
      %v1361 = vld [vmem:[#allocation3 + $0x340] sm:$0xff]
      %v1362 = vld [vmem:[#allocation3 + $0x348] sm:$0xff]
      %v1363 = vld [vmem:[#allocation3 + $0x350] sm:$0xff]
      %v1364 = vld [vmem:[#allocation3 + $0x358] sm:$0xff]
      %v1365 = vld [vmem:[#allocation3 + $0x360] sm:$0xff]
      %v1366 = vld [vmem:[#allocation3 + $0x368] sm:$0xff]
      %v1367 = vld [vmem:[#allocation3 + $0x370] sm:$0xff]
      %v1368 = vld [vmem:[#allocation3 + $0x378] sm:$0xff]
      %v1369 = vld [vmem:[#allocation3 + $0x380] sm:$0xff]
      %v1370 = vld [vmem:[#allocation3 + $0x388] sm:$0xff]
      %v1371 = vld [vmem:[#allocation3 + $0x390] sm:$0xff]
      %v1372 = vld [vmem:[#allocation3 + $0x398] sm:$0xff]
      %v1373 = vld [vmem:[#allocation3 + $0x3a0] sm:$0xff]
      %v1374 = vld [vmem:[#allocation3 + $0x3a8] sm:$0xff]
      %v1375 = vld [vmem:[#allocation3 + $0x3b0] sm:$0xff]
      %v1376 = vld [vmem:[#allocation3 + $0x3b8] sm:$0xff]
      %v1377 = vld [vmem:[#allocation3 + $0x3c0] sm:$0xff]
      %v1378 = vld [vmem:[#allocation3 + $0x3c8] sm:$0xff]
      %v1379 = vld [vmem:[#allocation3 + $0x3d0] sm:$0xff]
      %v1380 = vld [vmem:[#allocation3 + $0x3d8] sm:$0xff]
      %v1381 = vld [vmem:[#allocation3 + $0x3e0] sm:$0xff]
      %v1382 = vld [vmem:[#allocation3 + $0x3e8] sm:$0xff]
      %v1383 = vld [vmem:[#allocation3 + $0x3f0] sm:$0xff]
      %v1384 = vld [vmem:[#allocation3 + $0x3f8] sm:$0xff]
      %v1385 = vld [vmem:[#allocation3 + $0x400] sm:$0xff]
      %v1386 = vld [vmem:[#allocation3 + $0x408] sm:$0xff]
      %v1387 = vld [vmem:[#allocation3 + $0x410] sm:$0xff]
      %v1388 = vld [vmem:[#allocation3 + $0x418] sm:$0xff]
      %v1389 = vld [vmem:[#allocation3 + $0x420] sm:$0xff]
      %v1390 = vld [vmem:[#allocation3 + $0x428] sm:$0xff]
      %v1391 = vld [vmem:[#allocation3 + $0x430] sm:$0xff]
      %v1392 = vld [vmem:[#allocation3 + $0x438] sm:$0xff]
      %v1393 = vld [vmem:[#allocation3 + $0x440] sm:$0xff]
      %v1394 = vld [vmem:[#allocation3 + $0x448] sm:$0xff]
      %v1395 = vld [vmem:[#allocation3 + $0x450] sm:$0xff]
      %v1396 = vld [vmem:[#allocation3 + $0x458] sm:$0xff]
      %v1397 = vld [vmem:[#allocation3 + $0x460] sm:$0xff]
      %v1398 = vld [vmem:[#allocation3 + $0x468] sm:$0xff]
      %v1399 = vld [vmem:[#allocation3 + $0x470] sm:$0xff]
      %v1400 = vld [vmem:[#allocation3 + $0x478] sm:$0xff]
      %v1401 = vld [vmem:[#allocation3 + $0x480] sm:$0xff]
      %v1402 = vld [vmem:[#allocation3 + $0x488] sm:$0xff]
      %v1403 = vld [vmem:[#allocation3 + $0x490] sm:$0xff]
      %v1404 = vld [vmem:[#allocation3 + $0x498] sm:$0xff]
      %v1405 = vld [vmem:[#allocation3 + $0x4a0] sm:$0xff]
      %v1406 = vld [vmem:[#allocation3 + $0x4a8] sm:$0xff]
      %v1407 = vld [vmem:[#allocation3 + $0x4b0] sm:$0xff]
      %v1408 = vld [vmem:[#allocation3 + $0x4b8] sm:$0xff]
      %v1409 = vld [vmem:[#allocation3 + $0x4c0] sm:$0xff]
      %v1410 = vld [vmem:[#allocation3 + $0x4c8] sm:$0xff]
      %v1411 = vld [vmem:[#allocation3 + $0x4d0] sm:$0xff]
      %v1412 = vld [vmem:[#allocation3 + $0x4d8] sm:$0xff]
      %v1413 = vld [vmem:[#allocation3 + $0x4e0] sm:$0xff]
      %v1414 = vld [vmem:[#allocation3 + $0x4e8] sm:$0xff]
      %v1415 = vld [vmem:[#allocation3 + $0x4f0] sm:$0xff]
      %v1416 = vld [vmem:[#allocation3 + $0x4f8] sm:$0xff]
      %v1417 = vld [vmem:[#allocation3 + $0x500] sm:$0xff]
      %v1418 = vld [vmem:[#allocation3 + $0x508] sm:$0xff]
      %v1419 = vld [vmem:[#allocation3 + $0x510] sm:$0xff]
      %v1420 = vld [vmem:[#allocation3 + $0x518] sm:$0xff]
      %v1421 = vld [vmem:[#allocation3 + $0x520] sm:$0xff]
      %v1422 = vld [vmem:[#allocation3 + $0x528] sm:$0xff]
      %v1423 = vld [vmem:[#allocation3 + $0x530] sm:$0xff]
      %v1424 = vld [vmem:[#allocation3 + $0x538] sm:$0xff]
      %v1425 = vld [vmem:[#allocation3 + $0x540] sm:$0xff]
      %v1426 = vld [vmem:[#allocation3 + $0x548] sm:$0xff]
      %v1427 = vld [vmem:[#allocation3 + $0x550] sm:$0xff]
      %v1428 = vld [vmem:[#allocation3 + $0x558] sm:$0xff]
      %v1429 = vld [vmem:[#allocation3 + $0x560] sm:$0xff]
      %v1430 = vld [vmem:[#allocation3 + $0x568] sm:$0xff]
      %v1431 = vld [vmem:[#allocation3 + $0x570] sm:$0xff]
      %v1432 = vld [vmem:[#allocation3 + $0x578] sm:$0xff]
      %v1433 = vld [vmem:[#allocation3 + $0x580] sm:$0xff]
      %v1434 = vld [vmem:[#allocation3 + $0x588] sm:$0xff]
      %v1435 = vld [vmem:[#allocation3 + $0x590] sm:$0xff]
      %v1436 = vld [vmem:[#allocation3 + $0x598] sm:$0xff]
      %v1437 = vld [vmem:[#allocation3 + $0x5a0] sm:$0xff]
      %v1438 = vld [vmem:[#allocation3 + $0x5a8] sm:$0xff]
      %v1439 = vld [vmem:[#allocation3 + $0x5b0] sm:$0xff]
      %v1440 = vld [vmem:[#allocation3 + $0x5b8] sm:$0xff]
      %v1441 = vld [vmem:[#allocation3 + $0x5c0] sm:$0xff]
      %v1442 = vld [vmem:[#allocation3 + $0x5c8] sm:$0xff]
      %v1443 = vld [vmem:[#allocation3 + $0x5d0] sm:$0xff]
      %v1444 = vld [vmem:[#allocation3 + $0x5d8] sm:$0xff]
      %v1445 = vld [vmem:[#allocation3 + $0x5e0] sm:$0xff]
      %v1446 = vld [vmem:[#allocation3 + $0x5e8] sm:$0xff]
      %v1447 = vld [vmem:[#allocation3 + $0x5f0] sm:$0xff]
      %v1448 = vld [vmem:[#allocation3 + $0x5f8] sm:$0xff]
      %v1449 = vld [vmem:[#allocation3 + $0x600] sm:$0xff]
      %v1450 = vld [vmem:[#allocation3 + $0x608] sm:$0xff]
      %v1451 = vld [vmem:[#allocation3 + $0x610] sm:$0xff]
      %v1452 = vld [vmem:[#allocation3 + $0x618] sm:$0xff]
      %v1453 = vld [vmem:[#allocation3 + $0x620] sm:$0xff]
      %v1454 = vld [vmem:[#allocation3 + $0x628] sm:$0xff]
      %v1455 = vld [vmem:[#allocation3 + $0x630] sm:$0xff]
      %v1456 = vld [vmem:[#allocation3 + $0x638] sm:$0xff]
      %v1457 = vld [vmem:[#allocation3 + $0x640] sm:$0xff]
      %v1458 = vld [vmem:[#allocation3 + $0x648] sm:$0xff]
      %v1459 = vld [vmem:[#allocation3 + $0x650] sm:$0xff]
      %v1460 = vld [vmem:[#allocation3 + $0x658] sm:$0xff]
      %v1461 = vld [vmem:[#allocation3 + $0x660] sm:$0xff]
      %v1462 = vld [vmem:[#allocation3 + $0x668] sm:$0xff]
      %v1463 = vld [vmem:[#allocation3 + $0x670] sm:$0xff]
      %v1464 = vld [vmem:[#allocation3 + $0x678] sm:$0xff]
      %v1465 = vld [vmem:[#allocation3 + $0x680] sm:$0xff]
      %v1466 = vld [vmem:[#allocation3 + $0x688] sm:$0xff]
      %v1467 = vld [vmem:[#allocation3 + $0x690] sm:$0xff]
      %v1468 = vld [vmem:[#allocation3 + $0x698] sm:$0xff]
      %v1469 = vld [vmem:[#allocation3 + $0x6a0] sm:$0xff]
      %v1470 = vld [vmem:[#allocation3 + $0x6a8] sm:$0xff]
      %v1471 = vld [vmem:[#allocation3 + $0x6b0] sm:$0xff]
      %v1472 = vld [vmem:[#allocation3 + $0x6b8] sm:$0xff]
      %v1473 = vld [vmem:[#allocation3 + $0x6c0] sm:$0xff]
      %v1474 = vld [vmem:[#allocation3 + $0x6c8] sm:$0xff]
      %v1475 = vld [vmem:[#allocation3 + $0x6d0] sm:$0xff]
      %v1476 = vld [vmem:[#allocation3 + $0x6d8] sm:$0xff]
      %v1477 = vld [vmem:[#allocation3 + $0x6e0] sm:$0xff]
      %v1478 = vld [vmem:[#allocation3 + $0x6e8] sm:$0xff]
      %v1479 = vld [vmem:[#allocation3 + $0x6f0] sm:$0xff]
      %v1480 = vld [vmem:[#allocation3 + $0x6f8] sm:$0xff]
      %v1481 = vld [vmem:[#allocation3 + $0x700] sm:$0xff]
      %v1482 = vld [vmem:[#allocation3 + $0x708] sm:$0xff]
      %v1483 = vld [vmem:[#allocation3 + $0x710] sm:$0xff]
      %v1484 = vld [vmem:[#allocation3 + $0x718] sm:$0xff]
      %v1485 = vld [vmem:[#allocation3 + $0x720] sm:$0xff]
      %v1486 = vld [vmem:[#allocation3 + $0x728] sm:$0xff]
      %v1487 = vld [vmem:[#allocation3 + $0x730] sm:$0xff]
      %v1488 = vld [vmem:[#allocation3 + $0x738] sm:$0xff]
      %v1489 = vld [vmem:[#allocation3 + $0x740] sm:$0xff]
      %v1490 = vld [vmem:[#allocation3 + $0x748] sm:$0xff]
      %v1491 = vld [vmem:[#allocation3 + $0x750] sm:$0xff]
      %v1492 = vld [vmem:[#allocation3 + $0x758] sm:$0xff]
      %v1493 = vld [vmem:[#allocation3 + $0x760] sm:$0xff]
      %v1494 = vld [vmem:[#allocation3 + $0x768] sm:$0xff]
      %v1495 = vld [vmem:[#allocation3 + $0x770] sm:$0xff]
      %v1496 = vld [vmem:[#allocation3 + $0x778] sm:$0xff]
      %v1497 = vld [vmem:[#allocation3 + $0x780] sm:$0xff]
      %v1498 = vld [vmem:[#allocation3 + $0x788] sm:$0xff]
      %v1499 = vld [vmem:[#allocation3 + $0x790] sm:$0xff]
      %v1500 = vld [vmem:[#allocation3 + $0x798] sm:$0xff]
      %v1501 = vld [vmem:[#allocation3 + $0x7a0] sm:$0xff]
      %v1502 = vld [vmem:[#allocation3 + $0x7a8] sm:$0xff]
      %v1503 = vld [vmem:[#allocation3 + $0x7b0] sm:$0xff]
      %v1504 = vld [vmem:[#allocation3 + $0x7b8] sm:$0xff]
      %v1505 = vld [vmem:[#allocation3 + $0x7c0] sm:$0xff]
      %v1506 = vld [vmem:[#allocation3 + $0x7c8] sm:$0xff]
      %v1507 = vld [vmem:[#allocation3 + $0x7d0] sm:$0xff]
      %v1508 = vld [vmem:[#allocation3 + $0x7d8] sm:$0xff]
      %v1509 = vld [vmem:[#allocation3 + $0x7e0] sm:$0xff]
      %v1510 = vld [vmem:[#allocation3 + $0x7e8] sm:$0xff]
      %v1511 = vld [vmem:[#allocation3 + $0x7f0] sm:$0xff]
      %v1512 = vld [vmem:[#allocation3 + $0x7f8] sm:$0xff]
      %v1513 = vld [vmem:[#allocation3 + $0x800] sm:$0xff]
      %v1514 = vld [vmem:[#allocation3 + $0x808] sm:$0xff]
      %v1515 = vld [vmem:[#allocation3 + $0x810] sm:$0xff]
      %v1516 = vld [vmem:[#allocation3 + $0x818] sm:$0xff]
      %v1517 = vld [vmem:[#allocation3 + $0x820] sm:$0xff]
      %v1518 = vld [vmem:[#allocation3 + $0x828] sm:$0xff]
      %v1519 = vld [vmem:[#allocation3 + $0x830] sm:$0xff]
      %v1520 = vld [vmem:[#allocation3 + $0x838] sm:$0xff]
      %v1521 = vld [vmem:[#allocation3 + $0x840] sm:$0xff]
      %v1522 = vld [vmem:[#allocation3 + $0x848] sm:$0xff]
      %v1523 = vld [vmem:[#allocation3 + $0x850] sm:$0xff]
      %v1524 = vld [vmem:[#allocation3 + $0x858] sm:$0xff]
      %v1525 = vld [vmem:[#allocation3 + $0x860] sm:$0xff]
      %v1526 = vld [vmem:[#allocation3 + $0x868] sm:$0xff]
      %v1527 = vld [vmem:[#allocation3 + $0x870] sm:$0xff]
      %v1528 = vld [vmem:[#allocation3 + $0x878] sm:$0xff]
      %v1529 = vld [vmem:[#allocation3 + $0x880] sm:$0xff]
      %v1530 = vld [vmem:[#allocation3 + $0x888] sm:$0xff]
      %v1531 = vld [vmem:[#allocation3 + $0x890] sm:$0xff]
      %v1532 = vld [vmem:[#allocation3 + $0x898] sm:$0xff]
      %v1533 = vld [vmem:[#allocation3 + $0x8a0] sm:$0xff]
      %v1534 = vld [vmem:[#allocation3 + $0x8a8] sm:$0xff]
      %v1535 = vld [vmem:[#allocation3 + $0x8b0] sm:$0xff]
      %v1536 = vld [vmem:[#allocation3 + $0x8b8] sm:$0xff]
      %v1537 = vld [vmem:[#allocation3 + $0x8c0] sm:$0xff]
      %v1538 = vld [vmem:[#allocation3 + $0x8c8] sm:$0xff]
      %v1539 = vld [vmem:[#allocation3 + $0x8d0] sm:$0xff]
      %v1540 = vld [vmem:[#allocation3 + $0x8d8] sm:$0xff]
      %v1541 = vld [vmem:[#allocation3 + $0x8e0] sm:$0xff]
      %v1542 = vld [vmem:[#allocation3 + $0x8e8] sm:$0xff]
      %v1543 = vld [vmem:[#allocation3 + $0x8f0] sm:$0xff]
      %v1544 = vld [vmem:[#allocation3 + $0x8f8] sm:$0xff]
      %v1545 = vld [vmem:[%s6] sm:$0xff]
      %v1546 = vld [vmem:[%s6 + $0x8] sm:$0xff]
      %v1547 = vld [vmem:[%s6 + $0x10] sm:$0xff]
      %v1548 = vld [vmem:[%s6 + $0x18] sm:$0xff]
      %v1549 = vld [vmem:[%s6 + $0x20] sm:$0xff]
      %v1550 = vld [vmem:[%s6 + $0x28] sm:$0xff]
      %v1551 = vld [vmem:[%s6 + $0x30] sm:$0xff]
      %v1552 = vld [vmem:[%s6 + $0x38] sm:$0xff]
      %v1553 = vld [vmem:[%s6 + $0x40] sm:$0xff]
      %v1554 = vld [vmem:[%s6 + $0x48] sm:$0xff]
      %v1555 = vld [vmem:[%s6 + $0x50] sm:$0xff]
      %v1556 = vld [vmem:[%s6 + $0x58] sm:$0xff]
      %v1557 = vld [vmem:[%s6 + $0x60] sm:$0xff]
      %v1558 = vld [vmem:[%s6 + $0x68] sm:$0xff]
      %v1559 = vld [vmem:[%s6 + $0x70] sm:$0xff]
      %v1560 = vld [vmem:[%s6 + $0x78] sm:$0xff]
      %v1561 = vld [vmem:[%s6 + $0x80] sm:$0xff]
      %v1562 = vld [vmem:[%s6 + $0x88] sm:$0xff]
      %v1563 = vld [vmem:[%s6 + $0x90] sm:$0xff]
      %v1564 = vld [vmem:[%s6 + $0x98] sm:$0xff]
      %v1565 = vld [vmem:[%s6 + $0xa0] sm:$0xff]
      %v1566 = vld [vmem:[%s6 + $0xa8] sm:$0xff]
      %v1567 = vld [vmem:[%s6 + $0xb0] sm:$0xff]
      %v1568 = vld [vmem:[%s6 + $0xb8] sm:$0xff]
      %v1569 = vld [vmem:[%s6 + $0xc0] sm:$0xff]
      %v1570 = vld [vmem:[%s6 + $0xc8] sm:$0xff]
      %v1571 = vld [vmem:[%s6 + $0xd0] sm:$0xff]
      %v1572 = vld [vmem:[%s6 + $0xd8] sm:$0xff]
      %v1573 = vld [vmem:[%s6 + $0xe0] sm:$0xff]
      %v1574 = vld [vmem:[%s6 + $0xe8] sm:$0xff]
      %v1575 = vld [vmem:[%s6 + $0xf0] sm:$0xff]
      %v1576 = vld [vmem:[%s6 + $0xf8] sm:$0xff]
      %v1577 = vld [vmem:[%s6 + $0x100] sm:$0xff]
      %v1578 = vld [vmem:[%s6 + $0x108] sm:$0xff]
      %v1579 = vld [vmem:[%s6 + $0x110] sm:$0xff]
      %v1580 = vld [vmem:[%s6 + $0x118] sm:$0xff]
      %v1581 = vld [vmem:[%s6 + $0x120] sm:$0xff]
      %v1582 = vld [vmem:[%s6 + $0x128] sm:$0xff]
      %v1583 = vld [vmem:[%s6 + $0x130] sm:$0xff]
      %v1584 = vld [vmem:[%s6 + $0x138] sm:$0xff]
      %v1585 = vld [vmem:[%s6 + $0x140] sm:$0xff]
      %v1586 = vld [vmem:[%s6 + $0x148] sm:$0xff]
      %v1587 = vld [vmem:[%s6 + $0x150] sm:$0xff]
      %v1588 = vld [vmem:[%s6 + $0x158] sm:$0xff]
      %v1589 = vld [vmem:[%s6 + $0x160] sm:$0xff]
      %v1590 = vld [vmem:[%s6 + $0x168] sm:$0xff]
      %v1591 = vld [vmem:[%s6 + $0x170] sm:$0xff]
      %v1592 = vld [vmem:[%s6 + $0x178] sm:$0xff]
      %v1593 = vld [vmem:[%s6 + $0x180] sm:$0xff]
      %v1594 = vld [vmem:[%s6 + $0x188] sm:$0xff]
      %v1595 = vld [vmem:[%s6 + $0x190] sm:$0xff]
      %v1596 = vld [vmem:[%s6 + $0x198] sm:$0xff]
      %v1597 = vld [vmem:[%s6 + $0x1a0] sm:$0xff]
      %v1598 = vld [vmem:[%s6 + $0x1a8] sm:$0xff]
      %v1599 = vld [vmem:[%s6 + $0x1b0] sm:$0xff]
      %v1600 = vld [vmem:[%s6 + $0x1b8] sm:$0xff]
      %v1601 = vld [vmem:[%s6 + $0x1c0] sm:$0xff]
      %v1602 = vld [vmem:[%s6 + $0x1c8] sm:$0xff]
      %v1603 = vld [vmem:[%s6 + $0x1d0] sm:$0xff]
      %v1604 = vld [vmem:[%s6 + $0x1d8] sm:$0xff]
      %v1605 = vld [vmem:[%s6 + $0x1e0] sm:$0xff]
      %v1606 = vld [vmem:[%s6 + $0x1e8] sm:$0xff]
      %v1607 = vld [vmem:[%s6 + $0x1f0] sm:$0xff]
      %v1608 = vld [vmem:[%s6 + $0x1f8] sm:$0xff]
      %v1609 = vld [vmem:[%s6 + $0x200] sm:$0xff]
      %v1610 = vld [vmem:[%s6 + $0x208] sm:$0xff]
      %v1611 = vld [vmem:[%s6 + $0x210] sm:$0xff]
      %v1612 = vld [vmem:[%s6 + $0x218] sm:$0xff]
      %v1613 = vld [vmem:[%s6 + $0x220] sm:$0xff]
      %v1614 = vld [vmem:[%s6 + $0x228] sm:$0xff]
      %v1615 = vld [vmem:[%s6 + $0x230] sm:$0xff]
      %v1616 = vld [vmem:[%s6 + $0x238] sm:$0xff]
      %v1617 = vld [vmem:[%s6 + $0x240] sm:$0xff]
      %v1618 = vld [vmem:[%s6 + $0x248] sm:$0xff]
      %v1619 = vld [vmem:[%s6 + $0x250] sm:$0xff]
      %v1620 = vld [vmem:[%s6 + $0x258] sm:$0xff]
      %v1621 = vld [vmem:[%s6 + $0x260] sm:$0xff]
      %v1622 = vld [vmem:[%s6 + $0x268] sm:$0xff]
      %v1623 = vld [vmem:[%s6 + $0x270] sm:$0xff]
      %v1624 = vld [vmem:[%s6 + $0x278] sm:$0xff]
      %v1625 = vld [vmem:[%s6 + $0x280] sm:$0xff]
      %v1626 = vld [vmem:[%s6 + $0x288] sm:$0xff]
      %v1627 = vld [vmem:[%s6 + $0x290] sm:$0xff]
      %v1628 = vld [vmem:[%s6 + $0x298] sm:$0xff]
      %v1629 = vld [vmem:[%s6 + $0x2a0] sm:$0xff]
      %v1630 = vld [vmem:[%s6 + $0x2a8] sm:$0xff]
      %v1631 = vld [vmem:[%s6 + $0x2b0] sm:$0xff]
      %v1632 = vld [vmem:[%s6 + $0x2b8] sm:$0xff]
      %v1633 = vld [vmem:[%s6 + $0x2c0] sm:$0xff]
      %v1634 = vld [vmem:[%s6 + $0x2c8] sm:$0xff]
      %v1635 = vld [vmem:[%s6 + $0x2d0] sm:$0xff]
      %v1636 = vld [vmem:[%s6 + $0x2d8] sm:$0xff]
      %v1637 = vld [vmem:[%s6 + $0x2e0] sm:$0xff]
      %v1638 = vld [vmem:[%s6 + $0x2e8] sm:$0xff]
      %v1639 = vld [vmem:[%s6 + $0x2f0] sm:$0xff]
      %v1640 = vld [vmem:[%s6 + $0x2f8] sm:$0xff]
      %v1641 = vld [vmem:[%s6 + $0x300] sm:$0xff]
      %v1642 = vld [vmem:[%s6 + $0x308] sm:$0xff]
      %v1643 = vld [vmem:[%s6 + $0x310] sm:$0xff]
      %v1644 = vld [vmem:[%s6 + $0x318] sm:$0xff]
      %v1645 = vld [vmem:[%s6 + $0x320] sm:$0xff]
      %v1646 = vld [vmem:[%s6 + $0x328] sm:$0xff]
      %v1647 = vld [vmem:[%s6 + $0x330] sm:$0xff]
      %v1648 = vld [vmem:[%s6 + $0x338] sm:$0xff]
      %v1649 = vld [vmem:[%s6 + $0x340] sm:$0xff]
      %v1650 = vld [vmem:[%s6 + $0x348] sm:$0xff]
      %v1651 = vld [vmem:[%s6 + $0x350] sm:$0xff]
      %v1652 = vld [vmem:[%s6 + $0x358] sm:$0xff]
      %v1653 = vld [vmem:[%s6 + $0x360] sm:$0xff]
      %v1654 = vld [vmem:[%s6 + $0x368] sm:$0xff]
      %v1655 = vld [vmem:[%s6 + $0x370] sm:$0xff]
      %v1656 = vld [vmem:[%s6 + $0x378] sm:$0xff]
      %v1657 = vld [vmem:[%s6 + $0x380] sm:$0xff]
      %v1658 = vld [vmem:[%s6 + $0x388] sm:$0xff]
      %v1659 = vld [vmem:[%s6 + $0x390] sm:$0xff]
      %v1660 = vld [vmem:[%s6 + $0x398] sm:$0xff]
      %v1661 = vld [vmem:[%s6 + $0x3a0] sm:$0xff]
      %v1662 = vld [vmem:[%s6 + $0x3a8] sm:$0xff]
      %v1663 = vld [vmem:[%s6 + $0x3b0] sm:$0xff]
      %v1664 = vld [vmem:[%s6 + $0x3b8] sm:$0xff]
      %v1665 = vld [vmem:[%s6 + $0x3c0] sm:$0xff]
      %v1666 = vld [vmem:[%s6 + $0x3c8] sm:$0xff]
      %v1667 = vld [vmem:[%s6 + $0x3d0] sm:$0xff]
      %v1668 = vld [vmem:[%s6 + $0x3d8] sm:$0xff]
      %v1669 = vld [vmem:[%s6 + $0x3e0] sm:$0xff]
      %v1670 = vld [vmem:[%s6 + $0x3e8] sm:$0xff]
      %v1671 = vld [vmem:[%s6 + $0x3f0] sm:$0xff]
      %v1672 = vld [vmem:[%s6 + $0x3f8] sm:$0xff]
      %v1673 = vld [vmem:[%s6 + $0x400] sm:$0xff]
      %v1674 = vld [vmem:[%s6 + $0x408] sm:$0xff]
      %v1675 = vld [vmem:[%s6 + $0x410] sm:$0xff]
      %v1676 = vld [vmem:[%s6 + $0x418] sm:$0xff]
      %v1677 = vld [vmem:[%s6 + $0x420] sm:$0xff]
      %v1678 = vld [vmem:[%s6 + $0x428] sm:$0xff]
      %v1679 = vld [vmem:[%s6 + $0x430] sm:$0xff]
      %v1680 = vld [vmem:[%s6 + $0x438] sm:$0xff]
      %v1681 = vld [vmem:[%s6 + $0x440] sm:$0xff]
      %v1682 = vld [vmem:[%s6 + $0x448] sm:$0xff]
      %v1683 = vld [vmem:[%s6 + $0x450] sm:$0xff]
      %v1684 = vld [vmem:[%s6 + $0x458] sm:$0xff]
      %v1685 = vld [vmem:[%s6 + $0x460] sm:$0xff]
      %v1686 = vld [vmem:[%s6 + $0x468] sm:$0xff]
      %v1687 = vld [vmem:[%s6 + $0x470] sm:$0xff]
      %v1688 = vld [vmem:[%s6 + $0x478] sm:$0xff]
      %v1689 = vld [vmem:[%s7] sm:$0x1]
      %v1691 = vlaneseq
      %v1692 = vshrl.u32 %v1691, 7
      %v1693 = vsub.s32 0, %v1692
      %v1694 = vrot.slane %v1689, %v1693
      %1696 = vmatprep.subr.mxu0 0.0
      %1697 = vmatpush1.msra.mxu0 %v1560
      %1698 = vmatprep.subr.mxu0 0.0
      %1699 = vmatpush1.msra.mxu0 %v1559
      %1700 = vmatprep.subr.mxu0 0.0
      %1701 = vmatpush1.msra.mxu0 %v1558
      %1702 = vmatprep.subr.mxu0 0.0
      %1703 = vmatpush1.msra.mxu0 %v1557
      %1704 = vmatprep.subr.mxu0 0.0
      %1705 = vmatpush1.msra.mxu0 %v1556
      %1706 = vmatprep.subr.mxu0 0.0
      %1707 = vmatpush1.msra.mxu0 %v1555
      %1708 = vmatprep.subr.mxu0 0.0
      %1709 = vmatpush1.msra.mxu0 %v1554
      %1710 = vmatprep.subr.mxu0 0.0
      %1711 = vmatpush1.msra.mxu0 %v1553
      %1712 = vmatprep.subr.mxu0 0.0
      %1713 = vmatpush1.msra.mxu0 %v1552
      %1714 = vmatprep.subr.mxu0 0.0
      %1715 = vmatpush1.msra.mxu0 %v1551
      %1716 = vmatprep.subr.mxu0 0.0
      %1717 = vmatpush1.msra.mxu0 %v1550
      %1718 = vmatprep.subr.mxu0 0.0
      %1719 = vmatpush1.msra.mxu0 %v1549
      %1720 = vmatprep.subr.mxu0 0.0
      %1721 = vmatpush1.msra.mxu0 %v1548
      %1722 = vmatprep.subr.mxu0 0.0
      %1723 = vmatpush1.msra.mxu0 %v1547
      %1724 = vmatprep.subr.mxu0 0.0
      %1725 = vmatpush1.msra.mxu0 %v1546
      %1726 = vmatprep.subr.mxu0 0.0
      %1727 = vmatpush1.msra.mxu0 %v1545
      %1728 = vmatprep.subr.mxu0 0.0
      %1729 = vmatpush2.msra.mxu0 %v1576
      %1730 = vmatprep.subr.mxu0 0.0
      %1731 = vmatpush2.msra.mxu0 %v1575
      %1732 = vmatprep.subr.mxu0 0.0
      %1733 = vmatpush2.msra.mxu0 %v1574
      %1734 = vmatprep.subr.mxu0 0.0
      %1735 = vmatpush2.msra.mxu0 %v1573
      %1736 = vmatprep.subr.mxu0 0.0
      %1737 = vmatpush2.msra.mxu0 %v1572
      %1738 = vmatprep.subr.mxu0 0.0
      %1739 = vmatpush2.msra.mxu0 %v1571
      %1740 = vmatprep.subr.mxu0 0.0
      %1741 = vmatpush2.msra.mxu0 %v1570
      %1742 = vmatprep.subr.mxu0 0.0
      %1743 = vmatpush2.msra.mxu0 %v1569
      %1744 = vmatprep.subr.mxu0 0.0
      %1745 = vmatpush2.msra.mxu0 %v1568
      %1746 = vmatprep.subr.mxu0 0.0
      %1747 = vmatpush2.msra.mxu0 %v1567
      %1748 = vmatprep.subr.mxu0 0.0
      %1749 = vmatpush2.msra.mxu0 %v1566
      %1750 = vmatprep.subr.mxu0 0.0
      %1751 = vmatpush2.msra.mxu0 %v1565
      %1752 = vmatprep.subr.mxu0 0.0
      %1753 = vmatpush2.msra.mxu0 %v1564
      %1754 = vmatprep.subr.mxu0 0.0
      %1755 = vmatpush2.msra.mxu0 %v1563
      %1756 = vmatprep.subr.mxu0 0.0
      %1757 = vmatpush2.msra.mxu0 %v1562
      %1758 = vmatprep.subr.mxu0 0.0
      %1759 = vmatpush2.msra.mxu0 %v1561
      %1760 = vmatprep.mubr.f32.mxu0 %v1258
      %1761 = vmatmul.mubr.f32.gmra.mxu0 %v1257
      %v1762 = vpop.f32.mrf.mxu0
      %v1763 = vadd.f32 %v1694, %v1762
      %v1764 = vpop.f32.mrf.mxu0
      %1765 = vmatprep.mubr.f32.mxu0 %v1267
      %1766 = vmatmul.mubr.f32.gmra.mxu0 %v1266
      %v1767 = vpop.f32.mrf.mxu0
      %v1768 = vadd.f32 %v1694, %v1767
      %v1769 = vpop.f32.mrf.mxu0
      %1770 = vmatprep.mubr.f32.mxu0 %v1276
      %1771 = vmatmul.mubr.f32.gmra.mxu0 %v1275
      %v1772 = vpop.f32.mrf.mxu0
      %v1773 = vadd.f32 %v1694, %v1772
      %v1774 = vpop.f32.mrf.mxu0
      %1775 = vmatprep.mubr.f32.mxu0 %v1285
      %1776 = vmatmul.mubr.f32.gmra.mxu0 %v1284
      %v1777 = vpop.f32.mrf.mxu0
      %v1778 = vadd.f32 %v1694, %v1777
      %v1779 = vpop.f32.mrf.mxu0
      %1780 = vmatprep.mubr.f32.mxu0 %v1294
      %1781 = vmatmul.mubr.f32.gmra.mxu0 %v1293
      %v1782 = vpop.f32.mrf.mxu0
      %v1783 = vadd.f32 %v1694, %v1782
      %v1784 = vpop.f32.mrf.mxu0
      %1785 = vmatprep.mubr.f32.mxu0 %v1303
      %1786 = vmatmul.mubr.f32.gmra.mxu0 %v1302
      %v1787 = vpop.f32.mrf.mxu0
      %v1788 = vadd.f32 %v1694, %v1787
      %v1789 = vpop.f32.mrf.mxu0
      %1790 = vmatprep.mubr.f32.mxu0 %v1312
      %1791 = vmatmul.mubr.f32.gmra.mxu0 %v1311
      %v1792 = vpop.f32.mrf.mxu0
      %v1793 = vadd.f32 %v1694, %v1792
      %v1794 = vpop.f32.mrf.mxu0
      %1795 = vmatprep.mubr.f32.mxu0 %v1321
      %1796 = vmatmul.mubr.f32.gmra.mxu0 %v1320
      %v1797 = vpop.f32.mrf.mxu0
      %v1798 = vadd.f32 %v1694, %v1797
      %v1799 = vpop.f32.mrf.mxu0
      %1800 = vmatprep.mubr.f32.mxu0 %v1330
      %1801 = vmatmul.mubr.f32.gmra.mxu0 %v1329
      %v1802 = vpop.f32.mrf.mxu0
      %v1803 = vadd.f32 %v1694, %v1802
      %v1804 = vpop.f32.mrf.mxu0
      %1805 = vmatprep.mubr.f32.mxu0 %v1339
      %1806 = vmatmul.mubr.f32.gmra.mxu0 %v1338
      %v1807 = vpop.f32.mrf.mxu0
      %v1808 = vadd.f32 %v1694, %v1807
      %v1809 = vpop.f32.mrf.mxu0
      %1810 = vmatprep.mubr.f32.mxu0 %v1348
      %1811 = vmatmul.mubr.f32.gmra.mxu0 %v1347
      %v1812 = vpop.f32.mrf.mxu0
      %v1813 = vadd.f32 %v1694, %v1812
      %v1814 = vpop.f32.mrf.mxu0
      %1815 = vmatprep.mubr.f32.mxu0 %v1357
      %1816 = vmatmul.mubr.f32.gmra.mxu0 %v1356
      %v1817 = vpop.f32.mrf.mxu0
      %v1818 = vadd.f32 %v1694, %v1817
      %v1819 = vpop.f32.mrf.mxu0
      %1820 = vmatprep.mubr.f32.mxu0 %v1366
      %1821 = vmatmul.mubr.f32.gmra.mxu0 %v1365
      %v1822 = vpop.f32.mrf.mxu0
      %v1823 = vadd.f32 %v1694, %v1822
      %v1824 = vpop.f32.mrf.mxu0
      %1825 = vmatprep.mubr.f32.mxu0 %v1375
      %1826 = vmatmul.mubr.f32.gmra.mxu0 %v1374
      %v1827 = vpop.f32.mrf.mxu0
      %v1828 = vadd.f32 %v1694, %v1827
      %v1829 = vpop.f32.mrf.mxu0
      %1830 = vmatprep.mubr.f32.mxu0 %v1384
      %1831 = vmatmul.mubr.f32.gmra.mxu0 %v1383
      %v1832 = vpop.f32.mrf.mxu0
      %v1833 = vadd.f32 %v1694, %v1832
      %v1834 = vpop.f32.mrf.mxu0
      %1835 = vmatprep.mubr.f32.mxu0 %v1393
      %1836 = vmatmul.mubr.f32.gmra.mxu0 %v1392
      %v1837 = vpop.f32.mrf.mxu0
      %v1838 = vadd.f32 %v1694, %v1837
      %v1839 = vpop.f32.mrf.mxu0
      %1840 = vmatprep.mubr.f32.mxu0 %v1402
      %1841 = vmatmul.mubr.f32.gmra.mxu0 %v1401
      %v1842 = vpop.f32.mrf.mxu0
      %v1843 = vadd.f32 %v1694, %v1842
      %v1844 = vpop.f32.mrf.mxu0
      %1845 = vmatprep.mubr.f32.mxu0 %v1411
      %1846 = vmatmul.mubr.f32.gmra.mxu0 %v1410
      %v1847 = vpop.f32.mrf.mxu0
      %v1848 = vadd.f32 %v1694, %v1847
      %v1849 = vpop.f32.mrf.mxu0
      %1850 = vmatprep.mubr.f32.mxu0 %v1420
      %1851 = vmatmul.mubr.f32.gmra.mxu0 %v1419
      %v1852 = vpop.f32.mrf.mxu0
      %v1853 = vadd.f32 %v1694, %v1852
      %v1854 = vpop.f32.mrf.mxu0
      %1855 = vmatprep.mubr.f32.mxu0 %v1429
      %1856 = vmatmul.mubr.f32.gmra.mxu0 %v1428
      %v1857 = vpop.f32.mrf.mxu0
      %v1858 = vadd.f32 %v1694, %v1857
      %v1859 = vpop.f32.mrf.mxu0
      %1860 = vmatprep.mubr.f32.mxu0 %v1438
      %1861 = vmatmul.mubr.f32.gmra.mxu0 %v1437
      %v1862 = vpop.f32.mrf.mxu0
      %v1863 = vadd.f32 %v1694, %v1862
      %v1864 = vpop.f32.mrf.mxu0
      %1865 = vmatprep.mubr.f32.mxu0 %v1447
      %1866 = vmatmul.mubr.f32.gmra.mxu0 %v1446
      %v1867 = vpop.f32.mrf.mxu0
      %v1868 = vadd.f32 %v1694, %v1867
      %v1869 = vpop.f32.mrf.mxu0
      %1870 = vmatprep.mubr.f32.mxu0 %v1456
      %1871 = vmatmul.mubr.f32.gmra.mxu0 %v1455
      %v1872 = vpop.f32.mrf.mxu0
      %v1873 = vadd.f32 %v1694, %v1872
      %v1874 = vpop.f32.mrf.mxu0
      %1875 = vmatprep.mubr.f32.mxu0 %v1465
      %1876 = vmatmul.mubr.f32.gmra.mxu0 %v1464
      %v1877 = vpop.f32.mrf.mxu0
      %v1878 = vadd.f32 %v1694, %v1877
      %v1879 = vpop.f32.mrf.mxu0
      %1880 = vmatprep.mubr.f32.mxu0 %v1474
      %1881 = vmatmul.mubr.f32.gmra.mxu0 %v1473
      %v1882 = vpop.f32.mrf.mxu0
      %v1883 = vadd.f32 %v1694, %v1882
      %v1884 = vpop.f32.mrf.mxu0
      %1885 = vmatprep.mubr.f32.mxu0 %v1483
      %1886 = vmatmul.mubr.f32.gmra.mxu0 %v1482
      %v1887 = vpop.f32.mrf.mxu0
      %v1888 = vadd.f32 %v1694, %v1887
      %v1889 = vpop.f32.mrf.mxu0
      %1890 = vmatprep.mubr.f32.mxu0 %v1492
      %1891 = vmatmul.mubr.f32.gmra.mxu0 %v1491
      %v1892 = vpop.f32.mrf.mxu0
      %v1893 = vadd.f32 %v1694, %v1892
      %v1894 = vpop.f32.mrf.mxu0
      %1895 = vmatprep.mubr.f32.mxu0 %v1501
      %1896 = vmatmul.mubr.f32.gmra.mxu0 %v1500
      %v1897 = vpop.f32.mrf.mxu0
      %v1898 = vadd.f32 %v1694, %v1897
      %v1899 = vpop.f32.mrf.mxu0
      %1900 = vmatprep.mubr.f32.mxu0 %v1510
      %1901 = vmatmul.mubr.f32.gmra.mxu0 %v1509
      %v1902 = vpop.f32.mrf.mxu0
      %v1903 = vadd.f32 %v1694, %v1902
      %v1904 = vpop.f32.mrf.mxu0
      %1905 = vmatprep.mubr.f32.mxu0 %v1519
      %1906 = vmatmul.mubr.f32.gmra.mxu0 %v1518
      %v1907 = vpop.f32.mrf.mxu0
      %v1908 = vadd.f32 %v1694, %v1907
      %v1909 = vpop.f32.mrf.mxu0
      %1910 = vmatprep.mubr.f32.mxu0 %v1528
      %1911 = vmatmul.mubr.f32.gmra.mxu0 %v1527
      %v1912 = vpop.f32.mrf.mxu0
      %v1913 = vadd.f32 %v1694, %v1912
      %v1914 = vpop.f32.mrf.mxu0
      %1915 = vmatprep.mubr.f32.mxu0 %v1537
      %1916 = vmatmul.mubr.f32.gmra.mxu0 %v1536
      %v1917 = vpop.f32.mrf.mxu0
      %v1918 = vadd.f32 %v1694, %v1917
      %v1919 = vpop.f32.mrf.mxu0
      %1920 = vdwg.mxu0
      %1921 = vmatprep.subr.mxu0 0.0
      %1922 = vmatpush1.msra.mxu0 %v1592
      %1923 = vmatprep.subr.mxu0 0.0
      %1924 = vmatpush1.msra.mxu0 %v1591
      %1925 = vmatprep.subr.mxu0 0.0
      %1926 = vmatpush1.msra.mxu0 %v1590
      %1927 = vmatprep.subr.mxu0 0.0
      %1928 = vmatpush1.msra.mxu0 %v1589
      %1929 = vmatprep.subr.mxu0 0.0
      %1930 = vmatpush1.msra.mxu0 %v1588
      %1931 = vmatprep.subr.mxu0 0.0
      %1932 = vmatpush1.msra.mxu0 %v1587
      %1933 = vmatprep.subr.mxu0 0.0
      %1934 = vmatpush1.msra.mxu0 %v1586
      %1935 = vmatprep.subr.mxu0 0.0
      %1936 = vmatpush1.msra.mxu0 %v1585
      %1937 = vmatprep.subr.mxu0 0.0
      %1938 = vmatpush1.msra.mxu0 %v1584
      %1939 = vmatprep.subr.mxu0 0.0
      %1940 = vmatpush1.msra.mxu0 %v1583
      %1941 = vmatprep.subr.mxu0 0.0
      %1942 = vmatpush1.msra.mxu0 %v1582
      %1943 = vmatprep.subr.mxu0 0.0
      %1944 = vmatpush1.msra.mxu0 %v1581
      %1945 = vmatprep.subr.mxu0 0.0
      %1946 = vmatpush1.msra.mxu0 %v1580
      %1947 = vmatprep.subr.mxu0 0.0
      %1948 = vmatpush1.msra.mxu0 %v1579
      %1949 = vmatprep.subr.mxu0 0.0
      %1950 = vmatpush1.msra.mxu0 %v1578
      %1951 = vmatprep.subr.mxu0 0.0
      %1952 = vmatpush1.msra.mxu0 %v1577
      %1953 = vmatprep.subr.mxu0 0.0
      %1954 = vmatpush2.msra.mxu0 %v1608
      %1955 = vmatprep.subr.mxu0 0.0
      %1956 = vmatpush2.msra.mxu0 %v1607
      %1957 = vmatprep.subr.mxu0 0.0
      %1958 = vmatpush2.msra.mxu0 %v1606
      %1959 = vmatprep.subr.mxu0 0.0
      %1960 = vmatpush2.msra.mxu0 %v1605
      %1961 = vmatprep.subr.mxu0 0.0
      %1962 = vmatpush2.msra.mxu0 %v1604
      %1963 = vmatprep.subr.mxu0 0.0
      %1964 = vmatpush2.msra.mxu0 %v1603
      %1965 = vmatprep.subr.mxu0 0.0
      %1966 = vmatpush2.msra.mxu0 %v1602
      %1967 = vmatprep.subr.mxu0 0.0
      %1968 = vmatpush2.msra.mxu0 %v1601
      %1969 = vmatprep.subr.mxu0 0.0
      %1970 = vmatpush2.msra.mxu0 %v1600
      %1971 = vmatprep.subr.mxu0 0.0
      %1972 = vmatpush2.msra.mxu0 %v1599
      %1973 = vmatprep.subr.mxu0 0.0
      %1974 = vmatpush2.msra.mxu0 %v1598
      %1975 = vmatprep.subr.mxu0 0.0
      %1976 = vmatpush2.msra.mxu0 %v1597
      %1977 = vmatprep.subr.mxu0 0.0
      %1978 = vmatpush2.msra.mxu0 %v1596
      %1979 = vmatprep.subr.mxu0 0.0
      %1980 = vmatpush2.msra.mxu0 %v1595
      %1981 = vmatprep.subr.mxu0 0.0
      %1982 = vmatpush2.msra.mxu0 %v1594
      %1983 = vmatprep.subr.mxu0 0.0
      %1984 = vmatpush2.msra.mxu0 %v1593
      %1985 = vmatprep.mubr.f32.mxu0 %v1260
      %1986 = vmatmul.mubr.f32.gmra.mxu0 %v1259
      %v1987 = vpop.f32.mrf.mxu0
      %v1988 = vadd.f32 %v1763, %v1987
      %v1989 = vpop.f32.mrf.mxu0
      %1990 = vmatprep.mubr.f32.mxu0 %v1269
      %1991 = vmatmul.mubr.f32.gmra.mxu0 %v1268
      %v1992 = vpop.f32.mrf.mxu0
      %v1993 = vadd.f32 %v1768, %v1992
      %v1994 = vpop.f32.mrf.mxu0
      %1995 = vmatprep.mubr.f32.mxu0 %v1278
      %1996 = vmatmul.mubr.f32.gmra.mxu0 %v1277
      %v1997 = vpop.f32.mrf.mxu0
      %v1998 = vadd.f32 %v1773, %v1997
      %v1999 = vpop.f32.mrf.mxu0
      %2000 = vmatprep.mubr.f32.mxu0 %v1287
      %2001 = vmatmul.mubr.f32.gmra.mxu0 %v1286
      %v2002 = vpop.f32.mrf.mxu0
      %v2003 = vadd.f32 %v1778, %v2002
      %v2004 = vpop.f32.mrf.mxu0
      %2005 = vmatprep.mubr.f32.mxu0 %v1296
      %2006 = vmatmul.mubr.f32.gmra.mxu0 %v1295
      %v2007 = vpop.f32.mrf.mxu0
      %v2008 = vadd.f32 %v1783, %v2007
      %v2009 = vpop.f32.mrf.mxu0
      %2010 = vmatprep.mubr.f32.mxu0 %v1305
      %2011 = vmatmul.mubr.f32.gmra.mxu0 %v1304
      %v2012 = vpop.f32.mrf.mxu0
      %v2013 = vadd.f32 %v1788, %v2012
      %v2014 = vpop.f32.mrf.mxu0
      %2015 = vmatprep.mubr.f32.mxu0 %v1314
      %2016 = vmatmul.mubr.f32.gmra.mxu0 %v1313
      %v2017 = vpop.f32.mrf.mxu0
      %v2018 = vadd.f32 %v1793, %v2017
      %v2019 = vpop.f32.mrf.mxu0
      %2020 = vmatprep.mubr.f32.mxu0 %v1323
      %2021 = vmatmul.mubr.f32.gmra.mxu0 %v1322
      %v2022 = vpop.f32.mrf.mxu0
      %v2023 = vadd.f32 %v1798, %v2022
      %v2024 = vpop.f32.mrf.mxu0
      %2025 = vmatprep.mubr.f32.mxu0 %v1332
      %2026 = vmatmul.mubr.f32.gmra.mxu0 %v1331
      %v2027 = vpop.f32.mrf.mxu0
      %v2028 = vadd.f32 %v1803, %v2027
      %v2029 = vpop.f32.mrf.mxu0
      %2030 = vmatprep.mubr.f32.mxu0 %v1341
      %2031 = vmatmul.mubr.f32.gmra.mxu0 %v1340
      %v2032 = vpop.f32.mrf.mxu0
      %v2033 = vadd.f32 %v1808, %v2032
      %v2034 = vpop.f32.mrf.mxu0
      %2035 = vmatprep.mubr.f32.mxu0 %v1350
      %2036 = vmatmul.mubr.f32.gmra.mxu0 %v1349
      %v2037 = vpop.f32.mrf.mxu0
      %v2038 = vadd.f32 %v1813, %v2037
      %v2039 = vpop.f32.mrf.mxu0
      %2040 = vmatprep.mubr.f32.mxu0 %v1359
      %2041 = vmatmul.mubr.f32.gmra.mxu0 %v1358
      %v2042 = vpop.f32.mrf.mxu0
      %v2043 = vadd.f32 %v1818, %v2042
      %v2044 = vpop.f32.mrf.mxu0
      %2045 = vmatprep.mubr.f32.mxu0 %v1368
      %2046 = vmatmul.mubr.f32.gmra.mxu0 %v1367
      %v2047 = vpop.f32.mrf.mxu0
      %v2048 = vadd.f32 %v1823, %v2047
      %v2049 = vpop.f32.mrf.mxu0
      %2050 = vmatprep.mubr.f32.mxu0 %v1377
      %2051 = vmatmul.mubr.f32.gmra.mxu0 %v1376
      %v2052 = vpop.f32.mrf.mxu0
      %v2053 = vadd.f32 %v1828, %v2052
      %v2054 = vpop.f32.mrf.mxu0
      %2055 = vmatprep.mubr.f32.mxu0 %v1386
      %2056 = vmatmul.mubr.f32.gmra.mxu0 %v1385
      %v2057 = vpop.f32.mrf.mxu0
      %v2058 = vadd.f32 %v1833, %v2057
      %v2059 = vpop.f32.mrf.mxu0
      %2060 = vmatprep.mubr.f32.mxu0 %v1395
      %2061 = vmatmul.mubr.f32.gmra.mxu0 %v1394
      %v2062 = vpop.f32.mrf.mxu0
      %v2063 = vadd.f32 %v1838, %v2062
      %v2064 = vpop.f32.mrf.mxu0
      %2065 = vmatprep.mubr.f32.mxu0 %v1404
      %2066 = vmatmul.mubr.f32.gmra.mxu0 %v1403
      %v2067 = vpop.f32.mrf.mxu0
      %v2068 = vadd.f32 %v1843, %v2067
      %v2069 = vpop.f32.mrf.mxu0
      %2070 = vmatprep.mubr.f32.mxu0 %v1413
      %2071 = vmatmul.mubr.f32.gmra.mxu0 %v1412
      %v2072 = vpop.f32.mrf.mxu0
      %v2073 = vadd.f32 %v1848, %v2072
      %v2074 = vpop.f32.mrf.mxu0
      %2075 = vmatprep.mubr.f32.mxu0 %v1422
      %2076 = vmatmul.mubr.f32.gmra.mxu0 %v1421
      %v2077 = vpop.f32.mrf.mxu0
      %v2078 = vadd.f32 %v1853, %v2077
      %v2079 = vpop.f32.mrf.mxu0
      %2080 = vmatprep.mubr.f32.mxu0 %v1431
      %2081 = vmatmul.mubr.f32.gmra.mxu0 %v1430
      %v2082 = vpop.f32.mrf.mxu0
      %v2083 = vadd.f32 %v1858, %v2082
      %v2084 = vpop.f32.mrf.mxu0
      %2085 = vmatprep.mubr.f32.mxu0 %v1440
      %2086 = vmatmul.mubr.f32.gmra.mxu0 %v1439
      %v2087 = vpop.f32.mrf.mxu0
      %v2088 = vadd.f32 %v1863, %v2087
      %v2089 = vpop.f32.mrf.mxu0
      %2090 = vmatprep.mubr.f32.mxu0 %v1449
      %2091 = vmatmul.mubr.f32.gmra.mxu0 %v1448
      %v2092 = vpop.f32.mrf.mxu0
      %v2093 = vadd.f32 %v1868, %v2092
      %v2094 = vpop.f32.mrf.mxu0
      %2095 = vmatprep.mubr.f32.mxu0 %v1458
      %2096 = vmatmul.mubr.f32.gmra.mxu0 %v1457
      %v2097 = vpop.f32.mrf.mxu0
      %v2098 = vadd.f32 %v1873, %v2097
      %v2099 = vpop.f32.mrf.mxu0
      %2100 = vmatprep.mubr.f32.mxu0 %v1467
      %2101 = vmatmul.mubr.f32.gmra.mxu0 %v1466
      %v2102 = vpop.f32.mrf.mxu0
      %v2103 = vadd.f32 %v1878, %v2102
      %v2104 = vpop.f32.mrf.mxu0
      %2105 = vmatprep.mubr.f32.mxu0 %v1476
      %2106 = vmatmul.mubr.f32.gmra.mxu0 %v1475
      %v2107 = vpop.f32.mrf.mxu0
      %v2108 = vadd.f32 %v1883, %v2107
      %v2109 = vpop.f32.mrf.mxu0
      %2110 = vmatprep.mubr.f32.mxu0 %v1485
      %2111 = vmatmul.mubr.f32.gmra.mxu0 %v1484
      %v2112 = vpop.f32.mrf.mxu0
      %v2113 = vadd.f32 %v1888, %v2112
      %v2114 = vpop.f32.mrf.mxu0
      %2115 = vmatprep.mubr.f32.mxu0 %v1494
      %2116 = vmatmul.mubr.f32.gmra.mxu0 %v1493
      %v2117 = vpop.f32.mrf.mxu0
      %v2118 = vadd.f32 %v1893, %v2117
      %v2119 = vpop.f32.mrf.mxu0
      %2120 = vmatprep.mubr.f32.mxu0 %v1503
      %2121 = vmatmul.mubr.f32.gmra.mxu0 %v1502
      %v2122 = vpop.f32.mrf.mxu0
      %v2123 = vadd.f32 %v1898, %v2122
      %v2124 = vpop.f32.mrf.mxu0
      %2125 = vmatprep.mubr.f32.mxu0 %v1512
      %2126 = vmatmul.mubr.f32.gmra.mxu0 %v1511
      %v2127 = vpop.f32.mrf.mxu0
      %v2128 = vadd.f32 %v1903, %v2127
      %v2129 = vpop.f32.mrf.mxu0
      %2130 = vmatprep.mubr.f32.mxu0 %v1521
      %2131 = vmatmul.mubr.f32.gmra.mxu0 %v1520
      %v2132 = vpop.f32.mrf.mxu0
      %v2133 = vadd.f32 %v1908, %v2132
      %v2134 = vpop.f32.mrf.mxu0
      %2135 = vmatprep.mubr.f32.mxu0 %v1530
      %2136 = vmatmul.mubr.f32.gmra.mxu0 %v1529
      %v2137 = vpop.f32.mrf.mxu0
      %v2138 = vadd.f32 %v1913, %v2137
      %v2139 = vpop.f32.mrf.mxu0
      %2140 = vmatprep.mubr.f32.mxu0 %v1539
      %2141 = vmatmul.mubr.f32.gmra.mxu0 %v1538
      %v2142 = vpop.f32.mrf.mxu0
      %v2143 = vadd.f32 %v1918, %v2142
      %v2144 = vpop.f32.mrf.mxu0
      %2145 = vdwg.mxu0
      %2146 = vmatprep.subr.mxu0 0.0
      %2147 = vmatpush1.msra.mxu0 %v1624
      %2148 = vmatprep.subr.mxu0 0.0
      %2149 = vmatpush1.msra.mxu0 %v1623
      %2150 = vmatprep.subr.mxu0 0.0
      %2151 = vmatpush1.msra.mxu0 %v1622
      %2152 = vmatprep.subr.mxu0 0.0
      %2153 = vmatpush1.msra.mxu0 %v1621
      %2154 = vmatprep.subr.mxu0 0.0
      %2155 = vmatpush1.msra.mxu0 %v1620
      %2156 = vmatprep.subr.mxu0 0.0
      %2157 = vmatpush1.msra.mxu0 %v1619
      %2158 = vmatprep.subr.mxu0 0.0
      %2159 = vmatpush1.msra.mxu0 %v1618
      %2160 = vmatprep.subr.mxu0 0.0
      %2161 = vmatpush1.msra.mxu0 %v1617
      %2162 = vmatprep.subr.mxu0 0.0
      %2163 = vmatpush1.msra.mxu0 %v1616
      %2164 = vmatprep.subr.mxu0 0.0
      %2165 = vmatpush1.msra.mxu0 %v1615
      %2166 = vmatprep.subr.mxu0 0.0
      %2167 = vmatpush1.msra.mxu0 %v1614
      %2168 = vmatprep.subr.mxu0 0.0
      %2169 = vmatpush1.msra.mxu0 %v1613
      %2170 = vmatprep.subr.mxu0 0.0
      %2171 = vmatpush1.msra.mxu0 %v1612
      %2172 = vmatprep.subr.mxu0 0.0
      %2173 = vmatpush1.msra.mxu0 %v1611
      %2174 = vmatprep.subr.mxu0 0.0
      %2175 = vmatpush1.msra.mxu0 %v1610
      %2176 = vmatprep.subr.mxu0 0.0
      %2177 = vmatpush1.msra.mxu0 %v1609
      %2178 = vmatprep.subr.mxu0 0.0
      %2179 = vmatpush2.msra.mxu0 %v1640
      %2180 = vmatprep.subr.mxu0 0.0
      %2181 = vmatpush2.msra.mxu0 %v1639
      %2182 = vmatprep.subr.mxu0 0.0
      %2183 = vmatpush2.msra.mxu0 %v1638
      %2184 = vmatprep.subr.mxu0 0.0
      %2185 = vmatpush2.msra.mxu0 %v1637
      %2186 = vmatprep.subr.mxu0 0.0
      %2187 = vmatpush2.msra.mxu0 %v1636
      %2188 = vmatprep.subr.mxu0 0.0
      %2189 = vmatpush2.msra.mxu0 %v1635
      %2190 = vmatprep.subr.mxu0 0.0
      %2191 = vmatpush2.msra.mxu0 %v1634
      %2192 = vmatprep.subr.mxu0 0.0
      %2193 = vmatpush2.msra.mxu0 %v1633
      %2194 = vmatprep.subr.mxu0 0.0
      %2195 = vmatpush2.msra.mxu0 %v1632
      %2196 = vmatprep.subr.mxu0 0.0
      %2197 = vmatpush2.msra.mxu0 %v1631
      %2198 = vmatprep.subr.mxu0 0.0
      %2199 = vmatpush2.msra.mxu0 %v1630
      %2200 = vmatprep.subr.mxu0 0.0
      %2201 = vmatpush2.msra.mxu0 %v1629
      %2202 = vmatprep.subr.mxu0 0.0
      %2203 = vmatpush2.msra.mxu0 %v1628
      %2204 = vmatprep.subr.mxu0 0.0
      %2205 = vmatpush2.msra.mxu0 %v1627
      %2206 = vmatprep.subr.mxu0 0.0
      %2207 = vmatpush2.msra.mxu0 %v1626
      %2208 = vmatprep.subr.mxu0 0.0
      %2209 = vmatpush2.msra.mxu0 %v1625
      %2210 = vmatprep.mubr.f32.mxu0 %v1262
      %2211 = vmatmul.mubr.f32.gmra.mxu0 %v1261
      %v2212 = vpop.f32.mrf.mxu0
      %v2213 = vadd.f32 %v1988, %v2212
      %v2214 = vpop.f32.mrf.mxu0
      %2215 = vmatprep.mubr.f32.mxu0 %v1271
      %2216 = vmatmul.mubr.f32.gmra.mxu0 %v1270
      %v2217 = vpop.f32.mrf.mxu0
      %v2218 = vadd.f32 %v1993, %v2217
      %v2219 = vpop.f32.mrf.mxu0
      %2220 = vmatprep.mubr.f32.mxu0 %v1280
      %2221 = vmatmul.mubr.f32.gmra.mxu0 %v1279
      %v2222 = vpop.f32.mrf.mxu0
      %v2223 = vadd.f32 %v1998, %v2222
      %v2224 = vpop.f32.mrf.mxu0
      %2225 = vmatprep.mubr.f32.mxu0 %v1289
      %2226 = vmatmul.mubr.f32.gmra.mxu0 %v1288
      %v2227 = vpop.f32.mrf.mxu0
      %v2228 = vadd.f32 %v2003, %v2227
      %v2229 = vpop.f32.mrf.mxu0
      %2230 = vmatprep.mubr.f32.mxu0 %v1298
      %2231 = vmatmul.mubr.f32.gmra.mxu0 %v1297
      %v2232 = vpop.f32.mrf.mxu0
      %v2233 = vadd.f32 %v2008, %v2232
      %v2234 = vpop.f32.mrf.mxu0
      %2235 = vmatprep.mubr.f32.mxu0 %v1307
      %2236 = vmatmul.mubr.f32.gmra.mxu0 %v1306
      %v2237 = vpop.f32.mrf.mxu0
      %v2238 = vadd.f32 %v2013, %v2237
      %v2239 = vpop.f32.mrf.mxu0
      %2240 = vmatprep.mubr.f32.mxu0 %v1316
      %2241 = vmatmul.mubr.f32.gmra.mxu0 %v1315
      %v2242 = vpop.f32.mrf.mxu0
      %v2243 = vadd.f32 %v2018, %v2242
      %v2244 = vpop.f32.mrf.mxu0
      %2245 = vmatprep.mubr.f32.mxu0 %v1325
      %2246 = vmatmul.mubr.f32.gmra.mxu0 %v1324
      %v2247 = vpop.f32.mrf.mxu0
      %v2248 = vadd.f32 %v2023, %v2247
      %v2249 = vpop.f32.mrf.mxu0
      %2250 = vmatprep.mubr.f32.mxu0 %v1334
      %2251 = vmatmul.mubr.f32.gmra.mxu0 %v1333
      %v2252 = vpop.f32.mrf.mxu0
      %v2253 = vadd.f32 %v2028, %v2252
      %v2254 = vpop.f32.mrf.mxu0
      %2255 = vmatprep.mubr.f32.mxu0 %v1343
      %2256 = vmatmul.mubr.f32.gmra.mxu0 %v1342
      %v2257 = vpop.f32.mrf.mxu0
      %v2258 = vadd.f32 %v2033, %v2257
      %v2259 = vpop.f32.mrf.mxu0
      %2260 = vmatprep.mubr.f32.mxu0 %v1352
      %2261 = vmatmul.mubr.f32.gmra.mxu0 %v1351
      %v2262 = vpop.f32.mrf.mxu0
      %v2263 = vadd.f32 %v2038, %v2262
      %v2264 = vpop.f32.mrf.mxu0
      %2265 = vmatprep.mubr.f32.mxu0 %v1361
      %2266 = vmatmul.mubr.f32.gmra.mxu0 %v1360
      %v2267 = vpop.f32.mrf.mxu0
      %v2268 = vadd.f32 %v2043, %v2267
      %v2269 = vpop.f32.mrf.mxu0
      %2270 = vmatprep.mubr.f32.mxu0 %v1370
      %2271 = vmatmul.mubr.f32.gmra.mxu0 %v1369
      %v2272 = vpop.f32.mrf.mxu0
      %v2273 = vadd.f32 %v2048, %v2272
      %v2274 = vpop.f32.mrf.mxu0
      %2275 = vmatprep.mubr.f32.mxu0 %v1379
      %2276 = vmatmul.mubr.f32.gmra.mxu0 %v1378
      %v2277 = vpop.f32.mrf.mxu0
      %v2278 = vadd.f32 %v2053, %v2277
      %v2279 = vpop.f32.mrf.mxu0
      %2280 = vmatprep.mubr.f32.mxu0 %v1388
      %2281 = vmatmul.mubr.f32.gmra.mxu0 %v1387
      %v2282 = vpop.f32.mrf.mxu0
      %v2283 = vadd.f32 %v2058, %v2282
      %v2284 = vpop.f32.mrf.mxu0
      %2285 = vmatprep.mubr.f32.mxu0 %v1397
      %2286 = vmatmul.mubr.f32.gmra.mxu0 %v1396
      %v2287 = vpop.f32.mrf.mxu0
      %v2288 = vadd.f32 %v2063, %v2287
      %v2289 = vpop.f32.mrf.mxu0
      %2290 = vmatprep.mubr.f32.mxu0 %v1406
      %2291 = vmatmul.mubr.f32.gmra.mxu0 %v1405
      %v2292 = vpop.f32.mrf.mxu0
      %v2293 = vadd.f32 %v2068, %v2292
      %v2294 = vpop.f32.mrf.mxu0
      %2295 = vmatprep.mubr.f32.mxu0 %v1415
      %2296 = vmatmul.mubr.f32.gmra.mxu0 %v1414
      %v2297 = vpop.f32.mrf.mxu0
      %v2298 = vadd.f32 %v2073, %v2297
      %v2299 = vpop.f32.mrf.mxu0
      %2300 = vmatprep.mubr.f32.mxu0 %v1424
      %2301 = vmatmul.mubr.f32.gmra.mxu0 %v1423
      %v2302 = vpop.f32.mrf.mxu0
      %v2303 = vadd.f32 %v2078, %v2302
      %v2304 = vpop.f32.mrf.mxu0
      %2305 = vmatprep.mubr.f32.mxu0 %v1433
      %2306 = vmatmul.mubr.f32.gmra.mxu0 %v1432
      %v2307 = vpop.f32.mrf.mxu0
      %v2308 = vadd.f32 %v2083, %v2307
      %v2309 = vpop.f32.mrf.mxu0
      %2310 = vmatprep.mubr.f32.mxu0 %v1442
      %2311 = vmatmul.mubr.f32.gmra.mxu0 %v1441
      %v2312 = vpop.f32.mrf.mxu0
      %v2313 = vadd.f32 %v2088, %v2312
      %v2314 = vpop.f32.mrf.mxu0
      %2315 = vmatprep.mubr.f32.mxu0 %v1451
      %2316 = vmatmul.mubr.f32.gmra.mxu0 %v1450
      %v2317 = vpop.f32.mrf.mxu0
      %v2318 = vadd.f32 %v2093, %v2317
      %v2319 = vpop.f32.mrf.mxu0
      %2320 = vmatprep.mubr.f32.mxu0 %v1460
      %2321 = vmatmul.mubr.f32.gmra.mxu0 %v1459
      %v2322 = vpop.f32.mrf.mxu0
      %v2323 = vadd.f32 %v2098, %v2322
      %v2324 = vpop.f32.mrf.mxu0
      %2325 = vmatprep.mubr.f32.mxu0 %v1469
      %2326 = vmatmul.mubr.f32.gmra.mxu0 %v1468
      %v2327 = vpop.f32.mrf.mxu0
      %v2328 = vadd.f32 %v2103, %v2327
      %v2329 = vpop.f32.mrf.mxu0
      %2330 = vmatprep.mubr.f32.mxu0 %v1478
      %2331 = vmatmul.mubr.f32.gmra.mxu0 %v1477
      %v2332 = vpop.f32.mrf.mxu0
      %v2333 = vadd.f32 %v2108, %v2332
      %v2334 = vpop.f32.mrf.mxu0
      %2335 = vmatprep.mubr.f32.mxu0 %v1487
      %2336 = vmatmul.mubr.f32.gmra.mxu0 %v1486
      %v2337 = vpop.f32.mrf.mxu0
      %v2338 = vadd.f32 %v2113, %v2337
      %v2339 = vpop.f32.mrf.mxu0
      %2340 = vmatprep.mubr.f32.mxu0 %v1496
      %2341 = vmatmul.mubr.f32.gmra.mxu0 %v1495
      %v2342 = vpop.f32.mrf.mxu0
      %v2343 = vadd.f32 %v2118, %v2342
      %v2344 = vpop.f32.mrf.mxu0
      %2345 = vmatprep.mubr.f32.mxu0 %v1505
      %2346 = vmatmul.mubr.f32.gmra.mxu0 %v1504
      %v2347 = vpop.f32.mrf.mxu0
      %v2348 = vadd.f32 %v2123, %v2347
      %v2349 = vpop.f32.mrf.mxu0
      %2350 = vmatprep.mubr.f32.mxu0 %v1514
      %2351 = vmatmul.mubr.f32.gmra.mxu0 %v1513
      %v2352 = vpop.f32.mrf.mxu0
      %v2353 = vadd.f32 %v2128, %v2352
      %v2354 = vpop.f32.mrf.mxu0
      %2355 = vmatprep.mubr.f32.mxu0 %v1523
      %2356 = vmatmul.mubr.f32.gmra.mxu0 %v1522
      %v2357 = vpop.f32.mrf.mxu0
      %v2358 = vadd.f32 %v2133, %v2357
      %v2359 = vpop.f32.mrf.mxu0
      %2360 = vmatprep.mubr.f32.mxu0 %v1532
      %2361 = vmatmul.mubr.f32.gmra.mxu0 %v1531
      %v2362 = vpop.f32.mrf.mxu0
      %v2363 = vadd.f32 %v2138, %v2362
      %v2364 = vpop.f32.mrf.mxu0
      %2365 = vmatprep.mubr.f32.mxu0 %v1541
      %2366 = vmatmul.mubr.f32.gmra.mxu0 %v1540
      %v2367 = vpop.f32.mrf.mxu0
      %v2368 = vadd.f32 %v2143, %v2367
      %v2369 = vpop.f32.mrf.mxu0
      %2370 = vdwg.mxu0
      %2371 = vmatprep.subr.mxu0 0.0
      %2372 = vmatpush1.msra.mxu0 %v1656
      %2373 = vmatprep.subr.mxu0 0.0
      %2374 = vmatpush1.msra.mxu0 %v1655
      %2375 = vmatprep.subr.mxu0 0.0
      %2376 = vmatpush1.msra.mxu0 %v1654
      %2377 = vmatprep.subr.mxu0 0.0
      %2378 = vmatpush1.msra.mxu0 %v1653
      %2379 = vmatprep.subr.mxu0 0.0
      %2380 = vmatpush1.msra.mxu0 %v1652
      %2381 = vmatprep.subr.mxu0 0.0
      %2382 = vmatpush1.msra.mxu0 %v1651
      %2383 = vmatprep.subr.mxu0 0.0
      %2384 = vmatpush1.msra.mxu0 %v1650
      %2385 = vmatprep.subr.mxu0 0.0
      %2386 = vmatpush1.msra.mxu0 %v1649
      %2387 = vmatprep.subr.mxu0 0.0
      %2388 = vmatpush1.msra.mxu0 %v1648
      %2389 = vmatprep.subr.mxu0 0.0
      %2390 = vmatpush1.msra.mxu0 %v1647
      %2391 = vmatprep.subr.mxu0 0.0
      %2392 = vmatpush1.msra.mxu0 %v1646
      %2393 = vmatprep.subr.mxu0 0.0
      %2394 = vmatpush1.msra.mxu0 %v1645
      %2395 = vmatprep.subr.mxu0 0.0
      %2396 = vmatpush1.msra.mxu0 %v1644
      %2397 = vmatprep.subr.mxu0 0.0
      %2398 = vmatpush1.msra.mxu0 %v1643
      %2399 = vmatprep.subr.mxu0 0.0
      %2400 = vmatpush1.msra.mxu0 %v1642
      %2401 = vmatprep.subr.mxu0 0.0
      %2402 = vmatpush1.msra.mxu0 %v1641
      %2403 = vmatprep.subr.mxu0 0.0
      %2404 = vmatpush2.msra.mxu0 %v1672
      %2405 = vmatprep.subr.mxu0 0.0
      %2406 = vmatpush2.msra.mxu0 %v1671
      %2407 = vmatprep.subr.mxu0 0.0
      %2408 = vmatpush2.msra.mxu0 %v1670
      %2409 = vmatprep.subr.mxu0 0.0
      %2410 = vmatpush2.msra.mxu0 %v1669
      %2411 = vmatprep.subr.mxu0 0.0
      %2412 = vmatpush2.msra.mxu0 %v1668
      %2413 = vmatprep.subr.mxu0 0.0
      %2414 = vmatpush2.msra.mxu0 %v1667
      %2415 = vmatprep.subr.mxu0 0.0
      %2416 = vmatpush2.msra.mxu0 %v1666
      %2417 = vmatprep.subr.mxu0 0.0
      %2418 = vmatpush2.msra.mxu0 %v1665
      %2419 = vmatprep.subr.mxu0 0.0
      %2420 = vmatpush2.msra.mxu0 %v1664
      %2421 = vmatprep.subr.mxu0 0.0
      %2422 = vmatpush2.msra.mxu0 %v1663
      %2423 = vmatprep.subr.mxu0 0.0
      %2424 = vmatpush2.msra.mxu0 %v1662
      %2425 = vmatprep.subr.mxu0 0.0
      %2426 = vmatpush2.msra.mxu0 %v1661
      %2427 = vmatprep.subr.mxu0 0.0
      %2428 = vmatpush2.msra.mxu0 %v1660
      %2429 = vmatprep.subr.mxu0 0.0
      %2430 = vmatpush2.msra.mxu0 %v1659
      %2431 = vmatprep.subr.mxu0 0.0
      %2432 = vmatpush2.msra.mxu0 %v1658
      %2433 = vmatprep.subr.mxu0 0.0
      %2434 = vmatpush2.msra.mxu0 %v1657
      %2435 = vmatprep.mubr.f32.mxu0 %v1264
      %2436 = vmatmul.mubr.f32.gmra.mxu0 %v1263
      %v2437 = vpop.f32.mrf.mxu0
      %v2438 = vadd.f32 %v2213, %v2437
      %v2439 = vpop.f32.mrf.mxu0
      %2440 = vmatprep.mubr.f32.mxu0 %v1273
      %2441 = vmatmul.mubr.f32.gmra.mxu0 %v1272
      %v2442 = vpop.f32.mrf.mxu0
      %v2443 = vadd.f32 %v2218, %v2442
      %v2444 = vpop.f32.mrf.mxu0
      %2445 = vmatprep.mubr.f32.mxu0 %v1282
      %2446 = vmatmul.mubr.f32.gmra.mxu0 %v1281
      %v2447 = vpop.f32.mrf.mxu0
      %v2448 = vadd.f32 %v2223, %v2447
      %v2449 = vpop.f32.mrf.mxu0
      %2450 = vmatprep.mubr.f32.mxu0 %v1291
      %2451 = vmatmul.mubr.f32.gmra.mxu0 %v1290
      %v2452 = vpop.f32.mrf.mxu0
      %v2453 = vadd.f32 %v2228, %v2452
      %v2454 = vpop.f32.mrf.mxu0
      %2455 = vmatprep.mubr.f32.mxu0 %v1300
      %2456 = vmatmul.mubr.f32.gmra.mxu0 %v1299
      %v2457 = vpop.f32.mrf.mxu0
      %v2458 = vadd.f32 %v2233, %v2457
      %v2459 = vpop.f32.mrf.mxu0
      %2460 = vmatprep.mubr.f32.mxu0 %v1309
      %2461 = vmatmul.mubr.f32.gmra.mxu0 %v1308
      %v2462 = vpop.f32.mrf.mxu0
      %v2463 = vadd.f32 %v2238, %v2462
      %v2464 = vpop.f32.mrf.mxu0
      %2465 = vmatprep.mubr.f32.mxu0 %v1318
      %2466 = vmatmul.mubr.f32.gmra.mxu0 %v1317
      %v2467 = vpop.f32.mrf.mxu0
      %v2468 = vadd.f32 %v2243, %v2467
      %v2469 = vpop.f32.mrf.mxu0
      %2470 = vmatprep.mubr.f32.mxu0 %v1327
      %2471 = vmatmul.mubr.f32.gmra.mxu0 %v1326
      %v2472 = vpop.f32.mrf.mxu0
      %v2473 = vadd.f32 %v2248, %v2472
      %v2474 = vpop.f32.mrf.mxu0
      %2475 = vmatprep.mubr.f32.mxu0 %v1336
      %2476 = vmatmul.mubr.f32.gmra.mxu0 %v1335
      %v2477 = vpop.f32.mrf.mxu0
      %v2478 = vadd.f32 %v2253, %v2477
      %v2479 = vpop.f32.mrf.mxu0
      %2480 = vmatprep.mubr.f32.mxu0 %v1345
      %2481 = vmatmul.mubr.f32.gmra.mxu0 %v1344
      %v2482 = vpop.f32.mrf.mxu0
      %v2483 = vadd.f32 %v2258, %v2482
      %v2484 = vpop.f32.mrf.mxu0
      %2485 = vmatprep.mubr.f32.mxu0 %v1354
      %2486 = vmatmul.mubr.f32.gmra.mxu0 %v1353
      %v2487 = vpop.f32.mrf.mxu0
      %v2488 = vadd.f32 %v2263, %v2487
      %v2489 = vpop.f32.mrf.mxu0
      %2490 = vmatprep.mubr.f32.mxu0 %v1363
      %2491 = vmatmul.mubr.f32.gmra.mxu0 %v1362
      %v2492 = vpop.f32.mrf.mxu0
      %v2493 = vadd.f32 %v2268, %v2492
      %v2494 = vpop.f32.mrf.mxu0
      %2495 = vmatprep.mubr.f32.mxu0 %v1372
      %2496 = vmatmul.mubr.f32.gmra.mxu0 %v1371
      %v2497 = vpop.f32.mrf.mxu0
      %v2498 = vadd.f32 %v2273, %v2497
      %v2499 = vpop.f32.mrf.mxu0
      %2500 = vmatprep.mubr.f32.mxu0 %v1381
      %2501 = vmatmul.mubr.f32.gmra.mxu0 %v1380
      %v2502 = vpop.f32.mrf.mxu0
      %v2503 = vadd.f32 %v2278, %v2502
      %v2504 = vpop.f32.mrf.mxu0
      %2505 = vmatprep.mubr.f32.mxu0 %v1390
      %2506 = vmatmul.mubr.f32.gmra.mxu0 %v1389
      %v2507 = vpop.f32.mrf.mxu0
      %v2508 = vadd.f32 %v2283, %v2507
      %v2509 = vpop.f32.mrf.mxu0
      %2510 = vmatprep.mubr.f32.mxu0 %v1399
      %2511 = vmatmul.mubr.f32.gmra.mxu0 %v1398
      %v2512 = vpop.f32.mrf.mxu0
      %v2513 = vadd.f32 %v2288, %v2512
      %v2514 = vpop.f32.mrf.mxu0
      %2515 = vmatprep.mubr.f32.mxu0 %v1408
      %2516 = vmatmul.mubr.f32.gmra.mxu0 %v1407
      %v2517 = vpop.f32.mrf.mxu0
      %v2518 = vadd.f32 %v2293, %v2517
      %v2519 = vpop.f32.mrf.mxu0
      %2520 = vmatprep.mubr.f32.mxu0 %v1417
      %2521 = vmatmul.mubr.f32.gmra.mxu0 %v1416
      %v2522 = vpop.f32.mrf.mxu0
      %v2523 = vadd.f32 %v2298, %v2522
      %v2524 = vpop.f32.mrf.mxu0
      %2525 = vmatprep.mubr.f32.mxu0 %v1426
      %2526 = vmatmul.mubr.f32.gmra.mxu0 %v1425
      %v2527 = vpop.f32.mrf.mxu0
      %v2528 = vadd.f32 %v2303, %v2527
      %v2529 = vpop.f32.mrf.mxu0
      %2530 = vmatprep.mubr.f32.mxu0 %v1435
      %2531 = vmatmul.mubr.f32.gmra.mxu0 %v1434
      %v2532 = vpop.f32.mrf.mxu0
      %v2533 = vadd.f32 %v2308, %v2532
      %v2534 = vpop.f32.mrf.mxu0
      %2535 = vmatprep.mubr.f32.mxu0 %v1444
      %2536 = vmatmul.mubr.f32.gmra.mxu0 %v1443
      %v2537 = vpop.f32.mrf.mxu0
      %v2538 = vadd.f32 %v2313, %v2537
      %v2539 = vpop.f32.mrf.mxu0
      %2540 = vmatprep.mubr.f32.mxu0 %v1453
      %2541 = vmatmul.mubr.f32.gmra.mxu0 %v1452
      %v2542 = vpop.f32.mrf.mxu0
      %v2543 = vadd.f32 %v2318, %v2542
      %v2544 = vpop.f32.mrf.mxu0
      %2545 = vmatprep.mubr.f32.mxu0 %v1462
      %2546 = vmatmul.mubr.f32.gmra.mxu0 %v1461
      %v2547 = vpop.f32.mrf.mxu0
      %v2548 = vadd.f32 %v2323, %v2547
      %v2549 = vpop.f32.mrf.mxu0
      %2550 = vmatprep.mubr.f32.mxu0 %v1471
      %2551 = vmatmul.mubr.f32.gmra.mxu0 %v1470
      %v2552 = vpop.f32.mrf.mxu0
      %v2553 = vadd.f32 %v2328, %v2552
      %v2554 = vpop.f32.mrf.mxu0
      %2555 = vmatprep.mubr.f32.mxu0 %v1480
      %2556 = vmatmul.mubr.f32.gmra.mxu0 %v1479
      %v2557 = vpop.f32.mrf.mxu0
      %v2558 = vadd.f32 %v2333, %v2557
      %v2559 = vpop.f32.mrf.mxu0
      %2560 = vmatprep.mubr.f32.mxu0 %v1489
      %2561 = vmatmul.mubr.f32.gmra.mxu0 %v1488
      %v2562 = vpop.f32.mrf.mxu0
      %v2563 = vadd.f32 %v2338, %v2562
      %v2564 = vpop.f32.mrf.mxu0
      %2565 = vmatprep.mubr.f32.mxu0 %v1498
      %2566 = vmatmul.mubr.f32.gmra.mxu0 %v1497
      %v2567 = vpop.f32.mrf.mxu0
      %v2568 = vadd.f32 %v2343, %v2567
      %v2569 = vpop.f32.mrf.mxu0
      %2570 = vmatprep.mubr.f32.mxu0 %v1507
      %2571 = vmatmul.mubr.f32.gmra.mxu0 %v1506
      %v2572 = vpop.f32.mrf.mxu0
      %v2573 = vadd.f32 %v2348, %v2572
      %v2574 = vpop.f32.mrf.mxu0
      %2575 = vmatprep.mubr.f32.mxu0 %v1516
      %2576 = vmatmul.mubr.f32.gmra.mxu0 %v1515
      %v2577 = vpop.f32.mrf.mxu0
      %v2578 = vadd.f32 %v2353, %v2577
      %v2579 = vpop.f32.mrf.mxu0
      %2580 = vmatprep.mubr.f32.mxu0 %v1525
      %2581 = vmatmul.mubr.f32.gmra.mxu0 %v1524
      %v2582 = vpop.f32.mrf.mxu0
      %v2583 = vadd.f32 %v2358, %v2582
      %v2584 = vpop.f32.mrf.mxu0
      %2585 = vmatprep.mubr.f32.mxu0 %v1534
      %2586 = vmatmul.mubr.f32.gmra.mxu0 %v1533
      %v2587 = vpop.f32.mrf.mxu0
      %v2588 = vadd.f32 %v2363, %v2587
      %v2589 = vpop.f32.mrf.mxu0
      %2590 = vmatprep.mubr.f32.mxu0 %v1543
      %2591 = vmatmul.mubr.f32.gmra.mxu0 %v1542
      %v2592 = vpop.f32.mrf.mxu0
      %v2593 = vadd.f32 %v2368, %v2592
      %v2594 = vpop.f32.mrf.mxu0
      %2595 = vdwg.mxu0
      %2596 = vmatprep.subr.mxu0 0.0
      %2597 = vmatpush1.msra.mxu0 %v1688
      %2598 = vmatprep.subr.mxu0 0.0
      %2599 = vmatpush1.msra.mxu0 %v1687
      %2600 = vmatprep.subr.mxu0 0.0
      %2601 = vmatpush1.msra.mxu0 %v1686
      %2602 = vmatprep.subr.mxu0 0.0
      %2603 = vmatpush1.msra.mxu0 %v1685
      %2604 = vmatprep.subr.mxu0 0.0
      %2605 = vmatpush1.msra.mxu0 %v1684
      %2606 = vmatprep.subr.mxu0 0.0
      %2607 = vmatpush1.msra.mxu0 %v1683
      %2608 = vmatprep.subr.mxu0 0.0
      %2609 = vmatpush1.msra.mxu0 %v1682
      %2610 = vmatprep.subr.mxu0 0.0
      %2611 = vmatpush1.msra.mxu0 %v1681
      %2612 = vmatprep.subr.mxu0 0.0
      %2613 = vmatpush1.msra.mxu0 %v1680
      %2614 = vmatprep.subr.mxu0 0.0
      %2615 = vmatpush1.msra.mxu0 %v1679
      %2616 = vmatprep.subr.mxu0 0.0
      %2617 = vmatpush1.msra.mxu0 %v1678
      %2618 = vmatprep.subr.mxu0 0.0
      %2619 = vmatpush1.msra.mxu0 %v1677
      %2620 = vmatprep.subr.mxu0 0.0
      %2621 = vmatpush1.msra.mxu0 %v1676
      %2622 = vmatprep.subr.mxu0 0.0
      %2623 = vmatpush1.msra.mxu0 %v1675
      %2624 = vmatprep.subr.mxu0 0.0
      %2625 = vmatpush1.msra.mxu0 %v1674
      %2626 = vmatprep.subr.mxu0 0.0
      %2627 = vmatpush1.msra.mxu0 %v1673
      %2628 = vmatprep.subr.mxu0 0.0
      %2629 = vmatpush2.msra.mxu0 0.0
      %2630 = vmatprep.subr.mxu0 0.0
      %2631 = vmatpush2.msra.mxu0 0.0
      %2632 = vmatprep.subr.mxu0 0.0
      %2633 = vmatpush2.msra.mxu0 0.0
      %2634 = vmatprep.subr.mxu0 0.0
      %2635 = vmatpush2.msra.mxu0 0.0
      %2636 = vmatprep.subr.mxu0 0.0
      %2637 = vmatpush2.msra.mxu0 0.0
      %2638 = vmatprep.subr.mxu0 0.0
      %2639 = vmatpush2.msra.mxu0 0.0
      %2640 = vmatprep.subr.mxu0 0.0
      %2641 = vmatpush2.msra.mxu0 0.0
      %2642 = vmatprep.subr.mxu0 0.0
      %2643 = vmatpush2.msra.mxu0 0.0
      %2644 = vmatprep.subr.mxu0 0.0
      %2645 = vmatpush2.msra.mxu0 0.0
      %2646 = vmatprep.subr.mxu0 0.0
      %2647 = vmatpush2.msra.mxu0 0.0
      %2648 = vmatprep.subr.mxu0 0.0
      %2649 = vmatpush2.msra.mxu0 0.0
      %2650 = vmatprep.subr.mxu0 0.0
      %2651 = vmatpush2.msra.mxu0 0.0
      %2652 = vmatprep.subr.mxu0 0.0
      %2653 = vmatpush2.msra.mxu0 0.0
      %2654 = vmatprep.subr.mxu0 0.0
      %2655 = vmatpush2.msra.mxu0 0.0
      %2656 = vmatprep.subr.mxu0 0.0
      %2657 = vmatpush2.msra.mxu0 0.0
      %2658 = vmatprep.subr.mxu0 0.0
      %2659 = vmatpush2.msra.mxu0 0.0
      %2660 = vmatprep.mubr.f32.mxu0 0.0
      %2661 = vmatmul.mubr.f32.gmra.mxu0 %v1265
      %v2662 = vpop.f32.mrf.mxu0
      %v2663 = vadd.f32 %v2438, %v2662
      %v2664 = vpop.f32.mrf.mxu0
      %2665 = vmatprep.mubr.f32.mxu0 0.0
      %2666 = vmatmul.mubr.f32.gmra.mxu0 %v1274
      %v2667 = vpop.f32.mrf.mxu0
      %v2668 = vadd.f32 %v2443, %v2667
      %v2669 = vpop.f32.mrf.mxu0
      %2670 = vmatprep.mubr.f32.mxu0 0.0
      %2671 = vmatmul.mubr.f32.gmra.mxu0 %v1283
      %v2672 = vpop.f32.mrf.mxu0
      %v2673 = vadd.f32 %v2448, %v2672
      %v2674 = vpop.f32.mrf.mxu0
      %2675 = vmatprep.mubr.f32.mxu0 0.0
      %2676 = vmatmul.mubr.f32.gmra.mxu0 %v1292
      %v2677 = vpop.f32.mrf.mxu0
      %v2678 = vadd.f32 %v2453, %v2677
      %v2679 = vpop.f32.mrf.mxu0
      %2680 = vmatprep.mubr.f32.mxu0 0.0
      %2681 = vmatmul.mubr.f32.gmra.mxu0 %v1301
      %v2682 = vpop.f32.mrf.mxu0
      %v2683 = vadd.f32 %v2458, %v2682
      %v2684 = vpop.f32.mrf.mxu0
      %2685 = vmatprep.mubr.f32.mxu0 0.0
      %2686 = vmatmul.mubr.f32.gmra.mxu0 %v1310
      %v2687 = vpop.f32.mrf.mxu0
      %v2688 = vadd.f32 %v2463, %v2687
      %v2689 = vpop.f32.mrf.mxu0
      %2690 = vmatprep.mubr.f32.mxu0 0.0
      %2691 = vmatmul.mubr.f32.gmra.mxu0 %v1319
      %v2692 = vpop.f32.mrf.mxu0
      %v2693 = vadd.f32 %v2468, %v2692
      %v2694 = vpop.f32.mrf.mxu0
      %2695 = vmatprep.mubr.f32.mxu0 0.0
      %2696 = vmatmul.mubr.f32.gmra.mxu0 %v1328
      %v2697 = vpop.f32.mrf.mxu0
      %v2698 = vadd.f32 %v2473, %v2697
      %v2699 = vpop.f32.mrf.mxu0
      %2700 = vmatprep.mubr.f32.mxu0 0.0
      %2701 = vmatmul.mubr.f32.gmra.mxu0 %v1337
      %v2702 = vpop.f32.mrf.mxu0
      %v2703 = vadd.f32 %v2478, %v2702
      %v2704 = vpop.f32.mrf.mxu0
      %2705 = vmatprep.mubr.f32.mxu0 0.0
      %2706 = vmatmul.mubr.f32.gmra.mxu0 %v1346
      %v2707 = vpop.f32.mrf.mxu0
      %v2708 = vadd.f32 %v2483, %v2707
      %v2709 = vpop.f32.mrf.mxu0
      %2710 = vmatprep.mubr.f32.mxu0 0.0
      %2711 = vmatmul.mubr.f32.gmra.mxu0 %v1355
      %v2712 = vpop.f32.mrf.mxu0
      %v2713 = vadd.f32 %v2488, %v2712
      %v2714 = vpop.f32.mrf.mxu0
      %2715 = vmatprep.mubr.f32.mxu0 0.0
      %2716 = vmatmul.mubr.f32.gmra.mxu0 %v1364
      %v2717 = vpop.f32.mrf.mxu0
      %v2718 = vadd.f32 %v2493, %v2717
      %v2719 = vpop.f32.mrf.mxu0
      %2720 = vmatprep.mubr.f32.mxu0 0.0
      %2721 = vmatmul.mubr.f32.gmra.mxu0 %v1373
      %v2722 = vpop.f32.mrf.mxu0
      %v2723 = vadd.f32 %v2498, %v2722
      %v2724 = vpop.f32.mrf.mxu0
      %2725 = vmatprep.mubr.f32.mxu0 0.0
      %2726 = vmatmul.mubr.f32.gmra.mxu0 %v1382
      %v2727 = vpop.f32.mrf.mxu0
      %v2728 = vadd.f32 %v2503, %v2727
      %v2729 = vpop.f32.mrf.mxu0
      %2730 = vmatprep.mubr.f32.mxu0 0.0
      %2731 = vmatmul.mubr.f32.gmra.mxu0 %v1391
      %v2732 = vpop.f32.mrf.mxu0
      %v2733 = vadd.f32 %v2508, %v2732
      %v2734 = vpop.f32.mrf.mxu0
      %2735 = vmatprep.mubr.f32.mxu0 0.0
      %2736 = vmatmul.mubr.f32.gmra.mxu0 %v1400
      %v2737 = vpop.f32.mrf.mxu0
      %v2738 = vadd.f32 %v2513, %v2737
      %v2739 = vpop.f32.mrf.mxu0
      %2740 = vmatprep.mubr.f32.mxu0 0.0
      %2741 = vmatmul.mubr.f32.gmra.mxu0 %v1409
      %v2742 = vpop.f32.mrf.mxu0
      %v2743 = vadd.f32 %v2518, %v2742
      %v2744 = vpop.f32.mrf.mxu0
      %2745 = vmatprep.mubr.f32.mxu0 0.0
      %2746 = vmatmul.mubr.f32.gmra.mxu0 %v1418
      %v2747 = vpop.f32.mrf.mxu0
      %v2748 = vadd.f32 %v2523, %v2747
      %v2749 = vpop.f32.mrf.mxu0
      %2750 = vmatprep.mubr.f32.mxu0 0.0
      %2751 = vmatmul.mubr.f32.gmra.mxu0 %v1427
      %v2752 = vpop.f32.mrf.mxu0
      %v2753 = vadd.f32 %v2528, %v2752
      %v2754 = vpop.f32.mrf.mxu0
      %2755 = vmatprep.mubr.f32.mxu0 0.0
      %2756 = vmatmul.mubr.f32.gmra.mxu0 %v1436
      %v2757 = vpop.f32.mrf.mxu0
      %v2758 = vadd.f32 %v2533, %v2757
      %v2759 = vpop.f32.mrf.mxu0
      %2760 = vmatprep.mubr.f32.mxu0 0.0
      %2761 = vmatmul.mubr.f32.gmra.mxu0 %v1445
      %v2762 = vpop.f32.mrf.mxu0
      %v2763 = vadd.f32 %v2538, %v2762
      %v2764 = vpop.f32.mrf.mxu0
      %2765 = vmatprep.mubr.f32.mxu0 0.0
      %2766 = vmatmul.mubr.f32.gmra.mxu0 %v1454
      %v2767 = vpop.f32.mrf.mxu0
      %v2768 = vadd.f32 %v2543, %v2767
      %v2769 = vpop.f32.mrf.mxu0
      %2770 = vmatprep.mubr.f32.mxu0 0.0
      %2771 = vmatmul.mubr.f32.gmra.mxu0 %v1463
      %v2772 = vpop.f32.mrf.mxu0
      %v2773 = vadd.f32 %v2548, %v2772
      %v2774 = vpop.f32.mrf.mxu0
      %2775 = vmatprep.mubr.f32.mxu0 0.0
      %2776 = vmatmul.mubr.f32.gmra.mxu0 %v1472
      %v2777 = vpop.f32.mrf.mxu0
      %v2778 = vadd.f32 %v2553, %v2777
      %v2779 = vpop.f32.mrf.mxu0
      %2780 = vmatprep.mubr.f32.mxu0 0.0
      %2781 = vmatmul.mubr.f32.gmra.mxu0 %v1481
      %v2782 = vpop.f32.mrf.mxu0
      %v2783 = vadd.f32 %v2558, %v2782
      %v2784 = vpop.f32.mrf.mxu0
      %2785 = vmatprep.mubr.f32.mxu0 0.0
      %2786 = vmatmul.mubr.f32.gmra.mxu0 %v1490
      %v2787 = vpop.f32.mrf.mxu0
      %v2788 = vadd.f32 %v2563, %v2787
      %v2789 = vpop.f32.mrf.mxu0
      %2790 = vmatprep.mubr.f32.mxu0 0.0
      %2791 = vmatmul.mubr.f32.gmra.mxu0 %v1499
      %v2792 = vpop.f32.mrf.mxu0
      %v2793 = vadd.f32 %v2568, %v2792
      %v2794 = vpop.f32.mrf.mxu0
      %2795 = vmatprep.mubr.f32.mxu0 0.0
      %2796 = vmatmul.mubr.f32.gmra.mxu0 %v1508
      %v2797 = vpop.f32.mrf.mxu0
      %v2798 = vadd.f32 %v2573, %v2797
      %v2799 = vpop.f32.mrf.mxu0
      %2800 = vmatprep.mubr.f32.mxu0 0.0
      %2801 = vmatmul.mubr.f32.gmra.mxu0 %v1517
      %v2802 = vpop.f32.mrf.mxu0
      %v2803 = vadd.f32 %v2578, %v2802
      %v2804 = vpop.f32.mrf.mxu0
      %2805 = vmatprep.mubr.f32.mxu0 0.0
      %2806 = vmatmul.mubr.f32.gmra.mxu0 %v1526
      %v2807 = vpop.f32.mrf.mxu0
      %v2808 = vadd.f32 %v2583, %v2807
      %v2809 = vpop.f32.mrf.mxu0
      %2810 = vmatprep.mubr.f32.mxu0 0.0
      %2811 = vmatmul.mubr.f32.gmra.mxu0 %v1535
      %v2812 = vpop.f32.mrf.mxu0
      %v2813 = vadd.f32 %v2588, %v2812
      %v2814 = vpop.f32.mrf.mxu0
      %2815 = vmatprep.mubr.f32.mxu0 0.0
      %2816 = vmatmul.mubr.f32.gmra.mxu0 %v1544
      %v2817 = vpop.f32.mrf.mxu0
      %v2818 = vadd.f32 %v2593, %v2817
      %v2819 = vpop.f32.mrf.mxu0
      %2820 = vdwg.mxu0
      %v2821 = vmax.f32 %v2663, 0.0
      %v2822 = vmax.f32 %v2668, 0.0
      %v2823 = vmax.f32 %v2673, 0.0
      %v2824 = vmax.f32 %v2678, 0.0
      %v2825 = vmax.f32 %v2683, 0.0
      %v2826 = vmax.f32 %v2688, 0.0
      %v2827 = vmax.f32 %v2693, 0.0
      %v2828 = vmax.f32 %v2698, 0.0
      %v2829 = vmax.f32 %v2703, 0.0
      %v2830 = vmax.f32 %v2708, 0.0
      %v2831 = vmax.f32 %v2713, 0.0
      %v2832 = vmax.f32 %v2718, 0.0
      %v2833 = vmax.f32 %v2723, 0.0
      %v2834 = vmax.f32 %v2728, 0.0
      %v2835 = vmax.f32 %v2733, 0.0
      %v2836 = vmax.f32 %v2738, 0.0
      %v2837 = vmax.f32 %v2743, 0.0
      %v2838 = vmax.f32 %v2748, 0.0
      %v2839 = vmax.f32 %v2753, 0.0
      %v2840 = vmax.f32 %v2758, 0.0
      %v2841 = vmax.f32 %v2763, 0.0
      %v2842 = vmax.f32 %v2768, 0.0
      %v2843 = vmax.f32 %v2773, 0.0
      %v2844 = vmax.f32 %v2778, 0.0
      %v2845 = vmax.f32 %v2783, 0.0
      %v2846 = vmax.f32 %v2788, 0.0
      %v2847 = vmax.f32 %v2793, 0.0
      %v2848 = vmax.f32 %v2798, 0.0
      %v2849 = vmax.f32 %v2803, 0.0
      %v2850 = vmax.f32 %v2808, 0.0
      %v2851 = vmax.f32 %v2813, 0.0
      %v2852 = vmax.f32 %v2818, 0.0
      %2853 = vst [vmem:[%s353] sm:$0xff] %v2821
      %2854 = vst [vmem:[%s353 + $0x8] sm:$0xff] %v2822
      %2855 = vst [vmem:[%s353 + $0x10] sm:$0xff] %v2823
      %2856 = vst [vmem:[%s353 + $0x18] sm:$0xff] %v2824
      %2857 = vst [vmem:[%s353 + $0x20] sm:$0xff] %v2825
      %2858 = vst [vmem:[%s353 + $0x28] sm:$0xff] %v2826
      %2859 = vst [vmem:[%s353 + $0x30] sm:$0xff] %v2827
      %2860 = vst [vmem:[%s353 + $0x38] sm:$0xff] %v2828
      %2861 = vst [vmem:[%s353 + $0x40] sm:$0xff] %v2829
      %2862 = vst [vmem:[%s353 + $0x48] sm:$0xff] %v2830
      %2863 = vst [vmem:[%s353 + $0x50] sm:$0xff] %v2831
      %2864 = vst [vmem:[%s353 + $0x58] sm:$0xff] %v2832
      %2865 = vst [vmem:[%s353 + $0x60] sm:$0xff] %v2833
      %2866 = vst [vmem:[%s353 + $0x68] sm:$0xff] %v2834
      %2867 = vst [vmem:[%s353 + $0x70] sm:$0xff] %v2835
      %2868 = vst [vmem:[%s353 + $0x78] sm:$0xff] %v2836
      %2869 = vst [vmem:[%s353 + $0x80] sm:$0xff] %v2837
      %2870 = vst [vmem:[%s353 + $0x88] sm:$0xff] %v2838
      %2871 = vst [vmem:[%s353 + $0x90] sm:$0xff] %v2839
      %2872 = vst [vmem:[%s353 + $0x98] sm:$0xff] %v2840
      %2873 = vst [vmem:[%s353 + $0xa0] sm:$0xff] %v2841
      %2874 = vst [vmem:[%s353 + $0xa8] sm:$0xff] %v2842
      %2875 = vst [vmem:[%s353 + $0xb0] sm:$0xff] %v2843
      %2876 = vst [vmem:[%s353 + $0xb8] sm:$0xff] %v2844
      %2877 = vst [vmem:[%s353 + $0xc0] sm:$0xff] %v2845
      %2878 = vst [vmem:[%s353 + $0xc8] sm:$0xff] %v2846
      %2879 = vst [vmem:[%s353 + $0xd0] sm:$0xff] %v2847
      %2880 = vst [vmem:[%s353 + $0xd8] sm:$0xff] %v2848
      %2881 = vst [vmem:[%s353 + $0xe0] sm:$0xff] %v2849
      %2882 = vst [vmem:[%s353 + $0xe8] sm:$0xff] %v2850
      %2883 = vst [vmem:[%s353 + $0xf0] sm:$0xff] %v2851
      %2884 = vst [vmem:[%s353 + $0xf8] sm:$0xff] %v2852
      %v2885 = vadd.f32 %v2821, %v2822
      %v2886 = vadd.f32 %v2885, %v2823
      %v2887 = vadd.f32 %v2886, %v2824
      %v2888 = vadd.f32 %v2887, %v2825
      %v2889 = vadd.f32 %v2888, %v2826
      %v2890 = vadd.f32 %v2889, %v2827
      %v2891 = vadd.f32 %v2890, %v2828
      %v2892 = vadd.f32 %v2891, %v2829
      %v2893 = vadd.f32 %v2892, %v2830
      %v2894 = vadd.f32 %v2893, %v2831
      %v2895 = vadd.f32 %v2894, %v2832
      %v2896 = vadd.f32 %v2895, %v2833
      %v2897 = vadd.f32 %v2896, %v2834
      %v2898 = vadd.f32 %v2897, %v2835
      %v2899 = vadd.f32 %v2898, %v2836
      %v2900 = vadd.f32 %v2899, %v2837
      %v2901 = vadd.f32 %v2900, %v2838
      %v2902 = vadd.f32 %v2901, %v2839
      %v2903 = vadd.f32 %v2902, %v2840
      %v2904 = vadd.f32 %v2903, %v2841
      %v2905 = vadd.f32 %v2904, %v2842
      %v2906 = vadd.f32 %v2905, %v2843
      %v2907 = vadd.f32 %v2906, %v2844
      %v2908 = vadd.f32 %v2907, %v2845
      %v2909 = vadd.f32 %v2908, %v2846
      %v2910 = vadd.f32 %v2909, %v2847
      %v2911 = vadd.f32 %v2910, %v2848
      %v2912 = vadd.f32 %v2911, %v2849
      %v2913 = vadd.f32 %v2912, %v2850
      %v2914 = vadd.f32 %v2913, %v2851
      %v2915 = vadd.f32 %v2914, %v2852
      %v2916 = vrot.slane %v2915, 4
      %v2917 = vadd.f32 %v2915, %v2916
      %v2918 = vrot.slane %v2917, 2
      %v2919 = vadd.f32 %v2917, %v2918
      %v2920 = vrot.slane %v2919, 1
      %v2921 = vadd.f32 %v2919, %v2920
      %2922 = vst [vmem:[%s357] sm:$0x1] %v2921
      %v2923 = vmul.f32 %v2821, %v2821
      %v2924 = vmul.f32 %v2822, %v2822
      %v2925 = vmul.f32 %v2823, %v2823
      %v2926 = vmul.f32 %v2824, %v2824
      %v2927 = vmul.f32 %v2825, %v2825
      %v2928 = vmul.f32 %v2826, %v2826
      %v2929 = vmul.f32 %v2827, %v2827
      %v2930 = vmul.f32 %v2828, %v2828
      %v2931 = vmul.f32 %v2829, %v2829
      %v2932 = vmul.f32 %v2830, %v2830
      %v2933 = vmul.f32 %v2831, %v2831
      %v2934 = vmul.f32 %v2832, %v2832
      %v2935 = vmul.f32 %v2833, %v2833
      %v2936 = vmul.f32 %v2834, %v2834
      %v2937 = vmul.f32 %v2835, %v2835
      %v2938 = vmul.f32 %v2836, %v2836
      %v2939 = vmul.f32 %v2837, %v2837
      %v2940 = vmul.f32 %v2838, %v2838
      %v2941 = vmul.f32 %v2839, %v2839
      %v2942 = vmul.f32 %v2840, %v2840
      %v2943 = vmul.f32 %v2841, %v2841
      %v2944 = vmul.f32 %v2842, %v2842
      %v2945 = vmul.f32 %v2843, %v2843
      %v2946 = vmul.f32 %v2844, %v2844
      %v2947 = vmul.f32 %v2845, %v2845
      %v2948 = vmul.f32 %v2846, %v2846
      %v2949 = vmul.f32 %v2847, %v2847
      %v2950 = vmul.f32 %v2848, %v2848
      %v2951 = vmul.f32 %v2849, %v2849
      %v2952 = vmul.f32 %v2850, %v2850
      %v2953 = vmul.f32 %v2851, %v2851
      %v2954 = vmul.f32 %v2852, %v2852
      %v2955 = vadd.f32 %v2923, %v2924
      %v2956 = vadd.f32 %v2955, %v2925
      %v2957 = vadd.f32 %v2956, %v2926
      %v2958 = vadd.f32 %v2957, %v2927
      %v2959 = vadd.f32 %v2958, %v2928
      %v2960 = vadd.f32 %v2959, %v2929
      %v2961 = vadd.f32 %v2960, %v2930
      %v2962 = vadd.f32 %v2961, %v2931
      %v2963 = vadd.f32 %v2962, %v2932
      %v2964 = vadd.f32 %v2963, %v2933
      %v2965 = vadd.f32 %v2964, %v2934
      %v2966 = vadd.f32 %v2965, %v2935
      %v2967 = vadd.f32 %v2966, %v2936
      %v2968 = vadd.f32 %v2967, %v2937
      %v2969 = vadd.f32 %v2968, %v2938
      %v2970 = vadd.f32 %v2969, %v2939
      %v2971 = vadd.f32 %v2970, %v2940
      %v2972 = vadd.f32 %v2971, %v2941
      %v2973 = vadd.f32 %v2972, %v2942
      %v2974 = vadd.f32 %v2973, %v2943
      %v2975 = vadd.f32 %v2974, %v2944
      %v2976 = vadd.f32 %v2975, %v2945
      %v2977 = vadd.f32 %v2976, %v2946
      %v2978 = vadd.f32 %v2977, %v2947
      %v2979 = vadd.f32 %v2978, %v2948
      %v2980 = vadd.f32 %v2979, %v2949
      %v2981 = vadd.f32 %v2980, %v2950
      %v2982 = vadd.f32 %v2981, %v2951
      %v2983 = vadd.f32 %v2982, %v2952
      %v2984 = vadd.f32 %v2983, %v2953
      %v2985 = vadd.f32 %v2984, %v2954
      %v2986 = vrot.slane %v2985, 4
      %v2987 = vadd.f32 %v2985, %v2986
      %v2988 = vrot.slane %v2987, 2
      %v2989 = vadd.f32 %v2987, %v2988
      %v2990 = vrot.slane %v2989, 1
      %v2991 = vadd.f32 %v2989, %v2990
      %2992 = vst [vmem:[%s357 + $0x1] sm:$0x1] %v2991
      %p2993 = scmp.lt.s32.totalorder %s21, 1
      %s2994 = scalar_select %p2993, %s21, 1
      %s2995 = smul.addr %s2994, 32
      %s2996 = smul.addr %s2995, 8
      %s2997 = scalar_lea.vmem %s8, %s2996
      %p2998 = scmp.lt.s32.totalorder %s21, 1
      %s2999 = scalar_select %p2998, %s21, 1
      %s3000 = smul.addr %s2999, 2
      %s3001 = scalar_lea.vmem %s9, %s3000
      // Predicated region
      $region53: #{block_forward.4} parent=51 // pred_check
        %p3002 = pneg %p217
      $region54: #{block_forward.4} parent=51 // pred_check_branch
        %3004 = sbr.rel (%p3002) target = $region56
      $region55: #{block_forward.4} parent=51 // pred_region
        _
      $region56: #{block_forward.4} parent=51 // pred_fallthru
        _
      // Predicated region
      $region57: #{block_forward.4} parent=51 // pred_check
        %p3005 = pneg %p243
      $region58: #{block_forward.4} parent=51 // pred_check_branch
        %3007 = sbr.rel (%p3005) target = $region60
      $region59: #{block_forward.4} parent=51 // pred_region
        _
      $region60: #{block_forward.4} parent=51 // pred_fallthru
        _
    $region52: #{block_forward.4} parent=5 // pred_fallthru
      _
    %p3008 = scmp.le.s32.totalorder 2, %s16
    // Predicated region
    $region61: #{block_forward.4} parent=5 // pred_check
      %p3009 = pneg %p3008
    $region62: #{block_forward.4} parent=5 // pred_check_branch
      %3011 = sbr.rel (%p3009) target = $region64
    $region63: #{block_forward.4} parent=5 // pred_region
      %s3012 = ssub.s32 %s16, 2
      // Predicated region
      $region65: #{block_forward.4} parent=63 // pred_check
        %p3013 = pneg %p223
      $region66: #{block_forward.4} parent=63 // pred_check_branch
        %3015 = sbr.rel (%p3013) target = $region68
      $region67: #{block_forward.4} parent=63 // pred_region
        %p3016 = scmp.lt.s32.totalorder %s22, 1
        %s3017 = scalar_select %p3016, %s22, 1
        %s3018 = smul.addr %s3017, 32
        %s3019 = smul.addr %s3018, 8
        %s3020 = scalar_lea.vmem %s8, %s3019
      $region68: #{block_forward.4} parent=63 // pred_fallthru
        _
      // Predicated region
      $region69: #{block_forward.4} parent=63 // pred_check
        %p3021 = pneg %p249
      $region70: #{block_forward.4} parent=63 // pred_check_branch
        %3023 = sbr.rel (%p3021) target = $region72
      $region71: #{block_forward.4} parent=63 // pred_region
        %p3024 = scmp.lt.s32.totalorder %s22, 1
        %s3025 = scalar_select %p3024, %s22, 1
        %s3026 = smul.addr %s3025, 2
        %s3027 = scalar_lea.vmem %s9, %s3026
      $region72: #{block_forward.4} parent=63 // pred_fallthru
        _
    $region64: #{block_forward.4} parent=5 // pred_fallthru
      _
  $region6: #{block_forward.4} parent=0 // loop_footer
    %s20 = sadd.s32 1, %s16
  $region7: #{block_forward.4} parent=0 // loop_footer_branch
    %15 = sbr.rel target = $region3
  $region8: #{block_forward.4} parent=0 // loop_exit
    _

// kernel: block_forward.5
$region0: #{block_forward.5}
  #allocation0 [shape = 'u32[]', space=smem, size = 0x4, offset = 0x4, fixed_abs, tag = 'smem constant byte address 0x4 - core index']
  #allocation1 [shape = 'u32[144,128]{1,0:T(1,128)}', space=vmem, size = 0x12000, scoped, tag = 'internal scratch']
  #allocation2 [shape = 'f32[4,9,9,128]{3,2,1,0:T(8,128)}', space=vmem, size = 0x48000, scoped, tag = 'scratch operand']
  #allocation3 [shape = 'f32[64,2048]{1,0:T(8,128)}', space=vmem, size = 0x80000, scoped, tag = 'scratch operand']
  %s0 = inlined_call_operand.vmem [shape: f32[2,4,8,8,128], index: 0, kind: input, shape index: {}]
  %s1 = inlined_call_operand.vmem [shape: f32[1,128], index: 1, kind: input, shape index: {}]
  %s2 = inlined_call_operand.vmem [shape: f32[1,128], index: 2, kind: input, shape index: {}]
  %s3 = inlined_call_operand.vmem [shape: f32[2048,128], index: 3, kind: input, shape index: {}]
  %s4 = inlined_call_operand.vmem [shape: f32[1,128], index: 4, kind: input, shape index: {}]
  %s5 = inlined_call_operand.vmem [shape: f32[2,8,8,128], index: 5, kind: output, shape index: {}]
  %s6 = sld [smem:[#allocation0]]
  $region53: #{block_forward.5} parent=0
    _
  %s8 = ssub.s32 1, %s6
  %s9 = scalar_select 0, %s8, %s6
  loop: start=0, step=1, limit=4
  $region2: #{block_forward.5} parent=0 // loop_pre_header
    _
  $region3: #{block_forward.5} parent=0 // loop_header
    %s11 = sphi 0, %s15
    %p12 = scmp.ge.s32.totalorder %s11, 4
    %s21 = sphi 0, %s23
    %s24 = sphi 0, %s21
    %s25 = sphi 0, %s24
    %s41 = sphi 0, %s25
    %s45 = sphi 0, %s45
    %s47 = sphi 0, %s45
    %s48 = sphi 0, %s47
    %s62 = sphi 0, %s48
    %s66 = sphi 0, %s66
    %s68 = sphi 0, %s66
    %s69 = sphi 0, %s68
    %s83 = sphi 0, %s69
    %s87 = sphi 0, %s87
    %s89 = sphi 0, %s87
    %s90 = sphi 0, %s89
    %s104 = sphi 0, %s90
    %s108 = sphi 0, %s108
    %s110 = sphi 0, %s108
    %s111 = sphi 0, %s110
    %s125 = sphi 0, %s111
    %s131 = sphi 0, %s133
    %s134 = sphi 0, %s131
    %s135 = sphi 0, %s134
    %s151 = sphi 0, %s135
  $region4: #{block_forward.5} parent=0 // loop_header_branch
    %14 = sbr.rel (%p12) target = $region8
  $region5: #{block_forward.5} parent=0 // loop_body
    %s16 = ssub.s32 %s11, 1
    %s17 = ssub.s32 %s11, 2
    %s18 = sadd.s32 %s11, 1
    %s19 = ssub.s32 %s11, %s18
    %p20 = scmp.eq.s32.totalorder %s19, 0
    %s22 = sadd.s32 %s21, 1
    %s23 = scalar_select %p20, %s21, %s22
    %p26 = pneg %p20
    %p27 = scmp.eq.s32.totalorder %s11, 1
    %p28 = por %p26, %p27
    %p29 = scmp.ne.s32.totalorder %s21, %s24
    %p30 = scmp.eq.s32.totalorder %s11, 0
    %p31 = por %p29, %p30
    %p32 = scmp.ne.s32.totalorder %s21, %s24
    %p33 = scmp.eq.s32.totalorder %s16, 1
    %p34 = por %p32, %p33
    %p35 = scmp.ne.s32.totalorder %s24, %s25
    %p36 = scmp.eq.s32.totalorder %s16, 0
    %p37 = por %p35, %p36
    %p38 = scmp.ne.s32.totalorder %s24, %s25
    %p39 = scmp.eq.s32.totalorder %s17, 1
    %p40 = por %p38, %p39
    %p42 = scmp.ne.s32.totalorder %s25, %s41
    %p43 = scmp.eq.s32.totalorder %s17, 0
    %p44 = por %p42, %p43
    %s46 = sadd.s32 %s45, 1
    %p49 = scmp.eq.s32.totalorder %s11, 1
    %p50 = scmp.ne.s32.totalorder %s45, %s47
    %p51 = scmp.eq.s32.totalorder %s11, 0
    %p52 = por %p50, %p51
    %p53 = scmp.ne.s32.totalorder %s45, %s47
    %p54 = scmp.eq.s32.totalorder %s16, 1
    %p55 = por %p53, %p54
    %p56 = scmp.ne.s32.totalorder %s47, %s48
    %p57 = scmp.eq.s32.totalorder %s16, 0
    %p58 = por %p56, %p57
    %p59 = scmp.ne.s32.totalorder %s47, %s48
    %p60 = scmp.eq.s32.totalorder %s17, 1
    %p61 = por %p59, %p60
    %p63 = scmp.ne.s32.totalorder %s48, %s62
    %p64 = scmp.eq.s32.totalorder %s17, 0
    %p65 = por %p63, %p64
    %s67 = sadd.s32 %s66, 1
    %p70 = scmp.eq.s32.totalorder %s11, 1
    %p71 = scmp.ne.s32.totalorder %s66, %s68
    %p72 = scmp.eq.s32.totalorder %s11, 0
    %p73 = por %p71, %p72
    %p74 = scmp.ne.s32.totalorder %s66, %s68
    %p75 = scmp.eq.s32.totalorder %s16, 1
    %p76 = por %p74, %p75
    %p77 = scmp.ne.s32.totalorder %s68, %s69
    %p78 = scmp.eq.s32.totalorder %s16, 0
    %p79 = por %p77, %p78
    %p80 = scmp.ne.s32.totalorder %s68, %s69
    %p81 = scmp.eq.s32.totalorder %s17, 1
    %p82 = por %p80, %p81
    %p84 = scmp.ne.s32.totalorder %s69, %s83
    %p85 = scmp.eq.s32.totalorder %s17, 0
    %p86 = por %p84, %p85
    %s88 = sadd.s32 %s87, 1
    %p91 = scmp.eq.s32.totalorder %s11, 1
    %p92 = scmp.ne.s32.totalorder %s87, %s89
    %p93 = scmp.eq.s32.totalorder %s11, 0
    %p94 = por %p92, %p93
    %p95 = scmp.ne.s32.totalorder %s87, %s89
    %p96 = scmp.eq.s32.totalorder %s16, 1
    %p97 = por %p95, %p96
    %p98 = scmp.ne.s32.totalorder %s89, %s90
    %p99 = scmp.eq.s32.totalorder %s16, 0
    %p100 = por %p98, %p99
    %p101 = scmp.ne.s32.totalorder %s89, %s90
    %p102 = scmp.eq.s32.totalorder %s17, 1
    %p103 = por %p101, %p102
    %p105 = scmp.ne.s32.totalorder %s90, %s104
    %p106 = scmp.eq.s32.totalorder %s17, 0
    %p107 = por %p105, %p106
    %s109 = sadd.s32 %s108, 1
    %p112 = scmp.eq.s32.totalorder %s11, 1
    %p113 = scmp.ne.s32.totalorder %s108, %s110
    %p114 = scmp.eq.s32.totalorder %s11, 0
    %p115 = por %p113, %p114
    %p116 = scmp.ne.s32.totalorder %s108, %s110
    %p117 = scmp.eq.s32.totalorder %s16, 1
    %p118 = por %p116, %p117
    %p119 = scmp.ne.s32.totalorder %s110, %s111
    %p120 = scmp.eq.s32.totalorder %s16, 0
    %p121 = por %p119, %p120
    %p122 = scmp.ne.s32.totalorder %s110, %s111
    %p123 = scmp.eq.s32.totalorder %s17, 1
    %p124 = por %p122, %p123
    %p126 = scmp.ne.s32.totalorder %s111, %s125
    %p127 = scmp.eq.s32.totalorder %s17, 0
    %p128 = por %p126, %p127
    %s129 = ssub.s32 %s11, %s18
    %p130 = scmp.eq.s32.totalorder %s129, 0
    %s132 = sadd.s32 %s131, 1
    %s133 = scalar_select %p130, %s131, %s132
    %p136 = pneg %p130
    %p137 = scmp.eq.s32.totalorder %s11, 1
    %p138 = por %p136, %p137
    %p139 = scmp.ne.s32.totalorder %s131, %s134
    %p140 = scmp.eq.s32.totalorder %s11, 0
    %p141 = por %p139, %p140
    %p142 = scmp.ne.s32.totalorder %s131, %s134
    %p143 = scmp.eq.s32.totalorder %s16, 1
    %p144 = por %p142, %p143
    %p145 = scmp.ne.s32.totalorder %s134, %s135
    %p146 = scmp.eq.s32.totalorder %s16, 0
    %p147 = por %p145, %p146
    %p148 = scmp.ne.s32.totalorder %s134, %s135
    %p149 = scmp.eq.s32.totalorder %s17, 1
    %p150 = por %p148, %p149
    %p152 = scmp.ne.s32.totalorder %s135, %s151
    %p153 = scmp.eq.s32.totalorder %s17, 0
    %p154 = por %p152, %p153
    %p155 = scmp.le.s32.totalorder 1, %s11
    %p156 = scmp.lt.s32.totalorder %s11, 3
    %p157 = pnand %p155, %p156
    %p158 = pneg %p157
    // Predicated region
    $region9: #{block_forward.5} parent=5 // pred_check
      _
    $region10: #{block_forward.5} parent=5 // pred_check_branch
      %160 = sbr.rel (%p157) target = $region12
    $region11: #{block_forward.5} parent=5 // pred_region
      %s161 = ssub.s32 %s11, 1
      // Predicated region
      $region13: #{block_forward.5} parent=11 // pred_check
        %p162 = pneg %p58
      $region14: #{block_forward.5} parent=11 // pred_check_branch
        %164 = sbr.rel (%p162) target = $region16
      $region15: #{block_forward.5} parent=11 // pred_region
        _
      $region16: #{block_forward.5} parent=11 // pred_fallthru
        _
      // Predicated region
      $region17: #{block_forward.5} parent=11 // pred_check
        %p165 = pneg %p79
      $region18: #{block_forward.5} parent=11 // pred_check_branch
        %167 = sbr.rel (%p165) target = $region20
      $region19: #{block_forward.5} parent=11 // pred_region
        _
      $region20: #{block_forward.5} parent=11 // pred_fallthru
        _
      // Predicated region
      $region21: #{block_forward.5} parent=11 // pred_check
        %p168 = pneg %p100
      $region22: #{block_forward.5} parent=11 // pred_check_branch
        %170 = sbr.rel (%p168) target = $region24
      $region23: #{block_forward.5} parent=11 // pred_region
        _
      $region24: #{block_forward.5} parent=11 // pred_fallthru
        _
      // Predicated region
      $region25: #{block_forward.5} parent=11 // pred_check
        %p171 = pneg %p121
      $region26: #{block_forward.5} parent=11 // pred_check_branch
        %173 = sbr.rel (%p171) target = $region28
      $region27: #{block_forward.5} parent=11 // pred_region
        _
      $region28: #{block_forward.5} parent=11 // pred_fallthru
        _
    $region12: #{block_forward.5} parent=5 // pred_fallthru
      _
    %p174 = scmp.lt.s32.totalorder %s11, 2
    // Predicated region
    $region29: #{block_forward.5} parent=5 // pred_check
      %p175 = pneg %p174
    $region30: #{block_forward.5} parent=5 // pred_check_branch
      %177 = sbr.rel (%p175) target = $region32
    $region31: #{block_forward.5} parent=5 // pred_region
      // Predicated region
      $region33: #{block_forward.5} parent=31 // pred_check
        %p178 = pneg %p31
      $region34: #{block_forward.5} parent=31 // pred_check_branch
        %180 = sbr.rel (%p178) target = $region36
      $region35: #{block_forward.5} parent=31 // pred_region
        %p181 = scmp.lt.s32.totalorder %s11, 1
        %s182 = scalar_select %p181, %s11, 1
        %s183 = smul.addr %s182, 32
        %s184 = smul.addr %s183, 8
        %s185 = scalar_lea.vmem %s0, %s184
      $region36: #{block_forward.5} parent=31 // pred_fallthru
        _
    $region32: #{block_forward.5} parent=5 // pred_fallthru
      _
    %p186 = scmp.le.s32.totalorder 1, %s11
    %p187 = scmp.lt.s32.totalorder %s11, 3
    %p188 = pnand %p186, %p187
    %p189 = pneg %p188
    // Predicated region
    $region37: #{block_forward.5} parent=5 // pred_check
      _
    $region38: #{block_forward.5} parent=5 // pred_check_branch
      %191 = sbr.rel (%p188) target = $region40
    $region39: #{block_forward.5} parent=5 // pred_region
      %s192 = ssub.s32 %s11, 1
      %p193 = scmp.lt.s32.totalorder %s16, 1
      %s194 = scalar_select %p193, %s16, 1
      %s195 = smul.addr %s194, 32
      %s196 = smul.addr %s195, 8
      %s197 = scalar_lea.vmem %s0, %s196
      %p198 = pneg %p37
      %p199 = pneg %p34
      %p200 = pneg %p58
      %p201 = pneg %p55
      %p202 = pneg %p79
      %p203 = pneg %p76
      %p204 = pneg %p100
      %p205 = pneg %p97
      %p206 = pneg %p121
      %p207 = pneg %p118
      %p208 = pneg %p147
      %p209 = pneg %p144
      %p210 = scmp.lt.s32.totalorder %s16, 1
      %s211 = scalar_select %p210, %s16, 1
      %s212 = smul.addr %s211, 8
      %s213 = smul.addr %s212, 8
      %s214 = scalar_lea.vmem %s5, %s213
      %p215 = scmp.lt.s32.totalorder %s16, 1
      %s216 = scalar_select %p215, %s16, 1
      %s217 = smul.addr %s216, 32
      %s218 = smul.addr %s217, 8
      %s219 = scalar_lea.vmem %s0, %s218
      %p220 = scmp.lt.s32.totalorder %s16, 1
      %s221 = scalar_select %p220, %s16, 1
      %s222 = smul.addr %s221, 8
      %s223 = smul.addr %s222, 8
      %s224 = scalar_lea.vmem %s5, %s223
      %225 = vst [vmem:[#allocation2] sm:$0xff] 0.0
      %226 = vst [vmem:[#allocation2 + $0x8] sm:$0x1] 0.0
      %227 = vst [vmem:[#allocation2 + $0x10] sm:$0xff] 0.0
      %228 = vst [vmem:[#allocation2 + $0x18] sm:$0x1] 0.0
      %229 = vst [vmem:[#allocation2 + $0x20] sm:$0xff] 0.0
      %230 = vst [vmem:[#allocation2 + $0x28] sm:$0x1] 0.0
      %231 = vst [vmem:[#allocation2 + $0x30] sm:$0xff] 0.0
      %232 = vst [vmem:[#allocation2 + $0x38] sm:$0x1] 0.0
      %233 = vst [vmem:[#allocation2 + $0x40] sm:$0xff] 0.0
      %234 = vst [vmem:[#allocation2 + $0x48] sm:$0x1] 0.0
      %235 = vst [vmem:[#allocation2 + $0x50] sm:$0xff] 0.0
      %236 = vst [vmem:[#allocation2 + $0x58] sm:$0x1] 0.0
      %237 = vst [vmem:[#allocation2 + $0x60] sm:$0xff] 0.0
      %238 = vst [vmem:[#allocation2 + $0x68] sm:$0x1] 0.0
      %239 = vst [vmem:[#allocation2 + $0x70] sm:$0xff] 0.0
      %240 = vst [vmem:[#allocation2 + $0x78] sm:$0x1] 0.0
      %241 = vst [vmem:[#allocation2 + $0x80] sm:$0xff] 0.0
      %242 = vst [vmem:[#allocation2 + $0x88] sm:$0x1] 0.0
      %243 = vst [vmem:[#allocation2 + $0x90] sm:$0xff] 0.0
      %244 = vst [vmem:[#allocation2 + $0x98] sm:$0x1] 0.0
      %245 = vst [vmem:[#allocation2 + $0xa0] sm:$0xff] 0.0
      %246 = vst [vmem:[#allocation2 + $0xa8] sm:$0x1] 0.0
      %247 = vst [vmem:[#allocation2 + $0xb0] sm:$0xff] 0.0
      %248 = vst [vmem:[#allocation2 + $0xb8] sm:$0x1] 0.0
      %249 = vst [vmem:[#allocation2 + $0xc0] sm:$0xff] 0.0
      %250 = vst [vmem:[#allocation2 + $0xc8] sm:$0x1] 0.0
      %251 = vst [vmem:[#allocation2 + $0xd0] sm:$0xff] 0.0
      %252 = vst [vmem:[#allocation2 + $0xd8] sm:$0x1] 0.0
      %253 = vst [vmem:[#allocation2 + $0xe0] sm:$0xff] 0.0
      %254 = vst [vmem:[#allocation2 + $0xe8] sm:$0x1] 0.0
      %255 = vst [vmem:[#allocation2 + $0xf0] sm:$0xff] 0.0
      %256 = vst [vmem:[#allocation2 + $0xf8] sm:$0x1] 0.0
      %257 = vst [vmem:[#allocation2 + $0x100] sm:$0xff] 0.0
      %258 = vst [vmem:[#allocation2 + $0x108] sm:$0x1] 0.0
      %259 = vst [vmem:[#allocation2 + $0x110] sm:$0xff] 0.0
      %260 = vst [vmem:[#allocation2 + $0x118] sm:$0x1] 0.0
      %261 = vst [vmem:[#allocation2 + $0x120] sm:$0xff] 0.0
      %262 = vst [vmem:[#allocation2 + $0x128] sm:$0x1] 0.0
      %263 = vst [vmem:[#allocation2 + $0x130] sm:$0xff] 0.0
      %264 = vst [vmem:[#allocation2 + $0x138] sm:$0x1] 0.0
      %265 = vst [vmem:[#allocation2 + $0x140] sm:$0xff] 0.0
      %266 = vst [vmem:[#allocation2 + $0x148] sm:$0x1] 0.0
      %267 = vst [vmem:[#allocation2 + $0x150] sm:$0xff] 0.0
      %268 = vst [vmem:[#allocation2 + $0x158] sm:$0x1] 0.0
      %269 = vst [vmem:[#allocation2 + $0x160] sm:$0xff] 0.0
      %270 = vst [vmem:[#allocation2 + $0x168] sm:$0x1] 0.0
      %271 = vst [vmem:[#allocation2 + $0x170] sm:$0xff] 0.0
      %272 = vst [vmem:[#allocation2 + $0x178] sm:$0x1] 0.0
      %273 = vst [vmem:[#allocation2 + $0x180] sm:$0xff] 0.0
      %274 = vst [vmem:[#allocation2 + $0x188] sm:$0x1] 0.0
      %275 = vst [vmem:[#allocation2 + $0x190] sm:$0xff] 0.0
      %276 = vst [vmem:[#allocation2 + $0x198] sm:$0x1] 0.0
      %277 = vst [vmem:[#allocation2 + $0x1a0] sm:$0xff] 0.0
      %278 = vst [vmem:[#allocation2 + $0x1a8] sm:$0x1] 0.0
      %279 = vst [vmem:[#allocation2 + $0x1b0] sm:$0xff] 0.0
      %280 = vst [vmem:[#allocation2 + $0x1b8] sm:$0x1] 0.0
      %281 = vst [vmem:[#allocation2 + $0x1c0] sm:$0xff] 0.0
      %282 = vst [vmem:[#allocation2 + $0x1c8] sm:$0x1] 0.0
      %283 = vst [vmem:[#allocation2 + $0x1d0] sm:$0xff] 0.0
      %284 = vst [vmem:[#allocation2 + $0x1d8] sm:$0x1] 0.0
      %285 = vst [vmem:[#allocation2 + $0x1e0] sm:$0xff] 0.0
      %286 = vst [vmem:[#allocation2 + $0x1e8] sm:$0x1] 0.0
      %287 = vst [vmem:[#allocation2 + $0x1f0] sm:$0xff] 0.0
      %288 = vst [vmem:[#allocation2 + $0x1f8] sm:$0x1] 0.0
      %289 = vst [vmem:[#allocation2 + $0x200] sm:$0xff] 0.0
      %290 = vst [vmem:[#allocation2 + $0x208] sm:$0x1] 0.0
      %291 = vst [vmem:[#allocation2 + $0x210] sm:$0xff] 0.0
      %292 = vst [vmem:[#allocation2 + $0x218] sm:$0x1] 0.0
      %293 = vst [vmem:[#allocation2 + $0x220] sm:$0xff] 0.0
      %294 = vst [vmem:[#allocation2 + $0x228] sm:$0x1] 0.0
      %295 = vst [vmem:[#allocation2 + $0x230] sm:$0xff] 0.0
      %296 = vst [vmem:[#allocation2 + $0x238] sm:$0x1] 0.0
      %s297 = scalar_lea.vmem %s219, 192
      %v298 = vld [vmem:[%s297] sm:$0xff]
      %v299 = vld [vmem:[%s297 + $0x8] sm:$0xff]
      %v300 = vld [vmem:[%s297 + $0x10] sm:$0xff]
      %v301 = vld [vmem:[%s297 + $0x18] sm:$0xff]
      %v302 = vld [vmem:[%s297 + $0x20] sm:$0xff]
      %v303 = vld [vmem:[%s297 + $0x28] sm:$0xff]
      %v304 = vld [vmem:[%s297 + $0x30] sm:$0xff]
      %v305 = vld [vmem:[%s297 + $0x38] sm:$0xff]
      %v306 = vld [vmem:[%s1] sm:$0x1]
      %v308 = vlaneseq
      %v309 = vshrl.u32 %v308, 7
      %v310 = vsub.s32 0, %v309
      %v311 = vrot.slane %v306, %v310
      %v313 = vmul.f32 %v298, %v311
      %v314 = vmul.f32 %v299, %v311
      %v315 = vmul.f32 %v300, %v311
      %v316 = vmul.f32 %v301, %v311
      %v317 = vmul.f32 %v302, %v311
      %v318 = vmul.f32 %v303, %v311
      %v319 = vmul.f32 %v304, %v311
      %v320 = vmul.f32 %v305, %v311
      %v321 = vld [vmem:[%s2] sm:$0x1]
      %v323 = vlaneseq
      %v324 = vshrl.u32 %v323, 7
      %v325 = vsub.s32 0, %v324
      %v326 = vrot.slane %v321, %v325
      %v328 = vadd.f32 %v313, %v326
      %v329 = vadd.f32 %v314, %v326
      %v330 = vadd.f32 %v315, %v326
      %v331 = vadd.f32 %v316, %v326
      %v332 = vadd.f32 %v317, %v326
      %v333 = vadd.f32 %v318, %v326
      %v334 = vadd.f32 %v319, %v326
      %v335 = vadd.f32 %v320, %v326
      %s336 = scalar_lea.vmem [#allocation2], 16
      %337 = vst [vmem:[%s336 + $0x1] sm:$0xff] %v328
      %338 = vst [vmem:[%s336 + $0x11] sm:$0xff] %v329
      %339 = vst [vmem:[%s336 + $0x21] sm:$0xff] %v330
      %340 = vst [vmem:[%s336 + $0x31] sm:$0xff] %v331
      %341 = vst [vmem:[%s336 + $0x41] sm:$0xff] %v332
      %342 = vst [vmem:[%s336 + $0x51] sm:$0xff] %v333
      %343 = vst [vmem:[%s336 + $0x61] sm:$0xff] %v334
      %344 = vst [vmem:[%s336 + $0x71] sm:$0xff] %v335
      %s345 = scalar_lea.vmem %s219, 128
      %v346 = vld [vmem:[%s345] sm:$0xff]
      %v347 = vld [vmem:[%s345 + $0x8] sm:$0xff]
      %v348 = vld [vmem:[%s345 + $0x10] sm:$0xff]
      %v349 = vld [vmem:[%s345 + $0x18] sm:$0xff]
      %v350 = vld [vmem:[%s345 + $0x20] sm:$0xff]
      %v351 = vld [vmem:[%s345 + $0x28] sm:$0xff]
      %v352 = vld [vmem:[%s345 + $0x30] sm:$0xff]
      %v353 = vld [vmem:[%s345 + $0x38] sm:$0xff]
      %v354 = vld [vmem:[%s1] sm:$0x1]
      %v356 = vlaneseq
      %v357 = vshrl.u32 %v356, 7
      %v358 = vsub.s32 0, %v357
      %v359 = vrot.slane %v354, %v358
      %v361 = vmul.f32 %v346, %v359
      %v362 = vmul.f32 %v347, %v359
      %v363 = vmul.f32 %v348, %v359
      %v364 = vmul.f32 %v349, %v359
      %v365 = vmul.f32 %v350, %v359
      %v366 = vmul.f32 %v351, %v359
      %v367 = vmul.f32 %v352, %v359
      %v368 = vmul.f32 %v353, %v359
      %v369 = vld [vmem:[%s2] sm:$0x1]
      %v371 = vlaneseq
      %v372 = vshrl.u32 %v371, 7
      %v373 = vsub.s32 0, %v372
      %v374 = vrot.slane %v369, %v373
      %v376 = vadd.f32 %v361, %v374
      %v377 = vadd.f32 %v362, %v374
      %v378 = vadd.f32 %v363, %v374
      %v379 = vadd.f32 %v364, %v374
      %v380 = vadd.f32 %v365, %v374
      %v381 = vadd.f32 %v366, %v374
      %v382 = vadd.f32 %v367, %v374
      %v383 = vadd.f32 %v368, %v374
      %s384 = scalar_lea.vmem [#allocation2], 160
      %385 = vst [vmem:[%s384] sm:$0xff] %v376
      %386 = vst [vmem:[%s384 + $0x10] sm:$0xff] %v377
      %387 = vst [vmem:[%s384 + $0x20] sm:$0xff] %v378
      %388 = vst [vmem:[%s384 + $0x30] sm:$0xff] %v379
      %389 = vst [vmem:[%s384 + $0x40] sm:$0xff] %v380
      %390 = vst [vmem:[%s384 + $0x50] sm:$0xff] %v381
      %391 = vst [vmem:[%s384 + $0x60] sm:$0xff] %v382
      %392 = vst [vmem:[%s384 + $0x70] sm:$0xff] %v383
      %s393 = scalar_lea.vmem %s219, 64
      %v394 = vld [vmem:[%s393] sm:$0xff]
      %v395 = vld [vmem:[%s393 + $0x8] sm:$0xff]
      %v396 = vld [vmem:[%s393 + $0x10] sm:$0xff]
      %v397 = vld [vmem:[%s393 + $0x18] sm:$0xff]
      %v398 = vld [vmem:[%s393 + $0x20] sm:$0xff]
      %v399 = vld [vmem:[%s393 + $0x28] sm:$0xff]
      %v400 = vld [vmem:[%s393 + $0x30] sm:$0xff]
      %v401 = vld [vmem:[%s393 + $0x38] sm:$0xff]
      %v402 = vld [vmem:[%s1] sm:$0x1]
      %v404 = vlaneseq
      %v405 = vshrl.u32 %v404, 7
      %v406 = vsub.s32 0, %v405
      %v407 = vrot.slane %v402, %v406
      %v409 = vmul.f32 %v394, %v407
      %v410 = vmul.f32 %v395, %v407
      %v411 = vmul.f32 %v396, %v407
      %v412 = vmul.f32 %v397, %v407
      %v413 = vmul.f32 %v398, %v407
      %v414 = vmul.f32 %v399, %v407
      %v415 = vmul.f32 %v400, %v407
      %v416 = vmul.f32 %v401, %v407
      %v417 = vld [vmem:[%s2] sm:$0x1]
      %v419 = vlaneseq
      %v420 = vshrl.u32 %v419, 7
      %v421 = vsub.s32 0, %v420
      %v422 = vrot.slane %v417, %v421
      %v424 = vadd.f32 %v409, %v422
      %v425 = vadd.f32 %v410, %v422
      %v426 = vadd.f32 %v411, %v422
      %v427 = vadd.f32 %v412, %v422
      %v428 = vadd.f32 %v413, %v422
      %v429 = vadd.f32 %v414, %v422
      %v430 = vadd.f32 %v415, %v422
      %v431 = vadd.f32 %v416, %v422
      %s432 = scalar_lea.vmem [#allocation2], 288
      %433 = vst [vmem:[%s432 + $0x1] sm:$0xff] %v424
      %434 = vst [vmem:[%s432 + $0x11] sm:$0xff] %v425
      %435 = vst [vmem:[%s432 + $0x21] sm:$0xff] %v426
      %436 = vst [vmem:[%s432 + $0x31] sm:$0xff] %v427
      %437 = vst [vmem:[%s432 + $0x41] sm:$0xff] %v428
      %438 = vst [vmem:[%s432 + $0x51] sm:$0xff] %v429
      %439 = vst [vmem:[%s432 + $0x61] sm:$0xff] %v430
      %440 = vst [vmem:[%s432 + $0x71] sm:$0xff] %v431
      %v441 = vld [vmem:[%s219] sm:$0xff]
      %v442 = vld [vmem:[%s219 + $0x8] sm:$0xff]
      %v443 = vld [vmem:[%s219 + $0x10] sm:$0xff]
      %v444 = vld [vmem:[%s219 + $0x18] sm:$0xff]
      %v445 = vld [vmem:[%s219 + $0x20] sm:$0xff]
      %v446 = vld [vmem:[%s219 + $0x28] sm:$0xff]
      %v447 = vld [vmem:[%s219 + $0x30] sm:$0xff]
      %v448 = vld [vmem:[%s219 + $0x38] sm:$0xff]
      %v449 = vld [vmem:[%s1] sm:$0x1]
      %v451 = vlaneseq
      %v452 = vshrl.u32 %v451, 7
      %v453 = vsub.s32 0, %v452
      %v454 = vrot.slane %v449, %v453
      %v456 = vmul.f32 %v441, %v454
      %v457 = vmul.f32 %v442, %v454
      %v458 = vmul.f32 %v443, %v454
      %v459 = vmul.f32 %v444, %v454
      %v460 = vmul.f32 %v445, %v454
      %v461 = vmul.f32 %v446, %v454
      %v462 = vmul.f32 %v447, %v454
      %v463 = vmul.f32 %v448, %v454
      %v464 = vld [vmem:[%s2] sm:$0x1]
      %v466 = vlaneseq
      %v467 = vshrl.u32 %v466, 7
      %v468 = vsub.s32 0, %v467
      %v469 = vrot.slane %v464, %v468
      %v471 = vadd.f32 %v456, %v469
      %v472 = vadd.f32 %v457, %v469
      %v473 = vadd.f32 %v458, %v469
      %v474 = vadd.f32 %v459, %v469
      %v475 = vadd.f32 %v460, %v469
      %v476 = vadd.f32 %v461, %v469
      %v477 = vadd.f32 %v462, %v469
      %v478 = vadd.f32 %v463, %v469
      %s479 = scalar_lea.vmem [#allocation2], 432
      %480 = vst [vmem:[%s479] sm:$0xff] %v471
      %481 = vst [vmem:[%s479 + $0x10] sm:$0xff] %v472
      %482 = vst [vmem:[%s479 + $0x20] sm:$0xff] %v473
      %483 = vst [vmem:[%s479 + $0x30] sm:$0xff] %v474
      %484 = vst [vmem:[%s479 + $0x40] sm:$0xff] %v475
      %485 = vst [vmem:[%s479 + $0x50] sm:$0xff] %v476
      %486 = vst [vmem:[%s479 + $0x60] sm:$0xff] %v477
      %487 = vst [vmem:[%s479 + $0x70] sm:$0xff] %v478
      %v488 = vld [vmem:[#allocation2] sm:$0xff]
      %v489 = vld [vmem:[#allocation2 + $0x10] sm:$0xff]
      %v490 = vld [vmem:[#allocation2 + $0x20] sm:$0xff]
      %v491 = vld [vmem:[#allocation2 + $0x30] sm:$0xff]
      %v492 = vld [vmem:[#allocation2 + $0x40] sm:$0xff]
      %v493 = vld [vmem:[#allocation2 + $0x50] sm:$0xff]
      %v494 = vld [vmem:[#allocation2 + $0x60] sm:$0xff]
      %v495 = vld [vmem:[#allocation2 + $0x70] sm:$0xff]
      %496 = vst [vmem:[#allocation3] sm:$0xff] %v488
      %497 = vst [vmem:[#allocation3 + $0x80] sm:$0xff] %v489
      %498 = vst [vmem:[#allocation3 + $0x100] sm:$0xff] %v490
      %499 = vst [vmem:[#allocation3 + $0x180] sm:$0xff] %v491
      %500 = vst [vmem:[#allocation3 + $0x200] sm:$0xff] %v492
      %501 = vst [vmem:[#allocation3 + $0x280] sm:$0xff] %v493
      %502 = vst [vmem:[#allocation3 + $0x300] sm:$0xff] %v494
      %503 = vst [vmem:[#allocation3 + $0x380] sm:$0xff] %v495
      %v504 = vld [vmem:[#allocation2 + $0x1] sm:$0xff]
      %v505 = vld [vmem:[#allocation2 + $0x11] sm:$0xff]
      %v506 = vld [vmem:[#allocation2 + $0x21] sm:$0xff]
      %v507 = vld [vmem:[#allocation2 + $0x31] sm:$0xff]
      %v508 = vld [vmem:[#allocation2 + $0x41] sm:$0xff]
      %v509 = vld [vmem:[#allocation2 + $0x51] sm:$0xff]
      %v510 = vld [vmem:[#allocation2 + $0x61] sm:$0xff]
      %v511 = vld [vmem:[#allocation2 + $0x71] sm:$0xff]
      %512 = vst [vmem:[#allocation3 + $0x8] sm:$0xff] %v504
      %513 = vst [vmem:[#allocation3 + $0x88] sm:$0xff] %v505
      %514 = vst [vmem:[#allocation3 + $0x108] sm:$0xff] %v506
      %515 = vst [vmem:[#allocation3 + $0x188] sm:$0xff] %v507
      %516 = vst [vmem:[#allocation3 + $0x208] sm:$0xff] %v508
      %517 = vst [vmem:[#allocation3 + $0x288] sm:$0xff] %v509
      %518 = vst [vmem:[#allocation3 + $0x308] sm:$0xff] %v510
      %519 = vst [vmem:[#allocation3 + $0x388] sm:$0xff] %v511
      %v520 = vld [vmem:[%s336] sm:$0xff]
      %v521 = vld [vmem:[%s336 + $0x10] sm:$0xff]
      %v522 = vld [vmem:[%s336 + $0x20] sm:$0xff]
      %v523 = vld [vmem:[%s336 + $0x30] sm:$0xff]
      %v524 = vld [vmem:[%s336 + $0x40] sm:$0xff]
      %v525 = vld [vmem:[%s336 + $0x50] sm:$0xff]
      %v526 = vld [vmem:[%s336 + $0x60] sm:$0xff]
      %v527 = vld [vmem:[%s336 + $0x70] sm:$0xff]
      %528 = vst [vmem:[#allocation3 + $0x10] sm:$0xff] %v520
      %529 = vst [vmem:[#allocation3 + $0x90] sm:$0xff] %v521
      %530 = vst [vmem:[#allocation3 + $0x110] sm:$0xff] %v522
      %531 = vst [vmem:[#allocation3 + $0x190] sm:$0xff] %v523
      %532 = vst [vmem:[#allocation3 + $0x210] sm:$0xff] %v524
      %533 = vst [vmem:[#allocation3 + $0x290] sm:$0xff] %v525
      %534 = vst [vmem:[#allocation3 + $0x310] sm:$0xff] %v526
      %535 = vst [vmem:[#allocation3 + $0x390] sm:$0xff] %v527
      %v536 = vld [vmem:[%s336 + $0x1] sm:$0xff]
      %v537 = vld [vmem:[%s336 + $0x11] sm:$0xff]
      %v538 = vld [vmem:[%s336 + $0x21] sm:$0xff]
      %v539 = vld [vmem:[%s336 + $0x31] sm:$0xff]
      %v540 = vld [vmem:[%s336 + $0x41] sm:$0xff]
      %v541 = vld [vmem:[%s336 + $0x51] sm:$0xff]
      %v542 = vld [vmem:[%s336 + $0x61] sm:$0xff]
      %v543 = vld [vmem:[%s336 + $0x71] sm:$0xff]
      %544 = vst [vmem:[#allocation3 + $0x18] sm:$0xff] %v536
      %545 = vst [vmem:[#allocation3 + $0x98] sm:$0xff] %v537
      %546 = vst [vmem:[#allocation3 + $0x118] sm:$0xff] %v538
      %547 = vst [vmem:[#allocation3 + $0x198] sm:$0xff] %v539
      %548 = vst [vmem:[#allocation3 + $0x218] sm:$0xff] %v540
      %549 = vst [vmem:[#allocation3 + $0x298] sm:$0xff] %v541
      %550 = vst [vmem:[#allocation3 + $0x318] sm:$0xff] %v542
      %551 = vst [vmem:[#allocation3 + $0x398] sm:$0xff] %v543
      %s552 = scalar_lea.vmem [#allocation2], 144
      %v553 = vld [vmem:[%s552] sm:$0xff]
      %v554 = vld [vmem:[%s552 + $0x10] sm:$0xff]
      %v555 = vld [vmem:[%s552 + $0x20] sm:$0xff]
      %v556 = vld [vmem:[%s552 + $0x30] sm:$0xff]
      %v557 = vld [vmem:[%s552 + $0x40] sm:$0xff]
      %v558 = vld [vmem:[%s552 + $0x50] sm:$0xff]
      %v559 = vld [vmem:[%s552 + $0x60] sm:$0xff]
      %v560 = vld [vmem:[%s552 + $0x70] sm:$0xff]
      %561 = vst [vmem:[#allocation3 + $0x20] sm:$0xff] %v553
      %562 = vst [vmem:[#allocation3 + $0xa0] sm:$0xff] %v554
      %563 = vst [vmem:[#allocation3 + $0x120] sm:$0xff] %v555
      %564 = vst [vmem:[#allocation3 + $0x1a0] sm:$0xff] %v556
      %565 = vst [vmem:[#allocation3 + $0x220] sm:$0xff] %v557
      %566 = vst [vmem:[#allocation3 + $0x2a0] sm:$0xff] %v558
      %567 = vst [vmem:[#allocation3 + $0x320] sm:$0xff] %v559
      %568 = vst [vmem:[#allocation3 + $0x3a0] sm:$0xff] %v560
      %v569 = vld [vmem:[%s552 + $0x1] sm:$0xff]
      %v570 = vld [vmem:[%s552 + $0x11] sm:$0xff]
      %v571 = vld [vmem:[%s552 + $0x21] sm:$0xff]
      %v572 = vld [vmem:[%s552 + $0x31] sm:$0xff]
      %v573 = vld [vmem:[%s552 + $0x41] sm:$0xff]
      %v574 = vld [vmem:[%s552 + $0x51] sm:$0xff]
      %v575 = vld [vmem:[%s552 + $0x61] sm:$0xff]
      %v576 = vld [vmem:[%s552 + $0x71] sm:$0xff]
      %577 = vst [vmem:[#allocation3 + $0x28] sm:$0xff] %v569
      %578 = vst [vmem:[#allocation3 + $0xa8] sm:$0xff] %v570
      %579 = vst [vmem:[#allocation3 + $0x128] sm:$0xff] %v571
      %580 = vst [vmem:[#allocation3 + $0x1a8] sm:$0xff] %v572
      %581 = vst [vmem:[#allocation3 + $0x228] sm:$0xff] %v573
      %582 = vst [vmem:[#allocation3 + $0x2a8] sm:$0xff] %v574
      %583 = vst [vmem:[#allocation3 + $0x328] sm:$0xff] %v575
      %584 = vst [vmem:[#allocation3 + $0x3a8] sm:$0xff] %v576
      %v585 = vld [vmem:[%s384] sm:$0xff]
      %v586 = vld [vmem:[%s384 + $0x10] sm:$0xff]
      %v587 = vld [vmem:[%s384 + $0x20] sm:$0xff]
      %v588 = vld [vmem:[%s384 + $0x30] sm:$0xff]
      %v589 = vld [vmem:[%s384 + $0x40] sm:$0xff]
      %v590 = vld [vmem:[%s384 + $0x50] sm:$0xff]
      %v591 = vld [vmem:[%s384 + $0x60] sm:$0xff]
      %v592 = vld [vmem:[%s384 + $0x70] sm:$0xff]
      %593 = vst [vmem:[#allocation3 + $0x30] sm:$0xff] %v585
      %594 = vst [vmem:[#allocation3 + $0xb0] sm:$0xff] %v586
      %595 = vst [vmem:[#allocation3 + $0x130] sm:$0xff] %v587
      %596 = vst [vmem:[#allocation3 + $0x1b0] sm:$0xff] %v588
      %597 = vst [vmem:[#allocation3 + $0x230] sm:$0xff] %v589
      %598 = vst [vmem:[#allocation3 + $0x2b0] sm:$0xff] %v590
      %599 = vst [vmem:[#allocation3 + $0x330] sm:$0xff] %v591
      %600 = vst [vmem:[#allocation3 + $0x3b0] sm:$0xff] %v592
      %v601 = vld [vmem:[%s384 + $0x1] sm:$0xff]
      %v602 = vld [vmem:[%s384 + $0x11] sm:$0xff]
      %v603 = vld [vmem:[%s384 + $0x21] sm:$0xff]
      %v604 = vld [vmem:[%s384 + $0x31] sm:$0xff]
      %v605 = vld [vmem:[%s384 + $0x41] sm:$0xff]
      %v606 = vld [vmem:[%s384 + $0x51] sm:$0xff]
      %v607 = vld [vmem:[%s384 + $0x61] sm:$0xff]
      %v608 = vld [vmem:[%s384 + $0x71] sm:$0xff]
      %609 = vst [vmem:[#allocation3 + $0x38] sm:$0xff] %v601
      %610 = vst [vmem:[#allocation3 + $0xb8] sm:$0xff] %v602
      %611 = vst [vmem:[#allocation3 + $0x138] sm:$0xff] %v603
      %612 = vst [vmem:[#allocation3 + $0x1b8] sm:$0xff] %v604
      %613 = vst [vmem:[#allocation3 + $0x238] sm:$0xff] %v605
      %614 = vst [vmem:[#allocation3 + $0x2b8] sm:$0xff] %v606
      %615 = vst [vmem:[#allocation3 + $0x338] sm:$0xff] %v607
      %616 = vst [vmem:[#allocation3 + $0x3b8] sm:$0xff] %v608
      %v617 = vld [vmem:[%s432] sm:$0xff]
      %v618 = vld [vmem:[%s432 + $0x10] sm:$0xff]
      %v619 = vld [vmem:[%s432 + $0x20] sm:$0xff]
      %v620 = vld [vmem:[%s432 + $0x30] sm:$0xff]
      %v621 = vld [vmem:[%s432 + $0x40] sm:$0xff]
      %v622 = vld [vmem:[%s432 + $0x50] sm:$0xff]
      %v623 = vld [vmem:[%s432 + $0x60] sm:$0xff]
      %v624 = vld [vmem:[%s432 + $0x70] sm:$0xff]
      %625 = vst [vmem:[#allocation3 + $0x40] sm:$0xff] %v617
      %626 = vst [vmem:[#allocation3 + $0xc0] sm:$0xff] %v618
      %627 = vst [vmem:[#allocation3 + $0x140] sm:$0xff] %v619
      %628 = vst [vmem:[#allocation3 + $0x1c0] sm:$0xff] %v620
      %629 = vst [vmem:[#allocation3 + $0x240] sm:$0xff] %v621
      %630 = vst [vmem:[#allocation3 + $0x2c0] sm:$0xff] %v622
      %631 = vst [vmem:[#allocation3 + $0x340] sm:$0xff] %v623
      %632 = vst [vmem:[#allocation3 + $0x3c0] sm:$0xff] %v624
      %v633 = vld [vmem:[%s432 + $0x1] sm:$0xff]
      %v634 = vld [vmem:[%s432 + $0x11] sm:$0xff]
      %v635 = vld [vmem:[%s432 + $0x21] sm:$0xff]
      %v636 = vld [vmem:[%s432 + $0x31] sm:$0xff]
      %v637 = vld [vmem:[%s432 + $0x41] sm:$0xff]
      %v638 = vld [vmem:[%s432 + $0x51] sm:$0xff]
      %v639 = vld [vmem:[%s432 + $0x61] sm:$0xff]
      %v640 = vld [vmem:[%s432 + $0x71] sm:$0xff]
      %641 = vst [vmem:[#allocation3 + $0x48] sm:$0xff] %v633
      %642 = vst [vmem:[#allocation3 + $0xc8] sm:$0xff] %v634
      %643 = vst [vmem:[#allocation3 + $0x148] sm:$0xff] %v635
      %644 = vst [vmem:[#allocation3 + $0x1c8] sm:$0xff] %v636
      %645 = vst [vmem:[#allocation3 + $0x248] sm:$0xff] %v637
      %646 = vst [vmem:[#allocation3 + $0x2c8] sm:$0xff] %v638
      %647 = vst [vmem:[#allocation3 + $0x348] sm:$0xff] %v639
      %648 = vst [vmem:[#allocation3 + $0x3c8] sm:$0xff] %v640
      %s649 = scalar_lea.vmem [#allocation2], 304
      %v650 = vld [vmem:[%s649] sm:$0xff]
      %v651 = vld [vmem:[%s649 + $0x10] sm:$0xff]
      %v652 = vld [vmem:[%s649 + $0x20] sm:$0xff]
      %v653 = vld [vmem:[%s649 + $0x30] sm:$0xff]
      %v654 = vld [vmem:[%s649 + $0x40] sm:$0xff]
      %v655 = vld [vmem:[%s649 + $0x50] sm:$0xff]
      %v656 = vld [vmem:[%s649 + $0x60] sm:$0xff]
      %v657 = vld [vmem:[%s649 + $0x70] sm:$0xff]
      %658 = vst [vmem:[#allocation3 + $0x50] sm:$0xff] %v650
      %659 = vst [vmem:[#allocation3 + $0xd0] sm:$0xff] %v651
      %660 = vst [vmem:[#allocation3 + $0x150] sm:$0xff] %v652
      %661 = vst [vmem:[#allocation3 + $0x1d0] sm:$0xff] %v653
      %662 = vst [vmem:[#allocation3 + $0x250] sm:$0xff] %v654
      %663 = vst [vmem:[#allocation3 + $0x2d0] sm:$0xff] %v655
      %664 = vst [vmem:[#allocation3 + $0x350] sm:$0xff] %v656
      %665 = vst [vmem:[#allocation3 + $0x3d0] sm:$0xff] %v657
      %v666 = vld [vmem:[%s649 + $0x1] sm:$0xff]
      %v667 = vld [vmem:[%s649 + $0x11] sm:$0xff]
      %v668 = vld [vmem:[%s649 + $0x21] sm:$0xff]
      %v669 = vld [vmem:[%s649 + $0x31] sm:$0xff]
      %v670 = vld [vmem:[%s649 + $0x41] sm:$0xff]
      %v671 = vld [vmem:[%s649 + $0x51] sm:$0xff]
      %v672 = vld [vmem:[%s649 + $0x61] sm:$0xff]
      %v673 = vld [vmem:[%s649 + $0x71] sm:$0xff]
      %674 = vst [vmem:[#allocation3 + $0x58] sm:$0xff] %v666
      %675 = vst [vmem:[#allocation3 + $0xd8] sm:$0xff] %v667
      %676 = vst [vmem:[#allocation3 + $0x158] sm:$0xff] %v668
      %677 = vst [vmem:[#allocation3 + $0x1d8] sm:$0xff] %v669
      %678 = vst [vmem:[#allocation3 + $0x258] sm:$0xff] %v670
      %679 = vst [vmem:[#allocation3 + $0x2d8] sm:$0xff] %v671
      %680 = vst [vmem:[#allocation3 + $0x358] sm:$0xff] %v672
      %681 = vst [vmem:[#allocation3 + $0x3d8] sm:$0xff] %v673
      %v682 = vld [vmem:[%s479] sm:$0xff]
      %v683 = vld [vmem:[%s479 + $0x10] sm:$0xff]
      %v684 = vld [vmem:[%s479 + $0x20] sm:$0xff]
      %v685 = vld [vmem:[%s479 + $0x30] sm:$0xff]
      %v686 = vld [vmem:[%s479 + $0x40] sm:$0xff]
      %v687 = vld [vmem:[%s479 + $0x50] sm:$0xff]
      %v688 = vld [vmem:[%s479 + $0x60] sm:$0xff]
      %v689 = vld [vmem:[%s479 + $0x70] sm:$0xff]
      %690 = vst [vmem:[#allocation3 + $0x60] sm:$0xff] %v682
      %691 = vst [vmem:[#allocation3 + $0xe0] sm:$0xff] %v683
      %692 = vst [vmem:[#allocation3 + $0x160] sm:$0xff] %v684
      %693 = vst [vmem:[#allocation3 + $0x1e0] sm:$0xff] %v685
      %694 = vst [vmem:[#allocation3 + $0x260] sm:$0xff] %v686
      %695 = vst [vmem:[#allocation3 + $0x2e0] sm:$0xff] %v687
      %696 = vst [vmem:[#allocation3 + $0x360] sm:$0xff] %v688
      %697 = vst [vmem:[#allocation3 + $0x3e0] sm:$0xff] %v689
      %v698 = vld [vmem:[%s479 + $0x1] sm:$0xff]
      %v699 = vld [vmem:[%s479 + $0x11] sm:$0xff]
      %v700 = vld [vmem:[%s479 + $0x21] sm:$0xff]
      %v701 = vld [vmem:[%s479 + $0x31] sm:$0xff]
      %v702 = vld [vmem:[%s479 + $0x41] sm:$0xff]
      %v703 = vld [vmem:[%s479 + $0x51] sm:$0xff]
      %v704 = vld [vmem:[%s479 + $0x61] sm:$0xff]
      %v705 = vld [vmem:[%s479 + $0x71] sm:$0xff]
      %706 = vst [vmem:[#allocation3 + $0x68] sm:$0xff] %v698
      %707 = vst [vmem:[#allocation3 + $0xe8] sm:$0xff] %v699
      %708 = vst [vmem:[#allocation3 + $0x168] sm:$0xff] %v700
      %709 = vst [vmem:[#allocation3 + $0x1e8] sm:$0xff] %v701
      %710 = vst [vmem:[#allocation3 + $0x268] sm:$0xff] %v702
      %711 = vst [vmem:[#allocation3 + $0x2e8] sm:$0xff] %v703
      %712 = vst [vmem:[#allocation3 + $0x368] sm:$0xff] %v704
      %713 = vst [vmem:[#allocation3 + $0x3e8] sm:$0xff] %v705
      %s714 = scalar_lea.vmem [#allocation2], 448
      %v715 = vld [vmem:[%s714] sm:$0xff]
      %v716 = vld [vmem:[%s714 + $0x10] sm:$0xff]
      %v717 = vld [vmem:[%s714 + $0x20] sm:$0xff]
      %v718 = vld [vmem:[%s714 + $0x30] sm:$0xff]
      %v719 = vld [vmem:[%s714 + $0x40] sm:$0xff]
      %v720 = vld [vmem:[%s714 + $0x50] sm:$0xff]
      %v721 = vld [vmem:[%s714 + $0x60] sm:$0xff]
      %v722 = vld [vmem:[%s714 + $0x70] sm:$0xff]
      %723 = vst [vmem:[#allocation3 + $0x70] sm:$0xff] %v715
      %724 = vst [vmem:[#allocation3 + $0xf0] sm:$0xff] %v716
      %725 = vst [vmem:[#allocation3 + $0x170] sm:$0xff] %v717
      %726 = vst [vmem:[#allocation3 + $0x1f0] sm:$0xff] %v718
      %727 = vst [vmem:[#allocation3 + $0x270] sm:$0xff] %v719
      %728 = vst [vmem:[#allocation3 + $0x2f0] sm:$0xff] %v720
      %729 = vst [vmem:[#allocation3 + $0x370] sm:$0xff] %v721
      %730 = vst [vmem:[#allocation3 + $0x3f0] sm:$0xff] %v722
      %v731 = vld [vmem:[%s714 + $0x1] sm:$0xff]
      %v732 = vld [vmem:[%s714 + $0x11] sm:$0xff]
      %v733 = vld [vmem:[%s714 + $0x21] sm:$0xff]
      %v734 = vld [vmem:[%s714 + $0x31] sm:$0xff]
      %v735 = vld [vmem:[%s714 + $0x41] sm:$0xff]
      %v736 = vld [vmem:[%s714 + $0x51] sm:$0xff]
      %v737 = vld [vmem:[%s714 + $0x61] sm:$0xff]
      %v738 = vld [vmem:[%s714 + $0x71] sm:$0xff]
      %739 = vst [vmem:[#allocation3 + $0x78] sm:$0xff] %v731
      %740 = vst [vmem:[#allocation3 + $0xf8] sm:$0xff] %v732
      %741 = vst [vmem:[#allocation3 + $0x178] sm:$0xff] %v733
      %742 = vst [vmem:[#allocation3 + $0x1f8] sm:$0xff] %v734
      %743 = vst [vmem:[#allocation3 + $0x278] sm:$0xff] %v735
      %744 = vst [vmem:[#allocation3 + $0x2f8] sm:$0xff] %v736
      %745 = vst [vmem:[#allocation3 + $0x378] sm:$0xff] %v737
      %746 = vst [vmem:[#allocation3 + $0x3f8] sm:$0xff] %v738
      %v747 = vld [vmem:[#allocation3] sm:$0xff]
      %v748 = vld [vmem:[#allocation3 + $0x8] sm:$0xff]
      %v749 = vld [vmem:[#allocation3 + $0x10] sm:$0xff]
      %v750 = vld [vmem:[#allocation3 + $0x18] sm:$0xff]
      %v751 = vld [vmem:[#allocation3 + $0x20] sm:$0xff]
      %v752 = vld [vmem:[#allocation3 + $0x28] sm:$0xff]
      %v753 = vld [vmem:[#allocation3 + $0x30] sm:$0xff]
      %v754 = vld [vmem:[#allocation3 + $0x38] sm:$0xff]
      %v755 = vld [vmem:[#allocation3 + $0x40] sm:$0xff]
      %v756 = vld [vmem:[#allocation3 + $0x48] sm:$0xff]
      %v757 = vld [vmem:[#allocation3 + $0x50] sm:$0xff]
      %v758 = vld [vmem:[#allocation3 + $0x58] sm:$0xff]
      %v759 = vld [vmem:[#allocation3 + $0x60] sm:$0xff]
      %v760 = vld [vmem:[#allocation3 + $0x68] sm:$0xff]
      %v761 = vld [vmem:[#allocation3 + $0x70] sm:$0xff]
      %v762 = vld [vmem:[#allocation3 + $0x78] sm:$0xff]
      %v763 = vld [vmem:[#allocation3 + $0x80] sm:$0xff]
      %v764 = vld [vmem:[#allocation3 + $0x88] sm:$0xff]
      %v765 = vld [vmem:[#allocation3 + $0x90] sm:$0xff]
      %v766 = vld [vmem:[#allocation3 + $0x98] sm:$0xff]
      %v767 = vld [vmem:[#allocation3 + $0xa0] sm:$0xff]
      %v768 = vld [vmem:[#allocation3 + $0xa8] sm:$0xff]
      %v769 = vld [vmem:[#allocation3 + $0xb0] sm:$0xff]
      %v770 = vld [vmem:[#allocation3 + $0xb8] sm:$0xff]
      %v771 = vld [vmem:[#allocation3 + $0xc0] sm:$0xff]
      %v772 = vld [vmem:[#allocation3 + $0xc8] sm:$0xff]
      %v773 = vld [vmem:[#allocation3 + $0xd0] sm:$0xff]
      %v774 = vld [vmem:[#allocation3 + $0xd8] sm:$0xff]
      %v775 = vld [vmem:[#allocation3 + $0xe0] sm:$0xff]
      %v776 = vld [vmem:[#allocation3 + $0xe8] sm:$0xff]
      %v777 = vld [vmem:[#allocation3 + $0xf0] sm:$0xff]
      %v778 = vld [vmem:[#allocation3 + $0xf8] sm:$0xff]
      %v779 = vld [vmem:[#allocation3 + $0x100] sm:$0xff]
      %v780 = vld [vmem:[#allocation3 + $0x108] sm:$0xff]
      %v781 = vld [vmem:[#allocation3 + $0x110] sm:$0xff]
      %v782 = vld [vmem:[#allocation3 + $0x118] sm:$0xff]
      %v783 = vld [vmem:[#allocation3 + $0x120] sm:$0xff]
      %v784 = vld [vmem:[#allocation3 + $0x128] sm:$0xff]
      %v785 = vld [vmem:[#allocation3 + $0x130] sm:$0xff]
      %v786 = vld [vmem:[#allocation3 + $0x138] sm:$0xff]
      %v787 = vld [vmem:[#allocation3 + $0x140] sm:$0xff]
      %v788 = vld [vmem:[#allocation3 + $0x148] sm:$0xff]
      %v789 = vld [vmem:[#allocation3 + $0x150] sm:$0xff]
      %v790 = vld [vmem:[#allocation3 + $0x158] sm:$0xff]
      %v791 = vld [vmem:[#allocation3 + $0x160] sm:$0xff]
      %v792 = vld [vmem:[#allocation3 + $0x168] sm:$0xff]
      %v793 = vld [vmem:[#allocation3 + $0x170] sm:$0xff]
      %v794 = vld [vmem:[#allocation3 + $0x178] sm:$0xff]
      %v795 = vld [vmem:[#allocation3 + $0x180] sm:$0xff]
      %v796 = vld [vmem:[#allocation3 + $0x188] sm:$0xff]
      %v797 = vld [vmem:[#allocation3 + $0x190] sm:$0xff]
      %v798 = vld [vmem:[#allocation3 + $0x198] sm:$0xff]
      %v799 = vld [vmem:[#allocation3 + $0x1a0] sm:$0xff]
      %v800 = vld [vmem:[#allocation3 + $0x1a8] sm:$0xff]
      %v801 = vld [vmem:[#allocation3 + $0x1b0] sm:$0xff]
      %v802 = vld [vmem:[#allocation3 + $0x1b8] sm:$0xff]
      %v803 = vld [vmem:[#allocation3 + $0x1c0] sm:$0xff]
      %v804 = vld [vmem:[#allocation3 + $0x1c8] sm:$0xff]
      %v805 = vld [vmem:[#allocation3 + $0x1d0] sm:$0xff]
      %v806 = vld [vmem:[#allocation3 + $0x1d8] sm:$0xff]
      %v807 = vld [vmem:[#allocation3 + $0x1e0] sm:$0xff]
      %v808 = vld [vmem:[#allocation3 + $0x1e8] sm:$0xff]
      %v809 = vld [vmem:[#allocation3 + $0x1f0] sm:$0xff]
      %v810 = vld [vmem:[#allocation3 + $0x1f8] sm:$0xff]
      %v811 = vld [vmem:[#allocation3 + $0x200] sm:$0xff]
      %v812 = vld [vmem:[#allocation3 + $0x208] sm:$0xff]
      %v813 = vld [vmem:[#allocation3 + $0x210] sm:$0xff]
      %v814 = vld [vmem:[#allocation3 + $0x218] sm:$0xff]
      %v815 = vld [vmem:[#allocation3 + $0x220] sm:$0xff]
      %v816 = vld [vmem:[#allocation3 + $0x228] sm:$0xff]
      %v817 = vld [vmem:[#allocation3 + $0x230] sm:$0xff]
      %v818 = vld [vmem:[#allocation3 + $0x238] sm:$0xff]
      %v819 = vld [vmem:[#allocation3 + $0x240] sm:$0xff]
      %v820 = vld [vmem:[#allocation3 + $0x248] sm:$0xff]
      %v821 = vld [vmem:[#allocation3 + $0x250] sm:$0xff]
      %v822 = vld [vmem:[#allocation3 + $0x258] sm:$0xff]
      %v823 = vld [vmem:[#allocation3 + $0x260] sm:$0xff]
      %v824 = vld [vmem:[#allocation3 + $0x268] sm:$0xff]
      %v825 = vld [vmem:[#allocation3 + $0x270] sm:$0xff]
      %v826 = vld [vmem:[#allocation3 + $0x278] sm:$0xff]
      %v827 = vld [vmem:[#allocation3 + $0x280] sm:$0xff]
      %v828 = vld [vmem:[#allocation3 + $0x288] sm:$0xff]
      %v829 = vld [vmem:[#allocation3 + $0x290] sm:$0xff]
      %v830 = vld [vmem:[#allocation3 + $0x298] sm:$0xff]
      %v831 = vld [vmem:[#allocation3 + $0x2a0] sm:$0xff]
      %v832 = vld [vmem:[#allocation3 + $0x2a8] sm:$0xff]
      %v833 = vld [vmem:[#allocation3 + $0x2b0] sm:$0xff]
      %v834 = vld [vmem:[#allocation3 + $0x2b8] sm:$0xff]
      %v835 = vld [vmem:[#allocation3 + $0x2c0] sm:$0xff]
      %v836 = vld [vmem:[#allocation3 + $0x2c8] sm:$0xff]
      %v837 = vld [vmem:[#allocation3 + $0x2d0] sm:$0xff]
      %v838 = vld [vmem:[#allocation3 + $0x2d8] sm:$0xff]
      %v839 = vld [vmem:[#allocation3 + $0x2e0] sm:$0xff]
      %v840 = vld [vmem:[#allocation3 + $0x2e8] sm:$0xff]
      %v841 = vld [vmem:[#allocation3 + $0x2f0] sm:$0xff]
      %v842 = vld [vmem:[#allocation3 + $0x2f8] sm:$0xff]
      %v843 = vld [vmem:[#allocation3 + $0x300] sm:$0xff]
      %v844 = vld [vmem:[#allocation3 + $0x308] sm:$0xff]
      %v845 = vld [vmem:[#allocation3 + $0x310] sm:$0xff]
      %v846 = vld [vmem:[#allocation3 + $0x318] sm:$0xff]
      %v847 = vld [vmem:[#allocation3 + $0x320] sm:$0xff]
      %v848 = vld [vmem:[#allocation3 + $0x328] sm:$0xff]
      %v849 = vld [vmem:[#allocation3 + $0x330] sm:$0xff]
      %v850 = vld [vmem:[#allocation3 + $0x338] sm:$0xff]
      %v851 = vld [vmem:[#allocation3 + $0x340] sm:$0xff]
      %v852 = vld [vmem:[#allocation3 + $0x348] sm:$0xff]
      %v853 = vld [vmem:[#allocation3 + $0x350] sm:$0xff]
      %v854 = vld [vmem:[#allocation3 + $0x358] sm:$0xff]
      %v855 = vld [vmem:[#allocation3 + $0x360] sm:$0xff]
      %v856 = vld [vmem:[#allocation3 + $0x368] sm:$0xff]
      %v857 = vld [vmem:[#allocation3 + $0x370] sm:$0xff]
      %v858 = vld [vmem:[#allocation3 + $0x378] sm:$0xff]
      %v859 = vld [vmem:[#allocation3 + $0x380] sm:$0xff]
      %v860 = vld [vmem:[#allocation3 + $0x388] sm:$0xff]
      %v861 = vld [vmem:[#allocation3 + $0x390] sm:$0xff]
      %v862 = vld [vmem:[#allocation3 + $0x398] sm:$0xff]
      %v863 = vld [vmem:[#allocation3 + $0x3a0] sm:$0xff]
      %v864 = vld [vmem:[#allocation3 + $0x3a8] sm:$0xff]
      %v865 = vld [vmem:[#allocation3 + $0x3b0] sm:$0xff]
      %v866 = vld [vmem:[#allocation3 + $0x3b8] sm:$0xff]
      %v867 = vld [vmem:[#allocation3 + $0x3c0] sm:$0xff]
      %v868 = vld [vmem:[#allocation3 + $0x3c8] sm:$0xff]
      %v869 = vld [vmem:[#allocation3 + $0x3d0] sm:$0xff]
      %v870 = vld [vmem:[#allocation3 + $0x3d8] sm:$0xff]
      %v871 = vld [vmem:[#allocation3 + $0x3e0] sm:$0xff]
      %v872 = vld [vmem:[#allocation3 + $0x3e8] sm:$0xff]
      %v873 = vld [vmem:[#allocation3 + $0x3f0] sm:$0xff]
      %v874 = vld [vmem:[#allocation3 + $0x3f8] sm:$0xff]
      %v875 = vld [vmem:[%s3] sm:$0xff]
      %v876 = vld [vmem:[%s3 + $0x8] sm:$0xff]
      %v877 = vld [vmem:[%s3 + $0x10] sm:$0xff]
      %v878 = vld [vmem:[%s3 + $0x18] sm:$0xff]
      %v879 = vld [vmem:[%s3 + $0x20] sm:$0xff]
      %v880 = vld [vmem:[%s3 + $0x28] sm:$0xff]
      %v881 = vld [vmem:[%s3 + $0x30] sm:$0xff]
      %v882 = vld [vmem:[%s3 + $0x38] sm:$0xff]
      %v883 = vld [vmem:[%s3 + $0x40] sm:$0xff]
      %v884 = vld [vmem:[%s3 + $0x48] sm:$0xff]
      %v885 = vld [vmem:[%s3 + $0x50] sm:$0xff]
      %v886 = vld [vmem:[%s3 + $0x58] sm:$0xff]
      %v887 = vld [vmem:[%s3 + $0x60] sm:$0xff]
      %v888 = vld [vmem:[%s3 + $0x68] sm:$0xff]
      %v889 = vld [vmem:[%s3 + $0x70] sm:$0xff]
      %v890 = vld [vmem:[%s3 + $0x78] sm:$0xff]
      %v891 = vld [vmem:[%s3 + $0x80] sm:$0xff]
      %v892 = vld [vmem:[%s3 + $0x88] sm:$0xff]
      %v893 = vld [vmem:[%s3 + $0x90] sm:$0xff]
      %v894 = vld [vmem:[%s3 + $0x98] sm:$0xff]
      %v895 = vld [vmem:[%s3 + $0xa0] sm:$0xff]
      %v896 = vld [vmem:[%s3 + $0xa8] sm:$0xff]
      %v897 = vld [vmem:[%s3 + $0xb0] sm:$0xff]
      %v898 = vld [vmem:[%s3 + $0xb8] sm:$0xff]
      %v899 = vld [vmem:[%s3 + $0xc0] sm:$0xff]
      %v900 = vld [vmem:[%s3 + $0xc8] sm:$0xff]
      %v901 = vld [vmem:[%s3 + $0xd0] sm:$0xff]
      %v902 = vld [vmem:[%s3 + $0xd8] sm:$0xff]
      %v903 = vld [vmem:[%s3 + $0xe0] sm:$0xff]
      %v904 = vld [vmem:[%s3 + $0xe8] sm:$0xff]
      %v905 = vld [vmem:[%s3 + $0xf0] sm:$0xff]
      %v906 = vld [vmem:[%s3 + $0xf8] sm:$0xff]
      %v907 = vld [vmem:[%s3 + $0x100] sm:$0xff]
      %v908 = vld [vmem:[%s3 + $0x108] sm:$0xff]
      %v909 = vld [vmem:[%s3 + $0x110] sm:$0xff]
      %v910 = vld [vmem:[%s3 + $0x118] sm:$0xff]
      %v911 = vld [vmem:[%s3 + $0x120] sm:$0xff]
      %v912 = vld [vmem:[%s3 + $0x128] sm:$0xff]
      %v913 = vld [vmem:[%s3 + $0x130] sm:$0xff]
      %v914 = vld [vmem:[%s3 + $0x138] sm:$0xff]
      %v915 = vld [vmem:[%s3 + $0x140] sm:$0xff]
      %v916 = vld [vmem:[%s3 + $0x148] sm:$0xff]
      %v917 = vld [vmem:[%s3 + $0x150] sm:$0xff]
      %v918 = vld [vmem:[%s3 + $0x158] sm:$0xff]
      %v919 = vld [vmem:[%s3 + $0x160] sm:$0xff]
      %v920 = vld [vmem:[%s3 + $0x168] sm:$0xff]
      %v921 = vld [vmem:[%s3 + $0x170] sm:$0xff]
      %v922 = vld [vmem:[%s3 + $0x178] sm:$0xff]
      %v923 = vld [vmem:[%s3 + $0x180] sm:$0xff]
      %v924 = vld [vmem:[%s3 + $0x188] sm:$0xff]
      %v925 = vld [vmem:[%s3 + $0x190] sm:$0xff]
      %v926 = vld [vmem:[%s3 + $0x198] sm:$0xff]
      %v927 = vld [vmem:[%s3 + $0x1a0] sm:$0xff]
      %v928 = vld [vmem:[%s3 + $0x1a8] sm:$0xff]
      %v929 = vld [vmem:[%s3 + $0x1b0] sm:$0xff]
      %v930 = vld [vmem:[%s3 + $0x1b8] sm:$0xff]
      %v931 = vld [vmem:[%s3 + $0x1c0] sm:$0xff]
      %v932 = vld [vmem:[%s3 + $0x1c8] sm:$0xff]
      %v933 = vld [vmem:[%s3 + $0x1d0] sm:$0xff]
      %v934 = vld [vmem:[%s3 + $0x1d8] sm:$0xff]
      %v935 = vld [vmem:[%s3 + $0x1e0] sm:$0xff]
      %v936 = vld [vmem:[%s3 + $0x1e8] sm:$0xff]
      %v937 = vld [vmem:[%s3 + $0x1f0] sm:$0xff]
      %v938 = vld [vmem:[%s3 + $0x1f8] sm:$0xff]
      %v939 = vld [vmem:[%s3 + $0x200] sm:$0xff]
      %v940 = vld [vmem:[%s3 + $0x208] sm:$0xff]
      %v941 = vld [vmem:[%s3 + $0x210] sm:$0xff]
      %v942 = vld [vmem:[%s3 + $0x218] sm:$0xff]
      %v943 = vld [vmem:[%s3 + $0x220] sm:$0xff]
      %v944 = vld [vmem:[%s3 + $0x228] sm:$0xff]
      %v945 = vld [vmem:[%s3 + $0x230] sm:$0xff]
      %v946 = vld [vmem:[%s3 + $0x238] sm:$0xff]
      %v947 = vld [vmem:[%s3 + $0x240] sm:$0xff]
      %v948 = vld [vmem:[%s3 + $0x248] sm:$0xff]
      %v949 = vld [vmem:[%s3 + $0x250] sm:$0xff]
      %v950 = vld [vmem:[%s3 + $0x258] sm:$0xff]
      %v951 = vld [vmem:[%s3 + $0x260] sm:$0xff]
      %v952 = vld [vmem:[%s3 + $0x268] sm:$0xff]
      %v953 = vld [vmem:[%s3 + $0x270] sm:$0xff]
      %v954 = vld [vmem:[%s3 + $0x278] sm:$0xff]
      %v955 = vld [vmem:[%s3 + $0x280] sm:$0xff]
      %v956 = vld [vmem:[%s3 + $0x288] sm:$0xff]
      %v957 = vld [vmem:[%s3 + $0x290] sm:$0xff]
      %v958 = vld [vmem:[%s3 + $0x298] sm:$0xff]
      %v959 = vld [vmem:[%s3 + $0x2a0] sm:$0xff]
      %v960 = vld [vmem:[%s3 + $0x2a8] sm:$0xff]
      %v961 = vld [vmem:[%s3 + $0x2b0] sm:$0xff]
      %v962 = vld [vmem:[%s3 + $0x2b8] sm:$0xff]
      %v963 = vld [vmem:[%s3 + $0x2c0] sm:$0xff]
      %v964 = vld [vmem:[%s3 + $0x2c8] sm:$0xff]
      %v965 = vld [vmem:[%s3 + $0x2d0] sm:$0xff]
      %v966 = vld [vmem:[%s3 + $0x2d8] sm:$0xff]
      %v967 = vld [vmem:[%s3 + $0x2e0] sm:$0xff]
      %v968 = vld [vmem:[%s3 + $0x2e8] sm:$0xff]
      %v969 = vld [vmem:[%s3 + $0x2f0] sm:$0xff]
      %v970 = vld [vmem:[%s3 + $0x2f8] sm:$0xff]
      %v971 = vld [vmem:[%s3 + $0x300] sm:$0xff]
      %v972 = vld [vmem:[%s3 + $0x308] sm:$0xff]
      %v973 = vld [vmem:[%s3 + $0x310] sm:$0xff]
      %v974 = vld [vmem:[%s3 + $0x318] sm:$0xff]
      %v975 = vld [vmem:[%s3 + $0x320] sm:$0xff]
      %v976 = vld [vmem:[%s3 + $0x328] sm:$0xff]
      %v977 = vld [vmem:[%s3 + $0x330] sm:$0xff]
      %v978 = vld [vmem:[%s3 + $0x338] sm:$0xff]
      %v979 = vld [vmem:[%s3 + $0x340] sm:$0xff]
      %v980 = vld [vmem:[%s3 + $0x348] sm:$0xff]
      %v981 = vld [vmem:[%s3 + $0x350] sm:$0xff]
      %v982 = vld [vmem:[%s3 + $0x358] sm:$0xff]
      %v983 = vld [vmem:[%s3 + $0x360] sm:$0xff]
      %v984 = vld [vmem:[%s3 + $0x368] sm:$0xff]
      %v985 = vld [vmem:[%s3 + $0x370] sm:$0xff]
      %v986 = vld [vmem:[%s3 + $0x378] sm:$0xff]
      %v987 = vld [vmem:[%s3 + $0x380] sm:$0xff]
      %v988 = vld [vmem:[%s3 + $0x388] sm:$0xff]
      %v989 = vld [vmem:[%s3 + $0x390] sm:$0xff]
      %v990 = vld [vmem:[%s3 + $0x398] sm:$0xff]
      %v991 = vld [vmem:[%s3 + $0x3a0] sm:$0xff]
      %v992 = vld [vmem:[%s3 + $0x3a8] sm:$0xff]
      %v993 = vld [vmem:[%s3 + $0x3b0] sm:$0xff]
      %v994 = vld [vmem:[%s3 + $0x3b8] sm:$0xff]
      %v995 = vld [vmem:[%s3 + $0x3c0] sm:$0xff]
      %v996 = vld [vmem:[%s3 + $0x3c8] sm:$0xff]
      %v997 = vld [vmem:[%s3 + $0x3d0] sm:$0xff]
      %v998 = vld [vmem:[%s3 + $0x3d8] sm:$0xff]
      %v999 = vld [vmem:[%s3 + $0x3e0] sm:$0xff]
      %v1000 = vld [vmem:[%s3 + $0x3e8] sm:$0xff]
      %v1001 = vld [vmem:[%s3 + $0x3f0] sm:$0xff]
      %v1002 = vld [vmem:[%s3 + $0x3f8] sm:$0xff]
      %v1003 = vld [vmem:[%s3 + $0x400] sm:$0xff]
      %v1004 = vld [vmem:[%s3 + $0x408] sm:$0xff]
      %v1005 = vld [vmem:[%s3 + $0x410] sm:$0xff]
      %v1006 = vld [vmem:[%s3 + $0x418] sm:$0xff]
      %v1007 = vld [vmem:[%s3 + $0x420] sm:$0xff]
      %v1008 = vld [vmem:[%s3 + $0x428] sm:$0xff]
      %v1009 = vld [vmem:[%s3 + $0x430] sm:$0xff]
      %v1010 = vld [vmem:[%s3 + $0x438] sm:$0xff]
      %v1011 = vld [vmem:[%s3 + $0x440] sm:$0xff]
      %v1012 = vld [vmem:[%s3 + $0x448] sm:$0xff]
      %v1013 = vld [vmem:[%s3 + $0x450] sm:$0xff]
      %v1014 = vld [vmem:[%s3 + $0x458] sm:$0xff]
      %v1015 = vld [vmem:[%s3 + $0x460] sm:$0xff]
      %v1016 = vld [vmem:[%s3 + $0x468] sm:$0xff]
      %v1017 = vld [vmem:[%s3 + $0x470] sm:$0xff]
      %v1018 = vld [vmem:[%s3 + $0x478] sm:$0xff]
      %v1019 = vld [vmem:[%s3 + $0x480] sm:$0xff]
      %v1020 = vld [vmem:[%s3 + $0x488] sm:$0xff]
      %v1021 = vld [vmem:[%s3 + $0x490] sm:$0xff]
      %v1022 = vld [vmem:[%s3 + $0x498] sm:$0xff]
      %v1023 = vld [vmem:[%s3 + $0x4a0] sm:$0xff]
      %v1024 = vld [vmem:[%s3 + $0x4a8] sm:$0xff]
      %v1025 = vld [vmem:[%s3 + $0x4b0] sm:$0xff]
      %v1026 = vld [vmem:[%s3 + $0x4b8] sm:$0xff]
      %v1027 = vld [vmem:[%s3 + $0x4c0] sm:$0xff]
      %v1028 = vld [vmem:[%s3 + $0x4c8] sm:$0xff]
      %v1029 = vld [vmem:[%s3 + $0x4d0] sm:$0xff]
      %v1030 = vld [vmem:[%s3 + $0x4d8] sm:$0xff]
      %v1031 = vld [vmem:[%s3 + $0x4e0] sm:$0xff]
      %v1032 = vld [vmem:[%s3 + $0x4e8] sm:$0xff]
      %v1033 = vld [vmem:[%s3 + $0x4f0] sm:$0xff]
      %v1034 = vld [vmem:[%s3 + $0x4f8] sm:$0xff]
      %v1035 = vld [vmem:[%s3 + $0x500] sm:$0xff]
      %v1036 = vld [vmem:[%s3 + $0x508] sm:$0xff]
      %v1037 = vld [vmem:[%s3 + $0x510] sm:$0xff]
      %v1038 = vld [vmem:[%s3 + $0x518] sm:$0xff]
      %v1039 = vld [vmem:[%s3 + $0x520] sm:$0xff]
      %v1040 = vld [vmem:[%s3 + $0x528] sm:$0xff]
      %v1041 = vld [vmem:[%s3 + $0x530] sm:$0xff]
      %v1042 = vld [vmem:[%s3 + $0x538] sm:$0xff]
      %v1043 = vld [vmem:[%s3 + $0x540] sm:$0xff]
      %v1044 = vld [vmem:[%s3 + $0x548] sm:$0xff]
      %v1045 = vld [vmem:[%s3 + $0x550] sm:$0xff]
      %v1046 = vld [vmem:[%s3 + $0x558] sm:$0xff]
      %v1047 = vld [vmem:[%s3 + $0x560] sm:$0xff]
      %v1048 = vld [vmem:[%s3 + $0x568] sm:$0xff]
      %v1049 = vld [vmem:[%s3 + $0x570] sm:$0xff]
      %v1050 = vld [vmem:[%s3 + $0x578] sm:$0xff]
      %v1051 = vld [vmem:[%s3 + $0x580] sm:$0xff]
      %v1052 = vld [vmem:[%s3 + $0x588] sm:$0xff]
      %v1053 = vld [vmem:[%s3 + $0x590] sm:$0xff]
      %v1054 = vld [vmem:[%s3 + $0x598] sm:$0xff]
      %v1055 = vld [vmem:[%s3 + $0x5a0] sm:$0xff]
      %v1056 = vld [vmem:[%s3 + $0x5a8] sm:$0xff]
      %v1057 = vld [vmem:[%s3 + $0x5b0] sm:$0xff]
      %v1058 = vld [vmem:[%s3 + $0x5b8] sm:$0xff]
      %v1059 = vld [vmem:[%s3 + $0x5c0] sm:$0xff]
      %v1060 = vld [vmem:[%s3 + $0x5c8] sm:$0xff]
      %v1061 = vld [vmem:[%s3 + $0x5d0] sm:$0xff]
      %v1062 = vld [vmem:[%s3 + $0x5d8] sm:$0xff]
      %v1063 = vld [vmem:[%s3 + $0x5e0] sm:$0xff]
      %v1064 = vld [vmem:[%s3 + $0x5e8] sm:$0xff]
      %v1065 = vld [vmem:[%s3 + $0x5f0] sm:$0xff]
      %v1066 = vld [vmem:[%s3 + $0x5f8] sm:$0xff]
      %v1067 = vld [vmem:[%s3 + $0x600] sm:$0xff]
      %v1068 = vld [vmem:[%s3 + $0x608] sm:$0xff]
      %v1069 = vld [vmem:[%s3 + $0x610] sm:$0xff]
      %v1070 = vld [vmem:[%s3 + $0x618] sm:$0xff]
      %v1071 = vld [vmem:[%s3 + $0x620] sm:$0xff]
      %v1072 = vld [vmem:[%s3 + $0x628] sm:$0xff]
      %v1073 = vld [vmem:[%s3 + $0x630] sm:$0xff]
      %v1074 = vld [vmem:[%s3 + $0x638] sm:$0xff]
      %v1075 = vld [vmem:[%s3 + $0x640] sm:$0xff]
      %v1076 = vld [vmem:[%s3 + $0x648] sm:$0xff]
      %v1077 = vld [vmem:[%s3 + $0x650] sm:$0xff]
      %v1078 = vld [vmem:[%s3 + $0x658] sm:$0xff]
      %v1079 = vld [vmem:[%s3 + $0x660] sm:$0xff]
      %v1080 = vld [vmem:[%s3 + $0x668] sm:$0xff]
      %v1081 = vld [vmem:[%s3 + $0x670] sm:$0xff]
      %v1082 = vld [vmem:[%s3 + $0x678] sm:$0xff]
      %v1083 = vld [vmem:[%s3 + $0x680] sm:$0xff]
      %v1084 = vld [vmem:[%s3 + $0x688] sm:$0xff]
      %v1085 = vld [vmem:[%s3 + $0x690] sm:$0xff]
      %v1086 = vld [vmem:[%s3 + $0x698] sm:$0xff]
      %v1087 = vld [vmem:[%s3 + $0x6a0] sm:$0xff]
      %v1088 = vld [vmem:[%s3 + $0x6a8] sm:$0xff]
      %v1089 = vld [vmem:[%s3 + $0x6b0] sm:$0xff]
      %v1090 = vld [vmem:[%s3 + $0x6b8] sm:$0xff]
      %v1091 = vld [vmem:[%s3 + $0x6c0] sm:$0xff]
      %v1092 = vld [vmem:[%s3 + $0x6c8] sm:$0xff]
      %v1093 = vld [vmem:[%s3 + $0x6d0] sm:$0xff]
      %v1094 = vld [vmem:[%s3 + $0x6d8] sm:$0xff]
      %v1095 = vld [vmem:[%s3 + $0x6e0] sm:$0xff]
      %v1096 = vld [vmem:[%s3 + $0x6e8] sm:$0xff]
      %v1097 = vld [vmem:[%s3 + $0x6f0] sm:$0xff]
      %v1098 = vld [vmem:[%s3 + $0x6f8] sm:$0xff]
      %v1099 = vld [vmem:[%s3 + $0x700] sm:$0xff]
      %v1100 = vld [vmem:[%s3 + $0x708] sm:$0xff]
      %v1101 = vld [vmem:[%s3 + $0x710] sm:$0xff]
      %v1102 = vld [vmem:[%s3 + $0x718] sm:$0xff]
      %v1103 = vld [vmem:[%s3 + $0x720] sm:$0xff]
      %v1104 = vld [vmem:[%s3 + $0x728] sm:$0xff]
      %v1105 = vld [vmem:[%s3 + $0x730] sm:$0xff]
      %v1106 = vld [vmem:[%s3 + $0x738] sm:$0xff]
      %v1107 = vld [vmem:[%s3 + $0x740] sm:$0xff]
      %v1108 = vld [vmem:[%s3 + $0x748] sm:$0xff]
      %v1109 = vld [vmem:[%s3 + $0x750] sm:$0xff]
      %v1110 = vld [vmem:[%s3 + $0x758] sm:$0xff]
      %v1111 = vld [vmem:[%s3 + $0x760] sm:$0xff]
      %v1112 = vld [vmem:[%s3 + $0x768] sm:$0xff]
      %v1113 = vld [vmem:[%s3 + $0x770] sm:$0xff]
      %v1114 = vld [vmem:[%s3 + $0x778] sm:$0xff]
      %v1115 = vld [vmem:[%s3 + $0x780] sm:$0xff]
      %v1116 = vld [vmem:[%s3 + $0x788] sm:$0xff]
      %v1117 = vld [vmem:[%s3 + $0x790] sm:$0xff]
      %v1118 = vld [vmem:[%s3 + $0x798] sm:$0xff]
      %v1119 = vld [vmem:[%s3 + $0x7a0] sm:$0xff]
      %v1120 = vld [vmem:[%s3 + $0x7a8] sm:$0xff]
      %v1121 = vld [vmem:[%s3 + $0x7b0] sm:$0xff]
      %v1122 = vld [vmem:[%s3 + $0x7b8] sm:$0xff]
      %v1123 = vld [vmem:[%s3 + $0x7c0] sm:$0xff]
      %v1124 = vld [vmem:[%s3 + $0x7c8] sm:$0xff]
      %v1125 = vld [vmem:[%s3 + $0x7d0] sm:$0xff]
      %v1126 = vld [vmem:[%s3 + $0x7d8] sm:$0xff]
      %v1127 = vld [vmem:[%s3 + $0x7e0] sm:$0xff]
      %v1128 = vld [vmem:[%s3 + $0x7e8] sm:$0xff]
      %v1129 = vld [vmem:[%s3 + $0x7f0] sm:$0xff]
      %v1130 = vld [vmem:[%s3 + $0x7f8] sm:$0xff]
      %v1131 = vld [vmem:[%s4] sm:$0x1]
      %v1133 = vlaneseq
      %v1134 = vshrl.u32 %v1133, 7
      %v1135 = vsub.s32 0, %v1134
      %v1136 = vrot.slane %v1131, %v1135
      %1138 = vmatprep.subr.mxu0 0.0
      %1139 = vmatpush1.msra.mxu0 %v890
      %1140 = vmatprep.subr.mxu0 0.0
      %1141 = vmatpush1.msra.mxu0 %v889
      %1142 = vmatprep.subr.mxu0 0.0
      %1143 = vmatpush1.msra.mxu0 %v888
      %1144 = vmatprep.subr.mxu0 0.0
      %1145 = vmatpush1.msra.mxu0 %v887
      %1146 = vmatprep.subr.mxu0 0.0
      %1147 = vmatpush1.msra.mxu0 %v886
      %1148 = vmatprep.subr.mxu0 0.0
      %1149 = vmatpush1.msra.mxu0 %v885
      %1150 = vmatprep.subr.mxu0 0.0
      %1151 = vmatpush1.msra.mxu0 %v884
      %1152 = vmatprep.subr.mxu0 0.0
      %1153 = vmatpush1.msra.mxu0 %v883
      %1154 = vmatprep.subr.mxu0 0.0
      %1155 = vmatpush1.msra.mxu0 %v882
      %1156 = vmatprep.subr.mxu0 0.0
      %1157 = vmatpush1.msra.mxu0 %v881
      %1158 = vmatprep.subr.mxu0 0.0
      %1159 = vmatpush1.msra.mxu0 %v880
      %1160 = vmatprep.subr.mxu0 0.0
      %1161 = vmatpush1.msra.mxu0 %v879
      %1162 = vmatprep.subr.mxu0 0.0
      %1163 = vmatpush1.msra.mxu0 %v878
      %1164 = vmatprep.subr.mxu0 0.0
      %1165 = vmatpush1.msra.mxu0 %v877
      %1166 = vmatprep.subr.mxu0 0.0
      %1167 = vmatpush1.msra.mxu0 %v876
      %1168 = vmatprep.subr.mxu0 0.0
      %1169 = vmatpush1.msra.mxu0 %v875
      %1170 = vmatprep.subr.mxu0 0.0
      %1171 = vmatpush2.msra.mxu0 %v906
      %1172 = vmatprep.subr.mxu0 0.0
      %1173 = vmatpush2.msra.mxu0 %v905
      %1174 = vmatprep.subr.mxu0 0.0
      %1175 = vmatpush2.msra.mxu0 %v904
      %1176 = vmatprep.subr.mxu0 0.0
      %1177 = vmatpush2.msra.mxu0 %v903
      %1178 = vmatprep.subr.mxu0 0.0
      %1179 = vmatpush2.msra.mxu0 %v902
      %1180 = vmatprep.subr.mxu0 0.0
      %1181 = vmatpush2.msra.mxu0 %v901
      %1182 = vmatprep.subr.mxu0 0.0
      %1183 = vmatpush2.msra.mxu0 %v900
      %1184 = vmatprep.subr.mxu0 0.0
      %1185 = vmatpush2.msra.mxu0 %v899
      %1186 = vmatprep.subr.mxu0 0.0
      %1187 = vmatpush2.msra.mxu0 %v898
      %1188 = vmatprep.subr.mxu0 0.0
      %1189 = vmatpush2.msra.mxu0 %v897
      %1190 = vmatprep.subr.mxu0 0.0
      %1191 = vmatpush2.msra.mxu0 %v896
      %1192 = vmatprep.subr.mxu0 0.0
      %1193 = vmatpush2.msra.mxu0 %v895
      %1194 = vmatprep.subr.mxu0 0.0
      %1195 = vmatpush2.msra.mxu0 %v894
      %1196 = vmatprep.subr.mxu0 0.0
      %1197 = vmatpush2.msra.mxu0 %v893
      %1198 = vmatprep.subr.mxu0 0.0
      %1199 = vmatpush2.msra.mxu0 %v892
      %1200 = vmatprep.subr.mxu0 0.0
      %1201 = vmatpush2.msra.mxu0 %v891
      %1202 = vmatprep.mubr.f32.mxu0 %v748
      %1203 = vmatmul.mubr.f32.gmra.mxu0 %v747
      %v1204 = vpop.f32.mrf.mxu0
      %v1205 = vadd.f32 %v1136, %v1204
      %v1206 = vpop.f32.mrf.mxu0
      %1207 = vmatprep.mubr.f32.mxu0 %v764
      %1208 = vmatmul.mubr.f32.gmra.mxu0 %v763
      %v1209 = vpop.f32.mrf.mxu0
      %v1210 = vadd.f32 %v1136, %v1209
      %v1211 = vpop.f32.mrf.mxu0
      %1212 = vmatprep.mubr.f32.mxu0 %v780
      %1213 = vmatmul.mubr.f32.gmra.mxu0 %v779
      %v1214 = vpop.f32.mrf.mxu0
      %v1215 = vadd.f32 %v1136, %v1214
      %v1216 = vpop.f32.mrf.mxu0
      %1217 = vmatprep.mubr.f32.mxu0 %v796
      %1218 = vmatmul.mubr.f32.gmra.mxu0 %v795
      %v1219 = vpop.f32.mrf.mxu0
      %v1220 = vadd.f32 %v1136, %v1219
      %v1221 = vpop.f32.mrf.mxu0
      %1222 = vmatprep.mubr.f32.mxu0 %v812
      %1223 = vmatmul.mubr.f32.gmra.mxu0 %v811
      %v1224 = vpop.f32.mrf.mxu0
      %v1225 = vadd.f32 %v1136, %v1224
      %v1226 = vpop.f32.mrf.mxu0
      %1227 = vmatprep.mubr.f32.mxu0 %v828
      %1228 = vmatmul.mubr.f32.gmra.mxu0 %v827
      %v1229 = vpop.f32.mrf.mxu0
      %v1230 = vadd.f32 %v1136, %v1229
      %v1231 = vpop.f32.mrf.mxu0
      %1232 = vmatprep.mubr.f32.mxu0 %v844
      %1233 = vmatmul.mubr.f32.gmra.mxu0 %v843
      %v1234 = vpop.f32.mrf.mxu0
      %v1235 = vadd.f32 %v1136, %v1234
      %v1236 = vpop.f32.mrf.mxu0
      %1237 = vmatprep.mubr.f32.mxu0 %v860
      %1238 = vmatmul.mubr.f32.gmra.mxu0 %v859
      %v1239 = vpop.f32.mrf.mxu0
      %v1240 = vadd.f32 %v1136, %v1239
      %v1241 = vpop.f32.mrf.mxu0
      %1242 = vdwg.mxu0
      %1243 = vmatprep.subr.mxu0 0.0
      %1244 = vmatpush1.msra.mxu0 %v922
      %1245 = vmatprep.subr.mxu0 0.0
      %1246 = vmatpush1.msra.mxu0 %v921
      %1247 = vmatprep.subr.mxu0 0.0
      %1248 = vmatpush1.msra.mxu0 %v920
      %1249 = vmatprep.subr.mxu0 0.0
      %1250 = vmatpush1.msra.mxu0 %v919
      %1251 = vmatprep.subr.mxu0 0.0
      %1252 = vmatpush1.msra.mxu0 %v918
      %1253 = vmatprep.subr.mxu0 0.0
      %1254 = vmatpush1.msra.mxu0 %v917
      %1255 = vmatprep.subr.mxu0 0.0
      %1256 = vmatpush1.msra.mxu0 %v916
      %1257 = vmatprep.subr.mxu0 0.0
      %1258 = vmatpush1.msra.mxu0 %v915
      %1259 = vmatprep.subr.mxu0 0.0
      %1260 = vmatpush1.msra.mxu0 %v914
      %1261 = vmatprep.subr.mxu0 0.0
      %1262 = vmatpush1.msra.mxu0 %v913
      %1263 = vmatprep.subr.mxu0 0.0
      %1264 = vmatpush1.msra.mxu0 %v912
      %1265 = vmatprep.subr.mxu0 0.0
      %1266 = vmatpush1.msra.mxu0 %v911
      %1267 = vmatprep.subr.mxu0 0.0
      %1268 = vmatpush1.msra.mxu0 %v910
      %1269 = vmatprep.subr.mxu0 0.0
      %1270 = vmatpush1.msra.mxu0 %v909
      %1271 = vmatprep.subr.mxu0 0.0
      %1272 = vmatpush1.msra.mxu0 %v908
      %1273 = vmatprep.subr.mxu0 0.0
      %1274 = vmatpush1.msra.mxu0 %v907
      %1275 = vmatprep.subr.mxu0 0.0
      %1276 = vmatpush2.msra.mxu0 %v938
      %1277 = vmatprep.subr.mxu0 0.0
      %1278 = vmatpush2.msra.mxu0 %v937
      %1279 = vmatprep.subr.mxu0 0.0
      %1280 = vmatpush2.msra.mxu0 %v936
      %1281 = vmatprep.subr.mxu0 0.0
      %1282 = vmatpush2.msra.mxu0 %v935
      %1283 = vmatprep.subr.mxu0 0.0
      %1284 = vmatpush2.msra.mxu0 %v934
      %1285 = vmatprep.subr.mxu0 0.0
      %1286 = vmatpush2.msra.mxu0 %v933
      %1287 = vmatprep.subr.mxu0 0.0
      %1288 = vmatpush2.msra.mxu0 %v932
      %1289 = vmatprep.subr.mxu0 0.0
      %1290 = vmatpush2.msra.mxu0 %v931
      %1291 = vmatprep.subr.mxu0 0.0
      %1292 = vmatpush2.msra.mxu0 %v930
      %1293 = vmatprep.subr.mxu0 0.0
      %1294 = vmatpush2.msra.mxu0 %v929
      %1295 = vmatprep.subr.mxu0 0.0
      %1296 = vmatpush2.msra.mxu0 %v928
      %1297 = vmatprep.subr.mxu0 0.0
      %1298 = vmatpush2.msra.mxu0 %v927
      %1299 = vmatprep.subr.mxu0 0.0
      %1300 = vmatpush2.msra.mxu0 %v926
      %1301 = vmatprep.subr.mxu0 0.0
      %1302 = vmatpush2.msra.mxu0 %v925
      %1303 = vmatprep.subr.mxu0 0.0
      %1304 = vmatpush2.msra.mxu0 %v924
      %1305 = vmatprep.subr.mxu0 0.0
      %1306 = vmatpush2.msra.mxu0 %v923
      %1307 = vmatprep.mubr.f32.mxu0 %v750
      %1308 = vmatmul.mubr.f32.gmra.mxu0 %v749
      %v1309 = vpop.f32.mrf.mxu0
      %v1310 = vadd.f32 %v1205, %v1309
      %v1311 = vpop.f32.mrf.mxu0
      %1312 = vmatprep.mubr.f32.mxu0 %v766
      %1313 = vmatmul.mubr.f32.gmra.mxu0 %v765
      %v1314 = vpop.f32.mrf.mxu0
      %v1315 = vadd.f32 %v1210, %v1314
      %v1316 = vpop.f32.mrf.mxu0
      %1317 = vmatprep.mubr.f32.mxu0 %v782
      %1318 = vmatmul.mubr.f32.gmra.mxu0 %v781
      %v1319 = vpop.f32.mrf.mxu0
      %v1320 = vadd.f32 %v1215, %v1319
      %v1321 = vpop.f32.mrf.mxu0
      %1322 = vmatprep.mubr.f32.mxu0 %v798
      %1323 = vmatmul.mubr.f32.gmra.mxu0 %v797
      %v1324 = vpop.f32.mrf.mxu0
      %v1325 = vadd.f32 %v1220, %v1324
      %v1326 = vpop.f32.mrf.mxu0
      %1327 = vmatprep.mubr.f32.mxu0 %v814
      %1328 = vmatmul.mubr.f32.gmra.mxu0 %v813
      %v1329 = vpop.f32.mrf.mxu0
      %v1330 = vadd.f32 %v1225, %v1329
      %v1331 = vpop.f32.mrf.mxu0
      %1332 = vmatprep.mubr.f32.mxu0 %v830
      %1333 = vmatmul.mubr.f32.gmra.mxu0 %v829
      %v1334 = vpop.f32.mrf.mxu0
      %v1335 = vadd.f32 %v1230, %v1334
      %v1336 = vpop.f32.mrf.mxu0
      %1337 = vmatprep.mubr.f32.mxu0 %v846
      %1338 = vmatmul.mubr.f32.gmra.mxu0 %v845
      %v1339 = vpop.f32.mrf.mxu0
      %v1340 = vadd.f32 %v1235, %v1339
      %v1341 = vpop.f32.mrf.mxu0
      %1342 = vmatprep.mubr.f32.mxu0 %v862
      %1343 = vmatmul.mubr.f32.gmra.mxu0 %v861
      %v1344 = vpop.f32.mrf.mxu0
      %v1345 = vadd.f32 %v1240, %v1344
      %v1346 = vpop.f32.mrf.mxu0
      %1347 = vdwg.mxu0
      %1348 = vmatprep.subr.mxu0 0.0
      %1349 = vmatpush1.msra.mxu0 %v954
      %1350 = vmatprep.subr.mxu0 0.0
      %1351 = vmatpush1.msra.mxu0 %v953
      %1352 = vmatprep.subr.mxu0 0.0
      %1353 = vmatpush1.msra.mxu0 %v952
      %1354 = vmatprep.subr.mxu0 0.0
      %1355 = vmatpush1.msra.mxu0 %v951
      %1356 = vmatprep.subr.mxu0 0.0
      %1357 = vmatpush1.msra.mxu0 %v950
      %1358 = vmatprep.subr.mxu0 0.0
      %1359 = vmatpush1.msra.mxu0 %v949
      %1360 = vmatprep.subr.mxu0 0.0
      %1361 = vmatpush1.msra.mxu0 %v948
      %1362 = vmatprep.subr.mxu0 0.0
      %1363 = vmatpush1.msra.mxu0 %v947
      %1364 = vmatprep.subr.mxu0 0.0
      %1365 = vmatpush1.msra.mxu0 %v946
      %1366 = vmatprep.subr.mxu0 0.0
      %1367 = vmatpush1.msra.mxu0 %v945
      %1368 = vmatprep.subr.mxu0 0.0
      %1369 = vmatpush1.msra.mxu0 %v944
      %1370 = vmatprep.subr.mxu0 0.0
      %1371 = vmatpush1.msra.mxu0 %v943
      %1372 = vmatprep.subr.mxu0 0.0
      %1373 = vmatpush1.msra.mxu0 %v942
      %1374 = vmatprep.subr.mxu0 0.0
      %1375 = vmatpush1.msra.mxu0 %v941
      %1376 = vmatprep.subr.mxu0 0.0
      %1377 = vmatpush1.msra.mxu0 %v940
      %1378 = vmatprep.subr.mxu0 0.0
      %1379 = vmatpush1.msra.mxu0 %v939
      %1380 = vmatprep.subr.mxu0 0.0
      %1381 = vmatpush2.msra.mxu0 %v970
      %1382 = vmatprep.subr.mxu0 0.0
      %1383 = vmatpush2.msra.mxu0 %v969
      %1384 = vmatprep.subr.mxu0 0.0
      %1385 = vmatpush2.msra.mxu0 %v968
      %1386 = vmatprep.subr.mxu0 0.0
      %1387 = vmatpush2.msra.mxu0 %v967
      %1388 = vmatprep.subr.mxu0 0.0
      %1389 = vmatpush2.msra.mxu0 %v966
      %1390 = vmatprep.subr.mxu0 0.0
      %1391 = vmatpush2.msra.mxu0 %v965
      %1392 = vmatprep.subr.mxu0 0.0
      %1393 = vmatpush2.msra.mxu0 %v964
      %1394 = vmatprep.subr.mxu0 0.0
      %1395 = vmatpush2.msra.mxu0 %v963
      %1396 = vmatprep.subr.mxu0 0.0
      %1397 = vmatpush2.msra.mxu0 %v962
      %1398 = vmatprep.subr.mxu0 0.0
      %1399 = vmatpush2.msra.mxu0 %v961
      %1400 = vmatprep.subr.mxu0 0.0
      %1401 = vmatpush2.msra.mxu0 %v960
      %1402 = vmatprep.subr.mxu0 0.0
      %1403 = vmatpush2.msra.mxu0 %v959
      %1404 = vmatprep.subr.mxu0 0.0
      %1405 = vmatpush2.msra.mxu0 %v958
      %1406 = vmatprep.subr.mxu0 0.0
      %1407 = vmatpush2.msra.mxu0 %v957
      %1408 = vmatprep.subr.mxu0 0.0
      %1409 = vmatpush2.msra.mxu0 %v956
      %1410 = vmatprep.subr.mxu0 0.0
      %1411 = vmatpush2.msra.mxu0 %v955
      %1412 = vmatprep.mubr.f32.mxu0 %v752
      %1413 = vmatmul.mubr.f32.gmra.mxu0 %v751
      %v1414 = vpop.f32.mrf.mxu0
      %v1415 = vadd.f32 %v1310, %v1414
      %v1416 = vpop.f32.mrf.mxu0
      %1417 = vmatprep.mubr.f32.mxu0 %v768
      %1418 = vmatmul.mubr.f32.gmra.mxu0 %v767
      %v1419 = vpop.f32.mrf.mxu0
      %v1420 = vadd.f32 %v1315, %v1419
      %v1421 = vpop.f32.mrf.mxu0
      %1422 = vmatprep.mubr.f32.mxu0 %v784
      %1423 = vmatmul.mubr.f32.gmra.mxu0 %v783
      %v1424 = vpop.f32.mrf.mxu0
      %v1425 = vadd.f32 %v1320, %v1424
      %v1426 = vpop.f32.mrf.mxu0
      %1427 = vmatprep.mubr.f32.mxu0 %v800
      %1428 = vmatmul.mubr.f32.gmra.mxu0 %v799
      %v1429 = vpop.f32.mrf.mxu0
      %v1430 = vadd.f32 %v1325, %v1429
      %v1431 = vpop.f32.mrf.mxu0
      %1432 = vmatprep.mubr.f32.mxu0 %v816
      %1433 = vmatmul.mubr.f32.gmra.mxu0 %v815
      %v1434 = vpop.f32.mrf.mxu0
      %v1435 = vadd.f32 %v1330, %v1434
      %v1436 = vpop.f32.mrf.mxu0
      %1437 = vmatprep.mubr.f32.mxu0 %v832
      %1438 = vmatmul.mubr.f32.gmra.mxu0 %v831
      %v1439 = vpop.f32.mrf.mxu0
      %v1440 = vadd.f32 %v1335, %v1439
      %v1441 = vpop.f32.mrf.mxu0
      %1442 = vmatprep.mubr.f32.mxu0 %v848
      %1443 = vmatmul.mubr.f32.gmra.mxu0 %v847
      %v1444 = vpop.f32.mrf.mxu0
      %v1445 = vadd.f32 %v1340, %v1444
      %v1446 = vpop.f32.mrf.mxu0
      %1447 = vmatprep.mubr.f32.mxu0 %v864
      %1448 = vmatmul.mubr.f32.gmra.mxu0 %v863
      %v1449 = vpop.f32.mrf.mxu0
      %v1450 = vadd.f32 %v1345, %v1449
      %v1451 = vpop.f32.mrf.mxu0
      %1452 = vdwg.mxu0
      %1453 = vmatprep.subr.mxu0 0.0
      %1454 = vmatpush1.msra.mxu0 %v986
      %1455 = vmatprep.subr.mxu0 0.0
      %1456 = vmatpush1.msra.mxu0 %v985
      %1457 = vmatprep.subr.mxu0 0.0
      %1458 = vmatpush1.msra.mxu0 %v984
      %1459 = vmatprep.subr.mxu0 0.0
      %1460 = vmatpush1.msra.mxu0 %v983
      %1461 = vmatprep.subr.mxu0 0.0
      %1462 = vmatpush1.msra.mxu0 %v982
      %1463 = vmatprep.subr.mxu0 0.0
      %1464 = vmatpush1.msra.mxu0 %v981
      %1465 = vmatprep.subr.mxu0 0.0
      %1466 = vmatpush1.msra.mxu0 %v980
      %1467 = vmatprep.subr.mxu0 0.0
      %1468 = vmatpush1.msra.mxu0 %v979
      %1469 = vmatprep.subr.mxu0 0.0
      %1470 = vmatpush1.msra.mxu0 %v978
      %1471 = vmatprep.subr.mxu0 0.0
      %1472 = vmatpush1.msra.mxu0 %v977
      %1473 = vmatprep.subr.mxu0 0.0
      %1474 = vmatpush1.msra.mxu0 %v976
      %1475 = vmatprep.subr.mxu0 0.0
      %1476 = vmatpush1.msra.mxu0 %v975
      %1477 = vmatprep.subr.mxu0 0.0
      %1478 = vmatpush1.msra.mxu0 %v974
      %1479 = vmatprep.subr.mxu0 0.0
      %1480 = vmatpush1.msra.mxu0 %v973
      %1481 = vmatprep.subr.mxu0 0.0
      %1482 = vmatpush1.msra.mxu0 %v972
      %1483 = vmatprep.subr.mxu0 0.0
      %1484 = vmatpush1.msra.mxu0 %v971
      %1485 = vmatprep.subr.mxu0 0.0
      %1486 = vmatpush2.msra.mxu0 %v1002
      %1487 = vmatprep.subr.mxu0 0.0
      %1488 = vmatpush2.msra.mxu0 %v1001
      %1489 = vmatprep.subr.mxu0 0.0
      %1490 = vmatpush2.msra.mxu0 %v1000
      %1491 = vmatprep.subr.mxu0 0.0
      %1492 = vmatpush2.msra.mxu0 %v999
      %1493 = vmatprep.subr.mxu0 0.0
      %1494 = vmatpush2.msra.mxu0 %v998
      %1495 = vmatprep.subr.mxu0 0.0
      %1496 = vmatpush2.msra.mxu0 %v997
      %1497 = vmatprep.subr.mxu0 0.0
      %1498 = vmatpush2.msra.mxu0 %v996
      %1499 = vmatprep.subr.mxu0 0.0
      %1500 = vmatpush2.msra.mxu0 %v995
      %1501 = vmatprep.subr.mxu0 0.0
      %1502 = vmatpush2.msra.mxu0 %v994
      %1503 = vmatprep.subr.mxu0 0.0
      %1504 = vmatpush2.msra.mxu0 %v993
      %1505 = vmatprep.subr.mxu0 0.0
      %1506 = vmatpush2.msra.mxu0 %v992
      %1507 = vmatprep.subr.mxu0 0.0
      %1508 = vmatpush2.msra.mxu0 %v991
      %1509 = vmatprep.subr.mxu0 0.0
      %1510 = vmatpush2.msra.mxu0 %v990
      %1511 = vmatprep.subr.mxu0 0.0
      %1512 = vmatpush2.msra.mxu0 %v989
      %1513 = vmatprep.subr.mxu0 0.0
      %1514 = vmatpush2.msra.mxu0 %v988
      %1515 = vmatprep.subr.mxu0 0.0
      %1516 = vmatpush2.msra.mxu0 %v987
      %1517 = vmatprep.mubr.f32.mxu0 %v754
      %1518 = vmatmul.mubr.f32.gmra.mxu0 %v753
      %v1519 = vpop.f32.mrf.mxu0
      %v1520 = vadd.f32 %v1415, %v1519
      %v1521 = vpop.f32.mrf.mxu0
      %1522 = vmatprep.mubr.f32.mxu0 %v770
      %1523 = vmatmul.mubr.f32.gmra.mxu0 %v769
      %v1524 = vpop.f32.mrf.mxu0
      %v1525 = vadd.f32 %v1420, %v1524
      %v1526 = vpop.f32.mrf.mxu0
      %1527 = vmatprep.mubr.f32.mxu0 %v786
      %1528 = vmatmul.mubr.f32.gmra.mxu0 %v785
      %v1529 = vpop.f32.mrf.mxu0
      %v1530 = vadd.f32 %v1425, %v1529
      %v1531 = vpop.f32.mrf.mxu0
      %1532 = vmatprep.mubr.f32.mxu0 %v802
      %1533 = vmatmul.mubr.f32.gmra.mxu0 %v801
      %v1534 = vpop.f32.mrf.mxu0
      %v1535 = vadd.f32 %v1430, %v1534
      %v1536 = vpop.f32.mrf.mxu0
      %1537 = vmatprep.mubr.f32.mxu0 %v818
      %1538 = vmatmul.mubr.f32.gmra.mxu0 %v817
      %v1539 = vpop.f32.mrf.mxu0
      %v1540 = vadd.f32 %v1435, %v1539
      %v1541 = vpop.f32.mrf.mxu0
      %1542 = vmatprep.mubr.f32.mxu0 %v834
      %1543 = vmatmul.mubr.f32.gmra.mxu0 %v833
      %v1544 = vpop.f32.mrf.mxu0
      %v1545 = vadd.f32 %v1440, %v1544
      %v1546 = vpop.f32.mrf.mxu0
      %1547 = vmatprep.mubr.f32.mxu0 %v850
      %1548 = vmatmul.mubr.f32.gmra.mxu0 %v849
      %v1549 = vpop.f32.mrf.mxu0
      %v1550 = vadd.f32 %v1445, %v1549
      %v1551 = vpop.f32.mrf.mxu0
      %1552 = vmatprep.mubr.f32.mxu0 %v866
      %1553 = vmatmul.mubr.f32.gmra.mxu0 %v865
      %v1554 = vpop.f32.mrf.mxu0
      %v1555 = vadd.f32 %v1450, %v1554
      %v1556 = vpop.f32.mrf.mxu0
      %1557 = vdwg.mxu0
      %1558 = vmatprep.subr.mxu0 0.0
      %1559 = vmatpush1.msra.mxu0 %v1018
      %1560 = vmatprep.subr.mxu0 0.0
      %1561 = vmatpush1.msra.mxu0 %v1017
      %1562 = vmatprep.subr.mxu0 0.0
      %1563 = vmatpush1.msra.mxu0 %v1016
      %1564 = vmatprep.subr.mxu0 0.0
      %1565 = vmatpush1.msra.mxu0 %v1015
      %1566 = vmatprep.subr.mxu0 0.0
      %1567 = vmatpush1.msra.mxu0 %v1014
      %1568 = vmatprep.subr.mxu0 0.0
      %1569 = vmatpush1.msra.mxu0 %v1013
      %1570 = vmatprep.subr.mxu0 0.0
      %1571 = vmatpush1.msra.mxu0 %v1012
      %1572 = vmatprep.subr.mxu0 0.0
      %1573 = vmatpush1.msra.mxu0 %v1011
      %1574 = vmatprep.subr.mxu0 0.0
      %1575 = vmatpush1.msra.mxu0 %v1010
      %1576 = vmatprep.subr.mxu0 0.0
      %1577 = vmatpush1.msra.mxu0 %v1009
      %1578 = vmatprep.subr.mxu0 0.0
      %1579 = vmatpush1.msra.mxu0 %v1008
      %1580 = vmatprep.subr.mxu0 0.0
      %1581 = vmatpush1.msra.mxu0 %v1007
      %1582 = vmatprep.subr.mxu0 0.0
      %1583 = vmatpush1.msra.mxu0 %v1006
      %1584 = vmatprep.subr.mxu0 0.0
      %1585 = vmatpush1.msra.mxu0 %v1005
      %1586 = vmatprep.subr.mxu0 0.0
      %1587 = vmatpush1.msra.mxu0 %v1004
      %1588 = vmatprep.subr.mxu0 0.0
      %1589 = vmatpush1.msra.mxu0 %v1003
      %1590 = vmatprep.subr.mxu0 0.0
      %1591 = vmatpush2.msra.mxu0 %v1034
      %1592 = vmatprep.subr.mxu0 0.0
      %1593 = vmatpush2.msra.mxu0 %v1033
      %1594 = vmatprep.subr.mxu0 0.0
      %1595 = vmatpush2.msra.mxu0 %v1032
      %1596 = vmatprep.subr.mxu0 0.0
      %1597 = vmatpush2.msra.mxu0 %v1031
      %1598 = vmatprep.subr.mxu0 0.0
      %1599 = vmatpush2.msra.mxu0 %v1030
      %1600 = vmatprep.subr.mxu0 0.0
      %1601 = vmatpush2.msra.mxu0 %v1029
      %1602 = vmatprep.subr.mxu0 0.0
      %1603 = vmatpush2.msra.mxu0 %v1028
      %1604 = vmatprep.subr.mxu0 0.0
      %1605 = vmatpush2.msra.mxu0 %v1027
      %1606 = vmatprep.subr.mxu0 0.0
      %1607 = vmatpush2.msra.mxu0 %v1026
      %1608 = vmatprep.subr.mxu0 0.0
      %1609 = vmatpush2.msra.mxu0 %v1025
      %1610 = vmatprep.subr.mxu0 0.0
      %1611 = vmatpush2.msra.mxu0 %v1024
      %1612 = vmatprep.subr.mxu0 0.0
      %1613 = vmatpush2.msra.mxu0 %v1023
      %1614 = vmatprep.subr.mxu0 0.0
      %1615 = vmatpush2.msra.mxu0 %v1022
      %1616 = vmatprep.subr.mxu0 0.0
      %1617 = vmatpush2.msra.mxu0 %v1021
      %1618 = vmatprep.subr.mxu0 0.0
      %1619 = vmatpush2.msra.mxu0 %v1020
      %1620 = vmatprep.subr.mxu0 0.0
      %1621 = vmatpush2.msra.mxu0 %v1019
      %1622 = vmatprep.mubr.f32.mxu0 %v756
      %1623 = vmatmul.mubr.f32.gmra.mxu0 %v755
      %v1624 = vpop.f32.mrf.mxu0
      %v1625 = vadd.f32 %v1520, %v1624
      %v1626 = vpop.f32.mrf.mxu0
      %1627 = vmatprep.mubr.f32.mxu0 %v772
      %1628 = vmatmul.mubr.f32.gmra.mxu0 %v771
      %v1629 = vpop.f32.mrf.mxu0
      %v1630 = vadd.f32 %v1525, %v1629
      %v1631 = vpop.f32.mrf.mxu0
      %1632 = vmatprep.mubr.f32.mxu0 %v788
      %1633 = vmatmul.mubr.f32.gmra.mxu0 %v787
      %v1634 = vpop.f32.mrf.mxu0
      %v1635 = vadd.f32 %v1530, %v1634
      %v1636 = vpop.f32.mrf.mxu0
      %1637 = vmatprep.mubr.f32.mxu0 %v804
      %1638 = vmatmul.mubr.f32.gmra.mxu0 %v803
      %v1639 = vpop.f32.mrf.mxu0
      %v1640 = vadd.f32 %v1535, %v1639
      %v1641 = vpop.f32.mrf.mxu0
      %1642 = vmatprep.mubr.f32.mxu0 %v820
      %1643 = vmatmul.mubr.f32.gmra.mxu0 %v819
      %v1644 = vpop.f32.mrf.mxu0
      %v1645 = vadd.f32 %v1540, %v1644
      %v1646 = vpop.f32.mrf.mxu0
      %1647 = vmatprep.mubr.f32.mxu0 %v836
      %1648 = vmatmul.mubr.f32.gmra.mxu0 %v835
      %v1649 = vpop.f32.mrf.mxu0
      %v1650 = vadd.f32 %v1545, %v1649
      %v1651 = vpop.f32.mrf.mxu0
      %1652 = vmatprep.mubr.f32.mxu0 %v852
      %1653 = vmatmul.mubr.f32.gmra.mxu0 %v851
      %v1654 = vpop.f32.mrf.mxu0
      %v1655 = vadd.f32 %v1550, %v1654
      %v1656 = vpop.f32.mrf.mxu0
      %1657 = vmatprep.mubr.f32.mxu0 %v868
      %1658 = vmatmul.mubr.f32.gmra.mxu0 %v867
      %v1659 = vpop.f32.mrf.mxu0
      %v1660 = vadd.f32 %v1555, %v1659
      %v1661 = vpop.f32.mrf.mxu0
      %1662 = vdwg.mxu0
      %1663 = vmatprep.subr.mxu0 0.0
      %1664 = vmatpush1.msra.mxu0 %v1050
      %1665 = vmatprep.subr.mxu0 0.0
      %1666 = vmatpush1.msra.mxu0 %v1049
      %1667 = vmatprep.subr.mxu0 0.0
      %1668 = vmatpush1.msra.mxu0 %v1048
      %1669 = vmatprep.subr.mxu0 0.0
      %1670 = vmatpush1.msra.mxu0 %v1047
      %1671 = vmatprep.subr.mxu0 0.0
      %1672 = vmatpush1.msra.mxu0 %v1046
      %1673 = vmatprep.subr.mxu0 0.0
      %1674 = vmatpush1.msra.mxu0 %v1045
      %1675 = vmatprep.subr.mxu0 0.0
      %1676 = vmatpush1.msra.mxu0 %v1044
      %1677 = vmatprep.subr.mxu0 0.0
      %1678 = vmatpush1.msra.mxu0 %v1043
      %1679 = vmatprep.subr.mxu0 0.0
      %1680 = vmatpush1.msra.mxu0 %v1042
      %1681 = vmatprep.subr.mxu0 0.0
      %1682 = vmatpush1.msra.mxu0 %v1041
      %1683 = vmatprep.subr.mxu0 0.0
      %1684 = vmatpush1.msra.mxu0 %v1040
      %1685 = vmatprep.subr.mxu0 0.0
      %1686 = vmatpush1.msra.mxu0 %v1039
      %1687 = vmatprep.subr.mxu0 0.0
      %1688 = vmatpush1.msra.mxu0 %v1038
      %1689 = vmatprep.subr.mxu0 0.0
      %1690 = vmatpush1.msra.mxu0 %v1037
      %1691 = vmatprep.subr.mxu0 0.0
      %1692 = vmatpush1.msra.mxu0 %v1036
      %1693 = vmatprep.subr.mxu0 0.0
      %1694 = vmatpush1.msra.mxu0 %v1035
      %1695 = vmatprep.subr.mxu0 0.0
      %1696 = vmatpush2.msra.mxu0 %v1066
      %1697 = vmatprep.subr.mxu0 0.0
      %1698 = vmatpush2.msra.mxu0 %v1065
      %1699 = vmatprep.subr.mxu0 0.0
      %1700 = vmatpush2.msra.mxu0 %v1064
      %1701 = vmatprep.subr.mxu0 0.0
      %1702 = vmatpush2.msra.mxu0 %v1063
      %1703 = vmatprep.subr.mxu0 0.0
      %1704 = vmatpush2.msra.mxu0 %v1062
      %1705 = vmatprep.subr.mxu0 0.0
      %1706 = vmatpush2.msra.mxu0 %v1061
      %1707 = vmatprep.subr.mxu0 0.0
      %1708 = vmatpush2.msra.mxu0 %v1060
      %1709 = vmatprep.subr.mxu0 0.0
      %1710 = vmatpush2.msra.mxu0 %v1059
      %1711 = vmatprep.subr.mxu0 0.0
      %1712 = vmatpush2.msra.mxu0 %v1058
      %1713 = vmatprep.subr.mxu0 0.0
      %1714 = vmatpush2.msra.mxu0 %v1057
      %1715 = vmatprep.subr.mxu0 0.0
      %1716 = vmatpush2.msra.mxu0 %v1056
      %1717 = vmatprep.subr.mxu0 0.0
      %1718 = vmatpush2.msra.mxu0 %v1055
      %1719 = vmatprep.subr.mxu0 0.0
      %1720 = vmatpush2.msra.mxu0 %v1054
      %1721 = vmatprep.subr.mxu0 0.0
      %1722 = vmatpush2.msra.mxu0 %v1053
      %1723 = vmatprep.subr.mxu0 0.0
      %1724 = vmatpush2.msra.mxu0 %v1052
      %1725 = vmatprep.subr.mxu0 0.0
      %1726 = vmatpush2.msra.mxu0 %v1051
      %1727 = vmatprep.mubr.f32.mxu0 %v758
      %1728 = vmatmul.mubr.f32.gmra.mxu0 %v757
      %v1729 = vpop.f32.mrf.mxu0
      %v1730 = vadd.f32 %v1625, %v1729
      %v1731 = vpop.f32.mrf.mxu0
      %1732 = vmatprep.mubr.f32.mxu0 %v774
      %1733 = vmatmul.mubr.f32.gmra.mxu0 %v773
      %v1734 = vpop.f32.mrf.mxu0
      %v1735 = vadd.f32 %v1630, %v1734
      %v1736 = vpop.f32.mrf.mxu0
      %1737 = vmatprep.mubr.f32.mxu0 %v790
      %1738 = vmatmul.mubr.f32.gmra.mxu0 %v789
      %v1739 = vpop.f32.mrf.mxu0
      %v1740 = vadd.f32 %v1635, %v1739
      %v1741 = vpop.f32.mrf.mxu0
      %1742 = vmatprep.mubr.f32.mxu0 %v806
      %1743 = vmatmul.mubr.f32.gmra.mxu0 %v805
      %v1744 = vpop.f32.mrf.mxu0
      %v1745 = vadd.f32 %v1640, %v1744
      %v1746 = vpop.f32.mrf.mxu0
      %1747 = vmatprep.mubr.f32.mxu0 %v822
      %1748 = vmatmul.mubr.f32.gmra.mxu0 %v821
      %v1749 = vpop.f32.mrf.mxu0
      %v1750 = vadd.f32 %v1645, %v1749
      %v1751 = vpop.f32.mrf.mxu0
      %1752 = vmatprep.mubr.f32.mxu0 %v838
      %1753 = vmatmul.mubr.f32.gmra.mxu0 %v837
      %v1754 = vpop.f32.mrf.mxu0
      %v1755 = vadd.f32 %v1650, %v1754
      %v1756 = vpop.f32.mrf.mxu0
      %1757 = vmatprep.mubr.f32.mxu0 %v854
      %1758 = vmatmul.mubr.f32.gmra.mxu0 %v853
      %v1759 = vpop.f32.mrf.mxu0
      %v1760 = vadd.f32 %v1655, %v1759
      %v1761 = vpop.f32.mrf.mxu0
      %1762 = vmatprep.mubr.f32.mxu0 %v870
      %1763 = vmatmul.mubr.f32.gmra.mxu0 %v869
      %v1764 = vpop.f32.mrf.mxu0
      %v1765 = vadd.f32 %v1660, %v1764
      %v1766 = vpop.f32.mrf.mxu0
      %1767 = vdwg.mxu0
      %1768 = vmatprep.subr.mxu0 0.0
      %1769 = vmatpush1.msra.mxu0 %v1082
      %1770 = vmatprep.subr.mxu0 0.0
      %1771 = vmatpush1.msra.mxu0 %v1081
      %1772 = vmatprep.subr.mxu0 0.0
      %1773 = vmatpush1.msra.mxu0 %v1080
      %1774 = vmatprep.subr.mxu0 0.0
      %1775 = vmatpush1.msra.mxu0 %v1079
      %1776 = vmatprep.subr.mxu0 0.0
      %1777 = vmatpush1.msra.mxu0 %v1078
      %1778 = vmatprep.subr.mxu0 0.0
      %1779 = vmatpush1.msra.mxu0 %v1077
      %1780 = vmatprep.subr.mxu0 0.0
      %1781 = vmatpush1.msra.mxu0 %v1076
      %1782 = vmatprep.subr.mxu0 0.0
      %1783 = vmatpush1.msra.mxu0 %v1075
      %1784 = vmatprep.subr.mxu0 0.0
      %1785 = vmatpush1.msra.mxu0 %v1074
      %1786 = vmatprep.subr.mxu0 0.0
      %1787 = vmatpush1.msra.mxu0 %v1073
      %1788 = vmatprep.subr.mxu0 0.0
      %1789 = vmatpush1.msra.mxu0 %v1072
      %1790 = vmatprep.subr.mxu0 0.0
      %1791 = vmatpush1.msra.mxu0 %v1071
      %1792 = vmatprep.subr.mxu0 0.0
      %1793 = vmatpush1.msra.mxu0 %v1070
      %1794 = vmatprep.subr.mxu0 0.0
      %1795 = vmatpush1.msra.mxu0 %v1069
      %1796 = vmatprep.subr.mxu0 0.0
      %1797 = vmatpush1.msra.mxu0 %v1068
      %1798 = vmatprep.subr.mxu0 0.0
      %1799 = vmatpush1.msra.mxu0 %v1067
      %1800 = vmatprep.subr.mxu0 0.0
      %1801 = vmatpush2.msra.mxu0 %v1098
      %1802 = vmatprep.subr.mxu0 0.0
      %1803 = vmatpush2.msra.mxu0 %v1097
      %1804 = vmatprep.subr.mxu0 0.0
      %1805 = vmatpush2.msra.mxu0 %v1096
      %1806 = vmatprep.subr.mxu0 0.0
      %1807 = vmatpush2.msra.mxu0 %v1095
      %1808 = vmatprep.subr.mxu0 0.0
      %1809 = vmatpush2.msra.mxu0 %v1094
      %1810 = vmatprep.subr.mxu0 0.0
      %1811 = vmatpush2.msra.mxu0 %v1093
      %1812 = vmatprep.subr.mxu0 0.0
      %1813 = vmatpush2.msra.mxu0 %v1092
      %1814 = vmatprep.subr.mxu0 0.0
      %1815 = vmatpush2.msra.mxu0 %v1091
      %1816 = vmatprep.subr.mxu0 0.0
      %1817 = vmatpush2.msra.mxu0 %v1090
      %1818 = vmatprep.subr.mxu0 0.0
      %1819 = vmatpush2.msra.mxu0 %v1089
      %1820 = vmatprep.subr.mxu0 0.0
      %1821 = vmatpush2.msra.mxu0 %v1088
      %1822 = vmatprep.subr.mxu0 0.0
      %1823 = vmatpush2.msra.mxu0 %v1087
      %1824 = vmatprep.subr.mxu0 0.0
      %1825 = vmatpush2.msra.mxu0 %v1086
      %1826 = vmatprep.subr.mxu0 0.0
      %1827 = vmatpush2.msra.mxu0 %v1085
      %1828 = vmatprep.subr.mxu0 0.0
      %1829 = vmatpush2.msra.mxu0 %v1084
      %1830 = vmatprep.subr.mxu0 0.0
      %1831 = vmatpush2.msra.mxu0 %v1083
      %1832 = vmatprep.mubr.f32.mxu0 %v760
      %1833 = vmatmul.mubr.f32.gmra.mxu0 %v759
      %v1834 = vpop.f32.mrf.mxu0
      %v1835 = vadd.f32 %v1730, %v1834
      %v1836 = vpop.f32.mrf.mxu0
      %1837 = vmatprep.mubr.f32.mxu0 %v776
      %1838 = vmatmul.mubr.f32.gmra.mxu0 %v775
      %v1839 = vpop.f32.mrf.mxu0
      %v1840 = vadd.f32 %v1735, %v1839
      %v1841 = vpop.f32.mrf.mxu0
      %1842 = vmatprep.mubr.f32.mxu0 %v792
      %1843 = vmatmul.mubr.f32.gmra.mxu0 %v791
      %v1844 = vpop.f32.mrf.mxu0
      %v1845 = vadd.f32 %v1740, %v1844
      %v1846 = vpop.f32.mrf.mxu0
      %1847 = vmatprep.mubr.f32.mxu0 %v808
      %1848 = vmatmul.mubr.f32.gmra.mxu0 %v807
      %v1849 = vpop.f32.mrf.mxu0
      %v1850 = vadd.f32 %v1745, %v1849
      %v1851 = vpop.f32.mrf.mxu0
      %1852 = vmatprep.mubr.f32.mxu0 %v824
      %1853 = vmatmul.mubr.f32.gmra.mxu0 %v823
      %v1854 = vpop.f32.mrf.mxu0
      %v1855 = vadd.f32 %v1750, %v1854
      %v1856 = vpop.f32.mrf.mxu0
      %1857 = vmatprep.mubr.f32.mxu0 %v840
      %1858 = vmatmul.mubr.f32.gmra.mxu0 %v839
      %v1859 = vpop.f32.mrf.mxu0
      %v1860 = vadd.f32 %v1755, %v1859
      %v1861 = vpop.f32.mrf.mxu0
      %1862 = vmatprep.mubr.f32.mxu0 %v856
      %1863 = vmatmul.mubr.f32.gmra.mxu0 %v855
      %v1864 = vpop.f32.mrf.mxu0
      %v1865 = vadd.f32 %v1760, %v1864
      %v1866 = vpop.f32.mrf.mxu0
      %1867 = vmatprep.mubr.f32.mxu0 %v872
      %1868 = vmatmul.mubr.f32.gmra.mxu0 %v871
      %v1869 = vpop.f32.mrf.mxu0
      %v1870 = vadd.f32 %v1765, %v1869
      %v1871 = vpop.f32.mrf.mxu0
      %1872 = vdwg.mxu0
      %1873 = vmatprep.subr.mxu0 0.0
      %1874 = vmatpush1.msra.mxu0 %v1114
      %1875 = vmatprep.subr.mxu0 0.0
      %1876 = vmatpush1.msra.mxu0 %v1113
      %1877 = vmatprep.subr.mxu0 0.0
      %1878 = vmatpush1.msra.mxu0 %v1112
      %1879 = vmatprep.subr.mxu0 0.0
      %1880 = vmatpush1.msra.mxu0 %v1111
      %1881 = vmatprep.subr.mxu0 0.0
      %1882 = vmatpush1.msra.mxu0 %v1110
      %1883 = vmatprep.subr.mxu0 0.0
      %1884 = vmatpush1.msra.mxu0 %v1109
      %1885 = vmatprep.subr.mxu0 0.0
      %1886 = vmatpush1.msra.mxu0 %v1108
      %1887 = vmatprep.subr.mxu0 0.0
      %1888 = vmatpush1.msra.mxu0 %v1107
      %1889 = vmatprep.subr.mxu0 0.0
      %1890 = vmatpush1.msra.mxu0 %v1106
      %1891 = vmatprep.subr.mxu0 0.0
      %1892 = vmatpush1.msra.mxu0 %v1105
      %1893 = vmatprep.subr.mxu0 0.0
      %1894 = vmatpush1.msra.mxu0 %v1104
      %1895 = vmatprep.subr.mxu0 0.0
      %1896 = vmatpush1.msra.mxu0 %v1103
      %1897 = vmatprep.subr.mxu0 0.0
      %1898 = vmatpush1.msra.mxu0 %v1102
      %1899 = vmatprep.subr.mxu0 0.0
      %1900 = vmatpush1.msra.mxu0 %v1101
      %1901 = vmatprep.subr.mxu0 0.0
      %1902 = vmatpush1.msra.mxu0 %v1100
      %1903 = vmatprep.subr.mxu0 0.0
      %1904 = vmatpush1.msra.mxu0 %v1099
      %1905 = vmatprep.subr.mxu0 0.0
      %1906 = vmatpush2.msra.mxu0 %v1130
      %1907 = vmatprep.subr.mxu0 0.0
      %1908 = vmatpush2.msra.mxu0 %v1129
      %1909 = vmatprep.subr.mxu0 0.0
      %1910 = vmatpush2.msra.mxu0 %v1128
      %1911 = vmatprep.subr.mxu0 0.0
      %1912 = vmatpush2.msra.mxu0 %v1127
      %1913 = vmatprep.subr.mxu0 0.0
      %1914 = vmatpush2.msra.mxu0 %v1126
      %1915 = vmatprep.subr.mxu0 0.0
      %1916 = vmatpush2.msra.mxu0 %v1125
      %1917 = vmatprep.subr.mxu0 0.0
      %1918 = vmatpush2.msra.mxu0 %v1124
      %1919 = vmatprep.subr.mxu0 0.0
      %1920 = vmatpush2.msra.mxu0 %v1123
      %1921 = vmatprep.subr.mxu0 0.0
      %1922 = vmatpush2.msra.mxu0 %v1122
      %1923 = vmatprep.subr.mxu0 0.0
      %1924 = vmatpush2.msra.mxu0 %v1121
      %1925 = vmatprep.subr.mxu0 0.0
      %1926 = vmatpush2.msra.mxu0 %v1120
      %1927 = vmatprep.subr.mxu0 0.0
      %1928 = vmatpush2.msra.mxu0 %v1119
      %1929 = vmatprep.subr.mxu0 0.0
      %1930 = vmatpush2.msra.mxu0 %v1118
      %1931 = vmatprep.subr.mxu0 0.0
      %1932 = vmatpush2.msra.mxu0 %v1117
      %1933 = vmatprep.subr.mxu0 0.0
      %1934 = vmatpush2.msra.mxu0 %v1116
      %1935 = vmatprep.subr.mxu0 0.0
      %1936 = vmatpush2.msra.mxu0 %v1115
      %1937 = vmatprep.mubr.f32.mxu0 %v762
      %1938 = vmatmul.mubr.f32.gmra.mxu0 %v761
      %v1939 = vpop.f32.mrf.mxu0
      %v1940 = vadd.f32 %v1835, %v1939
      %v1941 = vpop.f32.mrf.mxu0
      %1942 = vmatprep.mubr.f32.mxu0 %v778
      %1943 = vmatmul.mubr.f32.gmra.mxu0 %v777
      %v1944 = vpop.f32.mrf.mxu0
      %v1945 = vadd.f32 %v1840, %v1944
      %v1946 = vpop.f32.mrf.mxu0
      %1947 = vmatprep.mubr.f32.mxu0 %v794
      %1948 = vmatmul.mubr.f32.gmra.mxu0 %v793
      %v1949 = vpop.f32.mrf.mxu0
      %v1950 = vadd.f32 %v1845, %v1949
      %v1951 = vpop.f32.mrf.mxu0
      %1952 = vmatprep.mubr.f32.mxu0 %v810
      %1953 = vmatmul.mubr.f32.gmra.mxu0 %v809
      %v1954 = vpop.f32.mrf.mxu0
      %v1955 = vadd.f32 %v1850, %v1954
      %v1956 = vpop.f32.mrf.mxu0
      %1957 = vmatprep.mubr.f32.mxu0 %v826
      %1958 = vmatmul.mubr.f32.gmra.mxu0 %v825
      %v1959 = vpop.f32.mrf.mxu0
      %v1960 = vadd.f32 %v1855, %v1959
      %v1961 = vpop.f32.mrf.mxu0
      %1962 = vmatprep.mubr.f32.mxu0 %v842
      %1963 = vmatmul.mubr.f32.gmra.mxu0 %v841
      %v1964 = vpop.f32.mrf.mxu0
      %v1965 = vadd.f32 %v1860, %v1964
      %v1966 = vpop.f32.mrf.mxu0
      %1967 = vmatprep.mubr.f32.mxu0 %v858
      %1968 = vmatmul.mubr.f32.gmra.mxu0 %v857
      %v1969 = vpop.f32.mrf.mxu0
      %v1970 = vadd.f32 %v1865, %v1969
      %v1971 = vpop.f32.mrf.mxu0
      %1972 = vmatprep.mubr.f32.mxu0 %v874
      %1973 = vmatmul.mubr.f32.gmra.mxu0 %v873
      %v1974 = vpop.f32.mrf.mxu0
      %v1975 = vadd.f32 %v1870, %v1974
      %v1976 = vpop.f32.mrf.mxu0
      %1977 = vdwg.mxu0
      %1978 = vst [vmem:[%s224] sm:$0xff] %v1940
      %1979 = vst [vmem:[%s224 + $0x8] sm:$0xff] %v1945
      %1980 = vst [vmem:[%s224 + $0x10] sm:$0xff] %v1950
      %1981 = vst [vmem:[%s224 + $0x18] sm:$0xff] %v1955
      %1982 = vst [vmem:[%s224 + $0x20] sm:$0xff] %v1960
      %1983 = vst [vmem:[%s224 + $0x28] sm:$0xff] %v1965
      %1984 = vst [vmem:[%s224 + $0x30] sm:$0xff] %v1970
      %1985 = vst [vmem:[%s224 + $0x38] sm:$0xff] %v1975
      %p1986 = scmp.lt.s32.totalorder %s16, 1
      %s1987 = scalar_select %p1986, %s16, 1
      %s1988 = smul.addr %s1987, 8
      %s1989 = smul.addr %s1988, 8
      %s1990 = scalar_lea.vmem %s5, %s1989
      // Predicated region
      $region41: #{block_forward.5} parent=39 // pred_check
        %p1991 = pneg %p144
      $region42: #{block_forward.5} parent=39 // pred_check_branch
        %1993 = sbr.rel (%p1991) target = $region44
      $region43: #{block_forward.5} parent=39 // pred_region
        _
      $region44: #{block_forward.5} parent=39 // pred_fallthru
        _
    $region40: #{block_forward.5} parent=5 // pred_fallthru
      _
    %p1994 = scmp.le.s32.totalorder 2, %s11
    // Predicated region
    $region45: #{block_forward.5} parent=5 // pred_check
      %p1995 = pneg %p1994
    $region46: #{block_forward.5} parent=5 // pred_check_branch
      %1997 = sbr.rel (%p1995) target = $region48
    $region47: #{block_forward.5} parent=5 // pred_region
      %s1998 = ssub.s32 %s11, 2
      // Predicated region
      $region49: #{block_forward.5} parent=47 // pred_check
        %p1999 = pneg %p150
      $region50: #{block_forward.5} parent=47 // pred_check_branch
        %2001 = sbr.rel (%p1999) target = $region52
      $region51: #{block_forward.5} parent=47 // pred_region
        %p2002 = scmp.lt.s32.totalorder %s17, 1
        %s2003 = scalar_select %p2002, %s17, 1
        %s2004 = smul.addr %s2003, 8
        %s2005 = smul.addr %s2004, 8
        %s2006 = scalar_lea.vmem %s5, %s2005
      $region52: #{block_forward.5} parent=47 // pred_fallthru
        _
    $region48: #{block_forward.5} parent=5 // pred_fallthru
      _
  $region6: #{block_forward.5} parent=0 // loop_footer
    %s15 = sadd.s32 1, %s11
  $region7: #{block_forward.5} parent=0 // loop_footer_branch
    %10 = sbr.rel target = $region3
  $region8: #{block_forward.5} parent=0 // loop_exit
    _

</llo_original>
